<compile_context>
chip_gen: v7x
topology: tpu7x:2x2x1
jax: 0.10.0
libtpu: 0.0.40
codegen_flags: <defaults>
</compile_context>

<pallas_src>
import functools

import jax
import jax.numpy as jnp
from jax.experimental import pallas as pl
from jax.experimental.pallas import tpu as pltpu

_EPS = 1e-5
_KSIZE = 4
_STRIDE = 2
_LAYER_CHANNELS = [(3, 32), (32, 64), (64, 128), (128, 256)]
# Single-pass LayerNorm requires one whole sample's layer to be VMEM-resident;
# generous ceiling (double-buffered blocks + f32 temporaries), far below the
# 16 MiB default scoped VMEM of the smallest generation.
_MAX_VMEM_WORKING_SET = 12 * 1024 * 1024


def _silu(x):
    # x * sigmoid(x), written via tanh so the transcendental maps to the EUP
    # slot and there is no f32 divide on the VALU.  Used identically in the
    # kernel and in the pure-JAX reference.
    return x * (0.5 * jnp.tanh(0.5 * x) + 0.5)


# --------------------------------------------------------------------------
# Fused (conv-as-matmul -> bias -> SiLU -> LayerNorm) kernel: one grid step
# processes one batch element.
# --------------------------------------------------------------------------
def _conv_silu_ln_kernel(p_ref, w_ref, b_ref, o_ref, *, inv_d):
    """p_ref: (K, P) im2col patches of ONE sample (K = C_in_tot*k*k, P = OH*OW)
    w_ref: (C_out, K) reshaped conv weight; b_ref: (C_out, 1) bias column.
    o_ref: (C_out, P) = LayerNorm(SiLU(W @ patches + b)) over all C_out*P."""
    p = p_ref[...]
    w = w_ref[...]
    # Convolution as a single MXU matmul (f32 accumulation).
    acc = jnp.dot(w, p, preferred_element_type=jnp.float32)      # (C_out, P)
    acc = acc + b_ref[...]                                       # lane broadcast
    a = _silu(acc)

    # LayerNorm statistics over every element of the (C_out, P) block.
    # Sublane axis first (plain VALU vreg adds across C_out), lane axis last
    # (one cross-lane XLU reduce).  E[a^2] - mean^2 needs only one data pass.
    s1 = jnp.sum(a, axis=-2, keepdims=True)                      # (1, P)
    s2 = jnp.sum(a * a, axis=-2, keepdims=True)                  # (1, P)
    total = jnp.sum(s1, axis=-1, keepdims=True)                  # (1, 1)
    total_sq = jnp.sum(s2, axis=-1, keepdims=True)               # (1, 1)
    mean = total * jnp.float32(inv_d)
    var = total_sq * jnp.float32(inv_d) - mean * mean
    inv = jax.lax.rsqrt(var + jnp.float32(_EPS))
    o_ref[...] = ((a - mean) * inv).astype(o_ref.dtype)


# --------------------------------------------------------------------------
# Wrapper-side layout plumbing (tiny XLA ops), then one pallas_call per layer.
# --------------------------------------------------------------------------
def _append_coords(x):
    """CoordConv2d: append normalized (x, y) coordinate channels in [-1, 1]."""
    n, _, h, w = x.shape
    ys = jnp.linspace(-1.0, 1.0, h, dtype=x.dtype)
    xs = jnp.linspace(-1.0, 1.0, w, dtype=x.dtype)
    yy = jnp.broadcast_to(ys[:, None], (h, w))
    xx = jnp.broadcast_to(xs[None, :], (h, w))
    coords = jnp.broadcast_to(jnp.stack([xx, yy])[None], (n, 2, h, w))
    return jnp.concatenate([x, coords.astype(x.dtype)], axis=1)


def _im2col(x, ksize=_KSIZE, stride=_STRIDE):
    """(N, C, H, W) -> (N, C*k*k, OH*OW) patches of a VALID strided conv.

    Feature ordering is channel-major, then (ky, kx) row-major, matching
    w.reshape(C_out, C*k*k)."""
    n, c, h, w = x.shape
    oh = (h - ksize) // stride + 1
    ow = (w - ksize) // stride + 1
    taps = []
    for ky in range(ksize):
        for kx in range(ksize):
            taps.append(x[:, :,
                          ky:ky + stride * (oh - 1) + 1:stride,
                          kx:kx + stride * (ow - 1) + 1:stride])
    patches = jnp.stack(taps, axis=2)              # (N, C, k*k, OH, OW)
    return patches.reshape(n, c * ksize * ksize, oh * ow), oh, ow


def coordconv_silu_layernorm(x, w, b):
    """One WMEncoder layer: LayerNorm(SiLU(CoordConv2d(x))) with the conv
    contraction, bias, SiLU and LayerNorm fused into a single Pallas kernel."""
    # TODO(synk): generate the coord channels (broadcasted_iota) and the im2col
    # patch gather inside the kernel via strided ref loads to drop the remaining
    # small wrapper-side XLA fusions (one dispatch per layer).
    n, c, h, wd = x.shape
    cout, cin_tot, kh, kw = w.shape
    assert cin_tot == c + 2 and kh == _KSIZE and kw == _KSIZE, (w.shape, x.shape)

    xin = _append_coords(x)
    patches, oh, ow = _im2col(xin)                 # (N, K, P)
    _, k, p = patches.shape
    d = cout * p                                   # LN normalizes over C_out*OH*OW
    itemsize = jnp.dtype(x.dtype).itemsize

    # Single-pass LN keeps one whole sample resident in VMEM: double-buffered
    # in/out blocks + weight + ~4 block-sized f32 temporaries must fit.
    vmem_est = (2 * (k * p + cout * k + cout + cout * p) + 4 * cout * p) * itemsize
    assert vmem_est <= _MAX_VMEM_WORKING_SET, (vmem_est, x.shape)

    kernel = functools.partial(_conv_silu_ln_kernel, inv_d=1.0 / d)
    cost = pl.CostEstimate(
        flops=n * (2 * cout * k * p + 10 * cout * p),
        transcendentals=n * cout * p,
        bytes_accessed=(n * k * p + cout * k + cout + n * cout * p) * itemsize,
    )

    out = pl.pallas_call(
        kernel,
        out_shape=jax.ShapeDtypeStruct((n, cout, p), x.dtype),
        grid=(n,),
        in_specs=[
            # Per-sample patch slab; last two dims equal the full array dims, so
            # the (8,128) divisibility rule does not apply (Mosaic masks padding).
            pl.BlockSpec((None, k, p), lambda i: (i, 0, 0)),
            pl.BlockSpec((cout, k), lambda i: (0, 0)),     # weight, grid-invariant
            pl.BlockSpec((cout, 1), lambda i: (0, 0)),     # bias column
        ],
        out_specs=pl.BlockSpec((None, cout, p), lambda i: (i, 0, 0)),
        compiler_params=pltpu.CompilerParams(
            # Batch elements are independent: double-buffer the DMAs and, on
            # v7x, shard the grid steps across both TensorCores.
            dimension_semantics=("parallel",),
        ),
        cost_estimate=cost,
    )(patches, w.reshape(cout, k), b.reshape(cout, 1))

    return out.reshape(n, cout, oh, ow)


# --------------------------------------------------------------------------
# Model
# --------------------------------------------------------------------------
def init_wm_encoder_params(key):
    params = []
    for cin, cout in _LAYER_CHANNELS:
        key, kw_, kb_ = jax.random.split(key, 3)
        fan_in = (cin + 2) * _KSIZE * _KSIZE
        scale = 1.0 / float(fan_in) ** 0.5
        w = jax.random.normal(kw_, (cout, cin + 2, _KSIZE, _KSIZE), jnp.float32) * scale
        b = jax.random.normal(kb_, (cout,), jnp.float32) * 0.01
        params.append((w, b))
    return params


def wm_encoder_forward(x, params):
    """WMEncoder.forward: (CoordConv2d -> SiLU -> LayerNorm) x 4, each layer as
    one fused Pallas kernel."""
    h = x
    for w, b in params:
        h = coordconv_silu_layernorm(h, w, b)
    return h


def wm_encoder_reference(x, params):
    """Pure-JAX reference using XLA's direct convolution (HIGHEST precision)."""
    h = x
    for w, b in params:
        xin = _append_coords(h)
        conv = jax.lax.conv_general_dilated(
            xin, w,
            window_strides=(_STRIDE, _STRIDE),
            padding="VALID",
            dimension_numbers=("NCHW", "OIHW", "NCHW"),
            precision=jax.lax.Precision.HIGHEST,
        ) + b[None, :, None, None]
        a = _silu(conv)
        af = a.reshape(a.shape[0], -1)
        mean = jnp.mean(af, axis=-1, keepdims=True)
        var = jnp.mean((af - mean) ** 2, axis=-1, keepdims=True)
        h = ((af - mean) * jax.lax.rsqrt(var + _EPS)).reshape(a.shape)
    return h


if __name__ == "__main__":
    key = jax.random.PRNGKey(0)
    kx, kp = jax.random.split(key)
    # Canonical world-model encoder input: NCHW, 3 channels, 64x64 pixels.
    x = jax.random.normal(kx, (2, 3, 64, 64), dtype=jnp.float32)
    params = init_wm_encoder_params(kp)

    forward = jax.jit(wm_encoder_forward)
    y = jax.block_until_ready(forward(x, params))
    assert y.shape == (2, 256, 2, 2), y.shape

    y_ref = jax.block_until_ready(wm_encoder_reference(x, params))
    max_err = float(jnp.max(jnp.abs(y - y_ref)))
    # The reference conv is an XLA direct convolution, the kernel an im2col MXU
    # matmul: different algorithms / accumulation orders, so compare at a
    # slightly relaxed (but still bug-catching) tolerance.
    assert jnp.allclose(y, y_ref, atol=2e-3, rtol=2e-3), max_err

    print("KERNEL_OK")
</pallas_src>

<mosaic_0001>
module attributes {stable_mosaic.version = 11 : i64} {
  func.func @_conv_silu_ln_kernel(%arg0: i32, %arg1: memref<1x80x961xf32, #tpu.memory_space<vmem>>, %arg2: memref<32x80xf32, #tpu.memory_space<vmem>>, %arg3: memref<32x1xf32, #tpu.memory_space<vmem>>, %arg4: memref<1x32x961xf32, #tpu.memory_space<vmem>>) attributes {dimension_semantics = [#tpu.dimension_semantics<parallel>], iteration_bounds = array<i64: 2>, scalar_prefetch = 0 : i64, scratch_operands = 0 : i64, tpu.core_type = #tpu.core_type<tc>, window_params = [{transform_indices = @transform_0, window_bounds = array<i64: 1, 80, 961>}, {pipeline_mode = #tpu.pipeline_mode<synchronous>, transform_indices = @transform_1, window_bounds = array<i64: 32, 80>}, {pipeline_mode = #tpu.pipeline_mode<synchronous>, transform_indices = @transform_2, window_bounds = array<i64: 32, 1>}, {transform_indices = @transform_3, window_bounds = array<i64: 1, 32, 961>}]} {
    %c0 = arith.constant 0 : index
    %c0_0 = arith.constant 0 : index
    %c0_1 = arith.constant 0 : index
    %0 = vector.load %arg1[%c0, %c0_0, %c0_1] : memref<1x80x961xf32, #tpu.memory_space<vmem>>, vector<1x80x961xf32>
    %1 = vector.shape_cast %0 : vector<1x80x961xf32> to vector<80x961xf32>
    %c0_2 = arith.constant 0 : index
    %c0_3 = arith.constant 0 : index
    %2 = vector.load %arg2[%c0_2, %c0_3] : memref<32x80xf32, #tpu.memory_space<vmem>>, vector<32x80xf32>
    %cst = arith.constant dense<0.000000e+00> : vector<32x961xf32>
    %3 = tpu.matmul %2, %1, %cst {dimension_numbers = #tpu.dot_dimension_numbers<[1], [0], [0], [1], [0, 0, 1, 1], [], []>} : vector<32x80xf32>, vector<80x961xf32>, vector<32x961xf32> -> vector<32x961xf32>
    %c0_4 = arith.constant 0 : index
    %c0_5 = arith.constant 0 : index
    %4 = vector.load %arg3[%c0_4, %c0_5] : memref<32x1xf32, #tpu.memory_space<vmem>>, vector<32x1xf32>
    %5 = vector.broadcast %4 : vector<32x1xf32> to vector<32x961xf32>
    %6 = arith.addf %3, %5 : vector<32x961xf32>
    %cst_6 = arith.constant 5.000000e-01 : f32
    %7 = vector.broadcast %cst_6 : f32 to vector<32x961xf32>
    %8 = arith.mulf %7, %6 : vector<32x961xf32>
    %9 = math.tanh %8 : vector<32x961xf32>
    %cst_7 = arith.constant 5.000000e-01 : f32
    %10 = vector.broadcast %cst_7 : f32 to vector<32x961xf32>
    %11 = arith.mulf %10, %9 : vector<32x961xf32>
    %cst_8 = arith.constant 5.000000e-01 : f32
    %12 = vector.broadcast %cst_8 : f32 to vector<32x961xf32>
    %13 = arith.addf %11, %12 : vector<32x961xf32>
    %14 = arith.mulf %6, %13 : vector<32x961xf32>
    %cst_9 = arith.constant dense<0.000000e+00> : vector<961xf32>
    %15 = vector.multi_reduction <add>, %14, %cst_9 [0] : vector<32x961xf32> to vector<961xf32>
    %16 = vector.shape_cast %15 : vector<961xf32> to vector<1x961xf32>
    %17 = arith.mulf %14, %14 : vector<32x961xf32>
    %cst_10 = arith.constant dense<0.000000e+00> : vector<961xf32>
    %18 = vector.multi_reduction <add>, %17, %cst_10 [0] : vector<32x961xf32> to vector<961xf32>
    %19 = vector.shape_cast %18 : vector<961xf32> to vector<1x961xf32>
    %cst_11 = arith.constant dense<0.000000e+00> : vector<1xf32>
    %20 = vector.multi_reduction <add>, %16, %cst_11 [1] : vector<1x961xf32> to vector<1xf32>
    %21 = vector.shape_cast %20 : vector<1xf32> to vector<1x1xf32>
    %cst_12 = arith.constant dense<0.000000e+00> : vector<1xf32>
    %22 = vector.multi_reduction <add>, %19, %cst_12 [1] : vector<1x961xf32> to vector<1xf32>
    %23 = vector.shape_cast %22 : vector<1xf32> to vector<1x1xf32>
    %cst_13 = arith.constant 3.25182118E-5 : f32
    %24 = vector.broadcast %cst_13 : f32 to vector<1x1xf32>
    %25 = arith.mulf %21, %24 : vector<1x1xf32>
    %cst_14 = arith.constant 3.25182118E-5 : f32
    %26 = vector.broadcast %cst_14 : f32 to vector<1x1xf32>
    %27 = arith.mulf %23, %26 : vector<1x1xf32>
    %28 = arith.mulf %25, %25 : vector<1x1xf32>
    %29 = arith.subf %27, %28 : vector<1x1xf32>
    %cst_15 = arith.constant 9.99999974E-6 : f32
    %30 = vector.broadcast %cst_15 : f32 to vector<1x1xf32>
    %31 = arith.addf %29, %30 : vector<1x1xf32>
    %32 = math.rsqrt %31 : vector<1x1xf32>
    %33 = vector.broadcast %25 : vector<1x1xf32> to vector<32x961xf32>
    %34 = arith.subf %14, %33 : vector<32x961xf32>
    %35 = vector.broadcast %32 : vector<1x1xf32> to vector<32x961xf32>
    %36 = arith.mulf %34, %35 : vector<32x961xf32>
    %c0_16 = arith.constant 0 : index
    %c0_17 = arith.constant 0 : index
    %c0_18 = arith.constant 0 : index
    %37 = vector.load %arg4[%c0_16, %c0_17, %c0_18] : memref<1x32x961xf32, #tpu.memory_space<vmem>>, vector<1x32x961xf32>
    %38 = vector.shape_cast %37 : vector<1x32x961xf32> to vector<32x961xf32>
    %39 = vector.shape_cast %36 : vector<32x961xf32> to vector<1x32x961xf32>
    tpu.vector_store %arg4[%c0_16, %c0_17, %c0_18], %39 {strides = array<i32>} : memref<1x32x961xf32, #tpu.memory_space<vmem>>, vector<1x32x961xf32>,
    return
  }
  func.func @transform_0(%arg0: i32) -> (i32, i32, i32) {
    %c0_i32 = arith.constant 0 : i32
    %c0_i32_0 = arith.constant 0 : i32
    %c0_i32_1 = arith.constant 0 : i32
    return %arg0, %c0_i32, %c0_i32_0 : i32, i32, i32
  }
  func.func @transform_1(%arg0: i32) -> (i32, i32) {
    %c0_i32 = arith.constant 0 : i32
    %c0_i32_0 = arith.constant 0 : i32
    %c0_i32_1 = arith.constant 0 : i32
    return %c0_i32, %c0_i32_0 : i32, i32
  }
  func.func @transform_2(%arg0: i32) -> (i32, i32) {
    %c0_i32 = arith.constant 0 : i32
    %c0_i32_0 = arith.constant 0 : i32
    %c0_i32_1 = arith.constant 0 : i32
    return %c0_i32, %c0_i32_0 : i32, i32
  }
  func.func @transform_3(%arg0: i32) -> (i32, i32, i32) {
    %c0_i32 = arith.constant 0 : i32
    %c0_i32_0 = arith.constant 0 : i32
    %c0_i32_1 = arith.constant 0 : i32
    return %arg0, %c0_i32, %c0_i32_0 : i32, i32, i32
  }
}

module attributes {stable_mosaic.version = 11 : i64} {
  func.func @_conv_silu_ln_kernel(%arg0: i32, %arg1: memref<1x544x196xf32, #tpu.memory_space<vmem>>, %arg2: memref<64x544xf32, #tpu.memory_space<vmem>>, %arg3: memref<64x1xf32, #tpu.memory_space<vmem>>, %arg4: memref<1x64x196xf32, #tpu.memory_space<vmem>>) attributes {dimension_semantics = [#tpu.dimension_semantics<parallel>], iteration_bounds = array<i64: 2>, scalar_prefetch = 0 : i64, scratch_operands = 0 : i64, tpu.core_type = #tpu.core_type<tc>, window_params = [{transform_indices = @transform_0, window_bounds = array<i64: 1, 544, 196>}, {pipeline_mode = #tpu.pipeline_mode<synchronous>, transform_indices = @transform_1, window_bounds = array<i64: 64, 544>}, {pipeline_mode = #tpu.pipeline_mode<synchronous>, transform_indices = @transform_2, window_bounds = array<i64: 64, 1>}, {transform_indices = @transform_3, window_bounds = array<i64: 1, 64, 196>}]} {
    %c0 = arith.constant 0 : index
    %c0_0 = arith.constant 0 : index
    %c0_1 = arith.constant 0 : index
    %0 = vector.load %arg1[%c0, %c0_0, %c0_1] : memref<1x544x196xf32, #tpu.memory_space<vmem>>, vector<1x544x196xf32>
    %1 = vector.shape_cast %0 : vector<1x544x196xf32> to vector<544x196xf32>
    %c0_2 = arith.constant 0 : index
    %c0_3 = arith.constant 0 : index
    %2 = vector.load %arg2[%c0_2, %c0_3] : memref<64x544xf32, #tpu.memory_space<vmem>>, vector<64x544xf32>
    %cst = arith.constant dense<0.000000e+00> : vector<64x196xf32>
    %3 = tpu.matmul %2, %1, %cst {dimension_numbers = #tpu.dot_dimension_numbers<[1], [0], [0], [1], [0, 0, 1, 1], [], []>} : vector<64x544xf32>, vector<544x196xf32>, vector<64x196xf32> -> vector<64x196xf32>
    %c0_4 = arith.constant 0 : index
    %c0_5 = arith.constant 0 : index
    %4 = vector.load %arg3[%c0_4, %c0_5] : memref<64x1xf32, #tpu.memory_space<vmem>>, vector<64x1xf32>
    %5 = vector.broadcast %4 : vector<64x1xf32> to vector<64x196xf32>
    %6 = arith.addf %3, %5 : vector<64x196xf32>
    %cst_6 = arith.constant 5.000000e-01 : f32
    %7 = vector.broadcast %cst_6 : f32 to vector<64x196xf32>
    %8 = arith.mulf %7, %6 : vector<64x196xf32>
    %9 = math.tanh %8 : vector<64x196xf32>
    %cst_7 = arith.constant 5.000000e-01 : f32
    %10 = vector.broadcast %cst_7 : f32 to vector<64x196xf32>
    %11 = arith.mulf %10, %9 : vector<64x196xf32>
    %cst_8 = arith.constant 5.000000e-01 : f32
    %12 = vector.broadcast %cst_8 : f32 to vector<64x196xf32>
    %13 = arith.addf %11, %12 : vector<64x196xf32>
    %14 = arith.mulf %6, %13 : vector<64x196xf32>
    %cst_9 = arith.constant dense<0.000000e+00> : vector<196xf32>
    %15 = vector.multi_reduction <add>, %14, %cst_9 [0] : vector<64x196xf32> to vector<196xf32>
    %16 = vector.shape_cast %15 : vector<196xf32> to vector<1x196xf32>
    %17 = arith.mulf %14, %14 : vector<64x196xf32>
    %cst_10 = arith.constant dense<0.000000e+00> : vector<196xf32>
    %18 = vector.multi_reduction <add>, %17, %cst_10 [0] : vector<64x196xf32> to vector<196xf32>
    %19 = vector.shape_cast %18 : vector<196xf32> to vector<1x196xf32>
    %cst_11 = arith.constant dense<0.000000e+00> : vector<1xf32>
    %20 = vector.multi_reduction <add>, %16, %cst_11 [1] : vector<1x196xf32> to vector<1xf32>
    %21 = vector.shape_cast %20 : vector<1xf32> to vector<1x1xf32>
    %cst_12 = arith.constant dense<0.000000e+00> : vector<1xf32>
    %22 = vector.multi_reduction <add>, %19, %cst_12 [1] : vector<1x196xf32> to vector<1xf32>
    %23 = vector.shape_cast %22 : vector<1xf32> to vector<1x1xf32>
    %cst_13 = arith.constant 7.97193861E-5 : f32
    %24 = vector.broadcast %cst_13 : f32 to vector<1x1xf32>
    %25 = arith.mulf %21, %24 : vector<1x1xf32>
    %cst_14 = arith.constant 7.97193861E-5 : f32
    %26 = vector.broadcast %cst_14 : f32 to vector<1x1xf32>
    %27 = arith.mulf %23, %26 : vector<1x1xf32>
    %28 = arith.mulf %25, %25 : vector<1x1xf32>
    %29 = arith.subf %27, %28 : vector<1x1xf32>
    %cst_15 = arith.constant 9.99999974E-6 : f32
    %30 = vector.broadcast %cst_15 : f32 to vector<1x1xf32>
    %31 = arith.addf %29, %30 : vector<1x1xf32>
    %32 = math.rsqrt %31 : vector<1x1xf32>
    %33 = vector.broadcast %25 : vector<1x1xf32> to vector<64x196xf32>
    %34 = arith.subf %14, %33 : vector<64x196xf32>
    %35 = vector.broadcast %32 : vector<1x1xf32> to vector<64x196xf32>
    %36 = arith.mulf %34, %35 : vector<64x196xf32>
    %c0_16 = arith.constant 0 : index
    %c0_17 = arith.constant 0 : index
    %c0_18 = arith.constant 0 : index
    %37 = vector.load %arg4[%c0_16, %c0_17, %c0_18] : memref<1x64x196xf32, #tpu.memory_space<vmem>>, vector<1x64x196xf32>
    %38 = vector.shape_cast %37 : vector<1x64x196xf32> to vector<64x196xf32>
    %39 = vector.shape_cast %36 : vector<64x196xf32> to vector<1x64x196xf32>
    tpu.vector_store %arg4[%c0_16, %c0_17, %c0_18], %39 {strides = array<i32>} : memref<1x64x196xf32, #tpu.memory_space<vmem>>, vector<1x64x196xf32>,
    return
  }
  func.func @transform_0(%arg0: i32) -> (i32, i32, i32) {
    %c0_i32 = arith.constant 0 : i32
    %c0_i32_0 = arith.constant 0 : i32
    %c0_i32_1 = arith.constant 0 : i32
    return %arg0, %c0_i32, %c0_i32_0 : i32, i32, i32
  }
  func.func @transform_1(%arg0: i32) -> (i32, i32) {
    %c0_i32 = arith.constant 0 : i32
    %c0_i32_0 = arith.constant 0 : i32
    %c0_i32_1 = arith.constant 0 : i32
    return %c0_i32, %c0_i32_0 : i32, i32
  }
  func.func @transform_2(%arg0: i32) -> (i32, i32) {
    %c0_i32 = arith.constant 0 : i32
    %c0_i32_0 = arith.constant 0 : i32
    %c0_i32_1 = arith.constant 0 : i32
    return %c0_i32, %c0_i32_0 : i32, i32
  }
  func.func @transform_3(%arg0: i32) -> (i32, i32, i32) {
    %c0_i32 = arith.constant 0 : i32
    %c0_i32_0 = arith.constant 0 : i32
    %c0_i32_1 = arith.constant 0 : i32
    return %arg0, %c0_i32, %c0_i32_0 : i32, i32, i32
  }
}

module attributes {stable_mosaic.version = 11 : i64} {
  func.func @_conv_silu_ln_kernel(%arg0: i32, %arg1: memref<1x1056x36xf32, #tpu.memory_space<vmem>>, %arg2: memref<128x1056xf32, #tpu.memory_space<vmem>>, %arg3: memref<128x1xf32, #tpu.memory_space<vmem>>, %arg4: memref<1x128x36xf32, #tpu.memory_space<vmem>>) attributes {dimension_semantics = [#tpu.dimension_semantics<parallel>], iteration_bounds = array<i64: 2>, scalar_prefetch = 0 : i64, scratch_operands = 0 : i64, tpu.core_type = #tpu.core_type<tc>, window_params = [{transform_indices = @transform_0, window_bounds = array<i64: 1, 1056, 36>}, {pipeline_mode = #tpu.pipeline_mode<synchronous>, transform_indices = @transform_1, window_bounds = array<i64: 128, 1056>}, {pipeline_mode = #tpu.pipeline_mode<synchronous>, transform_indices = @transform_2, window_bounds = array<i64: 128, 1>}, {transform_indices = @transform_3, window_bounds = array<i64: 1, 128, 36>}]} {
    %c0 = arith.constant 0 : index
    %c0_0 = arith.constant 0 : index
    %c0_1 = arith.constant 0 : index
    %0 = vector.load %arg1[%c0, %c0_0, %c0_1] : memref<1x1056x36xf32, #tpu.memory_space<vmem>>, vector<1x1056x36xf32>
    %1 = vector.shape_cast %0 : vector<1x1056x36xf32> to vector<1056x36xf32>
    %c0_2 = arith.constant 0 : index
    %c0_3 = arith.constant 0 : index
    %2 = vector.load %arg2[%c0_2, %c0_3] : memref<128x1056xf32, #tpu.memory_space<vmem>>, vector<128x1056xf32>
    %cst = arith.constant dense<0.000000e+00> : vector<128x36xf32>
    %3 = tpu.matmul %2, %1, %cst {dimension_numbers = #tpu.dot_dimension_numbers<[1], [0], [0], [1], [0, 0, 1, 1], [], []>} : vector<128x1056xf32>, vector<1056x36xf32>, vector<128x36xf32> -> vector<128x36xf32>
    %c0_4 = arith.constant 0 : index
    %c0_5 = arith.constant 0 : index
    %4 = vector.load %arg3[%c0_4, %c0_5] : memref<128x1xf32, #tpu.memory_space<vmem>>, vector<128x1xf32>
    %5 = vector.broadcast %4 : vector<128x1xf32> to vector<128x36xf32>
    %6 = arith.addf %3, %5 : vector<128x36xf32>
    %cst_6 = arith.constant 5.000000e-01 : f32
    %7 = vector.broadcast %cst_6 : f32 to vector<128x36xf32>
    %8 = arith.mulf %7, %6 : vector<128x36xf32>
    %9 = math.tanh %8 : vector<128x36xf32>
    %cst_7 = arith.constant 5.000000e-01 : f32
    %10 = vector.broadcast %cst_7 : f32 to vector<128x36xf32>
    %11 = arith.mulf %10, %9 : vector<128x36xf32>
    %cst_8 = arith.constant 5.000000e-01 : f32
    %12 = vector.broadcast %cst_8 : f32 to vector<128x36xf32>
    %13 = arith.addf %11, %12 : vector<128x36xf32>
    %14 = arith.mulf %6, %13 : vector<128x36xf32>
    %cst_9 = arith.constant dense<0.000000e+00> : vector<36xf32>
    %15 = vector.multi_reduction <add>, %14, %cst_9 [0] : vector<128x36xf32> to vector<36xf32>
    %16 = vector.shape_cast %15 : vector<36xf32> to vector<1x36xf32>
    %17 = arith.mulf %14, %14 : vector<128x36xf32>
    %cst_10 = arith.constant dense<0.000000e+00> : vector<36xf32>
    %18 = vector.multi_reduction <add>, %17, %cst_10 [0] : vector<128x36xf32> to vector<36xf32>
    %19 = vector.shape_cast %18 : vector<36xf32> to vector<1x36xf32>
    %cst_11 = arith.constant dense<0.000000e+00> : vector<1xf32>
    %20 = vector.multi_reduction <add>, %16, %cst_11 [1] : vector<1x36xf32> to vector<1xf32>
    %21 = vector.shape_cast %20 : vector<1xf32> to vector<1x1xf32>
    %cst_12 = arith.constant dense<0.000000e+00> : vector<1xf32>
    %22 = vector.multi_reduction <add>, %19, %cst_12 [1] : vector<1x36xf32> to vector<1xf32>
    %23 = vector.shape_cast %22 : vector<1xf32> to vector<1x1xf32>
    %cst_13 = arith.constant 2.17013891E-4 : f32
    %24 = vector.broadcast %cst_13 : f32 to vector<1x1xf32>
    %25 = arith.mulf %21, %24 : vector<1x1xf32>
    %cst_14 = arith.constant 2.17013891E-4 : f32
    %26 = vector.broadcast %cst_14 : f32 to vector<1x1xf32>
    %27 = arith.mulf %23, %26 : vector<1x1xf32>
    %28 = arith.mulf %25, %25 : vector<1x1xf32>
    %29 = arith.subf %27, %28 : vector<1x1xf32>
    %cst_15 = arith.constant 9.99999974E-6 : f32
    %30 = vector.broadcast %cst_15 : f32 to vector<1x1xf32>
    %31 = arith.addf %29, %30 : vector<1x1xf32>
    %32 = math.rsqrt %31 : vector<1x1xf32>
    %33 = vector.broadcast %25 : vector<1x1xf32> to vector<128x36xf32>
    %34 = arith.subf %14, %33 : vector<128x36xf32>
    %35 = vector.broadcast %32 : vector<1x1xf32> to vector<128x36xf32>
    %36 = arith.mulf %34, %35 : vector<128x36xf32>
    %c0_16 = arith.constant 0 : index
    %c0_17 = arith.constant 0 : index
    %c0_18 = arith.constant 0 : index
    %37 = vector.load %arg4[%c0_16, %c0_17, %c0_18] : memref<1x128x36xf32, #tpu.memory_space<vmem>>, vector<1x128x36xf32>
    %38 = vector.shape_cast %37 : vector<1x128x36xf32> to vector<128x36xf32>
    %39 = vector.shape_cast %36 : vector<128x36xf32> to vector<1x128x36xf32>
    tpu.vector_store %arg4[%c0_16, %c0_17, %c0_18], %39 {strides = array<i32>} : memref<1x128x36xf32, #tpu.memory_space<vmem>>, vector<1x128x36xf32>,
    return
  }
  func.func @transform_0(%arg0: i32) -> (i32, i32, i32) {
    %c0_i32 = arith.constant 0 : i32
    %c0_i32_0 = arith.constant 0 : i32
    %c0_i32_1 = arith.constant 0 : i32
    return %arg0, %c0_i32, %c0_i32_0 : i32, i32, i32
  }
  func.func @transform_1(%arg0: i32) -> (i32, i32) {
    %c0_i32 = arith.constant 0 : i32
    %c0_i32_0 = arith.constant 0 : i32
    %c0_i32_1 = arith.constant 0 : i32
    return %c0_i32, %c0_i32_0 : i32, i32
  }
  func.func @transform_2(%arg0: i32) -> (i32, i32) {
    %c0_i32 = arith.constant 0 : i32
    %c0_i32_0 = arith.constant 0 : i32
    %c0_i32_1 = arith.constant 0 : i32
    return %c0_i32, %c0_i32_0 : i32, i32
  }
  func.func @transform_3(%arg0: i32) -> (i32, i32, i32) {
    %c0_i32 = arith.constant 0 : i32
    %c0_i32_0 = arith.constant 0 : i32
    %c0_i32_1 = arith.constant 0 : i32
    return %arg0, %c0_i32, %c0_i32_0 : i32, i32, i32
  }
}

module attributes {stable_mosaic.version = 11 : i64} {
  func.func @_conv_silu_ln_kernel(%arg0: i32, %arg1: memref<1x2080x4xf32, #tpu.memory_space<vmem>>, %arg2: memref<256x2080xf32, #tpu.memory_space<vmem>>, %arg3: memref<256x1xf32, #tpu.memory_space<vmem>>, %arg4: memref<1x256x4xf32, #tpu.memory_space<vmem>>) attributes {dimension_semantics = [#tpu.dimension_semantics<parallel>], iteration_bounds = array<i64: 2>, scalar_prefetch = 0 : i64, scratch_operands = 0 : i64, tpu.core_type = #tpu.core_type<tc>, window_params = [{transform_indices = @transform_0, window_bounds = array<i64: 1, 2080, 4>}, {pipeline_mode = #tpu.pipeline_mode<synchronous>, transform_indices = @transform_1, window_bounds = array<i64: 256, 2080>}, {pipeline_mode = #tpu.pipeline_mode<synchronous>, transform_indices = @transform_2, window_bounds = array<i64: 256, 1>}, {transform_indices = @transform_3, window_bounds = array<i64: 1, 256, 4>}]} {
    %c0 = arith.constant 0 : index
    %c0_0 = arith.constant 0 : index
    %c0_1 = arith.constant 0 : index
    %0 = vector.load %arg1[%c0, %c0_0, %c0_1] : memref<1x2080x4xf32, #tpu.memory_space<vmem>>, vector<1x2080x4xf32>
    %1 = vector.shape_cast %0 : vector<1x2080x4xf32> to vector<2080x4xf32>
    %c0_2 = arith.constant 0 : index
    %c0_3 = arith.constant 0 : index
    %2 = vector.load %arg2[%c0_2, %c0_3] : memref<256x2080xf32, #tpu.memory_space<vmem>>, vector<256x2080xf32>
    %cst = arith.constant dense<0.000000e+00> : vector<256x4xf32>
    %3 = tpu.matmul %2, %1, %cst {dimension_numbers = #tpu.dot_dimension_numbers<[1], [0], [0], [1], [0, 0, 1, 1], [], []>} : vector<256x2080xf32>, vector<2080x4xf32>, vector<256x4xf32> -> vector<256x4xf32>
    %c0_4 = arith.constant 0 : index
    %c0_5 = arith.constant 0 : index
    %4 = vector.load %arg3[%c0_4, %c0_5] : memref<256x1xf32, #tpu.memory_space<vmem>>, vector<256x1xf32>
    %5 = vector.broadcast %4 : vector<256x1xf32> to vector<256x4xf32>
    %6 = arith.addf %3, %5 : vector<256x4xf32>
    %cst_6 = arith.constant 5.000000e-01 : f32
    %7 = vector.broadcast %cst_6 : f32 to vector<256x4xf32>
    %8 = arith.mulf %7, %6 : vector<256x4xf32>
    %9 = math.tanh %8 : vector<256x4xf32>
    %cst_7 = arith.constant 5.000000e-01 : f32
    %10 = vector.broadcast %cst_7 : f32 to vector<256x4xf32>
    %11 = arith.mulf %10, %9 : vector<256x4xf32>
    %cst_8 = arith.constant 5.000000e-01 : f32
    %12 = vector.broadcast %cst_8 : f32 to vector<256x4xf32>
    %13 = arith.addf %11, %12 : vector<256x4xf32>
    %14 = arith.mulf %6, %13 : vector<256x4xf32>
    %cst_9 = arith.constant dense<0.000000e+00> : vector<4xf32>
    %15 = vector.multi_reduction <add>, %14, %cst_9 [0] : vector<256x4xf32> to vector<4xf32>
    %16 = vector.shape_cast %15 : vector<4xf32> to vector<1x4xf32>
    %17 = arith.mulf %14, %14 : vector<256x4xf32>
    %cst_10 = arith.constant dense<0.000000e+00> : vector<4xf32>
    %18 = vector.multi_reduction <add>, %17, %cst_10 [0] : vector<256x4xf32> to vector<4xf32>
    %19 = vector.shape_cast %18 : vector<4xf32> to vector<1x4xf32>
    %cst_11 = arith.constant dense<0.000000e+00> : vector<1xf32>
    %20 = vector.multi_reduction <add>, %16, %cst_11 [1] : vector<1x4xf32> to vector<1xf32>
    %21 = vector.shape_cast %20 : vector<1xf32> to vector<1x1xf32>
    %cst_12 = arith.constant dense<0.000000e+00> : vector<1xf32>
    %22 = vector.multi_reduction <add>, %19, %cst_12 [1] : vector<1x4xf32> to vector<1xf32>
    %23 = vector.shape_cast %22 : vector<1xf32> to vector<1x1xf32>
    %cst_13 = arith.constant 9.765625E-4 : f32
    %24 = vector.broadcast %cst_13 : f32 to vector<1x1xf32>
    %25 = arith.mulf %21, %24 : vector<1x1xf32>
    %cst_14 = arith.constant 9.765625E-4 : f32
    %26 = vector.broadcast %cst_14 : f32 to vector<1x1xf32>
    %27 = arith.mulf %23, %26 : vector<1x1xf32>
    %28 = arith.mulf %25, %25 : vector<1x1xf32>
    %29 = arith.subf %27, %28 : vector<1x1xf32>
    %cst_15 = arith.constant 9.99999974E-6 : f32
    %30 = vector.broadcast %cst_15 : f32 to vector<1x1xf32>
    %31 = arith.addf %29, %30 : vector<1x1xf32>
    %32 = math.rsqrt %31 : vector<1x1xf32>
    %33 = vector.broadcast %25 : vector<1x1xf32> to vector<256x4xf32>
    %34 = arith.subf %14, %33 : vector<256x4xf32>
    %35 = vector.broadcast %32 : vector<1x1xf32> to vector<256x4xf32>
    %36 = arith.mulf %34, %35 : vector<256x4xf32>
    %c0_16 = arith.constant 0 : index
    %c0_17 = arith.constant 0 : index
    %c0_18 = arith.constant 0 : index
    %37 = vector.load %arg4[%c0_16, %c0_17, %c0_18] : memref<1x256x4xf32, #tpu.memory_space<vmem>>, vector<1x256x4xf32>
    %38 = vector.shape_cast %37 : vector<1x256x4xf32> to vector<256x4xf32>
    %39 = vector.shape_cast %36 : vector<256x4xf32> to vector<1x256x4xf32>
    tpu.vector_store %arg4[%c0_16, %c0_17, %c0_18], %39 {strides = array<i32>} : memref<1x256x4xf32, #tpu.memory_space<vmem>>, vector<1x256x4xf32>,
    return
  }
  func.func @transform_0(%arg0: i32) -> (i32, i32, i32) {
    %c0_i32 = arith.constant 0 : i32
    %c0_i32_0 = arith.constant 0 : i32
    %c0_i32_1 = arith.constant 0 : i32
    return %arg0, %c0_i32, %c0_i32_0 : i32, i32, i32
  }
  func.func @transform_1(%arg0: i32) -> (i32, i32) {
    %c0_i32 = arith.constant 0 : i32
    %c0_i32_0 = arith.constant 0 : i32
    %c0_i32_1 = arith.constant 0 : i32
    return %c0_i32, %c0_i32_0 : i32, i32
  }
  func.func @transform_2(%arg0: i32) -> (i32, i32) {
    %c0_i32 = arith.constant 0 : i32
    %c0_i32_0 = arith.constant 0 : i32
    %c0_i32_1 = arith.constant 0 : i32
    return %c0_i32, %c0_i32_0 : i32, i32
  }
  func.func @transform_3(%arg0: i32) -> (i32, i32, i32) {
    %c0_i32 = arith.constant 0 : i32
    %c0_i32_0 = arith.constant 0 : i32
    %c0_i32_1 = arith.constant 0 : i32
    return %arg0, %c0_i32, %c0_i32_0 : i32, i32, i32
  }
}

</mosaic_0001>

<llo_original>
// kernel: wm_encoder_forward.4
$region0: #{wm_encoder_forward.4}
  #allocation0 [shape = 'u32[]', space=smem, size = 0x4, offset = 0x4, fixed_abs, tag = 'smem constant byte address 0x4 - core index']
  #allocation1 [shape = 'u32[144,128]{1,0:T(1,128)}', space=vmem, size = 0x12000, scoped, tag = 'internal scratch']
  %s0 = inlined_call_operand.vmem [shape: f32[2,80,961], index: 0, kind: input, shape index: {}]
  %s1 = inlined_call_operand.vmem [shape: f32[32,80], index: 1, kind: input, shape index: {}]
  %s2 = inlined_call_operand.vmem [shape: f32[32,1], index: 2, kind: input, shape index: {}]
  %s3 = inlined_call_operand.vmem [shape: f32[2,32,961], index: 3, kind: output, shape index: {}]
  %s4 = sld [smem:[#allocation0]]
  $region45: #{wm_encoder_forward.4} parent=0
    _
  %s6 = ssub.s32 1, %s4
  %s7 = scalar_select 0, %s6, %s4
  loop: start=0, step=1, limit=4
  $region2: #{wm_encoder_forward.4} parent=0 // loop_pre_header
    _
  $region3: #{wm_encoder_forward.4} parent=0 // loop_header
    %s9 = sphi 0, %s13
    %p10 = scmp.ge.s32.totalorder %s9, 4
    %s19 = sphi 0, %s21
    %s22 = sphi 0, %s19
    %s23 = sphi 0, %s22
    %s39 = sphi 0, %s23
    %s43 = sphi 0, %s43
    %s45 = sphi 0, %s43
    %s46 = sphi 0, %s45
    %s60 = sphi 0, %s46
    %s64 = sphi 0, %s64
    %s66 = sphi 0, %s64
    %s67 = sphi 0, %s66
    %s81 = sphi 0, %s67
    %s87 = sphi 0, %s89
    %s90 = sphi 0, %s87
    %s91 = sphi 0, %s90
    %s107 = sphi 0, %s91
  $region4: #{wm_encoder_forward.4} parent=0 // loop_header_branch
    %12 = sbr.rel (%p10) target = $region8
  $region5: #{wm_encoder_forward.4} parent=0 // loop_body
    %s14 = ssub.s32 %s9, 1
    %s15 = ssub.s32 %s9, 2
    %s16 = sadd.s32 %s9, 1
    %s17 = ssub.s32 %s9, %s16
    %p18 = scmp.eq.s32.totalorder %s17, 0
    %s20 = sadd.s32 %s19, 1
    %s21 = scalar_select %p18, %s19, %s20
    %p24 = pneg %p18
    %p25 = scmp.eq.s32.totalorder %s9, 1
    %p26 = por %p24, %p25
    %p27 = scmp.ne.s32.totalorder %s19, %s22
    %p28 = scmp.eq.s32.totalorder %s9, 0
    %p29 = por %p27, %p28
    %p30 = scmp.ne.s32.totalorder %s19, %s22
    %p31 = scmp.eq.s32.totalorder %s14, 1
    %p32 = por %p30, %p31
    %p33 = scmp.ne.s32.totalorder %s22, %s23
    %p34 = scmp.eq.s32.totalorder %s14, 0
    %p35 = por %p33, %p34
    %p36 = scmp.ne.s32.totalorder %s22, %s23
    %p37 = scmp.eq.s32.totalorder %s15, 1
    %p38 = por %p36, %p37
    %p40 = scmp.ne.s32.totalorder %s23, %s39
    %p41 = scmp.eq.s32.totalorder %s15, 0
    %p42 = por %p40, %p41
    %s44 = sadd.s32 %s43, 1
    %p47 = scmp.eq.s32.totalorder %s9, 1
    %p48 = scmp.ne.s32.totalorder %s43, %s45
    %p49 = scmp.eq.s32.totalorder %s9, 0
    %p50 = por %p48, %p49
    %p51 = scmp.ne.s32.totalorder %s43, %s45
    %p52 = scmp.eq.s32.totalorder %s14, 1
    %p53 = por %p51, %p52
    %p54 = scmp.ne.s32.totalorder %s45, %s46
    %p55 = scmp.eq.s32.totalorder %s14, 0
    %p56 = por %p54, %p55
    %p57 = scmp.ne.s32.totalorder %s45, %s46
    %p58 = scmp.eq.s32.totalorder %s15, 1
    %p59 = por %p57, %p58
    %p61 = scmp.ne.s32.totalorder %s46, %s60
    %p62 = scmp.eq.s32.totalorder %s15, 0
    %p63 = por %p61, %p62
    %s65 = sadd.s32 %s64, 1
    %p68 = scmp.eq.s32.totalorder %s9, 1
    %p69 = scmp.ne.s32.totalorder %s64, %s66
    %p70 = scmp.eq.s32.totalorder %s9, 0
    %p71 = por %p69, %p70
    %p72 = scmp.ne.s32.totalorder %s64, %s66
    %p73 = scmp.eq.s32.totalorder %s14, 1
    %p74 = por %p72, %p73
    %p75 = scmp.ne.s32.totalorder %s66, %s67
    %p76 = scmp.eq.s32.totalorder %s14, 0
    %p77 = por %p75, %p76
    %p78 = scmp.ne.s32.totalorder %s66, %s67
    %p79 = scmp.eq.s32.totalorder %s15, 1
    %p80 = por %p78, %p79
    %p82 = scmp.ne.s32.totalorder %s67, %s81
    %p83 = scmp.eq.s32.totalorder %s15, 0
    %p84 = por %p82, %p83
    %s85 = ssub.s32 %s9, %s16
    %p86 = scmp.eq.s32.totalorder %s85, 0
    %s88 = sadd.s32 %s87, 1
    %s89 = scalar_select %p86, %s87, %s88
    %p92 = pneg %p86
    %p93 = scmp.eq.s32.totalorder %s9, 1
    %p94 = por %p92, %p93
    %p95 = scmp.ne.s32.totalorder %s87, %s90
    %p96 = scmp.eq.s32.totalorder %s9, 0
    %p97 = por %p95, %p96
    %p98 = scmp.ne.s32.totalorder %s87, %s90
    %p99 = scmp.eq.s32.totalorder %s14, 1
    %p100 = por %p98, %p99
    %p101 = scmp.ne.s32.totalorder %s90, %s91
    %p102 = scmp.eq.s32.totalorder %s14, 0
    %p103 = por %p101, %p102
    %p104 = scmp.ne.s32.totalorder %s90, %s91
    %p105 = scmp.eq.s32.totalorder %s15, 1
    %p106 = por %p104, %p105
    %p108 = scmp.ne.s32.totalorder %s91, %s107
    %p109 = scmp.eq.s32.totalorder %s15, 0
    %p110 = por %p108, %p109
    %p111 = scmp.le.s32.totalorder 1, %s9
    %p112 = scmp.lt.s32.totalorder %s9, 3
    %p113 = pnand %p111, %p112
    %p114 = pneg %p113
    // Predicated region
    $region9: #{wm_encoder_forward.4} parent=5 // pred_check
      _
    $region10: #{wm_encoder_forward.4} parent=5 // pred_check_branch
      %116 = sbr.rel (%p113) target = $region12
    $region11: #{wm_encoder_forward.4} parent=5 // pred_region
      %s117 = ssub.s32 %s9, 1
      // Predicated region
      $region13: #{wm_encoder_forward.4} parent=11 // pred_check
        %p118 = pneg %p56
      $region14: #{wm_encoder_forward.4} parent=11 // pred_check_branch
        %120 = sbr.rel (%p118) target = $region16
      $region15: #{wm_encoder_forward.4} parent=11 // pred_region
        _
      $region16: #{wm_encoder_forward.4} parent=11 // pred_fallthru
        _
      // Predicated region
      $region17: #{wm_encoder_forward.4} parent=11 // pred_check
        %p121 = pneg %p77
      $region18: #{wm_encoder_forward.4} parent=11 // pred_check_branch
        %123 = sbr.rel (%p121) target = $region20
      $region19: #{wm_encoder_forward.4} parent=11 // pred_region
        _
      $region20: #{wm_encoder_forward.4} parent=11 // pred_fallthru
        _
    $region12: #{wm_encoder_forward.4} parent=5 // pred_fallthru
      _
    %p124 = scmp.lt.s32.totalorder %s9, 2
    // Predicated region
    $region21: #{wm_encoder_forward.4} parent=5 // pred_check
      %p125 = pneg %p124
    $region22: #{wm_encoder_forward.4} parent=5 // pred_check_branch
      %127 = sbr.rel (%p125) target = $region24
    $region23: #{wm_encoder_forward.4} parent=5 // pred_region
      // Predicated region
      $region25: #{wm_encoder_forward.4} parent=23 // pred_check
        %p128 = pneg %p29
      $region26: #{wm_encoder_forward.4} parent=23 // pred_check_branch
        %130 = sbr.rel (%p128) target = $region28
      $region27: #{wm_encoder_forward.4} parent=23 // pred_region
        %p131 = scmp.lt.s32.totalorder %s9, 1
        %s132 = scalar_select %p131, %s9, 1
        %s133 = smul.addr %s132, 80
        %s134 = smul.addr %s133, 8
        %s135 = scalar_lea.vmem %s0, %s134
      $region28: #{wm_encoder_forward.4} parent=23 // pred_fallthru
        _
    $region24: #{wm_encoder_forward.4} parent=5 // pred_fallthru
      _
    %p136 = scmp.le.s32.totalorder 1, %s9
    %p137 = scmp.lt.s32.totalorder %s9, 3
    %p138 = pnand %p136, %p137
    %p139 = pneg %p138
    // Predicated region
    $region29: #{wm_encoder_forward.4} parent=5 // pred_check
      _
    $region30: #{wm_encoder_forward.4} parent=5 // pred_check_branch
      %141 = sbr.rel (%p138) target = $region32
    $region31: #{wm_encoder_forward.4} parent=5 // pred_region
      %s142 = ssub.s32 %s9, 1
      %p143 = scmp.lt.s32.totalorder %s14, 1
      %s144 = scalar_select %p143, %s14, 1
      %s145 = smul.addr %s144, 80
      %s146 = smul.addr %s145, 8
      %s147 = scalar_lea.vmem %s0, %s146
      %p148 = pneg %p35
      %p149 = pneg %p32
      %p150 = pneg %p56
      %p151 = pneg %p53
      %p152 = pneg %p77
      %p153 = pneg %p74
      %p154 = pneg %p103
      %p155 = pneg %p100
      %p156 = scmp.lt.s32.totalorder %s14, 1
      %s157 = scalar_select %p156, %s14, 1
      %s158 = smul.addr %s157, 32
      %s159 = smul.addr %s158, 8
      %s160 = scalar_lea.vmem %s3, %s159
      %p161 = scmp.lt.s32.totalorder %s14, 1
      %s162 = scalar_select %p161, %s14, 1
      %s163 = smul.addr %s162, 80
      %s164 = smul.addr %s163, 8
      %s165 = scalar_lea.vmem %s0, %s164
      %p166 = scmp.lt.s32.totalorder %s14, 1
      %s167 = scalar_select %p166, %s14, 1
      %s168 = smul.addr %s167, 32
      %s169 = smul.addr %s168, 8
      %s170 = scalar_lea.vmem %s3, %s169
      %v171 = vld [vmem:[%s165] sm:$0xff]
      %v172 = vld [vmem:[%s165 + $0x8] sm:$0xff]
      %v173 = vld [vmem:[%s165 + $0x10] sm:$0xff]
      %v174 = vld [vmem:[%s165 + $0x18] sm:$0xff]
      %v175 = vld [vmem:[%s165 + $0x20] sm:$0xff]
      %v176 = vld [vmem:[%s165 + $0x28] sm:$0xff]
      %v177 = vld [vmem:[%s165 + $0x30] sm:$0xff]
      %v178 = vld [vmem:[%s165 + $0x38] sm:$0xff]
      %v179 = vld [vmem:[%s165 + $0x40] sm:$0xff]
      %v180 = vld [vmem:[%s165 + $0x48] sm:$0xff]
      %v181 = vld [vmem:[%s165 + $0x50] sm:$0xff]
      %v182 = vld [vmem:[%s165 + $0x58] sm:$0xff]
      %v183 = vld [vmem:[%s165 + $0x60] sm:$0xff]
      %v184 = vld [vmem:[%s165 + $0x68] sm:$0xff]
      %v185 = vld [vmem:[%s165 + $0x70] sm:$0xff]
      %v186 = vld [vmem:[%s165 + $0x78] sm:$0xff]
      %v187 = vld [vmem:[%s165 + $0x80] sm:$0xff]
      %v188 = vld [vmem:[%s165 + $0x88] sm:$0xff]
      %v189 = vld [vmem:[%s165 + $0x90] sm:$0xff]
      %v190 = vld [vmem:[%s165 + $0x98] sm:$0xff]
      %v191 = vld [vmem:[%s165 + $0xa0] sm:$0xff]
      %v192 = vld [vmem:[%s165 + $0xa8] sm:$0xff]
      %v193 = vld [vmem:[%s165 + $0xb0] sm:$0xff]
      %v194 = vld [vmem:[%s165 + $0xb8] sm:$0xff]
      %v195 = vld [vmem:[%s165 + $0xc0] sm:$0xff]
      %v196 = vld [vmem:[%s165 + $0xc8] sm:$0xff]
      %v197 = vld [vmem:[%s165 + $0xd0] sm:$0xff]
      %v198 = vld [vmem:[%s165 + $0xd8] sm:$0xff]
      %v199 = vld [vmem:[%s165 + $0xe0] sm:$0xff]
      %v200 = vld [vmem:[%s165 + $0xe8] sm:$0xff]
      %v201 = vld [vmem:[%s165 + $0xf0] sm:$0xff]
      %v202 = vld [vmem:[%s165 + $0xf8] sm:$0xff]
      %v203 = vld [vmem:[%s165 + $0x100] sm:$0xff]
      %v204 = vld [vmem:[%s165 + $0x108] sm:$0xff]
      %v205 = vld [vmem:[%s165 + $0x110] sm:$0xff]
      %v206 = vld [vmem:[%s165 + $0x118] sm:$0xff]
      %v207 = vld [vmem:[%s165 + $0x120] sm:$0xff]
      %v208 = vld [vmem:[%s165 + $0x128] sm:$0xff]
      %v209 = vld [vmem:[%s165 + $0x130] sm:$0xff]
      %v210 = vld [vmem:[%s165 + $0x138] sm:$0xff]
      %v211 = vld [vmem:[%s165 + $0x140] sm:$0xff]
      %v212 = vld [vmem:[%s165 + $0x148] sm:$0xff]
      %v213 = vld [vmem:[%s165 + $0x150] sm:$0xff]
      %v214 = vld [vmem:[%s165 + $0x158] sm:$0xff]
      %v215 = vld [vmem:[%s165 + $0x160] sm:$0xff]
      %v216 = vld [vmem:[%s165 + $0x168] sm:$0xff]
      %v217 = vld [vmem:[%s165 + $0x170] sm:$0xff]
      %v218 = vld [vmem:[%s165 + $0x178] sm:$0xff]
      %v219 = vld [vmem:[%s165 + $0x180] sm:$0xff]
      %v220 = vld [vmem:[%s165 + $0x188] sm:$0xff]
      %v221 = vld [vmem:[%s165 + $0x190] sm:$0xff]
      %v222 = vld [vmem:[%s165 + $0x198] sm:$0xff]
      %v223 = vld [vmem:[%s165 + $0x1a0] sm:$0xff]
      %v224 = vld [vmem:[%s165 + $0x1a8] sm:$0xff]
      %v225 = vld [vmem:[%s165 + $0x1b0] sm:$0xff]
      %v226 = vld [vmem:[%s165 + $0x1b8] sm:$0xff]
      %v227 = vld [vmem:[%s165 + $0x1c0] sm:$0xff]
      %v228 = vld [vmem:[%s165 + $0x1c8] sm:$0xff]
      %v229 = vld [vmem:[%s165 + $0x1d0] sm:$0xff]
      %v230 = vld [vmem:[%s165 + $0x1d8] sm:$0xff]
      %v231 = vld [vmem:[%s165 + $0x1e0] sm:$0xff]
      %v232 = vld [vmem:[%s165 + $0x1e8] sm:$0xff]
      %v233 = vld [vmem:[%s165 + $0x1f0] sm:$0xff]
      %v234 = vld [vmem:[%s165 + $0x1f8] sm:$0xff]
      %v235 = vld [vmem:[%s165 + $0x200] sm:$0xff]
      %v236 = vld [vmem:[%s165 + $0x208] sm:$0xff]
      %v237 = vld [vmem:[%s165 + $0x210] sm:$0xff]
      %v238 = vld [vmem:[%s165 + $0x218] sm:$0xff]
      %v239 = vld [vmem:[%s165 + $0x220] sm:$0xff]
      %v240 = vld [vmem:[%s165 + $0x228] sm:$0xff]
      %v241 = vld [vmem:[%s165 + $0x230] sm:$0xff]
      %v242 = vld [vmem:[%s165 + $0x238] sm:$0xff]
      %v243 = vld [vmem:[%s165 + $0x240] sm:$0xff]
      %v244 = vld [vmem:[%s165 + $0x248] sm:$0xff]
      %v245 = vld [vmem:[%s165 + $0x250] sm:$0xff]
      %v246 = vld [vmem:[%s165 + $0x258] sm:$0xff]
      %v247 = vld [vmem:[%s165 + $0x260] sm:$0xff]
      %v248 = vld [vmem:[%s165 + $0x268] sm:$0xff]
      %v249 = vld [vmem:[%s165 + $0x270] sm:$0xff]
      %v250 = vld [vmem:[%s165 + $0x278] sm:$0xff]
      %v251 = vld [vmem:[%s1] sm:$0xff]
      %v252 = vld [vmem:[%s1 + $0x8] sm:$0xff]
      %v253 = vld [vmem:[%s1 + $0x10] sm:$0xff]
      %v254 = vld [vmem:[%s1 + $0x18] sm:$0xff]
      %v255 = vld [vmem:[%s2] sm:$0xff]
      %v256 = vld [vmem:[%s2 + $0x8] sm:$0xff]
      %v257 = vld [vmem:[%s2 + $0x10] sm:$0xff]
      %v258 = vld [vmem:[%s2 + $0x18] sm:$0xff]
      %260 = vset.pattern.permute.xlu0 0
      %261 = vperm.xlu0 %260, %v255
      %v262 = vpop.permute.xlu0 %261
      %265 = vset.pattern.permute.xlu0 0
      %266 = vperm.xlu0 %265, %v256
      %v267 = vpop.permute.xlu0 %266
      %270 = vset.pattern.permute.xlu0 0
      %271 = vperm.xlu0 %270, %v257
      %v272 = vpop.permute.xlu0 %271
      %275 = vset.pattern.permute.xlu0 0
      %276 = vperm.xlu0 %275, %v258
      %v277 = vpop.permute.xlu0 %276
      %vm279 = vcmask 654336
      %v281 = vsel %vm279, %v251, 0
      %v284 = vsel %vm279, %v252, 0
      %v287 = vsel %vm279, %v253, 0
      %v290 = vsel %vm279, %v254, 0
      %292 = vmatprep.subr.mxu0 %v172
      %293 = vmatpush1.msra.mxu0 %v171
      %294 = vmatprep.subr.mxu0 %v180
      %295 = vmatpush1.msra.mxu0 %v179
      %296 = vmatprep.subr.mxu0 %v188
      %297 = vmatpush1.msra.mxu0 %v187
      %298 = vmatprep.subr.mxu0 %v196
      %299 = vmatpush1.msra.mxu0 %v195
      %300 = vmatprep.subr.mxu0 %v204
      %301 = vmatpush1.msra.mxu0 %v203
      %302 = vmatprep.subr.mxu0 %v212
      %303 = vmatpush1.msra.mxu0 %v211
      %304 = vmatprep.subr.mxu0 %v220
      %305 = vmatpush1.msra.mxu0 %v219
      %306 = vmatprep.subr.mxu0 %v228
      %307 = vmatpush1.msra.mxu0 %v227
      %308 = vmatprep.subr.mxu0 %v236
      %309 = vmatpush1.msra.mxu0 %v235
      %310 = vmatprep.subr.mxu0 %v244
      %311 = vmatpush1.msra.mxu0 %v243
      %312 = vmatprep.subr.mxu0 0.0
      %313 = vmatpush1.msra.mxu0 0.0
      %314 = vmatprep.subr.mxu0 0.0
      %315 = vmatpush1.msra.mxu0 0.0
      %316 = vmatprep.subr.mxu0 0.0
      %317 = vmatpush1.msra.mxu0 0.0
      %318 = vmatprep.subr.mxu0 0.0
      %319 = vmatpush1.msra.mxu0 0.0
      %320 = vmatprep.subr.mxu0 0.0
      %321 = vmatpush1.msra.mxu0 0.0
      %322 = vmatprep.subr.mxu0 0.0
      %323 = vmatpush1.msra.mxu0 0.0
      %324 = vmatprep.subr.mxu0 0.0
      %325 = vmatpush1.msra.mxu0 0.0
      %326 = vmatprep.subr.mxu0 0.0
      %327 = vmatpush1.msra.mxu0 0.0
      %328 = vmatprep.subr.mxu0 0.0
      %329 = vmatpush1.msra.mxu0 0.0
      %330 = vmatprep.subr.mxu0 0.0
      %331 = vmatpush1.msra.mxu0 0.0
      %332 = vmatprep.subr.mxu0 0.0
      %333 = vmatpush1.msra.mxu0 0.0
      %334 = vmatprep.subr.mxu0 0.0
      %335 = vmatpush1.msra.mxu0 0.0
      %336 = vmatprep.subr.mxu0 0.0
      %337 = vmatpush1.msra.mxu0 0.0
      %338 = vmatprep.subr.mxu0 0.0
      %339 = vmatpush1.msra.mxu0 0.0
      %340 = vmatprep.subr.mxu0 0.0
      %341 = vmatpush1.msra.mxu0 0.0
      %342 = vmatprep.subr.mxu0 0.0
      %343 = vmatpush1.msra.mxu0 0.0
      %344 = vmatprep.subr.mxu0 0.0
      %345 = vmatpush1.msra.mxu0 0.0
      %346 = vmatprep.subr.mxu0 0.0
      %347 = vmatpush1.msra.mxu0 0.0
      %348 = vmatprep.subr.mxu0 0.0
      %349 = vmatpush1.msra.mxu0 0.0
      %350 = vmatprep.subr.mxu0 0.0
      %351 = vmatpush1.msra.mxu0 0.0
      %352 = vmatprep.subr.mxu0 0.0
      %353 = vmatpush1.msra.mxu0 0.0
      %354 = vmatprep.subr.mxu0 0.0
      %355 = vmatpush1.msra.mxu0 0.0
      %356 = vmatprep.mubr.f32.mxu0 0.0
      %357 = vmatmul.mubr.f32.gmra.mrb[0].mxu0 %v281
      %v358 = vpop.f32.mrb[0].mxu0
      %v359 = vadd.f32 %v262, %v358
      %v360 = vpop.f32.mrb[0].mxu0
      %v361 = vadd.f32 %v262, %v360
      %362 = vmatprep.mubr.f32.mxu0 0.0
      %363 = vmatmul.mubr.f32.gmra.mrb[0].mxu0 %v284
      %v364 = vpop.f32.mrb[0].mxu0
      %v365 = vadd.f32 %v267, %v364
      %v366 = vpop.f32.mrb[0].mxu0
      %v367 = vadd.f32 %v267, %v366
      %368 = vmatprep.mubr.f32.mxu0 0.0
      %369 = vmatmul.mubr.f32.gmra.mrb[0].mxu0 %v287
      %v370 = vpop.f32.mrb[0].mxu0
      %v371 = vadd.f32 %v272, %v370
      %v372 = vpop.f32.mrb[0].mxu0
      %v373 = vadd.f32 %v272, %v372
      %374 = vmatprep.mubr.f32.mxu0 0.0
      %375 = vmatmul.mubr.f32.gmra.mrb[0].mxu0 %v290
      %v376 = vpop.f32.mrb[0].mxu0
      %v377 = vadd.f32 %v277, %v376
      %v378 = vpop.f32.mrb[0].mxu0
      %v379 = vadd.f32 %v277, %v378
      %380 = vdwg.mxu0
      %381 = vmatprep.subr.mxu0 %v174
      %382 = vmatpush1.msra.mxu0 %v173
      %383 = vmatprep.subr.mxu0 %v182
      %384 = vmatpush1.msra.mxu0 %v181
      %385 = vmatprep.subr.mxu0 %v190
      %386 = vmatpush1.msra.mxu0 %v189
      %387 = vmatprep.subr.mxu0 %v198
      %388 = vmatpush1.msra.mxu0 %v197
      %389 = vmatprep.subr.mxu0 %v206
      %390 = vmatpush1.msra.mxu0 %v205
      %391 = vmatprep.subr.mxu0 %v214
      %392 = vmatpush1.msra.mxu0 %v213
      %393 = vmatprep.subr.mxu0 %v222
      %394 = vmatpush1.msra.mxu0 %v221
      %395 = vmatprep.subr.mxu0 %v230
      %396 = vmatpush1.msra.mxu0 %v229
      %397 = vmatprep.subr.mxu0 %v238
      %398 = vmatpush1.msra.mxu0 %v237
      %399 = vmatprep.subr.mxu0 %v246
      %400 = vmatpush1.msra.mxu0 %v245
      %401 = vmatprep.subr.mxu0 0.0
      %402 = vmatpush1.msra.mxu0 0.0
      %403 = vmatprep.subr.mxu0 0.0
      %404 = vmatpush1.msra.mxu0 0.0
      %405 = vmatprep.subr.mxu0 0.0
      %406 = vmatpush1.msra.mxu0 0.0
      %407 = vmatprep.subr.mxu0 0.0
      %408 = vmatpush1.msra.mxu0 0.0
      %409 = vmatprep.subr.mxu0 0.0
      %410 = vmatpush1.msra.mxu0 0.0
      %411 = vmatprep.subr.mxu0 0.0
      %412 = vmatpush1.msra.mxu0 0.0
      %413 = vmatprep.subr.mxu0 0.0
      %414 = vmatpush1.msra.mxu0 0.0
      %415 = vmatprep.subr.mxu0 0.0
      %416 = vmatpush1.msra.mxu0 0.0
      %417 = vmatprep.subr.mxu0 0.0
      %418 = vmatpush1.msra.mxu0 0.0
      %419 = vmatprep.subr.mxu0 0.0
      %420 = vmatpush1.msra.mxu0 0.0
      %421 = vmatprep.subr.mxu0 0.0
      %422 = vmatpush1.msra.mxu0 0.0
      %423 = vmatprep.subr.mxu0 0.0
      %424 = vmatpush1.msra.mxu0 0.0
      %425 = vmatprep.subr.mxu0 0.0
      %426 = vmatpush1.msra.mxu0 0.0
      %427 = vmatprep.subr.mxu0 0.0
      %428 = vmatpush1.msra.mxu0 0.0
      %429 = vmatprep.subr.mxu0 0.0
      %430 = vmatpush1.msra.mxu0 0.0
      %431 = vmatprep.subr.mxu0 0.0
      %432 = vmatpush1.msra.mxu0 0.0
      %433 = vmatprep.subr.mxu0 0.0
      %434 = vmatpush1.msra.mxu0 0.0
      %435 = vmatprep.subr.mxu0 0.0
      %436 = vmatpush1.msra.mxu0 0.0
      %437 = vmatprep.subr.mxu0 0.0
      %438 = vmatpush1.msra.mxu0 0.0
      %439 = vmatprep.subr.mxu0 0.0
      %440 = vmatpush1.msra.mxu0 0.0
      %441 = vmatprep.subr.mxu0 0.0
      %442 = vmatpush1.msra.mxu0 0.0
      %443 = vmatprep.subr.mxu0 0.0
      %444 = vmatpush1.msra.mxu0 0.0
      %445 = vmatprep.mubr.f32.mxu0 0.0
      %446 = vmatmul.mubr.f32.gmra.mrb[0].mxu0 %v281
      %v447 = vpop.f32.mrb[0].mxu0
      %v448 = vadd.f32 %v262, %v447
      %v449 = vpop.f32.mrb[0].mxu0
      %v450 = vadd.f32 %v262, %v449
      %451 = vmatprep.mubr.f32.mxu0 0.0
      %452 = vmatmul.mubr.f32.gmra.mrb[0].mxu0 %v284
      %v453 = vpop.f32.mrb[0].mxu0
      %v454 = vadd.f32 %v267, %v453
      %v455 = vpop.f32.mrb[0].mxu0
      %v456 = vadd.f32 %v267, %v455
      %457 = vmatprep.mubr.f32.mxu0 0.0
      %458 = vmatmul.mubr.f32.gmra.mrb[0].mxu0 %v287
      %v459 = vpop.f32.mrb[0].mxu0
      %v460 = vadd.f32 %v272, %v459
      %v461 = vpop.f32.mrb[0].mxu0
      %v462 = vadd.f32 %v272, %v461
      %463 = vmatprep.mubr.f32.mxu0 0.0
      %464 = vmatmul.mubr.f32.gmra.mrb[0].mxu0 %v290
      %v465 = vpop.f32.mrb[0].mxu0
      %v466 = vadd.f32 %v277, %v465
      %v467 = vpop.f32.mrb[0].mxu0
      %v468 = vadd.f32 %v277, %v467
      %469 = vdwg.mxu0
      %470 = vmatprep.subr.mxu0 %v176
      %471 = vmatpush1.msra.mxu0 %v175
      %472 = vmatprep.subr.mxu0 %v184
      %473 = vmatpush1.msra.mxu0 %v183
      %474 = vmatprep.subr.mxu0 %v192
      %475 = vmatpush1.msra.mxu0 %v191
      %476 = vmatprep.subr.mxu0 %v200
      %477 = vmatpush1.msra.mxu0 %v199
      %478 = vmatprep.subr.mxu0 %v208
      %479 = vmatpush1.msra.mxu0 %v207
      %480 = vmatprep.subr.mxu0 %v216
      %481 = vmatpush1.msra.mxu0 %v215
      %482 = vmatprep.subr.mxu0 %v224
      %483 = vmatpush1.msra.mxu0 %v223
      %484 = vmatprep.subr.mxu0 %v232
      %485 = vmatpush1.msra.mxu0 %v231
      %486 = vmatprep.subr.mxu0 %v240
      %487 = vmatpush1.msra.mxu0 %v239
      %488 = vmatprep.subr.mxu0 %v248
      %489 = vmatpush1.msra.mxu0 %v247
      %490 = vmatprep.subr.mxu0 0.0
      %491 = vmatpush1.msra.mxu0 0.0
      %492 = vmatprep.subr.mxu0 0.0
      %493 = vmatpush1.msra.mxu0 0.0
      %494 = vmatprep.subr.mxu0 0.0
      %495 = vmatpush1.msra.mxu0 0.0
      %496 = vmatprep.subr.mxu0 0.0
      %497 = vmatpush1.msra.mxu0 0.0
      %498 = vmatprep.subr.mxu0 0.0
      %499 = vmatpush1.msra.mxu0 0.0
      %500 = vmatprep.subr.mxu0 0.0
      %501 = vmatpush1.msra.mxu0 0.0
      %502 = vmatprep.subr.mxu0 0.0
      %503 = vmatpush1.msra.mxu0 0.0
      %504 = vmatprep.subr.mxu0 0.0
      %505 = vmatpush1.msra.mxu0 0.0
      %506 = vmatprep.subr.mxu0 0.0
      %507 = vmatpush1.msra.mxu0 0.0
      %508 = vmatprep.subr.mxu0 0.0
      %509 = vmatpush1.msra.mxu0 0.0
      %510 = vmatprep.subr.mxu0 0.0
      %511 = vmatpush1.msra.mxu0 0.0
      %512 = vmatprep.subr.mxu0 0.0
      %513 = vmatpush1.msra.mxu0 0.0
      %514 = vmatprep.subr.mxu0 0.0
      %515 = vmatpush1.msra.mxu0 0.0
      %516 = vmatprep.subr.mxu0 0.0
      %517 = vmatpush1.msra.mxu0 0.0
      %518 = vmatprep.subr.mxu0 0.0
      %519 = vmatpush1.msra.mxu0 0.0
      %520 = vmatprep.subr.mxu0 0.0
      %521 = vmatpush1.msra.mxu0 0.0
      %522 = vmatprep.subr.mxu0 0.0
      %523 = vmatpush1.msra.mxu0 0.0
      %524 = vmatprep.subr.mxu0 0.0
      %525 = vmatpush1.msra.mxu0 0.0
      %526 = vmatprep.subr.mxu0 0.0
      %527 = vmatpush1.msra.mxu0 0.0
      %528 = vmatprep.subr.mxu0 0.0
      %529 = vmatpush1.msra.mxu0 0.0
      %530 = vmatprep.subr.mxu0 0.0
      %531 = vmatpush1.msra.mxu0 0.0
      %532 = vmatprep.subr.mxu0 0.0
      %533 = vmatpush1.msra.mxu0 0.0
      %534 = vmatprep.mubr.f32.mxu0 0.0
      %535 = vmatmul.mubr.f32.gmra.mrb[0].mxu0 %v281
      %v536 = vpop.f32.mrb[0].mxu0
      %v537 = vadd.f32 %v262, %v536
      %v538 = vpop.f32.mrb[0].mxu0
      %v539 = vadd.f32 %v262, %v538
      %540 = vmatprep.mubr.f32.mxu0 0.0
      %541 = vmatmul.mubr.f32.gmra.mrb[0].mxu0 %v284
      %v542 = vpop.f32.mrb[0].mxu0
      %v543 = vadd.f32 %v267, %v542
      %v544 = vpop.f32.mrb[0].mxu0
      %v545 = vadd.f32 %v267, %v544
      %546 = vmatprep.mubr.f32.mxu0 0.0
      %547 = vmatmul.mubr.f32.gmra.mrb[0].mxu0 %v287
      %v548 = vpop.f32.mrb[0].mxu0
      %v549 = vadd.f32 %v272, %v548
      %v550 = vpop.f32.mrb[0].mxu0
      %v551 = vadd.f32 %v272, %v550
      %552 = vmatprep.mubr.f32.mxu0 0.0
      %553 = vmatmul.mubr.f32.gmra.mrb[0].mxu0 %v290
      %v554 = vpop.f32.mrb[0].mxu0
      %v555 = vadd.f32 %v277, %v554
      %v556 = vpop.f32.mrb[0].mxu0
      %v557 = vadd.f32 %v277, %v556
      %558 = vdwg.mxu0
      %559 = vmatprep.subr.mxu0 %v178
      %560 = vmatpush1.msra.mxu0 %v177
      %561 = vmatprep.subr.mxu0 %v186
      %562 = vmatpush1.msra.mxu0 %v185
      %563 = vmatprep.subr.mxu0 %v194
      %564 = vmatpush1.msra.mxu0 %v193
      %565 = vmatprep.subr.mxu0 %v202
      %566 = vmatpush1.msra.mxu0 %v201
      %567 = vmatprep.subr.mxu0 %v210
      %568 = vmatpush1.msra.mxu0 %v209
      %569 = vmatprep.subr.mxu0 %v218
      %570 = vmatpush1.msra.mxu0 %v217
      %571 = vmatprep.subr.mxu0 %v226
      %572 = vmatpush1.msra.mxu0 %v225
      %573 = vmatprep.subr.mxu0 %v234
      %574 = vmatpush1.msra.mxu0 %v233
      %575 = vmatprep.subr.mxu0 %v242
      %576 = vmatpush1.msra.mxu0 %v241
      %577 = vmatprep.subr.mxu0 %v250
      %578 = vmatpush1.msra.mxu0 %v249
      %579 = vmatprep.subr.mxu0 0.0
      %580 = vmatpush1.msra.mxu0 0.0
      %581 = vmatprep.subr.mxu0 0.0
      %582 = vmatpush1.msra.mxu0 0.0
      %583 = vmatprep.subr.mxu0 0.0
      %584 = vmatpush1.msra.mxu0 0.0
      %585 = vmatprep.subr.mxu0 0.0
      %586 = vmatpush1.msra.mxu0 0.0
      %587 = vmatprep.subr.mxu0 0.0
      %588 = vmatpush1.msra.mxu0 0.0
      %589 = vmatprep.subr.mxu0 0.0
      %590 = vmatpush1.msra.mxu0 0.0
      %591 = vmatprep.subr.mxu0 0.0
      %592 = vmatpush1.msra.mxu0 0.0
      %593 = vmatprep.subr.mxu0 0.0
      %594 = vmatpush1.msra.mxu0 0.0
      %595 = vmatprep.subr.mxu0 0.0
      %596 = vmatpush1.msra.mxu0 0.0
      %597 = vmatprep.subr.mxu0 0.0
      %598 = vmatpush1.msra.mxu0 0.0
      %599 = vmatprep.subr.mxu0 0.0
      %600 = vmatpush1.msra.mxu0 0.0
      %601 = vmatprep.subr.mxu0 0.0
      %602 = vmatpush1.msra.mxu0 0.0
      %603 = vmatprep.subr.mxu0 0.0
      %604 = vmatpush1.msra.mxu0 0.0
      %605 = vmatprep.subr.mxu0 0.0
      %606 = vmatpush1.msra.mxu0 0.0
      %607 = vmatprep.subr.mxu0 0.0
      %608 = vmatpush1.msra.mxu0 0.0
      %609 = vmatprep.subr.mxu0 0.0
      %610 = vmatpush1.msra.mxu0 0.0
      %611 = vmatprep.subr.mxu0 0.0
      %612 = vmatpush1.msra.mxu0 0.0
      %613 = vmatprep.subr.mxu0 0.0
      %614 = vmatpush1.msra.mxu0 0.0
      %615 = vmatprep.subr.mxu0 0.0
      %616 = vmatpush1.msra.mxu0 0.0
      %617 = vmatprep.subr.mxu0 0.0
      %618 = vmatpush1.msra.mxu0 0.0
      %619 = vmatprep.subr.mxu0 0.0
      %620 = vmatpush1.msra.mxu0 0.0
      %621 = vmatprep.subr.mxu0 0.0
      %622 = vmatpush1.msra.mxu0 0.0
      %623 = vmatprep.mubr.f32.mxu0 0.0
      %624 = vmatmul.mubr.f32.gmra.mrb[0].mxu0 %v281
      %v625 = vpop.f32.mrb[0].mxu0
      %v626 = vadd.f32 %v262, %v625
      %v627 = vpop.f32.mrb[0].mxu0
      %v628 = vadd.f32 %v262, %v627
      %629 = vmatprep.mubr.f32.mxu0 0.0
      %630 = vmatmul.mubr.f32.gmra.mrb[0].mxu0 %v284
      %v631 = vpop.f32.mrb[0].mxu0
      %v632 = vadd.f32 %v267, %v631
      %v633 = vpop.f32.mrb[0].mxu0
      %v634 = vadd.f32 %v267, %v633
      %635 = vmatprep.mubr.f32.mxu0 0.0
      %636 = vmatmul.mubr.f32.gmra.mrb[0].mxu0 %v287
      %v637 = vpop.f32.mrb[0].mxu0
      %v638 = vadd.f32 %v272, %v637
      %v639 = vpop.f32.mrb[0].mxu0
      %v640 = vadd.f32 %v272, %v639
      %641 = vmatprep.mubr.f32.mxu0 0.0
      %642 = vmatmul.mubr.f32.gmra.mrb[0].mxu0 %v290
      %v643 = vpop.f32.mrb[0].mxu0
      %v644 = vadd.f32 %v277, %v643
      %v645 = vpop.f32.mrb[0].mxu0
      %v646 = vadd.f32 %v277, %v645
      %647 = vdwg.mxu0
      %v648 = vmul.f32 %v359, 0.5
      %v649 = vmul.f32 %v361, 0.5
      %v650 = vmul.f32 %v448, 0.5
      %v651 = vmul.f32 %v450, 0.5
      %v652 = vmul.f32 %v537, 0.5
      %v653 = vmul.f32 %v539, 0.5
      %v654 = vmul.f32 %v626, 0.5
      %v655 = vmul.f32 %v628, 0.5
      %v656 = vmul.f32 %v365, 0.5
      %v657 = vmul.f32 %v367, 0.5
      %v658 = vmul.f32 %v454, 0.5
      %v659 = vmul.f32 %v456, 0.5
      %v660 = vmul.f32 %v543, 0.5
      %v661 = vmul.f32 %v545, 0.5
      %v662 = vmul.f32 %v632, 0.5
      %v663 = vmul.f32 %v634, 0.5
      %v664 = vmul.f32 %v371, 0.5
      %v665 = vmul.f32 %v373, 0.5
      %v666 = vmul.f32 %v460, 0.5
      %v667 = vmul.f32 %v462, 0.5
      %v668 = vmul.f32 %v549, 0.5
      %v669 = vmul.f32 %v551, 0.5
      %v670 = vmul.f32 %v638, 0.5
      %v671 = vmul.f32 %v640, 0.5
      %v672 = vmul.f32 %v377, 0.5
      %v673 = vmul.f32 %v379, 0.5
      %v674 = vmul.f32 %v466, 0.5
      %v675 = vmul.f32 %v468, 0.5
      %v676 = vmul.f32 %v555, 0.5
      %v677 = vmul.f32 %v557, 0.5
      %v678 = vmul.f32 %v644, 0.5
      %v679 = vmul.f32 %v646, 0.5
      %v680 = vtanh.pop %v648
      %v681 = vtanh.pop %v649
      %v682 = vtanh.pop %v650
      %v683 = vtanh.pop %v651
      %v684 = vtanh.pop %v652
      %v685 = vtanh.pop %v653
      %v686 = vtanh.pop %v654
      %v687 = vtanh.pop %v655
      %v688 = vtanh.pop %v656
      %v689 = vtanh.pop %v657
      %v690 = vtanh.pop %v658
      %v691 = vtanh.pop %v659
      %v692 = vtanh.pop %v660
      %v693 = vtanh.pop %v661
      %v694 = vtanh.pop %v662
      %v695 = vtanh.pop %v663
      %v696 = vtanh.pop %v664
      %v697 = vtanh.pop %v665
      %v698 = vtanh.pop %v666
      %v699 = vtanh.pop %v667
      %v700 = vtanh.pop %v668
      %v701 = vtanh.pop %v669
      %v702 = vtanh.pop %v670
      %v703 = vtanh.pop %v671
      %v704 = vtanh.pop %v672
      %v705 = vtanh.pop %v673
      %v706 = vtanh.pop %v674
      %v707 = vtanh.pop %v675
      %v708 = vtanh.pop %v676
      %v709 = vtanh.pop %v677
      %v710 = vtanh.pop %v678
      %v711 = vtanh.pop %v679
      %v712 = vmul.f32 %v680, 0.5
      %v713 = vmul.f32 %v681, 0.5
      %v714 = vmul.f32 %v682, 0.5
      %v715 = vmul.f32 %v683, 0.5
      %v716 = vmul.f32 %v684, 0.5
      %v717 = vmul.f32 %v685, 0.5
      %v718 = vmul.f32 %v686, 0.5
      %v719 = vmul.f32 %v687, 0.5
      %v720 = vmul.f32 %v688, 0.5
      %v721 = vmul.f32 %v689, 0.5
      %v722 = vmul.f32 %v690, 0.5
      %v723 = vmul.f32 %v691, 0.5
      %v724 = vmul.f32 %v692, 0.5
      %v725 = vmul.f32 %v693, 0.5
      %v726 = vmul.f32 %v694, 0.5
      %v727 = vmul.f32 %v695, 0.5
      %v728 = vmul.f32 %v696, 0.5
      %v729 = vmul.f32 %v697, 0.5
      %v730 = vmul.f32 %v698, 0.5
      %v731 = vmul.f32 %v699, 0.5
      %v732 = vmul.f32 %v700, 0.5
      %v733 = vmul.f32 %v701, 0.5
      %v734 = vmul.f32 %v702, 0.5
      %v735 = vmul.f32 %v703, 0.5
      %v736 = vmul.f32 %v704, 0.5
      %v737 = vmul.f32 %v705, 0.5
      %v738 = vmul.f32 %v706, 0.5
      %v739 = vmul.f32 %v707, 0.5
      %v740 = vmul.f32 %v708, 0.5
      %v741 = vmul.f32 %v709, 0.5
      %v742 = vmul.f32 %v710, 0.5
      %v743 = vmul.f32 %v711, 0.5
      %v744 = vadd.f32 %v712, 0.5
      %v745 = vadd.f32 %v713, 0.5
      %v746 = vadd.f32 %v714, 0.5
      %v747 = vadd.f32 %v715, 0.5
      %v748 = vadd.f32 %v716, 0.5
      %v749 = vadd.f32 %v717, 0.5
      %v750 = vadd.f32 %v718, 0.5
      %v751 = vadd.f32 %v719, 0.5
      %v752 = vadd.f32 %v720, 0.5
      %v753 = vadd.f32 %v721, 0.5
      %v754 = vadd.f32 %v722, 0.5
      %v755 = vadd.f32 %v723, 0.5
      %v756 = vadd.f32 %v724, 0.5
      %v757 = vadd.f32 %v725, 0.5
      %v758 = vadd.f32 %v726, 0.5
      %v759 = vadd.f32 %v727, 0.5
      %v760 = vadd.f32 %v728, 0.5
      %v761 = vadd.f32 %v729, 0.5
      %v762 = vadd.f32 %v730, 0.5
      %v763 = vadd.f32 %v731, 0.5
      %v764 = vadd.f32 %v732, 0.5
      %v765 = vadd.f32 %v733, 0.5
      %v766 = vadd.f32 %v734, 0.5
      %v767 = vadd.f32 %v735, 0.5
      %v768 = vadd.f32 %v736, 0.5
      %v769 = vadd.f32 %v737, 0.5
      %v770 = vadd.f32 %v738, 0.5
      %v771 = vadd.f32 %v739, 0.5
      %v772 = vadd.f32 %v740, 0.5
      %v773 = vadd.f32 %v741, 0.5
      %v774 = vadd.f32 %v742, 0.5
      %v775 = vadd.f32 %v743, 0.5
      %v776 = vmul.f32 %v359, %v744
      %v777 = vmul.f32 %v361, %v745
      %v778 = vmul.f32 %v448, %v746
      %v779 = vmul.f32 %v450, %v747
      %v780 = vmul.f32 %v537, %v748
      %v781 = vmul.f32 %v539, %v749
      %v782 = vmul.f32 %v626, %v750
      %v783 = vmul.f32 %v628, %v751
      %v784 = vmul.f32 %v365, %v752
      %v785 = vmul.f32 %v367, %v753
      %v786 = vmul.f32 %v454, %v754
      %v787 = vmul.f32 %v456, %v755
      %v788 = vmul.f32 %v543, %v756
      %v789 = vmul.f32 %v545, %v757
      %v790 = vmul.f32 %v632, %v758
      %v791 = vmul.f32 %v634, %v759
      %v792 = vmul.f32 %v371, %v760
      %v793 = vmul.f32 %v373, %v761
      %v794 = vmul.f32 %v460, %v762
      %v795 = vmul.f32 %v462, %v763
      %v796 = vmul.f32 %v549, %v764
      %v797 = vmul.f32 %v551, %v765
      %v798 = vmul.f32 %v638, %v766
      %v799 = vmul.f32 %v640, %v767
      %v800 = vmul.f32 %v377, %v768
      %v801 = vmul.f32 %v379, %v769
      %v802 = vmul.f32 %v466, %v770
      %v803 = vmul.f32 %v468, %v771
      %v804 = vmul.f32 %v555, %v772
      %v805 = vmul.f32 %v557, %v773
      %v806 = vmul.f32 %v644, %v774
      %v807 = vmul.f32 %v646, %v775
      %v808 = vadd.f32 %v776, %v784
      %v809 = vadd.f32 %v808, %v792
      %v810 = vadd.f32 %v809, %v800
      %v811 = vrot.slane %v810, 4
      %v812 = vadd.f32 %v810, %v811
      %v813 = vrot.slane %v812, 2
      %v814 = vadd.f32 %v812, %v813
      %v815 = vrot.slane %v814, 1
      %v816 = vadd.f32 %v814, %v815
      %v817 = vadd.f32 %v777, %v785
      %v818 = vadd.f32 %v817, %v793
      %v819 = vadd.f32 %v818, %v801
      %v820 = vrot.slane %v819, 4
      %v821 = vadd.f32 %v819, %v820
      %v822 = vrot.slane %v821, 2
      %v823 = vadd.f32 %v821, %v822
      %v824 = vrot.slane %v823, 1
      %v825 = vadd.f32 %v823, %v824
      %v826 = vadd.f32 %v778, %v786
      %v827 = vadd.f32 %v826, %v794
      %v828 = vadd.f32 %v827, %v802
      %v829 = vrot.slane %v828, 4
      %v830 = vadd.f32 %v828, %v829
      %v831 = vrot.slane %v830, 2
      %v832 = vadd.f32 %v830, %v831
      %v833 = vrot.slane %v832, 1
      %v834 = vadd.f32 %v832, %v833
      %v835 = vadd.f32 %v779, %v787
      %v836 = vadd.f32 %v835, %v795
      %v837 = vadd.f32 %v836, %v803
      %v838 = vrot.slane %v837, 4
      %v839 = vadd.f32 %v837, %v838
      %v840 = vrot.slane %v839, 2
      %v841 = vadd.f32 %v839, %v840
      %v842 = vrot.slane %v841, 1
      %v843 = vadd.f32 %v841, %v842
      %v844 = vadd.f32 %v780, %v788
      %v845 = vadd.f32 %v844, %v796
      %v846 = vadd.f32 %v845, %v804
      %v847 = vrot.slane %v846, 4
      %v848 = vadd.f32 %v846, %v847
      %v849 = vrot.slane %v848, 2
      %v850 = vadd.f32 %v848, %v849
      %v851 = vrot.slane %v850, 1
      %v852 = vadd.f32 %v850, %v851
      %v853 = vadd.f32 %v781, %v789
      %v854 = vadd.f32 %v853, %v797
      %v855 = vadd.f32 %v854, %v805
      %v856 = vrot.slane %v855, 4
      %v857 = vadd.f32 %v855, %v856
      %v858 = vrot.slane %v857, 2
      %v859 = vadd.f32 %v857, %v858
      %v860 = vrot.slane %v859, 1
      %v861 = vadd.f32 %v859, %v860
      %v862 = vadd.f32 %v782, %v790
      %v863 = vadd.f32 %v862, %v798
      %v864 = vadd.f32 %v863, %v806
      %v865 = vrot.slane %v864, 4
      %v866 = vadd.f32 %v864, %v865
      %v867 = vrot.slane %v866, 2
      %v868 = vadd.f32 %v866, %v867
      %v869 = vrot.slane %v868, 1
      %v870 = vadd.f32 %v868, %v869
      %vm871 = vcmask 531456
      %v872 = vsel %vm871, %v783, 0.0
      %v873 = vsel %vm871, %v791, 0.0
      %v874 = vadd.f32 %v872, %v873
      %v875 = vsel %vm871, %v799, 0.0
      %v876 = vadd.f32 %v874, %v875
      %v877 = vsel %vm871, %v807, 0.0
      %v878 = vadd.f32 %v876, %v877
      %v879 = vrot.slane %v878, 4
      %v880 = vadd.f32 %v878, %v879
      %v881 = vrot.slane %v880, 2
      %v882 = vadd.f32 %v880, %v881
      %v883 = vrot.slane %v882, 1
      %v884 = vadd.f32 %v882, %v883
      %v885 = vmul.f32 %v776, %v776
      %v886 = vmul.f32 %v777, %v777
      %v887 = vmul.f32 %v778, %v778
      %v888 = vmul.f32 %v779, %v779
      %v889 = vmul.f32 %v780, %v780
      %v890 = vmul.f32 %v781, %v781
      %v891 = vmul.f32 %v782, %v782
      %v892 = vmul.f32 %v783, %v783
      %v893 = vmul.f32 %v784, %v784
      %v894 = vmul.f32 %v785, %v785
      %v895 = vmul.f32 %v786, %v786
      %v896 = vmul.f32 %v787, %v787
      %v897 = vmul.f32 %v788, %v788
      %v898 = vmul.f32 %v789, %v789
      %v899 = vmul.f32 %v790, %v790
      %v900 = vmul.f32 %v791, %v791
      %v901 = vmul.f32 %v792, %v792
      %v902 = vmul.f32 %v793, %v793
      %v903 = vmul.f32 %v794, %v794
      %v904 = vmul.f32 %v795, %v795
      %v905 = vmul.f32 %v796, %v796
      %v906 = vmul.f32 %v797, %v797
      %v907 = vmul.f32 %v798, %v798
      %v908 = vmul.f32 %v799, %v799
      %v909 = vmul.f32 %v800, %v800
      %v910 = vmul.f32 %v801, %v801
      %v911 = vmul.f32 %v802, %v802
      %v912 = vmul.f32 %v803, %v803
      %v913 = vmul.f32 %v804, %v804
      %v914 = vmul.f32 %v805, %v805
      %v915 = vmul.f32 %v806, %v806
      %v916 = vmul.f32 %v807, %v807
      %v917 = vadd.f32 %v885, %v893
      %v918 = vadd.f32 %v917, %v901
      %v919 = vadd.f32 %v918, %v909
      %v920 = vrot.slane %v919, 4
      %v921 = vadd.f32 %v919, %v920
      %v922 = vrot.slane %v921, 2
      %v923 = vadd.f32 %v921, %v922
      %v924 = vrot.slane %v923, 1
      %v925 = vadd.f32 %v923, %v924
      %v926 = vadd.f32 %v886, %v894
      %v927 = vadd.f32 %v926, %v902
      %v928 = vadd.f32 %v927, %v910
      %v929 = vrot.slane %v928, 4
      %v930 = vadd.f32 %v928, %v929
      %v931 = vrot.slane %v930, 2
      %v932 = vadd.f32 %v930, %v931
      %v933 = vrot.slane %v932, 1
      %v934 = vadd.f32 %v932, %v933
      %v935 = vadd.f32 %v887, %v895
      %v936 = vadd.f32 %v935, %v903
      %v937 = vadd.f32 %v936, %v911
      %v938 = vrot.slane %v937, 4
      %v939 = vadd.f32 %v937, %v938
      %v940 = vrot.slane %v939, 2
      %v941 = vadd.f32 %v939, %v940
      %v942 = vrot.slane %v941, 1
      %v943 = vadd.f32 %v941, %v942
      %v944 = vadd.f32 %v888, %v896
      %v945 = vadd.f32 %v944, %v904
      %v946 = vadd.f32 %v945, %v912
      %v947 = vrot.slane %v946, 4
      %v948 = vadd.f32 %v946, %v947
      %v949 = vrot.slane %v948, 2
      %v950 = vadd.f32 %v948, %v949
      %v951 = vrot.slane %v950, 1
      %v952 = vadd.f32 %v950, %v951
      %v953 = vadd.f32 %v889, %v897
      %v954 = vadd.f32 %v953, %v905
      %v955 = vadd.f32 %v954, %v913
      %v956 = vrot.slane %v955, 4
      %v957 = vadd.f32 %v955, %v956
      %v958 = vrot.slane %v957, 2
      %v959 = vadd.f32 %v957, %v958
      %v960 = vrot.slane %v959, 1
      %v961 = vadd.f32 %v959, %v960
      %v962 = vadd.f32 %v890, %v898
      %v963 = vadd.f32 %v962, %v906
      %v964 = vadd.f32 %v963, %v914
      %v965 = vrot.slane %v964, 4
      %v966 = vadd.f32 %v964, %v965
      %v967 = vrot.slane %v966, 2
      %v968 = vadd.f32 %v966, %v967
      %v969 = vrot.slane %v968, 1
      %v970 = vadd.f32 %v968, %v969
      %v971 = vadd.f32 %v891, %v899
      %v972 = vadd.f32 %v971, %v907
      %v973 = vadd.f32 %v972, %v915
      %v974 = vrot.slane %v973, 4
      %v975 = vadd.f32 %v973, %v974
      %v976 = vrot.slane %v975, 2
      %v977 = vadd.f32 %v975, %v976
      %v978 = vrot.slane %v977, 1
      %v979 = vadd.f32 %v977, %v978
      %v980 = vsel %vm871, %v892, 0.0
      %v981 = vsel %vm871, %v900, 0.0
      %v982 = vadd.f32 %v980, %v981
      %v983 = vsel %vm871, %v908, 0.0
      %v984 = vadd.f32 %v982, %v983
      %v985 = vsel %vm871, %v916, 0.0
      %v986 = vadd.f32 %v984, %v985
      %v987 = vrot.slane %v986, 4
      %v988 = vadd.f32 %v986, %v987
      %v989 = vrot.slane %v988, 2
      %v990 = vadd.f32 %v988, %v989
      %v991 = vrot.slane %v990, 1
      %v992 = vadd.f32 %v990, %v991
      %v993 = vadd.f32 %v816, %v825
      %v994 = vadd.f32 %v993, %v834
      %v995 = vadd.f32 %v994, %v843
      %v996 = vadd.f32 %v995, %v852
      %v997 = vadd.f32 %v996, %v861
      %v998 = vadd.f32 %v997, %v870
      %v999 = vsel %vm871, %v884, 0.0
      %v1000 = vadd.f32 %v998, %v999
      %1001 = vadd.xlane.f32.xlu0 %v1000
      %v1002 = vpop.xlane.xlu0 %1001
      %v1003 = vadd.f32 %v925, %v934
      %v1004 = vadd.f32 %v1003, %v943
      %v1005 = vadd.f32 %v1004, %v952
      %v1006 = vadd.f32 %v1005, %v961
      %v1007 = vadd.f32 %v1006, %v970
      %v1008 = vadd.f32 %v1007, %v979
      %v1009 = vsel %vm871, %v992, 0.0
      %v1010 = vadd.f32 %v1008, %v1009
      %1011 = vadd.xlane.f32.xlu0 %v1010
      %v1012 = vpop.xlane.xlu0 %1011
      %v1013 = vmul.f32 %v1002, 3.251821e-05
      %v1014 = vmul.f32 %v1012, 3.251821e-05
      %v1015 = vmul.f32 %v1013, %v1013
      %v1016 = vsub.f32 %v1014, %v1015
      %v1017 = vadd.f32 %v1016, 1e-05
      %v1018 = vrsqrt.pop %v1017
      %v1019 = vsub.f32 %v776, %v1013
      %v1020 = vsub.f32 %v777, %v1013
      %v1021 = vsub.f32 %v778, %v1013
      %v1022 = vsub.f32 %v779, %v1013
      %v1023 = vsub.f32 %v780, %v1013
      %v1024 = vsub.f32 %v781, %v1013
      %v1025 = vsub.f32 %v782, %v1013
      %v1026 = vsub.f32 %v783, %v1013
      %v1027 = vsub.f32 %v784, %v1013
      %v1028 = vsub.f32 %v785, %v1013
      %v1029 = vsub.f32 %v786, %v1013
      %v1030 = vsub.f32 %v787, %v1013
      %v1031 = vsub.f32 %v788, %v1013
      %v1032 = vsub.f32 %v789, %v1013
      %v1033 = vsub.f32 %v790, %v1013
      %v1034 = vsub.f32 %v791, %v1013
      %v1035 = vsub.f32 %v792, %v1013
      %v1036 = vsub.f32 %v793, %v1013
      %v1037 = vsub.f32 %v794, %v1013
      %v1038 = vsub.f32 %v795, %v1013
      %v1039 = vsub.f32 %v796, %v1013
      %v1040 = vsub.f32 %v797, %v1013
      %v1041 = vsub.f32 %v798, %v1013
      %v1042 = vsub.f32 %v799, %v1013
      %v1043 = vsub.f32 %v800, %v1013
      %v1044 = vsub.f32 %v801, %v1013
      %v1045 = vsub.f32 %v802, %v1013
      %v1046 = vsub.f32 %v803, %v1013
      %v1047 = vsub.f32 %v804, %v1013
      %v1048 = vsub.f32 %v805, %v1013
      %v1049 = vsub.f32 %v806, %v1013
      %v1050 = vsub.f32 %v807, %v1013
      %v1051 = vmul.f32 %v1019, %v1018
      %v1052 = vmul.f32 %v1020, %v1018
      %v1053 = vmul.f32 %v1021, %v1018
      %v1054 = vmul.f32 %v1022, %v1018
      %v1055 = vmul.f32 %v1023, %v1018
      %v1056 = vmul.f32 %v1024, %v1018
      %v1057 = vmul.f32 %v1025, %v1018
      %v1058 = vmul.f32 %v1026, %v1018
      %v1059 = vmul.f32 %v1027, %v1018
      %v1060 = vmul.f32 %v1028, %v1018
      %v1061 = vmul.f32 %v1029, %v1018
      %v1062 = vmul.f32 %v1030, %v1018
      %v1063 = vmul.f32 %v1031, %v1018
      %v1064 = vmul.f32 %v1032, %v1018
      %v1065 = vmul.f32 %v1033, %v1018
      %v1066 = vmul.f32 %v1034, %v1018
      %v1067 = vmul.f32 %v1035, %v1018
      %v1068 = vmul.f32 %v1036, %v1018
      %v1069 = vmul.f32 %v1037, %v1018
      %v1070 = vmul.f32 %v1038, %v1018
      %v1071 = vmul.f32 %v1039, %v1018
      %v1072 = vmul.f32 %v1040, %v1018
      %v1073 = vmul.f32 %v1041, %v1018
      %v1074 = vmul.f32 %v1042, %v1018
      %v1075 = vmul.f32 %v1043, %v1018
      %v1076 = vmul.f32 %v1044, %v1018
      %v1077 = vmul.f32 %v1045, %v1018
      %v1078 = vmul.f32 %v1046, %v1018
      %v1079 = vmul.f32 %v1047, %v1018
      %v1080 = vmul.f32 %v1048, %v1018
      %v1081 = vmul.f32 %v1049, %v1018
      %v1082 = vmul.f32 %v1050, %v1018
      %1083 = vst [vmem:[%s170] sm:$0xff] %v1051
      %1084 = vst [vmem:[%s170 + $0x8] sm:$0xff] %v1052
      %1085 = vst [vmem:[%s170 + $0x10] sm:$0xff] %v1053
      %1086 = vst [vmem:[%s170 + $0x18] sm:$0xff] %v1054
      %1087 = vst [vmem:[%s170 + $0x20] sm:$0xff] %v1055
      %1088 = vst [vmem:[%s170 + $0x28] sm:$0xff] %v1056
      %1089 = vst [vmem:[%s170 + $0x30] sm:$0xff] %v1057
      %1090 = vst.msk [vmem:[%s170 + $0x38] sm:$0xff] %vm871, %v1058
      %1091 = vst [vmem:[%s170 + $0x40] sm:$0xff] %v1059
      %1092 = vst [vmem:[%s170 + $0x48] sm:$0xff] %v1060
      %1093 = vst [vmem:[%s170 + $0x50] sm:$0xff] %v1061
      %1094 = vst [vmem:[%s170 + $0x58] sm:$0xff] %v1062
      %1095 = vst [vmem:[%s170 + $0x60] sm:$0xff] %v1063
      %1096 = vst [vmem:[%s170 + $0x68] sm:$0xff] %v1064
      %1097 = vst [vmem:[%s170 + $0x70] sm:$0xff] %v1065
      %1098 = vst.msk [vmem:[%s170 + $0x78] sm:$0xff] %vm871, %v1066
      %1099 = vst [vmem:[%s170 + $0x80] sm:$0xff] %v1067
      %1100 = vst [vmem:[%s170 + $0x88] sm:$0xff] %v1068
      %1101 = vst [vmem:[%s170 + $0x90] sm:$0xff] %v1069
      %1102 = vst [vmem:[%s170 + $0x98] sm:$0xff] %v1070
      %1103 = vst [vmem:[%s170 + $0xa0] sm:$0xff] %v1071
      %1104 = vst [vmem:[%s170 + $0xa8] sm:$0xff] %v1072
      %1105 = vst [vmem:[%s170 + $0xb0] sm:$0xff] %v1073
      %1106 = vst.msk [vmem:[%s170 + $0xb8] sm:$0xff] %vm871, %v1074
      %1107 = vst [vmem:[%s170 + $0xc0] sm:$0xff] %v1075
      %1108 = vst [vmem:[%s170 + $0xc8] sm:$0xff] %v1076
      %1109 = vst [vmem:[%s170 + $0xd0] sm:$0xff] %v1077
      %1110 = vst [vmem:[%s170 + $0xd8] sm:$0xff] %v1078
      %1111 = vst [vmem:[%s170 + $0xe0] sm:$0xff] %v1079
      %1112 = vst [vmem:[%s170 + $0xe8] sm:$0xff] %v1080
      %1113 = vst [vmem:[%s170 + $0xf0] sm:$0xff] %v1081
      %1114 = vst.msk [vmem:[%s170 + $0xf8] sm:$0xff] %vm871, %v1082
      %p1115 = scmp.lt.s32.totalorder %s14, 1
      %s1116 = scalar_select %p1115, %s14, 1
      %s1117 = smul.addr %s1116, 32
      %s1118 = smul.addr %s1117, 8
      %s1119 = scalar_lea.vmem %s3, %s1118
      // Predicated region
      $region33: #{wm_encoder_forward.4} parent=31 // pred_check
        %p1120 = pneg %p100
      $region34: #{wm_encoder_forward.4} parent=31 // pred_check_branch
        %1122 = sbr.rel (%p1120) target = $region36
      $region35: #{wm_encoder_forward.4} parent=31 // pred_region
        _
      $region36: #{wm_encoder_forward.4} parent=31 // pred_fallthru
        _
    $region32: #{wm_encoder_forward.4} parent=5 // pred_fallthru
      _
    %p1123 = scmp.le.s32.totalorder 2, %s9
    // Predicated region
    $region37: #{wm_encoder_forward.4} parent=5 // pred_check
      %p1124 = pneg %p1123
    $region38: #{wm_encoder_forward.4} parent=5 // pred_check_branch
      %1126 = sbr.rel (%p1124) target = $region40
    $region39: #{wm_encoder_forward.4} parent=5 // pred_region
      %s1127 = ssub.s32 %s9, 2
      // Predicated region
      $region41: #{wm_encoder_forward.4} parent=39 // pred_check
        %p1128 = pneg %p106
      $region42: #{wm_encoder_forward.4} parent=39 // pred_check_branch
        %1130 = sbr.rel (%p1128) target = $region44
      $region43: #{wm_encoder_forward.4} parent=39 // pred_region
        %p1131 = scmp.lt.s32.totalorder %s15, 1
        %s1132 = scalar_select %p1131, %s15, 1
        %s1133 = smul.addr %s1132, 32
        %s1134 = smul.addr %s1133, 8
        %s1135 = scalar_lea.vmem %s3, %s1134
      $region44: #{wm_encoder_forward.4} parent=39 // pred_fallthru
        _
    $region40: #{wm_encoder_forward.4} parent=5 // pred_fallthru
      _
  $region6: #{wm_encoder_forward.4} parent=0 // loop_footer
    %s13 = sadd.s32 1, %s9
  $region7: #{wm_encoder_forward.4} parent=0 // loop_footer_branch
    %8 = sbr.rel target = $region3
  $region8: #{wm_encoder_forward.4} parent=0 // loop_exit
    _

// kernel: wm_encoder_forward.5
$region0: #{wm_encoder_forward.5}
  #allocation0 [shape = 'u32[]', space=smem, size = 0x4, offset = 0x4, fixed_abs, tag = 'smem constant byte address 0x4 - core index']
  #allocation1 [shape = 'u32[144,128]{1,0:T(1,128)}', space=vmem, size = 0x12000, scoped, tag = 'internal scratch']
  %s0 = inlined_call_operand.vmem [shape: f32[2,544,196], index: 0, kind: input, shape index: {}]
  %s1 = inlined_call_operand.vmem [shape: f32[64,544], index: 1, kind: input, shape index: {}]
  %s2 = inlined_call_operand.vmem [shape: f32[64,1], index: 2, kind: input, shape index: {}]
  %s3 = inlined_call_operand.vmem [shape: f32[2,64,196], index: 3, kind: output, shape index: {}]
  %s4 = sld [smem:[#allocation0]]
  $region45: #{wm_encoder_forward.5} parent=0
    _
  %s6 = ssub.s32 1, %s4
  %s7 = scalar_select 0, %s6, %s4
  loop: start=0, step=1, limit=4
  $region2: #{wm_encoder_forward.5} parent=0 // loop_pre_header
    _
  $region3: #{wm_encoder_forward.5} parent=0 // loop_header
    %s9 = sphi 0, %s13
    %p10 = scmp.ge.s32.totalorder %s9, 4
    %s19 = sphi 0, %s21
    %s22 = sphi 0, %s19
    %s23 = sphi 0, %s22
    %s39 = sphi 0, %s23
    %s43 = sphi 0, %s43
    %s45 = sphi 0, %s43
    %s46 = sphi 0, %s45
    %s60 = sphi 0, %s46
    %s64 = sphi 0, %s64
    %s66 = sphi 0, %s64
    %s67 = sphi 0, %s66
    %s81 = sphi 0, %s67
    %s87 = sphi 0, %s89
    %s90 = sphi 0, %s87
    %s91 = sphi 0, %s90
    %s107 = sphi 0, %s91
  $region4: #{wm_encoder_forward.5} parent=0 // loop_header_branch
    %12 = sbr.rel (%p10) target = $region8
  $region5: #{wm_encoder_forward.5} parent=0 // loop_body
    %s14 = ssub.s32 %s9, 1
    %s15 = ssub.s32 %s9, 2
    %s16 = sadd.s32 %s9, 1
    %s17 = ssub.s32 %s9, %s16
    %p18 = scmp.eq.s32.totalorder %s17, 0
    %s20 = sadd.s32 %s19, 1
    %s21 = scalar_select %p18, %s19, %s20
    %p24 = pneg %p18
    %p25 = scmp.eq.s32.totalorder %s9, 1
    %p26 = por %p24, %p25
    %p27 = scmp.ne.s32.totalorder %s19, %s22
    %p28 = scmp.eq.s32.totalorder %s9, 0
    %p29 = por %p27, %p28
    %p30 = scmp.ne.s32.totalorder %s19, %s22
    %p31 = scmp.eq.s32.totalorder %s14, 1
    %p32 = por %p30, %p31
    %p33 = scmp.ne.s32.totalorder %s22, %s23
    %p34 = scmp.eq.s32.totalorder %s14, 0
    %p35 = por %p33, %p34
    %p36 = scmp.ne.s32.totalorder %s22, %s23
    %p37 = scmp.eq.s32.totalorder %s15, 1
    %p38 = por %p36, %p37
    %p40 = scmp.ne.s32.totalorder %s23, %s39
    %p41 = scmp.eq.s32.totalorder %s15, 0
    %p42 = por %p40, %p41
    %s44 = sadd.s32 %s43, 1
    %p47 = scmp.eq.s32.totalorder %s9, 1
    %p48 = scmp.ne.s32.totalorder %s43, %s45
    %p49 = scmp.eq.s32.totalorder %s9, 0
    %p50 = por %p48, %p49
    %p51 = scmp.ne.s32.totalorder %s43, %s45
    %p52 = scmp.eq.s32.totalorder %s14, 1
    %p53 = por %p51, %p52
    %p54 = scmp.ne.s32.totalorder %s45, %s46
    %p55 = scmp.eq.s32.totalorder %s14, 0
    %p56 = por %p54, %p55
    %p57 = scmp.ne.s32.totalorder %s45, %s46
    %p58 = scmp.eq.s32.totalorder %s15, 1
    %p59 = por %p57, %p58
    %p61 = scmp.ne.s32.totalorder %s46, %s60
    %p62 = scmp.eq.s32.totalorder %s15, 0
    %p63 = por %p61, %p62
    %s65 = sadd.s32 %s64, 1
    %p68 = scmp.eq.s32.totalorder %s9, 1
    %p69 = scmp.ne.s32.totalorder %s64, %s66
    %p70 = scmp.eq.s32.totalorder %s9, 0
    %p71 = por %p69, %p70
    %p72 = scmp.ne.s32.totalorder %s64, %s66
    %p73 = scmp.eq.s32.totalorder %s14, 1
    %p74 = por %p72, %p73
    %p75 = scmp.ne.s32.totalorder %s66, %s67
    %p76 = scmp.eq.s32.totalorder %s14, 0
    %p77 = por %p75, %p76
    %p78 = scmp.ne.s32.totalorder %s66, %s67
    %p79 = scmp.eq.s32.totalorder %s15, 1
    %p80 = por %p78, %p79
    %p82 = scmp.ne.s32.totalorder %s67, %s81
    %p83 = scmp.eq.s32.totalorder %s15, 0
    %p84 = por %p82, %p83
    %s85 = ssub.s32 %s9, %s16
    %p86 = scmp.eq.s32.totalorder %s85, 0
    %s88 = sadd.s32 %s87, 1
    %s89 = scalar_select %p86, %s87, %s88
    %p92 = pneg %p86
    %p93 = scmp.eq.s32.totalorder %s9, 1
    %p94 = por %p92, %p93
    %p95 = scmp.ne.s32.totalorder %s87, %s90
    %p96 = scmp.eq.s32.totalorder %s9, 0
    %p97 = por %p95, %p96
    %p98 = scmp.ne.s32.totalorder %s87, %s90
    %p99 = scmp.eq.s32.totalorder %s14, 1
    %p100 = por %p98, %p99
    %p101 = scmp.ne.s32.totalorder %s90, %s91
    %p102 = scmp.eq.s32.totalorder %s14, 0
    %p103 = por %p101, %p102
    %p104 = scmp.ne.s32.totalorder %s90, %s91
    %p105 = scmp.eq.s32.totalorder %s15, 1
    %p106 = por %p104, %p105
    %p108 = scmp.ne.s32.totalorder %s91, %s107
    %p109 = scmp.eq.s32.totalorder %s15, 0
    %p110 = por %p108, %p109
    %p111 = scmp.le.s32.totalorder 1, %s9
    %p112 = scmp.lt.s32.totalorder %s9, 3
    %p113 = pnand %p111, %p112
    %p114 = pneg %p113
    // Predicated region
    $region9: #{wm_encoder_forward.5} parent=5 // pred_check
      _
    $region10: #{wm_encoder_forward.5} parent=5 // pred_check_branch
      %116 = sbr.rel (%p113) target = $region12
    $region11: #{wm_encoder_forward.5} parent=5 // pred_region
      %s117 = ssub.s32 %s9, 1
      // Predicated region
      $region13: #{wm_encoder_forward.5} parent=11 // pred_check
        %p118 = pneg %p56
      $region14: #{wm_encoder_forward.5} parent=11 // pred_check_branch
        %120 = sbr.rel (%p118) target = $region16
      $region15: #{wm_encoder_forward.5} parent=11 // pred_region
        _
      $region16: #{wm_encoder_forward.5} parent=11 // pred_fallthru
        _
      // Predicated region
      $region17: #{wm_encoder_forward.5} parent=11 // pred_check
        %p121 = pneg %p77
      $region18: #{wm_encoder_forward.5} parent=11 // pred_check_branch
        %123 = sbr.rel (%p121) target = $region20
      $region19: #{wm_encoder_forward.5} parent=11 // pred_region
        _
      $region20: #{wm_encoder_forward.5} parent=11 // pred_fallthru
        _
    $region12: #{wm_encoder_forward.5} parent=5 // pred_fallthru
      _
    %p124 = scmp.lt.s32.totalorder %s9, 2
    // Predicated region
    $region21: #{wm_encoder_forward.5} parent=5 // pred_check
      %p125 = pneg %p124
    $region22: #{wm_encoder_forward.5} parent=5 // pred_check_branch
      %127 = sbr.rel (%p125) target = $region24
    $region23: #{wm_encoder_forward.5} parent=5 // pred_region
      // Predicated region
      $region25: #{wm_encoder_forward.5} parent=23 // pred_check
        %p128 = pneg %p29
      $region26: #{wm_encoder_forward.5} parent=23 // pred_check_branch
        %130 = sbr.rel (%p128) target = $region28
      $region27: #{wm_encoder_forward.5} parent=23 // pred_region
        %p131 = scmp.lt.s32.totalorder %s9, 1
        %s132 = scalar_select %p131, %s9, 1
        %s133 = smul.addr %s132, 136
        %s134 = smul.addr %s133, 8
        %s135 = scalar_lea.vmem %s0, %s134
      $region28: #{wm_encoder_forward.5} parent=23 // pred_fallthru
        _
    $region24: #{wm_encoder_forward.5} parent=5 // pred_fallthru
      _
    %p136 = scmp.le.s32.totalorder 1, %s9
    %p137 = scmp.lt.s32.totalorder %s9, 3
    %p138 = pnand %p136, %p137
    %p139 = pneg %p138
    // Predicated region
    $region29: #{wm_encoder_forward.5} parent=5 // pred_check
      _
    $region30: #{wm_encoder_forward.5} parent=5 // pred_check_branch
      %141 = sbr.rel (%p138) target = $region32
    $region31: #{wm_encoder_forward.5} parent=5 // pred_region
      %s142 = ssub.s32 %s9, 1
      %p143 = scmp.lt.s32.totalorder %s14, 1
      %s144 = scalar_select %p143, %s14, 1
      %s145 = smul.addr %s144, 136
      %s146 = smul.addr %s145, 8
      %s147 = scalar_lea.vmem %s0, %s146
      %p148 = pneg %p35
      %p149 = pneg %p32
      %p150 = pneg %p56
      %p151 = pneg %p53
      %p152 = pneg %p77
      %p153 = pneg %p74
      %p154 = pneg %p103
      %p155 = pneg %p100
      %p156 = scmp.lt.s32.totalorder %s14, 1
      %s157 = scalar_select %p156, %s14, 1
      %s158 = smul.addr %s157, 16
      %s159 = smul.addr %s158, 8
      %s160 = scalar_lea.vmem %s3, %s159
      %p161 = scmp.lt.s32.totalorder %s14, 1
      %s162 = scalar_select %p161, %s14, 1
      %s163 = smul.addr %s162, 136
      %s164 = smul.addr %s163, 8
      %s165 = scalar_lea.vmem %s0, %s164
      %p166 = scmp.lt.s32.totalorder %s14, 1
      %s167 = scalar_select %p166, %s14, 1
      %s168 = smul.addr %s167, 16
      %s169 = smul.addr %s168, 8
      %s170 = scalar_lea.vmem %s3, %s169
      %v171 = vld [vmem:[%s165] sm:$0xff]
      %v172 = vld [vmem:[%s165 + $0x8] sm:$0xff]
      %v173 = vld [vmem:[%s165 + $0x10] sm:$0xff]
      %v174 = vld [vmem:[%s165 + $0x18] sm:$0xff]
      %v175 = vld [vmem:[%s165 + $0x20] sm:$0xff]
      %v176 = vld [vmem:[%s165 + $0x28] sm:$0xff]
      %v177 = vld [vmem:[%s165 + $0x30] sm:$0xff]
      %v178 = vld [vmem:[%s165 + $0x38] sm:$0xff]
      %v179 = vld [vmem:[%s165 + $0x40] sm:$0xff]
      %v180 = vld [vmem:[%s165 + $0x48] sm:$0xff]
      %v181 = vld [vmem:[%s165 + $0x50] sm:$0xff]
      %v182 = vld [vmem:[%s165 + $0x58] sm:$0xff]
      %v183 = vld [vmem:[%s165 + $0x60] sm:$0xff]
      %v184 = vld [vmem:[%s165 + $0x68] sm:$0xff]
      %v185 = vld [vmem:[%s165 + $0x70] sm:$0xff]
      %v186 = vld [vmem:[%s165 + $0x78] sm:$0xff]
      %v187 = vld [vmem:[%s165 + $0x80] sm:$0xff]
      %v188 = vld [vmem:[%s165 + $0x88] sm:$0xff]
      %v189 = vld [vmem:[%s165 + $0x90] sm:$0xff]
      %v190 = vld [vmem:[%s165 + $0x98] sm:$0xff]
      %v191 = vld [vmem:[%s165 + $0xa0] sm:$0xff]
      %v192 = vld [vmem:[%s165 + $0xa8] sm:$0xff]
      %v193 = vld [vmem:[%s165 + $0xb0] sm:$0xff]
      %v194 = vld [vmem:[%s165 + $0xb8] sm:$0xff]
      %v195 = vld [vmem:[%s165 + $0xc0] sm:$0xff]
      %v196 = vld [vmem:[%s165 + $0xc8] sm:$0xff]
      %v197 = vld [vmem:[%s165 + $0xd0] sm:$0xff]
      %v198 = vld [vmem:[%s165 + $0xd8] sm:$0xff]
      %v199 = vld [vmem:[%s165 + $0xe0] sm:$0xff]
      %v200 = vld [vmem:[%s165 + $0xe8] sm:$0xff]
      %v201 = vld [vmem:[%s165 + $0xf0] sm:$0xff]
      %v202 = vld [vmem:[%s165 + $0xf8] sm:$0xff]
      %v203 = vld [vmem:[%s165 + $0x100] sm:$0xff]
      %v204 = vld [vmem:[%s165 + $0x108] sm:$0xff]
      %v205 = vld [vmem:[%s165 + $0x110] sm:$0xff]
      %v206 = vld [vmem:[%s165 + $0x118] sm:$0xff]
      %v207 = vld [vmem:[%s165 + $0x120] sm:$0xff]
      %v208 = vld [vmem:[%s165 + $0x128] sm:$0xff]
      %v209 = vld [vmem:[%s165 + $0x130] sm:$0xff]
      %v210 = vld [vmem:[%s165 + $0x138] sm:$0xff]
      %v211 = vld [vmem:[%s165 + $0x140] sm:$0xff]
      %v212 = vld [vmem:[%s165 + $0x148] sm:$0xff]
      %v213 = vld [vmem:[%s165 + $0x150] sm:$0xff]
      %v214 = vld [vmem:[%s165 + $0x158] sm:$0xff]
      %v215 = vld [vmem:[%s165 + $0x160] sm:$0xff]
      %v216 = vld [vmem:[%s165 + $0x168] sm:$0xff]
      %v217 = vld [vmem:[%s165 + $0x170] sm:$0xff]
      %v218 = vld [vmem:[%s165 + $0x178] sm:$0xff]
      %v219 = vld [vmem:[%s165 + $0x180] sm:$0xff]
      %v220 = vld [vmem:[%s165 + $0x188] sm:$0xff]
      %v221 = vld [vmem:[%s165 + $0x190] sm:$0xff]
      %v222 = vld [vmem:[%s165 + $0x198] sm:$0xff]
      %v223 = vld [vmem:[%s165 + $0x1a0] sm:$0xff]
      %v224 = vld [vmem:[%s165 + $0x1a8] sm:$0xff]
      %v225 = vld [vmem:[%s165 + $0x1b0] sm:$0xff]
      %v226 = vld [vmem:[%s165 + $0x1b8] sm:$0xff]
      %v227 = vld [vmem:[%s165 + $0x1c0] sm:$0xff]
      %v228 = vld [vmem:[%s165 + $0x1c8] sm:$0xff]
      %v229 = vld [vmem:[%s165 + $0x1d0] sm:$0xff]
      %v230 = vld [vmem:[%s165 + $0x1d8] sm:$0xff]
      %v231 = vld [vmem:[%s165 + $0x1e0] sm:$0xff]
      %v232 = vld [vmem:[%s165 + $0x1e8] sm:$0xff]
      %v233 = vld [vmem:[%s165 + $0x1f0] sm:$0xff]
      %v234 = vld [vmem:[%s165 + $0x1f8] sm:$0xff]
      %v235 = vld [vmem:[%s165 + $0x200] sm:$0xff]
      %v236 = vld [vmem:[%s165 + $0x208] sm:$0xff]
      %v237 = vld [vmem:[%s165 + $0x210] sm:$0xff]
      %v238 = vld [vmem:[%s165 + $0x218] sm:$0xff]
      %v239 = vld [vmem:[%s165 + $0x220] sm:$0xff]
      %v240 = vld [vmem:[%s165 + $0x228] sm:$0xff]
      %v241 = vld [vmem:[%s165 + $0x230] sm:$0xff]
      %v242 = vld [vmem:[%s165 + $0x238] sm:$0xff]
      %v243 = vld [vmem:[%s165 + $0x240] sm:$0xff]
      %v244 = vld [vmem:[%s165 + $0x248] sm:$0xff]
      %v245 = vld [vmem:[%s165 + $0x250] sm:$0xff]
      %v246 = vld [vmem:[%s165 + $0x258] sm:$0xff]
      %v247 = vld [vmem:[%s165 + $0x260] sm:$0xff]
      %v248 = vld [vmem:[%s165 + $0x268] sm:$0xff]
      %v249 = vld [vmem:[%s165 + $0x270] sm:$0xff]
      %v250 = vld [vmem:[%s165 + $0x278] sm:$0xff]
      %v251 = vld [vmem:[%s165 + $0x280] sm:$0xff]
      %v252 = vld [vmem:[%s165 + $0x288] sm:$0xff]
      %v253 = vld [vmem:[%s165 + $0x290] sm:$0xff]
      %v254 = vld [vmem:[%s165 + $0x298] sm:$0xff]
      %v255 = vld [vmem:[%s165 + $0x2a0] sm:$0xff]
      %v256 = vld [vmem:[%s165 + $0x2a8] sm:$0xff]
      %v257 = vld [vmem:[%s165 + $0x2b0] sm:$0xff]
      %v258 = vld [vmem:[%s165 + $0x2b8] sm:$0xff]
      %v259 = vld [vmem:[%s165 + $0x2c0] sm:$0xff]
      %v260 = vld [vmem:[%s165 + $0x2c8] sm:$0xff]
      %v261 = vld [vmem:[%s165 + $0x2d0] sm:$0xff]
      %v262 = vld [vmem:[%s165 + $0x2d8] sm:$0xff]
      %v263 = vld [vmem:[%s165 + $0x2e0] sm:$0xff]
      %v264 = vld [vmem:[%s165 + $0x2e8] sm:$0xff]
      %v265 = vld [vmem:[%s165 + $0x2f0] sm:$0xff]
      %v266 = vld [vmem:[%s165 + $0x2f8] sm:$0xff]
      %v267 = vld [vmem:[%s165 + $0x300] sm:$0xff]
      %v268 = vld [vmem:[%s165 + $0x308] sm:$0xff]
      %v269 = vld [vmem:[%s165 + $0x310] sm:$0xff]
      %v270 = vld [vmem:[%s165 + $0x318] sm:$0xff]
      %v271 = vld [vmem:[%s165 + $0x320] sm:$0xff]
      %v272 = vld [vmem:[%s165 + $0x328] sm:$0xff]
      %v273 = vld [vmem:[%s165 + $0x330] sm:$0xff]
      %v274 = vld [vmem:[%s165 + $0x338] sm:$0xff]
      %v275 = vld [vmem:[%s165 + $0x340] sm:$0xff]
      %v276 = vld [vmem:[%s165 + $0x348] sm:$0xff]
      %v277 = vld [vmem:[%s165 + $0x350] sm:$0xff]
      %v278 = vld [vmem:[%s165 + $0x358] sm:$0xff]
      %v279 = vld [vmem:[%s165 + $0x360] sm:$0xff]
      %v280 = vld [vmem:[%s165 + $0x368] sm:$0xff]
      %v281 = vld [vmem:[%s165 + $0x370] sm:$0xff]
      %v282 = vld [vmem:[%s165 + $0x378] sm:$0xff]
      %v283 = vld [vmem:[%s165 + $0x380] sm:$0xff]
      %v284 = vld [vmem:[%s165 + $0x388] sm:$0xff]
      %v285 = vld [vmem:[%s165 + $0x390] sm:$0xff]
      %v286 = vld [vmem:[%s165 + $0x398] sm:$0xff]
      %v287 = vld [vmem:[%s165 + $0x3a0] sm:$0xff]
      %v288 = vld [vmem:[%s165 + $0x3a8] sm:$0xff]
      %v289 = vld [vmem:[%s165 + $0x3b0] sm:$0xff]
      %v290 = vld [vmem:[%s165 + $0x3b8] sm:$0xff]
      %v291 = vld [vmem:[%s165 + $0x3c0] sm:$0xff]
      %v292 = vld [vmem:[%s165 + $0x3c8] sm:$0xff]
      %v293 = vld [vmem:[%s165 + $0x3d0] sm:$0xff]
      %v294 = vld [vmem:[%s165 + $0x3d8] sm:$0xff]
      %v295 = vld [vmem:[%s165 + $0x3e0] sm:$0xff]
      %v296 = vld [vmem:[%s165 + $0x3e8] sm:$0xff]
      %v297 = vld [vmem:[%s165 + $0x3f0] sm:$0xff]
      %v298 = vld [vmem:[%s165 + $0x3f8] sm:$0xff]
      %v299 = vld [vmem:[%s165 + $0x400] sm:$0xff]
      %v300 = vld [vmem:[%s165 + $0x408] sm:$0xff]
      %v301 = vld [vmem:[%s165 + $0x410] sm:$0xff]
      %v302 = vld [vmem:[%s165 + $0x418] sm:$0xff]
      %v303 = vld [vmem:[%s165 + $0x420] sm:$0xff]
      %v304 = vld [vmem:[%s165 + $0x428] sm:$0xff]
      %v305 = vld [vmem:[%s165 + $0x430] sm:$0xff]
      %v306 = vld [vmem:[%s165 + $0x438] sm:$0xff]
      %v307 = vld [vmem:[%s1] sm:$0xff]
      %v308 = vld [vmem:[%s1 + $0x8] sm:$0xff]
      %v309 = vld [vmem:[%s1 + $0x10] sm:$0xff]
      %v310 = vld [vmem:[%s1 + $0x18] sm:$0xff]
      %v311 = vld [vmem:[%s1 + $0x20] sm:$0xff]
      %v312 = vld [vmem:[%s1 + $0x28] sm:$0xff]
      %v313 = vld [vmem:[%s1 + $0x30] sm:$0xff]
      %v314 = vld [vmem:[%s1 + $0x38] sm:$0xff]
      %v315 = vld [vmem:[%s1 + $0x40] sm:$0xff]
      %v316 = vld [vmem:[%s1 + $0x48] sm:$0xff]
      %v317 = vld [vmem:[%s1 + $0x50] sm:$0xff]
      %v318 = vld [vmem:[%s1 + $0x58] sm:$0xff]
      %v319 = vld [vmem:[%s1 + $0x60] sm:$0xff]
      %v320 = vld [vmem:[%s1 + $0x68] sm:$0xff]
      %v321 = vld [vmem:[%s1 + $0x70] sm:$0xff]
      %v322 = vld [vmem:[%s1 + $0x78] sm:$0xff]
      %v323 = vld [vmem:[%s1 + $0x80] sm:$0xff]
      %v324 = vld [vmem:[%s1 + $0x88] sm:$0xff]
      %v325 = vld [vmem:[%s1 + $0x90] sm:$0xff]
      %v326 = vld [vmem:[%s1 + $0x98] sm:$0xff]
      %v327 = vld [vmem:[%s1 + $0xa0] sm:$0xff]
      %v328 = vld [vmem:[%s1 + $0xa8] sm:$0xff]
      %v329 = vld [vmem:[%s1 + $0xb0] sm:$0xff]
      %v330 = vld [vmem:[%s1 + $0xb8] sm:$0xff]
      %v331 = vld [vmem:[%s1 + $0xc0] sm:$0xff]
      %v332 = vld [vmem:[%s1 + $0xc8] sm:$0xff]
      %v333 = vld [vmem:[%s1 + $0xd0] sm:$0xff]
      %v334 = vld [vmem:[%s1 + $0xd8] sm:$0xff]
      %v335 = vld [vmem:[%s1 + $0xe0] sm:$0xff]
      %v336 = vld [vmem:[%s1 + $0xe8] sm:$0xff]
      %v337 = vld [vmem:[%s1 + $0xf0] sm:$0xff]
      %v338 = vld [vmem:[%s1 + $0xf8] sm:$0xff]
      %v339 = vld [vmem:[%s1 + $0x100] sm:$0xff]
      %v340 = vld [vmem:[%s1 + $0x108] sm:$0xff]
      %v341 = vld [vmem:[%s1 + $0x110] sm:$0xff]
      %v342 = vld [vmem:[%s1 + $0x118] sm:$0xff]
      %v343 = vld [vmem:[%s1 + $0x120] sm:$0xff]
      %v344 = vld [vmem:[%s1 + $0x128] sm:$0xff]
      %v345 = vld [vmem:[%s1 + $0x130] sm:$0xff]
      %v346 = vld [vmem:[%s1 + $0x138] sm:$0xff]
      %v347 = vld [vmem:[%s2] sm:$0xff]
      %v348 = vld [vmem:[%s2 + $0x8] sm:$0xff]
      %v349 = vld [vmem:[%s2 + $0x10] sm:$0xff]
      %v350 = vld [vmem:[%s2 + $0x18] sm:$0xff]
      %v351 = vld [vmem:[%s2 + $0x20] sm:$0xff]
      %v352 = vld [vmem:[%s2 + $0x28] sm:$0xff]
      %v353 = vld [vmem:[%s2 + $0x30] sm:$0xff]
      %v354 = vld [vmem:[%s2 + $0x38] sm:$0xff]
      %356 = vset.pattern.permute.xlu0 0
      %357 = vperm.xlu0 %356, %v347
      %v358 = vpop.permute.xlu0 %357
      %361 = vset.pattern.permute.xlu0 0
      %362 = vperm.xlu0 %361, %v348
      %v363 = vpop.permute.xlu0 %362
      %366 = vset.pattern.permute.xlu0 0
      %367 = vperm.xlu0 %366, %v349
      %v368 = vpop.permute.xlu0 %367
      %371 = vset.pattern.permute.xlu0 0
      %372 = vperm.xlu0 %371, %v350
      %v373 = vpop.permute.xlu0 %372
      %376 = vset.pattern.permute.xlu0 0
      %377 = vperm.xlu0 %376, %v351
      %v378 = vpop.permute.xlu0 %377
      %381 = vset.pattern.permute.xlu0 0
      %382 = vperm.xlu0 %381, %v352
      %v383 = vpop.permute.xlu0 %382
      %386 = vset.pattern.permute.xlu0 0
      %387 = vperm.xlu0 %386, %v353
      %v388 = vpop.permute.xlu0 %387
      %391 = vset.pattern.permute.xlu0 0
      %392 = vperm.xlu0 %391, %v354
      %v393 = vpop.permute.xlu0 %392
      %vm395 = vcmask 261120
      %v397 = vsel %vm395, %v311, 0
      %v400 = vsel %vm395, %v316, 0
      %v403 = vsel %vm395, %v321, 0
      %v406 = vsel %vm395, %v326, 0
      %v409 = vsel %vm395, %v331, 0
      %v412 = vsel %vm395, %v336, 0
      %v415 = vsel %vm395, %v341, 0
      %v418 = vsel %vm395, %v346, 0
      %420 = vmatprep.subr.mxu0 %v172
      %421 = vmatpush1.msra.mxu0 %v171
      %422 = vmatprep.subr.mxu0 %v174
      %423 = vmatpush1.msra.mxu0 %v173
      %424 = vmatprep.subr.mxu0 %v176
      %425 = vmatpush1.msra.mxu0 %v175
      %426 = vmatprep.subr.mxu0 %v178
      %427 = vmatpush1.msra.mxu0 %v177
      %428 = vmatprep.subr.mxu0 %v180
      %429 = vmatpush1.msra.mxu0 %v179
      %430 = vmatprep.subr.mxu0 %v182
      %431 = vmatpush1.msra.mxu0 %v181
      %432 = vmatprep.subr.mxu0 %v184
      %433 = vmatpush1.msra.mxu0 %v183
      %434 = vmatprep.subr.mxu0 %v186
      %435 = vmatpush1.msra.mxu0 %v185
      %436 = vmatprep.subr.mxu0 %v188
      %437 = vmatpush1.msra.mxu0 %v187
      %438 = vmatprep.subr.mxu0 %v190
      %439 = vmatpush1.msra.mxu0 %v189
      %440 = vmatprep.subr.mxu0 %v192
      %441 = vmatpush1.msra.mxu0 %v191
      %442 = vmatprep.subr.mxu0 %v194
      %443 = vmatpush1.msra.mxu0 %v193
      %444 = vmatprep.subr.mxu0 %v196
      %445 = vmatpush1.msra.mxu0 %v195
      %446 = vmatprep.subr.mxu0 %v198
      %447 = vmatpush1.msra.mxu0 %v197
      %448 = vmatprep.subr.mxu0 %v200
      %449 = vmatpush1.msra.mxu0 %v199
      %450 = vmatprep.subr.mxu0 %v202
      %451 = vmatpush1.msra.mxu0 %v201
      %452 = vmatprep.subr.mxu0 %v204
      %453 = vmatpush1.msra.mxu0 %v203
      %454 = vmatprep.subr.mxu0 %v206
      %455 = vmatpush1.msra.mxu0 %v205
      %456 = vmatprep.subr.mxu0 %v208
      %457 = vmatpush1.msra.mxu0 %v207
      %458 = vmatprep.subr.mxu0 %v210
      %459 = vmatpush1.msra.mxu0 %v209
      %460 = vmatprep.subr.mxu0 %v212
      %461 = vmatpush1.msra.mxu0 %v211
      %462 = vmatprep.subr.mxu0 %v214
      %463 = vmatpush1.msra.mxu0 %v213
      %464 = vmatprep.subr.mxu0 %v216
      %465 = vmatpush1.msra.mxu0 %v215
      %466 = vmatprep.subr.mxu0 %v218
      %467 = vmatpush1.msra.mxu0 %v217
      %468 = vmatprep.subr.mxu0 %v220
      %469 = vmatpush1.msra.mxu0 %v219
      %470 = vmatprep.subr.mxu0 %v222
      %471 = vmatpush1.msra.mxu0 %v221
      %472 = vmatprep.subr.mxu0 %v224
      %473 = vmatpush1.msra.mxu0 %v223
      %474 = vmatprep.subr.mxu0 %v226
      %475 = vmatpush1.msra.mxu0 %v225
      %476 = vmatprep.subr.mxu0 %v228
      %477 = vmatpush1.msra.mxu0 %v227
      %478 = vmatprep.subr.mxu0 %v230
      %479 = vmatpush1.msra.mxu0 %v229
      %480 = vmatprep.subr.mxu0 %v232
      %481 = vmatpush1.msra.mxu0 %v231
      %482 = vmatprep.subr.mxu0 %v234
      %483 = vmatpush1.msra.mxu0 %v233
      %484 = vmatprep.mubr.f32.mxu0 %v308
      %485 = vmatmul.mubr.f32.gmra.mrb[0].mxu0 %v307
      %v486 = vpop.f32.mrb[0].mxu0
      %v487 = vadd.f32 %v358, %v486
      %v488 = vpop.f32.mrb[0].mxu0
      %v489 = vadd.f32 %v358, %v488
      %490 = vmatprep.mubr.f32.mxu0 %v313
      %491 = vmatmul.mubr.f32.gmra.mrb[0].mxu0 %v312
      %v492 = vpop.f32.mrb[0].mxu0
      %v493 = vadd.f32 %v363, %v492
      %v494 = vpop.f32.mrb[0].mxu0
      %v495 = vadd.f32 %v363, %v494
      %496 = vmatprep.mubr.f32.mxu0 %v318
      %497 = vmatmul.mubr.f32.gmra.mrb[0].mxu0 %v317
      %v498 = vpop.f32.mrb[0].mxu0
      %v499 = vadd.f32 %v368, %v498
      %v500 = vpop.f32.mrb[0].mxu0
      %v501 = vadd.f32 %v368, %v500
      %502 = vmatprep.mubr.f32.mxu0 %v323
      %503 = vmatmul.mubr.f32.gmra.mrb[0].mxu0 %v322
      %v504 = vpop.f32.mrb[0].mxu0
      %v505 = vadd.f32 %v373, %v504
      %v506 = vpop.f32.mrb[0].mxu0
      %v507 = vadd.f32 %v373, %v506
      %508 = vmatprep.mubr.f32.mxu0 %v328
      %509 = vmatmul.mubr.f32.gmra.mrb[0].mxu0 %v327
      %v510 = vpop.f32.mrb[0].mxu0
      %v511 = vadd.f32 %v378, %v510
      %v512 = vpop.f32.mrb[0].mxu0
      %v513 = vadd.f32 %v378, %v512
      %514 = vmatprep.mubr.f32.mxu0 %v333
      %515 = vmatmul.mubr.f32.gmra.mrb[0].mxu0 %v332
      %v516 = vpop.f32.mrb[0].mxu0
      %v517 = vadd.f32 %v383, %v516
      %v518 = vpop.f32.mrb[0].mxu0
      %v519 = vadd.f32 %v383, %v518
      %520 = vmatprep.mubr.f32.mxu0 %v338
      %521 = vmatmul.mubr.f32.gmra.mrb[0].mxu0 %v337
      %v522 = vpop.f32.mrb[0].mxu0
      %v523 = vadd.f32 %v388, %v522
      %v524 = vpop.f32.mrb[0].mxu0
      %v525 = vadd.f32 %v388, %v524
      %526 = vmatprep.mubr.f32.mxu0 %v343
      %527 = vmatmul.mubr.f32.gmra.mrb[0].mxu0 %v342
      %v528 = vpop.f32.mrb[0].mxu0
      %v529 = vadd.f32 %v393, %v528
      %v530 = vpop.f32.mrb[0].mxu0
      %v531 = vadd.f32 %v393, %v530
      %532 = vdwg.mxu0
      %533 = vmatprep.subr.mxu0 %v236
      %534 = vmatpush1.msra.mxu0 %v235
      %535 = vmatprep.subr.mxu0 %v238
      %536 = vmatpush1.msra.mxu0 %v237
      %537 = vmatprep.subr.mxu0 %v240
      %538 = vmatpush1.msra.mxu0 %v239
      %539 = vmatprep.subr.mxu0 %v242
      %540 = vmatpush1.msra.mxu0 %v241
      %541 = vmatprep.subr.mxu0 %v244
      %542 = vmatpush1.msra.mxu0 %v243
      %543 = vmatprep.subr.mxu0 %v246
      %544 = vmatpush1.msra.mxu0 %v245
      %545 = vmatprep.subr.mxu0 %v248
      %546 = vmatpush1.msra.mxu0 %v247
      %547 = vmatprep.subr.mxu0 %v250
      %548 = vmatpush1.msra.mxu0 %v249
      %549 = vmatprep.subr.mxu0 %v252
      %550 = vmatpush1.msra.mxu0 %v251
      %551 = vmatprep.subr.mxu0 %v254
      %552 = vmatpush1.msra.mxu0 %v253
      %553 = vmatprep.subr.mxu0 %v256
      %554 = vmatpush1.msra.mxu0 %v255
      %555 = vmatprep.subr.mxu0 %v258
      %556 = vmatpush1.msra.mxu0 %v257
      %557 = vmatprep.subr.mxu0 %v260
      %558 = vmatpush1.msra.mxu0 %v259
      %559 = vmatprep.subr.mxu0 %v262
      %560 = vmatpush1.msra.mxu0 %v261
      %561 = vmatprep.subr.mxu0 %v264
      %562 = vmatpush1.msra.mxu0 %v263
      %563 = vmatprep.subr.mxu0 %v266
      %564 = vmatpush1.msra.mxu0 %v265
      %565 = vmatprep.subr.mxu0 %v268
      %566 = vmatpush1.msra.mxu0 %v267
      %567 = vmatprep.subr.mxu0 %v270
      %568 = vmatpush1.msra.mxu0 %v269
      %569 = vmatprep.subr.mxu0 %v272
      %570 = vmatpush1.msra.mxu0 %v271
      %571 = vmatprep.subr.mxu0 %v274
      %572 = vmatpush1.msra.mxu0 %v273
      %573 = vmatprep.subr.mxu0 %v276
      %574 = vmatpush1.msra.mxu0 %v275
      %575 = vmatprep.subr.mxu0 %v278
      %576 = vmatpush1.msra.mxu0 %v277
      %577 = vmatprep.subr.mxu0 %v280
      %578 = vmatpush1.msra.mxu0 %v279
      %579 = vmatprep.subr.mxu0 %v282
      %580 = vmatpush1.msra.mxu0 %v281
      %581 = vmatprep.subr.mxu0 %v284
      %582 = vmatpush1.msra.mxu0 %v283
      %583 = vmatprep.subr.mxu0 %v286
      %584 = vmatpush1.msra.mxu0 %v285
      %585 = vmatprep.subr.mxu0 %v288
      %586 = vmatpush1.msra.mxu0 %v287
      %587 = vmatprep.subr.mxu0 %v290
      %588 = vmatpush1.msra.mxu0 %v289
      %589 = vmatprep.subr.mxu0 %v292
      %590 = vmatpush1.msra.mxu0 %v291
      %591 = vmatprep.subr.mxu0 %v294
      %592 = vmatpush1.msra.mxu0 %v293
      %593 = vmatprep.subr.mxu0 %v296
      %594 = vmatpush1.msra.mxu0 %v295
      %595 = vmatprep.subr.mxu0 %v298
      %596 = vmatpush1.msra.mxu0 %v297
      %597 = vmatprep.mubr.f32.mxu0 %v310
      %598 = vmatmul.mubr.f32.gmra.mrb[0].mxu0 %v309
      %v599 = vpop.f32.mrb[0].mxu0
      %v600 = vadd.f32 %v487, %v599
      %v601 = vpop.f32.mrb[0].mxu0
      %v602 = vadd.f32 %v489, %v601
      %603 = vmatprep.mubr.f32.mxu0 %v315
      %604 = vmatmul.mubr.f32.gmra.mrb[0].mxu0 %v314
      %v605 = vpop.f32.mrb[0].mxu0
      %v606 = vadd.f32 %v493, %v605
      %v607 = vpop.f32.mrb[0].mxu0
      %v608 = vadd.f32 %v495, %v607
      %609 = vmatprep.mubr.f32.mxu0 %v320
      %610 = vmatmul.mubr.f32.gmra.mrb[0].mxu0 %v319
      %v611 = vpop.f32.mrb[0].mxu0
      %v612 = vadd.f32 %v499, %v611
      %v613 = vpop.f32.mrb[0].mxu0
      %v614 = vadd.f32 %v501, %v613
      %615 = vmatprep.mubr.f32.mxu0 %v325
      %616 = vmatmul.mubr.f32.gmra.mrb[0].mxu0 %v324
      %v617 = vpop.f32.mrb[0].mxu0
      %v618 = vadd.f32 %v505, %v617
      %v619 = vpop.f32.mrb[0].mxu0
      %v620 = vadd.f32 %v507, %v619
      %621 = vmatprep.mubr.f32.mxu0 %v330
      %622 = vmatmul.mubr.f32.gmra.mrb[0].mxu0 %v329
      %v623 = vpop.f32.mrb[0].mxu0
      %v624 = vadd.f32 %v511, %v623
      %v625 = vpop.f32.mrb[0].mxu0
      %v626 = vadd.f32 %v513, %v625
      %627 = vmatprep.mubr.f32.mxu0 %v335
      %628 = vmatmul.mubr.f32.gmra.mrb[0].mxu0 %v334
      %v629 = vpop.f32.mrb[0].mxu0
      %v630 = vadd.f32 %v517, %v629
      %v631 = vpop.f32.mrb[0].mxu0
      %v632 = vadd.f32 %v519, %v631
      %633 = vmatprep.mubr.f32.mxu0 %v340
      %634 = vmatmul.mubr.f32.gmra.mrb[0].mxu0 %v339
      %v635 = vpop.f32.mrb[0].mxu0
      %v636 = vadd.f32 %v523, %v635
      %v637 = vpop.f32.mrb[0].mxu0
      %v638 = vadd.f32 %v525, %v637
      %639 = vmatprep.mubr.f32.mxu0 %v345
      %640 = vmatmul.mubr.f32.gmra.mrb[0].mxu0 %v344
      %v641 = vpop.f32.mrb[0].mxu0
      %v642 = vadd.f32 %v529, %v641
      %v643 = vpop.f32.mrb[0].mxu0
      %v644 = vadd.f32 %v531, %v643
      %645 = vdwg.mxu0
      %646 = vmatprep.subr.mxu0 %v300
      %647 = vmatpush1.msra.mxu0 %v299
      %648 = vmatprep.subr.mxu0 %v302
      %649 = vmatpush1.msra.mxu0 %v301
      %650 = vmatprep.subr.mxu0 %v304
      %651 = vmatpush1.msra.mxu0 %v303
      %652 = vmatprep.subr.mxu0 %v306
      %653 = vmatpush1.msra.mxu0 %v305
      %654 = vmatprep.subr.mxu0 0.0
      %655 = vmatpush1.msra.mxu0 0.0
      %656 = vmatprep.subr.mxu0 0.0
      %657 = vmatpush1.msra.mxu0 0.0
      %658 = vmatprep.subr.mxu0 0.0
      %659 = vmatpush1.msra.mxu0 0.0
      %660 = vmatprep.subr.mxu0 0.0
      %661 = vmatpush1.msra.mxu0 0.0
      %662 = vmatprep.subr.mxu0 0.0
      %663 = vmatpush1.msra.mxu0 0.0
      %664 = vmatprep.subr.mxu0 0.0
      %665 = vmatpush1.msra.mxu0 0.0
      %666 = vmatprep.subr.mxu0 0.0
      %667 = vmatpush1.msra.mxu0 0.0
      %668 = vmatprep.subr.mxu0 0.0
      %669 = vmatpush1.msra.mxu0 0.0
      %670 = vmatprep.subr.mxu0 0.0
      %671 = vmatpush1.msra.mxu0 0.0
      %672 = vmatprep.subr.mxu0 0.0
      %673 = vmatpush1.msra.mxu0 0.0
      %674 = vmatprep.subr.mxu0 0.0
      %675 = vmatpush1.msra.mxu0 0.0
      %676 = vmatprep.subr.mxu0 0.0
      %677 = vmatpush1.msra.mxu0 0.0
      %678 = vmatprep.subr.mxu0 0.0
      %679 = vmatpush1.msra.mxu0 0.0
      %680 = vmatprep.subr.mxu0 0.0
      %681 = vmatpush1.msra.mxu0 0.0
      %682 = vmatprep.subr.mxu0 0.0
      %683 = vmatpush1.msra.mxu0 0.0
      %684 = vmatprep.subr.mxu0 0.0
      %685 = vmatpush1.msra.mxu0 0.0
      %686 = vmatprep.subr.mxu0 0.0
      %687 = vmatpush1.msra.mxu0 0.0
      %688 = vmatprep.subr.mxu0 0.0
      %689 = vmatpush1.msra.mxu0 0.0
      %690 = vmatprep.subr.mxu0 0.0
      %691 = vmatpush1.msra.mxu0 0.0
      %692 = vmatprep.subr.mxu0 0.0
      %693 = vmatpush1.msra.mxu0 0.0
      %694 = vmatprep.subr.mxu0 0.0
      %695 = vmatpush1.msra.mxu0 0.0
      %696 = vmatprep.subr.mxu0 0.0
      %697 = vmatpush1.msra.mxu0 0.0
      %698 = vmatprep.subr.mxu0 0.0
      %699 = vmatpush1.msra.mxu0 0.0
      %700 = vmatprep.subr.mxu0 0.0
      %701 = vmatpush1.msra.mxu0 0.0
      %702 = vmatprep.subr.mxu0 0.0
      %703 = vmatpush1.msra.mxu0 0.0
      %704 = vmatprep.subr.mxu0 0.0
      %705 = vmatpush1.msra.mxu0 0.0
      %706 = vmatprep.subr.mxu0 0.0
      %707 = vmatpush1.msra.mxu0 0.0
      %708 = vmatprep.subr.mxu0 0.0
      %709 = vmatpush1.msra.mxu0 0.0
      %710 = vmatprep.mubr.f32.mxu0 0.0
      %711 = vmatmul.mubr.f32.gmra.mrb[0].mxu0 %v397
      %v712 = vpop.f32.mrb[0].mxu0
      %v713 = vadd.f32 %v600, %v712
      %v714 = vpop.f32.mrb[0].mxu0
      %v715 = vadd.f32 %v602, %v714
      %716 = vmatprep.mubr.f32.mxu0 0.0
      %717 = vmatmul.mubr.f32.gmra.mrb[0].mxu0 %v400
      %v718 = vpop.f32.mrb[0].mxu0
      %v719 = vadd.f32 %v606, %v718
      %v720 = vpop.f32.mrb[0].mxu0
      %v721 = vadd.f32 %v608, %v720
      %722 = vmatprep.mubr.f32.mxu0 0.0
      %723 = vmatmul.mubr.f32.gmra.mrb[0].mxu0 %v403
      %v724 = vpop.f32.mrb[0].mxu0
      %v725 = vadd.f32 %v612, %v724
      %v726 = vpop.f32.mrb[0].mxu0
      %v727 = vadd.f32 %v614, %v726
      %728 = vmatprep.mubr.f32.mxu0 0.0
      %729 = vmatmul.mubr.f32.gmra.mrb[0].mxu0 %v406
      %v730 = vpop.f32.mrb[0].mxu0
      %v731 = vadd.f32 %v618, %v730
      %v732 = vpop.f32.mrb[0].mxu0
      %v733 = vadd.f32 %v620, %v732
      %734 = vmatprep.mubr.f32.mxu0 0.0
      %735 = vmatmul.mubr.f32.gmra.mrb[0].mxu0 %v409
      %v736 = vpop.f32.mrb[0].mxu0
      %v737 = vadd.f32 %v624, %v736
      %v738 = vpop.f32.mrb[0].mxu0
      %v739 = vadd.f32 %v626, %v738
      %740 = vmatprep.mubr.f32.mxu0 0.0
      %741 = vmatmul.mubr.f32.gmra.mrb[0].mxu0 %v412
      %v742 = vpop.f32.mrb[0].mxu0
      %v743 = vadd.f32 %v630, %v742
      %v744 = vpop.f32.mrb[0].mxu0
      %v745 = vadd.f32 %v632, %v744
      %746 = vmatprep.mubr.f32.mxu0 0.0
      %747 = vmatmul.mubr.f32.gmra.mrb[0].mxu0 %v415
      %v748 = vpop.f32.mrb[0].mxu0
      %v749 = vadd.f32 %v636, %v748
      %v750 = vpop.f32.mrb[0].mxu0
      %v751 = vadd.f32 %v638, %v750
      %752 = vmatprep.mubr.f32.mxu0 0.0
      %753 = vmatmul.mubr.f32.gmra.mrb[0].mxu0 %v418
      %v754 = vpop.f32.mrb[0].mxu0
      %v755 = vadd.f32 %v642, %v754
      %v756 = vpop.f32.mrb[0].mxu0
      %v757 = vadd.f32 %v644, %v756
      %758 = vdwg.mxu0
      %v759 = vmul.f32 %v713, 0.5
      %v760 = vmul.f32 %v715, 0.5
      %v761 = vmul.f32 %v719, 0.5
      %v762 = vmul.f32 %v721, 0.5
      %v763 = vmul.f32 %v725, 0.5
      %v764 = vmul.f32 %v727, 0.5
      %v765 = vmul.f32 %v731, 0.5
      %v766 = vmul.f32 %v733, 0.5
      %v767 = vmul.f32 %v737, 0.5
      %v768 = vmul.f32 %v739, 0.5
      %v769 = vmul.f32 %v743, 0.5
      %v770 = vmul.f32 %v745, 0.5
      %v771 = vmul.f32 %v749, 0.5
      %v772 = vmul.f32 %v751, 0.5
      %v773 = vmul.f32 %v755, 0.5
      %v774 = vmul.f32 %v757, 0.5
      %v775 = vtanh.pop %v759
      %v776 = vtanh.pop %v760
      %v777 = vtanh.pop %v761
      %v778 = vtanh.pop %v762
      %v779 = vtanh.pop %v763
      %v780 = vtanh.pop %v764
      %v781 = vtanh.pop %v765
      %v782 = vtanh.pop %v766
      %v783 = vtanh.pop %v767
      %v784 = vtanh.pop %v768
      %v785 = vtanh.pop %v769
      %v786 = vtanh.pop %v770
      %v787 = vtanh.pop %v771
      %v788 = vtanh.pop %v772
      %v789 = vtanh.pop %v773
      %v790 = vtanh.pop %v774
      %v791 = vmul.f32 %v775, 0.5
      %v792 = vmul.f32 %v776, 0.5
      %v793 = vmul.f32 %v777, 0.5
      %v794 = vmul.f32 %v778, 0.5
      %v795 = vmul.f32 %v779, 0.5
      %v796 = vmul.f32 %v780, 0.5
      %v797 = vmul.f32 %v781, 0.5
      %v798 = vmul.f32 %v782, 0.5
      %v799 = vmul.f32 %v783, 0.5
      %v800 = vmul.f32 %v784, 0.5
      %v801 = vmul.f32 %v785, 0.5
      %v802 = vmul.f32 %v786, 0.5
      %v803 = vmul.f32 %v787, 0.5
      %v804 = vmul.f32 %v788, 0.5
      %v805 = vmul.f32 %v789, 0.5
      %v806 = vmul.f32 %v790, 0.5
      %v807 = vadd.f32 %v791, 0.5
      %v808 = vadd.f32 %v792, 0.5
      %v809 = vadd.f32 %v793, 0.5
      %v810 = vadd.f32 %v794, 0.5
      %v811 = vadd.f32 %v795, 0.5
      %v812 = vadd.f32 %v796, 0.5
      %v813 = vadd.f32 %v797, 0.5
      %v814 = vadd.f32 %v798, 0.5
      %v815 = vadd.f32 %v799, 0.5
      %v816 = vadd.f32 %v800, 0.5
      %v817 = vadd.f32 %v801, 0.5
      %v818 = vadd.f32 %v802, 0.5
      %v819 = vadd.f32 %v803, 0.5
      %v820 = vadd.f32 %v804, 0.5
      %v821 = vadd.f32 %v805, 0.5
      %v822 = vadd.f32 %v806, 0.5
      %v823 = vmul.f32 %v713, %v807
      %v824 = vmul.f32 %v715, %v808
      %v825 = vmul.f32 %v719, %v809
      %v826 = vmul.f32 %v721, %v810
      %v827 = vmul.f32 %v725, %v811
      %v828 = vmul.f32 %v727, %v812
      %v829 = vmul.f32 %v731, %v813
      %v830 = vmul.f32 %v733, %v814
      %v831 = vmul.f32 %v737, %v815
      %v832 = vmul.f32 %v739, %v816
      %v833 = vmul.f32 %v743, %v817
      %v834 = vmul.f32 %v745, %v818
      %v835 = vmul.f32 %v749, %v819
      %v836 = vmul.f32 %v751, %v820
      %v837 = vmul.f32 %v755, %v821
      %v838 = vmul.f32 %v757, %v822
      %v839 = vadd.f32 %v823, %v825
      %v840 = vadd.f32 %v839, %v827
      %v841 = vadd.f32 %v840, %v829
      %v842 = vadd.f32 %v841, %v831
      %v843 = vadd.f32 %v842, %v833
      %v844 = vadd.f32 %v843, %v835
      %v845 = vadd.f32 %v844, %v837
      %v846 = vrot.slane %v845, 4
      %v847 = vadd.f32 %v845, %v846
      %v848 = vrot.slane %v847, 2
      %v849 = vadd.f32 %v847, %v848
      %v850 = vrot.slane %v849, 1
      %v851 = vadd.f32 %v849, %v850
      %vm852 = vcmask 556032
      %v853 = vsel %vm852, %v824, 0.0
      %v854 = vsel %vm852, %v826, 0.0
      %v855 = vadd.f32 %v853, %v854
      %v856 = vsel %vm852, %v828, 0.0
      %v857 = vadd.f32 %v855, %v856
      %v858 = vsel %vm852, %v830, 0.0
      %v859 = vadd.f32 %v857, %v858
      %v860 = vsel %vm852, %v832, 0.0
      %v861 = vadd.f32 %v859, %v860
      %v862 = vsel %vm852, %v834, 0.0
      %v863 = vadd.f32 %v861, %v862
      %v864 = vsel %vm852, %v836, 0.0
      %v865 = vadd.f32 %v863, %v864
      %v866 = vsel %vm852, %v838, 0.0
      %v867 = vadd.f32 %v865, %v866
      %v868 = vrot.slane %v867, 4
      %v869 = vadd.f32 %v867, %v868
      %v870 = vrot.slane %v869, 2
      %v871 = vadd.f32 %v869, %v870
      %v872 = vrot.slane %v871, 1
      %v873 = vadd.f32 %v871, %v872
      %v874 = vmul.f32 %v823, %v823
      %v875 = vmul.f32 %v824, %v824
      %v876 = vmul.f32 %v825, %v825
      %v877 = vmul.f32 %v826, %v826
      %v878 = vmul.f32 %v827, %v827
      %v879 = vmul.f32 %v828, %v828
      %v880 = vmul.f32 %v829, %v829
      %v881 = vmul.f32 %v830, %v830
      %v882 = vmul.f32 %v831, %v831
      %v883 = vmul.f32 %v832, %v832
      %v884 = vmul.f32 %v833, %v833
      %v885 = vmul.f32 %v834, %v834
      %v886 = vmul.f32 %v835, %v835
      %v887 = vmul.f32 %v836, %v836
      %v888 = vmul.f32 %v837, %v837
      %v889 = vmul.f32 %v838, %v838
      %v890 = vadd.f32 %v874, %v876
      %v891 = vadd.f32 %v890, %v878
      %v892 = vadd.f32 %v891, %v880
      %v893 = vadd.f32 %v892, %v882
      %v894 = vadd.f32 %v893, %v884
      %v895 = vadd.f32 %v894, %v886
      %v896 = vadd.f32 %v895, %v888
      %v897 = vrot.slane %v896, 4
      %v898 = vadd.f32 %v896, %v897
      %v899 = vrot.slane %v898, 2
      %v900 = vadd.f32 %v898, %v899
      %v901 = vrot.slane %v900, 1
      %v902 = vadd.f32 %v900, %v901
      %v903 = vsel %vm852, %v875, 0.0
      %v904 = vsel %vm852, %v877, 0.0
      %v905 = vadd.f32 %v903, %v904
      %v906 = vsel %vm852, %v879, 0.0
      %v907 = vadd.f32 %v905, %v906
      %v908 = vsel %vm852, %v881, 0.0
      %v909 = vadd.f32 %v907, %v908
      %v910 = vsel %vm852, %v883, 0.0
      %v911 = vadd.f32 %v909, %v910
      %v912 = vsel %vm852, %v885, 0.0
      %v913 = vadd.f32 %v911, %v912
      %v914 = vsel %vm852, %v887, 0.0
      %v915 = vadd.f32 %v913, %v914
      %v916 = vsel %vm852, %v889, 0.0
      %v917 = vadd.f32 %v915, %v916
      %v918 = vrot.slane %v917, 4
      %v919 = vadd.f32 %v917, %v918
      %v920 = vrot.slane %v919, 2
      %v921 = vadd.f32 %v919, %v920
      %v922 = vrot.slane %v921, 1
      %v923 = vadd.f32 %v921, %v922
      %v924 = vsel %vm852, %v873, 0.0
      %v925 = vadd.f32 %v851, %v924
      %926 = vadd.xlane.f32.xlu0 %v925
      %v927 = vpop.xlane.xlu0 %926
      %v928 = vsel %vm852, %v923, 0.0
      %v929 = vadd.f32 %v902, %v928
      %930 = vadd.xlane.f32.xlu0 %v929
      %v931 = vpop.xlane.xlu0 %930
      %v932 = vmul.f32 %v927, 7.9719386e-05
      %v933 = vmul.f32 %v931, 7.9719386e-05
      %v934 = vmul.f32 %v932, %v932
      %v935 = vsub.f32 %v933, %v934
      %v936 = vadd.f32 %v935, 1e-05
      %v937 = vrsqrt.pop %v936
      %v938 = vsub.f32 %v823, %v932
      %v939 = vsub.f32 %v824, %v932
      %v940 = vsub.f32 %v825, %v932
      %v941 = vsub.f32 %v826, %v932
      %v942 = vsub.f32 %v827, %v932
      %v943 = vsub.f32 %v828, %v932
      %v944 = vsub.f32 %v829, %v932
      %v945 = vsub.f32 %v830, %v932
      %v946 = vsub.f32 %v831, %v932
      %v947 = vsub.f32 %v832, %v932
      %v948 = vsub.f32 %v833, %v932
      %v949 = vsub.f32 %v834, %v932
      %v950 = vsub.f32 %v835, %v932
      %v951 = vsub.f32 %v836, %v932
      %v952 = vsub.f32 %v837, %v932
      %v953 = vsub.f32 %v838, %v932
      %v954 = vmul.f32 %v938, %v937
      %v955 = vmul.f32 %v939, %v937
      %v956 = vmul.f32 %v940, %v937
      %v957 = vmul.f32 %v941, %v937
      %v958 = vmul.f32 %v942, %v937
      %v959 = vmul.f32 %v943, %v937
      %v960 = vmul.f32 %v944, %v937
      %v961 = vmul.f32 %v945, %v937
      %v962 = vmul.f32 %v946, %v937
      %v963 = vmul.f32 %v947, %v937
      %v964 = vmul.f32 %v948, %v937
      %v965 = vmul.f32 %v949, %v937
      %v966 = vmul.f32 %v950, %v937
      %v967 = vmul.f32 %v951, %v937
      %v968 = vmul.f32 %v952, %v937
      %v969 = vmul.f32 %v953, %v937
      %970 = vst [vmem:[%s170] sm:$0xff] %v954
      %971 = vst.msk [vmem:[%s170 + $0x8] sm:$0xff] %vm852, %v955
      %972 = vst [vmem:[%s170 + $0x10] sm:$0xff] %v956
      %973 = vst.msk [vmem:[%s170 + $0x18] sm:$0xff] %vm852, %v957
      %974 = vst [vmem:[%s170 + $0x20] sm:$0xff] %v958
      %975 = vst.msk [vmem:[%s170 + $0x28] sm:$0xff] %vm852, %v959
      %976 = vst [vmem:[%s170 + $0x30] sm:$0xff] %v960
      %977 = vst.msk [vmem:[%s170 + $0x38] sm:$0xff] %vm852, %v961
      %978 = vst [vmem:[%s170 + $0x40] sm:$0xff] %v962
      %979 = vst.msk [vmem:[%s170 + $0x48] sm:$0xff] %vm852, %v963
      %980 = vst [vmem:[%s170 + $0x50] sm:$0xff] %v964
      %981 = vst.msk [vmem:[%s170 + $0x58] sm:$0xff] %vm852, %v965
      %982 = vst [vmem:[%s170 + $0x60] sm:$0xff] %v966
      %983 = vst.msk [vmem:[%s170 + $0x68] sm:$0xff] %vm852, %v967
      %984 = vst [vmem:[%s170 + $0x70] sm:$0xff] %v968
      %985 = vst.msk [vmem:[%s170 + $0x78] sm:$0xff] %vm852, %v969
      %p986 = scmp.lt.s32.totalorder %s14, 1
      %s987 = scalar_select %p986, %s14, 1
      %s988 = smul.addr %s987, 16
      %s989 = smul.addr %s988, 8
      %s990 = scalar_lea.vmem %s3, %s989
      // Predicated region
      $region33: #{wm_encoder_forward.5} parent=31 // pred_check
        %p991 = pneg %p100
      $region34: #{wm_encoder_forward.5} parent=31 // pred_check_branch
        %993 = sbr.rel (%p991) target = $region36
      $region35: #{wm_encoder_forward.5} parent=31 // pred_region
        _
      $region36: #{wm_encoder_forward.5} parent=31 // pred_fallthru
        _
    $region32: #{wm_encoder_forward.5} parent=5 // pred_fallthru
      _
    %p994 = scmp.le.s32.totalorder 2, %s9
    // Predicated region
    $region37: #{wm_encoder_forward.5} parent=5 // pred_check
      %p995 = pneg %p994
    $region38: #{wm_encoder_forward.5} parent=5 // pred_check_branch
      %997 = sbr.rel (%p995) target = $region40
    $region39: #{wm_encoder_forward.5} parent=5 // pred_region
      %s998 = ssub.s32 %s9, 2
      // Predicated region
      $region41: #{wm_encoder_forward.5} parent=39 // pred_check
        %p999 = pneg %p106
      $region42: #{wm_encoder_forward.5} parent=39 // pred_check_branch
        %1001 = sbr.rel (%p999) target = $region44
      $region43: #{wm_encoder_forward.5} parent=39 // pred_region
        %p1002 = scmp.lt.s32.totalorder %s15, 1
        %s1003 = scalar_select %p1002, %s15, 1
        %s1004 = smul.addr %s1003, 16
        %s1005 = smul.addr %s1004, 8
        %s1006 = scalar_lea.vmem %s3, %s1005
      $region44: #{wm_encoder_forward.5} parent=39 // pred_fallthru
        _
    $region40: #{wm_encoder_forward.5} parent=5 // pred_fallthru
      _
  $region6: #{wm_encoder_forward.5} parent=0 // loop_footer
    %s13 = sadd.s32 1, %s9
  $region7: #{wm_encoder_forward.5} parent=0 // loop_footer_branch
    %8 = sbr.rel target = $region3
  $region8: #{wm_encoder_forward.5} parent=0 // loop_exit
    _

// kernel: wm_encoder_forward.6
$region0: #{wm_encoder_forward.6}
  #allocation0 [shape = 'u32[]', space=smem, size = 0x4, offset = 0x4, fixed_abs, tag = 'smem constant byte address 0x4 - core index']
  #allocation1 [shape = 'u32[144,128]{1,0:T(1,128)}', space=vmem, size = 0x12000, scoped, tag = 'internal scratch']
  %s0 = inlined_call_operand.vmem [shape: f32[2,1056,36], index: 0, kind: input, shape index: {}]
  %s1 = inlined_call_operand.vmem [shape: f32[128,1056], index: 1, kind: input, shape index: {}]
  %s2 = inlined_call_operand.vmem [shape: f32[128,1], index: 2, kind: input, shape index: {}]
  %s3 = inlined_call_operand.vmem [shape: f32[2,128,36], index: 3, kind: output, shape index: {}]
  %s4 = sld [smem:[#allocation0]]
  $region45: #{wm_encoder_forward.6} parent=0
    _
  %s6 = ssub.s32 1, %s4
  %s7 = scalar_select 0, %s6, %s4
  loop: start=0, step=1, limit=4
  $region2: #{wm_encoder_forward.6} parent=0 // loop_pre_header
    _
  $region3: #{wm_encoder_forward.6} parent=0 // loop_header
    %s9 = sphi 0, %s13
    %p10 = scmp.ge.s32.totalorder %s9, 4
    %s19 = sphi 0, %s21
    %s22 = sphi 0, %s19
    %s23 = sphi 0, %s22
    %s39 = sphi 0, %s23
    %s43 = sphi 0, %s43
    %s45 = sphi 0, %s43
    %s46 = sphi 0, %s45
    %s60 = sphi 0, %s46
    %s64 = sphi 0, %s64
    %s66 = sphi 0, %s64
    %s67 = sphi 0, %s66
    %s81 = sphi 0, %s67
    %s87 = sphi 0, %s89
    %s90 = sphi 0, %s87
    %s91 = sphi 0, %s90
    %s107 = sphi 0, %s91
  $region4: #{wm_encoder_forward.6} parent=0 // loop_header_branch
    %12 = sbr.rel (%p10) target = $region8
  $region5: #{wm_encoder_forward.6} parent=0 // loop_body
    %s14 = ssub.s32 %s9, 1
    %s15 = ssub.s32 %s9, 2
    %s16 = sadd.s32 %s9, 1
    %s17 = ssub.s32 %s9, %s16
    %p18 = scmp.eq.s32.totalorder %s17, 0
    %s20 = sadd.s32 %s19, 1
    %s21 = scalar_select %p18, %s19, %s20
    %p24 = pneg %p18
    %p25 = scmp.eq.s32.totalorder %s9, 1
    %p26 = por %p24, %p25
    %p27 = scmp.ne.s32.totalorder %s19, %s22
    %p28 = scmp.eq.s32.totalorder %s9, 0
    %p29 = por %p27, %p28
    %p30 = scmp.ne.s32.totalorder %s19, %s22
    %p31 = scmp.eq.s32.totalorder %s14, 1
    %p32 = por %p30, %p31
    %p33 = scmp.ne.s32.totalorder %s22, %s23
    %p34 = scmp.eq.s32.totalorder %s14, 0
    %p35 = por %p33, %p34
    %p36 = scmp.ne.s32.totalorder %s22, %s23
    %p37 = scmp.eq.s32.totalorder %s15, 1
    %p38 = por %p36, %p37
    %p40 = scmp.ne.s32.totalorder %s23, %s39
    %p41 = scmp.eq.s32.totalorder %s15, 0
    %p42 = por %p40, %p41
    %s44 = sadd.s32 %s43, 1
    %p47 = scmp.eq.s32.totalorder %s9, 1
    %p48 = scmp.ne.s32.totalorder %s43, %s45
    %p49 = scmp.eq.s32.totalorder %s9, 0
    %p50 = por %p48, %p49
    %p51 = scmp.ne.s32.totalorder %s43, %s45
    %p52 = scmp.eq.s32.totalorder %s14, 1
    %p53 = por %p51, %p52
    %p54 = scmp.ne.s32.totalorder %s45, %s46
    %p55 = scmp.eq.s32.totalorder %s14, 0
    %p56 = por %p54, %p55
    %p57 = scmp.ne.s32.totalorder %s45, %s46
    %p58 = scmp.eq.s32.totalorder %s15, 1
    %p59 = por %p57, %p58
    %p61 = scmp.ne.s32.totalorder %s46, %s60
    %p62 = scmp.eq.s32.totalorder %s15, 0
    %p63 = por %p61, %p62
    %s65 = sadd.s32 %s64, 1
    %p68 = scmp.eq.s32.totalorder %s9, 1
    %p69 = scmp.ne.s32.totalorder %s64, %s66
    %p70 = scmp.eq.s32.totalorder %s9, 0
    %p71 = por %p69, %p70
    %p72 = scmp.ne.s32.totalorder %s64, %s66
    %p73 = scmp.eq.s32.totalorder %s14, 1
    %p74 = por %p72, %p73
    %p75 = scmp.ne.s32.totalorder %s66, %s67
    %p76 = scmp.eq.s32.totalorder %s14, 0
    %p77 = por %p75, %p76
    %p78 = scmp.ne.s32.totalorder %s66, %s67
    %p79 = scmp.eq.s32.totalorder %s15, 1
    %p80 = por %p78, %p79
    %p82 = scmp.ne.s32.totalorder %s67, %s81
    %p83 = scmp.eq.s32.totalorder %s15, 0
    %p84 = por %p82, %p83
    %s85 = ssub.s32 %s9, %s16
    %p86 = scmp.eq.s32.totalorder %s85, 0
    %s88 = sadd.s32 %s87, 1
    %s89 = scalar_select %p86, %s87, %s88
    %p92 = pneg %p86
    %p93 = scmp.eq.s32.totalorder %s9, 1
    %p94 = por %p92, %p93
    %p95 = scmp.ne.s32.totalorder %s87, %s90
    %p96 = scmp.eq.s32.totalorder %s9, 0
    %p97 = por %p95, %p96
    %p98 = scmp.ne.s32.totalorder %s87, %s90
    %p99 = scmp.eq.s32.totalorder %s14, 1
    %p100 = por %p98, %p99
    %p101 = scmp.ne.s32.totalorder %s90, %s91
    %p102 = scmp.eq.s32.totalorder %s14, 0
    %p103 = por %p101, %p102
    %p104 = scmp.ne.s32.totalorder %s90, %s91
    %p105 = scmp.eq.s32.totalorder %s15, 1
    %p106 = por %p104, %p105
    %p108 = scmp.ne.s32.totalorder %s91, %s107
    %p109 = scmp.eq.s32.totalorder %s15, 0
    %p110 = por %p108, %p109
    %p111 = scmp.le.s32.totalorder 1, %s9
    %p112 = scmp.lt.s32.totalorder %s9, 3
    %p113 = pnand %p111, %p112
    %p114 = pneg %p113
    // Predicated region
    $region9: #{wm_encoder_forward.6} parent=5 // pred_check
      _
    $region10: #{wm_encoder_forward.6} parent=5 // pred_check_branch
      %116 = sbr.rel (%p113) target = $region12
    $region11: #{wm_encoder_forward.6} parent=5 // pred_region
      %s117 = ssub.s32 %s9, 1
      // Predicated region
      $region13: #{wm_encoder_forward.6} parent=11 // pred_check
        %p118 = pneg %p56
      $region14: #{wm_encoder_forward.6} parent=11 // pred_check_branch
        %120 = sbr.rel (%p118) target = $region16
      $region15: #{wm_encoder_forward.6} parent=11 // pred_region
        _
      $region16: #{wm_encoder_forward.6} parent=11 // pred_fallthru
        _
      // Predicated region
      $region17: #{wm_encoder_forward.6} parent=11 // pred_check
        %p121 = pneg %p77
      $region18: #{wm_encoder_forward.6} parent=11 // pred_check_branch
        %123 = sbr.rel (%p121) target = $region20
      $region19: #{wm_encoder_forward.6} parent=11 // pred_region
        _
      $region20: #{wm_encoder_forward.6} parent=11 // pred_fallthru
        _
    $region12: #{wm_encoder_forward.6} parent=5 // pred_fallthru
      _
    %p124 = scmp.lt.s32.totalorder %s9, 2
    // Predicated region
    $region21: #{wm_encoder_forward.6} parent=5 // pred_check
      %p125 = pneg %p124
    $region22: #{wm_encoder_forward.6} parent=5 // pred_check_branch
      %127 = sbr.rel (%p125) target = $region24
    $region23: #{wm_encoder_forward.6} parent=5 // pred_region
      // Predicated region
      $region25: #{wm_encoder_forward.6} parent=23 // pred_check
        %p128 = pneg %p29
      $region26: #{wm_encoder_forward.6} parent=23 // pred_check_branch
        %130 = sbr.rel (%p128) target = $region28
      $region27: #{wm_encoder_forward.6} parent=23 // pred_region
        %p131 = scmp.lt.s32.totalorder %s9, 1
        %s132 = scalar_select %p131, %s9, 1
        %s133 = smul.addr %s132, 132
        %s134 = smul.addr %s133, 8
        %s135 = scalar_lea.vmem %s0, %s134
      $region28: #{wm_encoder_forward.6} parent=23 // pred_fallthru
        _
    $region24: #{wm_encoder_forward.6} parent=5 // pred_fallthru
      _
    %p136 = scmp.le.s32.totalorder 1, %s9
    %p137 = scmp.lt.s32.totalorder %s9, 3
    %p138 = pnand %p136, %p137
    %p139 = pneg %p138
    // Predicated region
    $region29: #{wm_encoder_forward.6} parent=5 // pred_check
      _
    $region30: #{wm_encoder_forward.6} parent=5 // pred_check_branch
      %141 = sbr.rel (%p138) target = $region32
    $region31: #{wm_encoder_forward.6} parent=5 // pred_region
      %s142 = ssub.s32 %s9, 1
      %p143 = scmp.lt.s32.totalorder %s14, 1
      %s144 = scalar_select %p143, %s14, 1
      %s145 = smul.addr %s144, 132
      %s146 = smul.addr %s145, 8
      %s147 = scalar_lea.vmem %s0, %s146
      %p148 = pneg %p35
      %p149 = pneg %p32
      %p150 = pneg %p56
      %p151 = pneg %p53
      %p152 = pneg %p77
      %p153 = pneg %p74
      %p154 = pneg %p103
      %p155 = pneg %p100
      %p156 = scmp.lt.s32.totalorder %s14, 1
      %s157 = scalar_select %p156, %s14, 1
      %s158 = smul.addr %s157, 16
      %s159 = smul.addr %s158, 8
      %s160 = scalar_lea.vmem %s3, %s159
      %p161 = scmp.lt.s32.totalorder %s14, 1
      %s162 = scalar_select %p161, %s14, 1
      %s163 = smul.addr %s162, 132
      %s164 = smul.addr %s163, 8
      %s165 = scalar_lea.vmem %s0, %s164
      %p166 = scmp.lt.s32.totalorder %s14, 1
      %s167 = scalar_select %p166, %s14, 1
      %s168 = smul.addr %s167, 16
      %s169 = smul.addr %s168, 8
      %s170 = scalar_lea.vmem %s3, %s169
      %v171 = vld [vmem:[%s165] sm:$0xff]
      %v172 = vld [vmem:[%s165 + $0x8] sm:$0xff]
      %v173 = vld [vmem:[%s165 + $0x10] sm:$0xff]
      %v174 = vld [vmem:[%s165 + $0x18] sm:$0xff]
      %v175 = vld [vmem:[%s165 + $0x20] sm:$0xff]
      %v176 = vld [vmem:[%s165 + $0x28] sm:$0xff]
      %v177 = vld [vmem:[%s165 + $0x30] sm:$0xff]
      %v178 = vld [vmem:[%s165 + $0x38] sm:$0xff]
      %v179 = vld [vmem:[%s165 + $0x40] sm:$0xff]
      %v180 = vld [vmem:[%s165 + $0x48] sm:$0xff]
      %v181 = vld [vmem:[%s165 + $0x50] sm:$0xff]
      %v182 = vld [vmem:[%s165 + $0x58] sm:$0xff]
      %v183 = vld [vmem:[%s165 + $0x60] sm:$0xff]
      %v184 = vld [vmem:[%s165 + $0x68] sm:$0xff]
      %v185 = vld [vmem:[%s165 + $0x70] sm:$0xff]
      %v186 = vld [vmem:[%s165 + $0x78] sm:$0xff]
      %v187 = vld [vmem:[%s165 + $0x80] sm:$0xff]
      %v188 = vld [vmem:[%s165 + $0x88] sm:$0xff]
      %v189 = vld [vmem:[%s165 + $0x90] sm:$0xff]
      %v190 = vld [vmem:[%s165 + $0x98] sm:$0xff]
      %v191 = vld [vmem:[%s165 + $0xa0] sm:$0xff]
      %v192 = vld [vmem:[%s165 + $0xa8] sm:$0xff]
      %v193 = vld [vmem:[%s165 + $0xb0] sm:$0xff]
      %v194 = vld [vmem:[%s165 + $0xb8] sm:$0xff]
      %v195 = vld [vmem:[%s165 + $0xc0] sm:$0xff]
      %v196 = vld [vmem:[%s165 + $0xc8] sm:$0xff]
      %v197 = vld [vmem:[%s165 + $0xd0] sm:$0xff]
      %v198 = vld [vmem:[%s165 + $0xd8] sm:$0xff]
      %v199 = vld [vmem:[%s165 + $0xe0] sm:$0xff]
      %v200 = vld [vmem:[%s165 + $0xe8] sm:$0xff]
      %v201 = vld [vmem:[%s165 + $0xf0] sm:$0xff]
      %v202 = vld [vmem:[%s165 + $0xf8] sm:$0xff]
      %v203 = vld [vmem:[%s165 + $0x100] sm:$0xff]
      %v204 = vld [vmem:[%s165 + $0x108] sm:$0xff]
      %v205 = vld [vmem:[%s165 + $0x110] sm:$0xff]
      %v206 = vld [vmem:[%s165 + $0x118] sm:$0xff]
      %v207 = vld [vmem:[%s165 + $0x120] sm:$0xff]
      %v208 = vld [vmem:[%s165 + $0x128] sm:$0xff]
      %v209 = vld [vmem:[%s165 + $0x130] sm:$0xff]
      %v210 = vld [vmem:[%s165 + $0x138] sm:$0xff]
      %v211 = vld [vmem:[%s165 + $0x140] sm:$0xff]
      %v212 = vld [vmem:[%s165 + $0x148] sm:$0xff]
      %v213 = vld [vmem:[%s165 + $0x150] sm:$0xff]
      %v214 = vld [vmem:[%s165 + $0x158] sm:$0xff]
      %v215 = vld [vmem:[%s165 + $0x160] sm:$0xff]
      %v216 = vld [vmem:[%s165 + $0x168] sm:$0xff]
      %v217 = vld [vmem:[%s165 + $0x170] sm:$0xff]
      %v218 = vld [vmem:[%s165 + $0x178] sm:$0xff]
      %v219 = vld [vmem:[%s165 + $0x180] sm:$0xff]
      %v220 = vld [vmem:[%s165 + $0x188] sm:$0xff]
      %v221 = vld [vmem:[%s165 + $0x190] sm:$0xff]
      %v222 = vld [vmem:[%s165 + $0x198] sm:$0xff]
      %v223 = vld [vmem:[%s165 + $0x1a0] sm:$0xff]
      %v224 = vld [vmem:[%s165 + $0x1a8] sm:$0xff]
      %v225 = vld [vmem:[%s165 + $0x1b0] sm:$0xff]
      %v226 = vld [vmem:[%s165 + $0x1b8] sm:$0xff]
      %v227 = vld [vmem:[%s165 + $0x1c0] sm:$0xff]
      %v228 = vld [vmem:[%s165 + $0x1c8] sm:$0xff]
      %v229 = vld [vmem:[%s165 + $0x1d0] sm:$0xff]
      %v230 = vld [vmem:[%s165 + $0x1d8] sm:$0xff]
      %v231 = vld [vmem:[%s165 + $0x1e0] sm:$0xff]
      %v232 = vld [vmem:[%s165 + $0x1e8] sm:$0xff]
      %v233 = vld [vmem:[%s165 + $0x1f0] sm:$0xff]
      %v234 = vld [vmem:[%s165 + $0x1f8] sm:$0xff]
      %v235 = vld [vmem:[%s165 + $0x200] sm:$0xff]
      %v236 = vld [vmem:[%s165 + $0x208] sm:$0xff]
      %v237 = vld [vmem:[%s165 + $0x210] sm:$0xff]
      %v238 = vld [vmem:[%s165 + $0x218] sm:$0xff]
      %v239 = vld [vmem:[%s165 + $0x220] sm:$0xff]
      %v240 = vld [vmem:[%s165 + $0x228] sm:$0xff]
      %v241 = vld [vmem:[%s165 + $0x230] sm:$0xff]
      %v242 = vld [vmem:[%s165 + $0x238] sm:$0xff]
      %v243 = vld [vmem:[%s165 + $0x240] sm:$0xff]
      %v244 = vld [vmem:[%s165 + $0x248] sm:$0xff]
      %v245 = vld [vmem:[%s165 + $0x250] sm:$0xff]
      %v246 = vld [vmem:[%s165 + $0x258] sm:$0xff]
      %v247 = vld [vmem:[%s165 + $0x260] sm:$0xff]
      %v248 = vld [vmem:[%s165 + $0x268] sm:$0xff]
      %v249 = vld [vmem:[%s165 + $0x270] sm:$0xff]
      %v250 = vld [vmem:[%s165 + $0x278] sm:$0xff]
      %v251 = vld [vmem:[%s165 + $0x280] sm:$0xff]
      %v252 = vld [vmem:[%s165 + $0x288] sm:$0xff]
      %v253 = vld [vmem:[%s165 + $0x290] sm:$0xff]
      %v254 = vld [vmem:[%s165 + $0x298] sm:$0xff]
      %v255 = vld [vmem:[%s165 + $0x2a0] sm:$0xff]
      %v256 = vld [vmem:[%s165 + $0x2a8] sm:$0xff]
      %v257 = vld [vmem:[%s165 + $0x2b0] sm:$0xff]
      %v258 = vld [vmem:[%s165 + $0x2b8] sm:$0xff]
      %v259 = vld [vmem:[%s165 + $0x2c0] sm:$0xff]
      %v260 = vld [vmem:[%s165 + $0x2c8] sm:$0xff]
      %v261 = vld [vmem:[%s165 + $0x2d0] sm:$0xff]
      %v262 = vld [vmem:[%s165 + $0x2d8] sm:$0xff]
      %v263 = vld [vmem:[%s165 + $0x2e0] sm:$0xff]
      %v264 = vld [vmem:[%s165 + $0x2e8] sm:$0xff]
      %v265 = vld [vmem:[%s165 + $0x2f0] sm:$0xff]
      %v266 = vld [vmem:[%s165 + $0x2f8] sm:$0xff]
      %v267 = vld [vmem:[%s165 + $0x300] sm:$0xff]
      %v268 = vld [vmem:[%s165 + $0x308] sm:$0xff]
      %v269 = vld [vmem:[%s165 + $0x310] sm:$0xff]
      %v270 = vld [vmem:[%s165 + $0x318] sm:$0xff]
      %v271 = vld [vmem:[%s165 + $0x320] sm:$0xff]
      %v272 = vld [vmem:[%s165 + $0x328] sm:$0xff]
      %v273 = vld [vmem:[%s165 + $0x330] sm:$0xff]
      %v274 = vld [vmem:[%s165 + $0x338] sm:$0xff]
      %v275 = vld [vmem:[%s165 + $0x340] sm:$0xff]
      %v276 = vld [vmem:[%s165 + $0x348] sm:$0xff]
      %v277 = vld [vmem:[%s165 + $0x350] sm:$0xff]
      %v278 = vld [vmem:[%s165 + $0x358] sm:$0xff]
      %v279 = vld [vmem:[%s165 + $0x360] sm:$0xff]
      %v280 = vld [vmem:[%s165 + $0x368] sm:$0xff]
      %v281 = vld [vmem:[%s165 + $0x370] sm:$0xff]
      %v282 = vld [vmem:[%s165 + $0x378] sm:$0xff]
      %v283 = vld [vmem:[%s165 + $0x380] sm:$0xff]
      %v284 = vld [vmem:[%s165 + $0x388] sm:$0xff]
      %v285 = vld [vmem:[%s165 + $0x390] sm:$0xff]
      %v286 = vld [vmem:[%s165 + $0x398] sm:$0xff]
      %v287 = vld [vmem:[%s165 + $0x3a0] sm:$0xff]
      %v288 = vld [vmem:[%s165 + $0x3a8] sm:$0xff]
      %v289 = vld [vmem:[%s165 + $0x3b0] sm:$0xff]
      %v290 = vld [vmem:[%s165 + $0x3b8] sm:$0xff]
      %v291 = vld [vmem:[%s165 + $0x3c0] sm:$0xff]
      %v292 = vld [vmem:[%s165 + $0x3c8] sm:$0xff]
      %v293 = vld [vmem:[%s165 + $0x3d0] sm:$0xff]
      %v294 = vld [vmem:[%s165 + $0x3d8] sm:$0xff]
      %v295 = vld [vmem:[%s165 + $0x3e0] sm:$0xff]
      %v296 = vld [vmem:[%s165 + $0x3e8] sm:$0xff]
      %v297 = vld [vmem:[%s165 + $0x3f0] sm:$0xff]
      %v298 = vld [vmem:[%s165 + $0x3f8] sm:$0xff]
      %v299 = vld [vmem:[%s165 + $0x400] sm:$0xff]
      %v300 = vld [vmem:[%s165 + $0x408] sm:$0xff]
      %v301 = vld [vmem:[%s165 + $0x410] sm:$0xff]
      %v302 = vld [vmem:[%s165 + $0x418] sm:$0xff]
      %v303 = vld [vmem:[%s1] sm:$0xff]
      %v304 = vld [vmem:[%s1 + $0x8] sm:$0xff]
      %v305 = vld [vmem:[%s1 + $0x10] sm:$0xff]
      %v306 = vld [vmem:[%s1 + $0x18] sm:$0xff]
      %v307 = vld [vmem:[%s1 + $0x20] sm:$0xff]
      %v308 = vld [vmem:[%s1 + $0x28] sm:$0xff]
      %v309 = vld [vmem:[%s1 + $0x30] sm:$0xff]
      %v310 = vld [vmem:[%s1 + $0x38] sm:$0xff]
      %v311 = vld [vmem:[%s1 + $0x40] sm:$0xff]
      %v312 = vld [vmem:[%s1 + $0x48] sm:$0xff]
      %v313 = vld [vmem:[%s1 + $0x50] sm:$0xff]
      %v314 = vld [vmem:[%s1 + $0x58] sm:$0xff]
      %v315 = vld [vmem:[%s1 + $0x60] sm:$0xff]
      %v316 = vld [vmem:[%s1 + $0x68] sm:$0xff]
      %v317 = vld [vmem:[%s1 + $0x70] sm:$0xff]
      %v318 = vld [vmem:[%s1 + $0x78] sm:$0xff]
      %v319 = vld [vmem:[%s1 + $0x80] sm:$0xff]
      %v320 = vld [vmem:[%s1 + $0x88] sm:$0xff]
      %v321 = vld [vmem:[%s1 + $0x90] sm:$0xff]
      %v322 = vld [vmem:[%s1 + $0x98] sm:$0xff]
      %v323 = vld [vmem:[%s1 + $0xa0] sm:$0xff]
      %v324 = vld [vmem:[%s1 + $0xa8] sm:$0xff]
      %v325 = vld [vmem:[%s1 + $0xb0] sm:$0xff]
      %v326 = vld [vmem:[%s1 + $0xb8] sm:$0xff]
      %v327 = vld [vmem:[%s1 + $0xc0] sm:$0xff]
      %v328 = vld [vmem:[%s1 + $0xc8] sm:$0xff]
      %v329 = vld [vmem:[%s1 + $0xd0] sm:$0xff]
      %v330 = vld [vmem:[%s1 + $0xd8] sm:$0xff]
      %v331 = vld [vmem:[%s1 + $0xe0] sm:$0xff]
      %v332 = vld [vmem:[%s1 + $0xe8] sm:$0xff]
      %v333 = vld [vmem:[%s1 + $0xf0] sm:$0xff]
      %v334 = vld [vmem:[%s1 + $0xf8] sm:$0xff]
      %v335 = vld [vmem:[%s1 + $0x100] sm:$0xff]
      %v336 = vld [vmem:[%s1 + $0x108] sm:$0xff]
      %v337 = vld [vmem:[%s1 + $0x110] sm:$0xff]
      %v338 = vld [vmem:[%s1 + $0x118] sm:$0xff]
      %v339 = vld [vmem:[%s1 + $0x120] sm:$0xff]
      %v340 = vld [vmem:[%s1 + $0x128] sm:$0xff]
      %v341 = vld [vmem:[%s1 + $0x130] sm:$0xff]
      %v342 = vld [vmem:[%s1 + $0x138] sm:$0xff]
      %v343 = vld [vmem:[%s1 + $0x140] sm:$0xff]
      %v344 = vld [vmem:[%s1 + $0x148] sm:$0xff]
      %v345 = vld [vmem:[%s1 + $0x150] sm:$0xff]
      %v346 = vld [vmem:[%s1 + $0x158] sm:$0xff]
      %v347 = vld [vmem:[%s1 + $0x160] sm:$0xff]
      %v348 = vld [vmem:[%s1 + $0x168] sm:$0xff]
      %v349 = vld [vmem:[%s1 + $0x170] sm:$0xff]
      %v350 = vld [vmem:[%s1 + $0x178] sm:$0xff]
      %v351 = vld [vmem:[%s1 + $0x180] sm:$0xff]
      %v352 = vld [vmem:[%s1 + $0x188] sm:$0xff]
      %v353 = vld [vmem:[%s1 + $0x190] sm:$0xff]
      %v354 = vld [vmem:[%s1 + $0x198] sm:$0xff]
      %v355 = vld [vmem:[%s1 + $0x1a0] sm:$0xff]
      %v356 = vld [vmem:[%s1 + $0x1a8] sm:$0xff]
      %v357 = vld [vmem:[%s1 + $0x1b0] sm:$0xff]
      %v358 = vld [vmem:[%s1 + $0x1b8] sm:$0xff]
      %v359 = vld [vmem:[%s1 + $0x1c0] sm:$0xff]
      %v360 = vld [vmem:[%s1 + $0x1c8] sm:$0xff]
      %v361 = vld [vmem:[%s1 + $0x1d0] sm:$0xff]
      %v362 = vld [vmem:[%s1 + $0x1d8] sm:$0xff]
      %v363 = vld [vmem:[%s1 + $0x1e0] sm:$0xff]
      %v364 = vld [vmem:[%s1 + $0x1e8] sm:$0xff]
      %v365 = vld [vmem:[%s1 + $0x1f0] sm:$0xff]
      %v366 = vld [vmem:[%s1 + $0x1f8] sm:$0xff]
      %v367 = vld [vmem:[%s1 + $0x200] sm:$0xff]
      %v368 = vld [vmem:[%s1 + $0x208] sm:$0xff]
      %v369 = vld [vmem:[%s1 + $0x210] sm:$0xff]
      %v370 = vld [vmem:[%s1 + $0x218] sm:$0xff]
      %v371 = vld [vmem:[%s1 + $0x220] sm:$0xff]
      %v372 = vld [vmem:[%s1 + $0x228] sm:$0xff]
      %v373 = vld [vmem:[%s1 + $0x230] sm:$0xff]
      %v374 = vld [vmem:[%s1 + $0x238] sm:$0xff]
      %v375 = vld [vmem:[%s1 + $0x240] sm:$0xff]
      %v376 = vld [vmem:[%s1 + $0x248] sm:$0xff]
      %v377 = vld [vmem:[%s1 + $0x250] sm:$0xff]
      %v378 = vld [vmem:[%s1 + $0x258] sm:$0xff]
      %v379 = vld [vmem:[%s1 + $0x260] sm:$0xff]
      %v380 = vld [vmem:[%s1 + $0x268] sm:$0xff]
      %v381 = vld [vmem:[%s1 + $0x270] sm:$0xff]
      %v382 = vld [vmem:[%s1 + $0x278] sm:$0xff]
      %v383 = vld [vmem:[%s1 + $0x280] sm:$0xff]
      %v384 = vld [vmem:[%s1 + $0x288] sm:$0xff]
      %v385 = vld [vmem:[%s1 + $0x290] sm:$0xff]
      %v386 = vld [vmem:[%s1 + $0x298] sm:$0xff]
      %v387 = vld [vmem:[%s1 + $0x2a0] sm:$0xff]
      %v388 = vld [vmem:[%s1 + $0x2a8] sm:$0xff]
      %v389 = vld [vmem:[%s1 + $0x2b0] sm:$0xff]
      %v390 = vld [vmem:[%s1 + $0x2b8] sm:$0xff]
      %v391 = vld [vmem:[%s1 + $0x2c0] sm:$0xff]
      %v392 = vld [vmem:[%s1 + $0x2c8] sm:$0xff]
      %v393 = vld [vmem:[%s1 + $0x2d0] sm:$0xff]
      %v394 = vld [vmem:[%s1 + $0x2d8] sm:$0xff]
      %v395 = vld [vmem:[%s1 + $0x2e0] sm:$0xff]
      %v396 = vld [vmem:[%s1 + $0x2e8] sm:$0xff]
      %v397 = vld [vmem:[%s1 + $0x2f0] sm:$0xff]
      %v398 = vld [vmem:[%s1 + $0x2f8] sm:$0xff]
      %v399 = vld [vmem:[%s1 + $0x300] sm:$0xff]
      %v400 = vld [vmem:[%s1 + $0x308] sm:$0xff]
      %v401 = vld [vmem:[%s1 + $0x310] sm:$0xff]
      %v402 = vld [vmem:[%s1 + $0x318] sm:$0xff]
      %v403 = vld [vmem:[%s1 + $0x320] sm:$0xff]
      %v404 = vld [vmem:[%s1 + $0x328] sm:$0xff]
      %v405 = vld [vmem:[%s1 + $0x330] sm:$0xff]
      %v406 = vld [vmem:[%s1 + $0x338] sm:$0xff]
      %v407 = vld [vmem:[%s1 + $0x340] sm:$0xff]
      %v408 = vld [vmem:[%s1 + $0x348] sm:$0xff]
      %v409 = vld [vmem:[%s1 + $0x350] sm:$0xff]
      %v410 = vld [vmem:[%s1 + $0x358] sm:$0xff]
      %v411 = vld [vmem:[%s1 + $0x360] sm:$0xff]
      %v412 = vld [vmem:[%s1 + $0x368] sm:$0xff]
      %v413 = vld [vmem:[%s1 + $0x370] sm:$0xff]
      %v414 = vld [vmem:[%s1 + $0x378] sm:$0xff]
      %v415 = vld [vmem:[%s1 + $0x380] sm:$0xff]
      %v416 = vld [vmem:[%s1 + $0x388] sm:$0xff]
      %v417 = vld [vmem:[%s1 + $0x390] sm:$0xff]
      %v418 = vld [vmem:[%s1 + $0x398] sm:$0xff]
      %v419 = vld [vmem:[%s1 + $0x3a0] sm:$0xff]
      %v420 = vld [vmem:[%s1 + $0x3a8] sm:$0xff]
      %v421 = vld [vmem:[%s1 + $0x3b0] sm:$0xff]
      %v422 = vld [vmem:[%s1 + $0x3b8] sm:$0xff]
      %v423 = vld [vmem:[%s1 + $0x3c0] sm:$0xff]
      %v424 = vld [vmem:[%s1 + $0x3c8] sm:$0xff]
      %v425 = vld [vmem:[%s1 + $0x3d0] sm:$0xff]
      %v426 = vld [vmem:[%s1 + $0x3d8] sm:$0xff]
      %v427 = vld [vmem:[%s1 + $0x3e0] sm:$0xff]
      %v428 = vld [vmem:[%s1 + $0x3e8] sm:$0xff]
      %v429 = vld [vmem:[%s1 + $0x3f0] sm:$0xff]
      %v430 = vld [vmem:[%s1 + $0x3f8] sm:$0xff]
      %v431 = vld [vmem:[%s1 + $0x400] sm:$0xff]
      %v432 = vld [vmem:[%s1 + $0x408] sm:$0xff]
      %v433 = vld [vmem:[%s1 + $0x410] sm:$0xff]
      %v434 = vld [vmem:[%s1 + $0x418] sm:$0xff]
      %v435 = vld [vmem:[%s1 + $0x420] sm:$0xff]
      %v436 = vld [vmem:[%s1 + $0x428] sm:$0xff]
      %v437 = vld [vmem:[%s1 + $0x430] sm:$0xff]
      %v438 = vld [vmem:[%s1 + $0x438] sm:$0xff]
      %v439 = vld [vmem:[%s1 + $0x440] sm:$0xff]
      %v440 = vld [vmem:[%s1 + $0x448] sm:$0xff]
      %v441 = vld [vmem:[%s1 + $0x450] sm:$0xff]
      %v442 = vld [vmem:[%s1 + $0x458] sm:$0xff]
      %v443 = vld [vmem:[%s1 + $0x460] sm:$0xff]
      %v444 = vld [vmem:[%s1 + $0x468] sm:$0xff]
      %v445 = vld [vmem:[%s1 + $0x470] sm:$0xff]
      %v446 = vld [vmem:[%s1 + $0x478] sm:$0xff]
      %v447 = vld [vmem:[%s2] sm:$0xff]
      %v448 = vld [vmem:[%s2 + $0x8] sm:$0xff]
      %v449 = vld [vmem:[%s2 + $0x10] sm:$0xff]
      %v450 = vld [vmem:[%s2 + $0x18] sm:$0xff]
      %v451 = vld [vmem:[%s2 + $0x20] sm:$0xff]
      %v452 = vld [vmem:[%s2 + $0x28] sm:$0xff]
      %v453 = vld [vmem:[%s2 + $0x30] sm:$0xff]
      %v454 = vld [vmem:[%s2 + $0x38] sm:$0xff]
      %v455 = vld [vmem:[%s2 + $0x40] sm:$0xff]
      %v456 = vld [vmem:[%s2 + $0x48] sm:$0xff]
      %v457 = vld [vmem:[%s2 + $0x50] sm:$0xff]
      %v458 = vld [vmem:[%s2 + $0x58] sm:$0xff]
      %v459 = vld [vmem:[%s2 + $0x60] sm:$0xff]
      %v460 = vld [vmem:[%s2 + $0x68] sm:$0xff]
      %v461 = vld [vmem:[%s2 + $0x70] sm:$0xff]
      %v462 = vld [vmem:[%s2 + $0x78] sm:$0xff]
      %464 = vset.pattern.permute.xlu0 0
      %465 = vperm.xlu0 %464, %v447
      %v466 = vpop.permute.xlu0 %465
      %469 = vset.pattern.permute.xlu0 0
      %470 = vperm.xlu0 %469, %v448
      %v471 = vpop.permute.xlu0 %470
      %474 = vset.pattern.permute.xlu0 0
      %475 = vperm.xlu0 %474, %v449
      %v476 = vpop.permute.xlu0 %475
      %479 = vset.pattern.permute.xlu0 0
      %480 = vperm.xlu0 %479, %v450
      %v481 = vpop.permute.xlu0 %480
      %484 = vset.pattern.permute.xlu0 0
      %485 = vperm.xlu0 %484, %v451
      %v486 = vpop.permute.xlu0 %485
      %489 = vset.pattern.permute.xlu0 0
      %490 = vperm.xlu0 %489, %v452
      %v491 = vpop.permute.xlu0 %490
      %494 = vset.pattern.permute.xlu0 0
      %495 = vperm.xlu0 %494, %v453
      %v496 = vpop.permute.xlu0 %495
      %499 = vset.pattern.permute.xlu0 0
      %500 = vperm.xlu0 %499, %v454
      %v501 = vpop.permute.xlu0 %500
      %504 = vset.pattern.permute.xlu0 0
      %505 = vperm.xlu0 %504, %v455
      %v506 = vpop.permute.xlu0 %505
      %509 = vset.pattern.permute.xlu0 0
      %510 = vperm.xlu0 %509, %v456
      %v511 = vpop.permute.xlu0 %510
      %514 = vset.pattern.permute.xlu0 0
      %515 = vperm.xlu0 %514, %v457
      %v516 = vpop.permute.xlu0 %515
      %519 = vset.pattern.permute.xlu0 0
      %520 = vperm.xlu0 %519, %v458
      %v521 = vpop.permute.xlu0 %520
      %524 = vset.pattern.permute.xlu0 0
      %525 = vperm.xlu0 %524, %v459
      %v526 = vpop.permute.xlu0 %525
      %529 = vset.pattern.permute.xlu0 0
      %530 = vperm.xlu0 %529, %v460
      %v531 = vpop.permute.xlu0 %530
      %534 = vset.pattern.permute.xlu0 0
      %535 = vperm.xlu0 %534, %v461
      %v536 = vpop.permute.xlu0 %535
      %539 = vset.pattern.permute.xlu0 0
      %540 = vperm.xlu0 %539, %v462
      %v541 = vpop.permute.xlu0 %540
      %vm543 = vcmask 261120
      %v545 = vsel %vm543, %v311, 0
      %v548 = vsel %vm543, %v320, 0
      %v551 = vsel %vm543, %v329, 0
      %v554 = vsel %vm543, %v338, 0
      %v557 = vsel %vm543, %v347, 0
      %v560 = vsel %vm543, %v356, 0
      %v563 = vsel %vm543, %v365, 0
      %v566 = vsel %vm543, %v374, 0
      %v569 = vsel %vm543, %v383, 0
      %v572 = vsel %vm543, %v392, 0
      %v575 = vsel %vm543, %v401, 0
      %v578 = vsel %vm543, %v410, 0
      %v581 = vsel %vm543, %v419, 0
      %v584 = vsel %vm543, %v428, 0
      %v587 = vsel %vm543, %v437, 0
      %v590 = vsel %vm543, %v446, 0
      %592 = vmatprep.subr.mxu0 0.0
      %593 = vmatpush1.msra.mxu0 %v171
      %594 = vmatprep.subr.mxu0 0.0
      %595 = vmatpush1.msra.mxu0 %v172
      %596 = vmatprep.subr.mxu0 0.0
      %597 = vmatpush1.msra.mxu0 %v173
      %598 = vmatprep.subr.mxu0 0.0
      %599 = vmatpush1.msra.mxu0 %v174
      %600 = vmatprep.subr.mxu0 0.0
      %601 = vmatpush1.msra.mxu0 %v175
      %602 = vmatprep.subr.mxu0 0.0
      %603 = vmatpush1.msra.mxu0 %v176
      %604 = vmatprep.subr.mxu0 0.0
      %605 = vmatpush1.msra.mxu0 %v177
      %606 = vmatprep.subr.mxu0 0.0
      %607 = vmatpush1.msra.mxu0 %v178
      %608 = vmatprep.subr.mxu0 0.0
      %609 = vmatpush1.msra.mxu0 %v179
      %610 = vmatprep.subr.mxu0 0.0
      %611 = vmatpush1.msra.mxu0 %v180
      %612 = vmatprep.subr.mxu0 0.0
      %613 = vmatpush1.msra.mxu0 %v181
      %614 = vmatprep.subr.mxu0 0.0
      %615 = vmatpush1.msra.mxu0 %v182
      %616 = vmatprep.subr.mxu0 0.0
      %617 = vmatpush1.msra.mxu0 %v183
      %618 = vmatprep.subr.mxu0 0.0
      %619 = vmatpush1.msra.mxu0 %v184
      %620 = vmatprep.subr.mxu0 0.0
      %621 = vmatpush1.msra.mxu0 %v185
      %622 = vmatprep.subr.mxu0 0.0
      %623 = vmatpush1.msra.mxu0 %v186
      %624 = vmatprep.subr.mxu0 0.0
      %625 = vmatpush1.msra.mxu0 %v187
      %626 = vmatprep.subr.mxu0 0.0
      %627 = vmatpush1.msra.mxu0 %v188
      %628 = vmatprep.subr.mxu0 0.0
      %629 = vmatpush1.msra.mxu0 %v189
      %630 = vmatprep.subr.mxu0 0.0
      %631 = vmatpush1.msra.mxu0 %v190
      %632 = vmatprep.subr.mxu0 0.0
      %633 = vmatpush1.msra.mxu0 %v191
      %634 = vmatprep.subr.mxu0 0.0
      %635 = vmatpush1.msra.mxu0 %v192
      %636 = vmatprep.subr.mxu0 0.0
      %637 = vmatpush1.msra.mxu0 %v193
      %638 = vmatprep.subr.mxu0 0.0
      %639 = vmatpush1.msra.mxu0 %v194
      %640 = vmatprep.subr.mxu0 0.0
      %641 = vmatpush1.msra.mxu0 %v195
      %642 = vmatprep.subr.mxu0 0.0
      %643 = vmatpush1.msra.mxu0 %v196
      %644 = vmatprep.subr.mxu0 0.0
      %645 = vmatpush1.msra.mxu0 %v197
      %646 = vmatprep.subr.mxu0 0.0
      %647 = vmatpush1.msra.mxu0 %v198
      %648 = vmatprep.subr.mxu0 0.0
      %649 = vmatpush1.msra.mxu0 %v199
      %650 = vmatprep.subr.mxu0 0.0
      %651 = vmatpush1.msra.mxu0 %v200
      %652 = vmatprep.subr.mxu0 0.0
      %653 = vmatpush1.msra.mxu0 %v201
      %654 = vmatprep.subr.mxu0 0.0
      %655 = vmatpush1.msra.mxu0 %v202
      %656 = vmatprep.mubr.f32.mxu0 %v304
      %657 = vmatmul.mubr.f32.gmra.mrb[0].mxu0 %v303
      %v658 = vpop.f32.mrb[0].mxu0
      %v659 = vadd.f32 %v466, %v658
      %v660 = vpop.f32.mrb[0].mxu0
      %661 = vmatprep.mubr.f32.mxu0 %v313
      %662 = vmatmul.mubr.f32.gmra.mrb[0].mxu0 %v312
      %v663 = vpop.f32.mrb[0].mxu0
      %v664 = vadd.f32 %v471, %v663
      %v665 = vpop.f32.mrb[0].mxu0
      %666 = vmatprep.mubr.f32.mxu0 %v322
      %667 = vmatmul.mubr.f32.gmra.mrb[0].mxu0 %v321
      %v668 = vpop.f32.mrb[0].mxu0
      %v669 = vadd.f32 %v476, %v668
      %v670 = vpop.f32.mrb[0].mxu0
      %671 = vmatprep.mubr.f32.mxu0 %v331
      %672 = vmatmul.mubr.f32.gmra.mrb[0].mxu0 %v330
      %v673 = vpop.f32.mrb[0].mxu0
      %v674 = vadd.f32 %v481, %v673
      %v675 = vpop.f32.mrb[0].mxu0
      %676 = vmatprep.mubr.f32.mxu0 %v340
      %677 = vmatmul.mubr.f32.gmra.mrb[0].mxu0 %v339
      %v678 = vpop.f32.mrb[0].mxu0
      %v679 = vadd.f32 %v486, %v678
      %v680 = vpop.f32.mrb[0].mxu0
      %681 = vmatprep.mubr.f32.mxu0 %v349
      %682 = vmatmul.mubr.f32.gmra.mrb[0].mxu0 %v348
      %v683 = vpop.f32.mrb[0].mxu0
      %v684 = vadd.f32 %v491, %v683
      %v685 = vpop.f32.mrb[0].mxu0
      %686 = vmatprep.mubr.f32.mxu0 %v358
      %687 = vmatmul.mubr.f32.gmra.mrb[0].mxu0 %v357
      %v688 = vpop.f32.mrb[0].mxu0
      %v689 = vadd.f32 %v496, %v688
      %v690 = vpop.f32.mrb[0].mxu0
      %691 = vmatprep.mubr.f32.mxu0 %v367
      %692 = vmatmul.mubr.f32.gmra.mrb[0].mxu0 %v366
      %v693 = vpop.f32.mrb[0].mxu0
      %v694 = vadd.f32 %v501, %v693
      %v695 = vpop.f32.mrb[0].mxu0
      %696 = vmatprep.mubr.f32.mxu0 %v376
      %697 = vmatmul.mubr.f32.gmra.mrb[0].mxu0 %v375
      %v698 = vpop.f32.mrb[0].mxu0
      %v699 = vadd.f32 %v506, %v698
      %v700 = vpop.f32.mrb[0].mxu0
      %701 = vmatprep.mubr.f32.mxu0 %v385
      %702 = vmatmul.mubr.f32.gmra.mrb[0].mxu0 %v384
      %v703 = vpop.f32.mrb[0].mxu0
      %v704 = vadd.f32 %v511, %v703
      %v705 = vpop.f32.mrb[0].mxu0
      %706 = vmatprep.mubr.f32.mxu0 %v394
      %707 = vmatmul.mubr.f32.gmra.mrb[0].mxu0 %v393
      %v708 = vpop.f32.mrb[0].mxu0
      %v709 = vadd.f32 %v516, %v708
      %v710 = vpop.f32.mrb[0].mxu0
      %711 = vmatprep.mubr.f32.mxu0 %v403
      %712 = vmatmul.mubr.f32.gmra.mrb[0].mxu0 %v402
      %v713 = vpop.f32.mrb[0].mxu0
      %v714 = vadd.f32 %v521, %v713
      %v715 = vpop.f32.mrb[0].mxu0
      %716 = vmatprep.mubr.f32.mxu0 %v412
      %717 = vmatmul.mubr.f32.gmra.mrb[0].mxu0 %v411
      %v718 = vpop.f32.mrb[0].mxu0
      %v719 = vadd.f32 %v526, %v718
      %v720 = vpop.f32.mrb[0].mxu0
      %721 = vmatprep.mubr.f32.mxu0 %v421
      %722 = vmatmul.mubr.f32.gmra.mrb[0].mxu0 %v420
      %v723 = vpop.f32.mrb[0].mxu0
      %v724 = vadd.f32 %v531, %v723
      %v725 = vpop.f32.mrb[0].mxu0
      %726 = vmatprep.mubr.f32.mxu0 %v430
      %727 = vmatmul.mubr.f32.gmra.mrb[0].mxu0 %v429
      %v728 = vpop.f32.mrb[0].mxu0
      %v729 = vadd.f32 %v536, %v728
      %v730 = vpop.f32.mrb[0].mxu0
      %731 = vmatprep.mubr.f32.mxu0 %v439
      %732 = vmatmul.mubr.f32.gmra.mrb[0].mxu0 %v438
      %v733 = vpop.f32.mrb[0].mxu0
      %v734 = vadd.f32 %v541, %v733
      %v735 = vpop.f32.mrb[0].mxu0
      %736 = vdwg.mxu0
      %737 = vmatprep.subr.mxu0 0.0
      %738 = vmatpush1.msra.mxu0 %v203
      %739 = vmatprep.subr.mxu0 0.0
      %740 = vmatpush1.msra.mxu0 %v204
      %741 = vmatprep.subr.mxu0 0.0
      %742 = vmatpush1.msra.mxu0 %v205
      %743 = vmatprep.subr.mxu0 0.0
      %744 = vmatpush1.msra.mxu0 %v206
      %745 = vmatprep.subr.mxu0 0.0
      %746 = vmatpush1.msra.mxu0 %v207
      %747 = vmatprep.subr.mxu0 0.0
      %748 = vmatpush1.msra.mxu0 %v208
      %749 = vmatprep.subr.mxu0 0.0
      %750 = vmatpush1.msra.mxu0 %v209
      %751 = vmatprep.subr.mxu0 0.0
      %752 = vmatpush1.msra.mxu0 %v210
      %753 = vmatprep.subr.mxu0 0.0
      %754 = vmatpush1.msra.mxu0 %v211
      %755 = vmatprep.subr.mxu0 0.0
      %756 = vmatpush1.msra.mxu0 %v212
      %757 = vmatprep.subr.mxu0 0.0
      %758 = vmatpush1.msra.mxu0 %v213
      %759 = vmatprep.subr.mxu0 0.0
      %760 = vmatpush1.msra.mxu0 %v214
      %761 = vmatprep.subr.mxu0 0.0
      %762 = vmatpush1.msra.mxu0 %v215
      %763 = vmatprep.subr.mxu0 0.0
      %764 = vmatpush1.msra.mxu0 %v216
      %765 = vmatprep.subr.mxu0 0.0
      %766 = vmatpush1.msra.mxu0 %v217
      %767 = vmatprep.subr.mxu0 0.0
      %768 = vmatpush1.msra.mxu0 %v218
      %769 = vmatprep.subr.mxu0 0.0
      %770 = vmatpush1.msra.mxu0 %v219
      %771 = vmatprep.subr.mxu0 0.0
      %772 = vmatpush1.msra.mxu0 %v220
      %773 = vmatprep.subr.mxu0 0.0
      %774 = vmatpush1.msra.mxu0 %v221
      %775 = vmatprep.subr.mxu0 0.0
      %776 = vmatpush1.msra.mxu0 %v222
      %777 = vmatprep.subr.mxu0 0.0
      %778 = vmatpush1.msra.mxu0 %v223
      %779 = vmatprep.subr.mxu0 0.0
      %780 = vmatpush1.msra.mxu0 %v224
      %781 = vmatprep.subr.mxu0 0.0
      %782 = vmatpush1.msra.mxu0 %v225
      %783 = vmatprep.subr.mxu0 0.0
      %784 = vmatpush1.msra.mxu0 %v226
      %785 = vmatprep.subr.mxu0 0.0
      %786 = vmatpush1.msra.mxu0 %v227
      %787 = vmatprep.subr.mxu0 0.0
      %788 = vmatpush1.msra.mxu0 %v228
      %789 = vmatprep.subr.mxu0 0.0
      %790 = vmatpush1.msra.mxu0 %v229
      %791 = vmatprep.subr.mxu0 0.0
      %792 = vmatpush1.msra.mxu0 %v230
      %793 = vmatprep.subr.mxu0 0.0
      %794 = vmatpush1.msra.mxu0 %v231
      %795 = vmatprep.subr.mxu0 0.0
      %796 = vmatpush1.msra.mxu0 %v232
      %797 = vmatprep.subr.mxu0 0.0
      %798 = vmatpush1.msra.mxu0 %v233
      %799 = vmatprep.subr.mxu0 0.0
      %800 = vmatpush1.msra.mxu0 %v234
      %801 = vmatprep.mubr.f32.mxu0 %v306
      %802 = vmatmul.mubr.f32.gmra.mrb[0].mxu0 %v305
      %v803 = vpop.f32.mrb[0].mxu0
      %v804 = vadd.f32 %v659, %v803
      %v805 = vpop.f32.mrb[0].mxu0
      %806 = vmatprep.mubr.f32.mxu0 %v315
      %807 = vmatmul.mubr.f32.gmra.mrb[0].mxu0 %v314
      %v808 = vpop.f32.mrb[0].mxu0
      %v809 = vadd.f32 %v664, %v808
      %v810 = vpop.f32.mrb[0].mxu0
      %811 = vmatprep.mubr.f32.mxu0 %v324
      %812 = vmatmul.mubr.f32.gmra.mrb[0].mxu0 %v323
      %v813 = vpop.f32.mrb[0].mxu0
      %v814 = vadd.f32 %v669, %v813
      %v815 = vpop.f32.mrb[0].mxu0
      %816 = vmatprep.mubr.f32.mxu0 %v333
      %817 = vmatmul.mubr.f32.gmra.mrb[0].mxu0 %v332
      %v818 = vpop.f32.mrb[0].mxu0
      %v819 = vadd.f32 %v674, %v818
      %v820 = vpop.f32.mrb[0].mxu0
      %821 = vmatprep.mubr.f32.mxu0 %v342
      %822 = vmatmul.mubr.f32.gmra.mrb[0].mxu0 %v341
      %v823 = vpop.f32.mrb[0].mxu0
      %v824 = vadd.f32 %v679, %v823
      %v825 = vpop.f32.mrb[0].mxu0
      %826 = vmatprep.mubr.f32.mxu0 %v351
      %827 = vmatmul.mubr.f32.gmra.mrb[0].mxu0 %v350
      %v828 = vpop.f32.mrb[0].mxu0
      %v829 = vadd.f32 %v684, %v828
      %v830 = vpop.f32.mrb[0].mxu0
      %831 = vmatprep.mubr.f32.mxu0 %v360
      %832 = vmatmul.mubr.f32.gmra.mrb[0].mxu0 %v359
      %v833 = vpop.f32.mrb[0].mxu0
      %v834 = vadd.f32 %v689, %v833
      %v835 = vpop.f32.mrb[0].mxu0
      %836 = vmatprep.mubr.f32.mxu0 %v369
      %837 = vmatmul.mubr.f32.gmra.mrb[0].mxu0 %v368
      %v838 = vpop.f32.mrb[0].mxu0
      %v839 = vadd.f32 %v694, %v838
      %v840 = vpop.f32.mrb[0].mxu0
      %841 = vmatprep.mubr.f32.mxu0 %v378
      %842 = vmatmul.mubr.f32.gmra.mrb[0].mxu0 %v377
      %v843 = vpop.f32.mrb[0].mxu0
      %v844 = vadd.f32 %v699, %v843
      %v845 = vpop.f32.mrb[0].mxu0
      %846 = vmatprep.mubr.f32.mxu0 %v387
      %847 = vmatmul.mubr.f32.gmra.mrb[0].mxu0 %v386
      %v848 = vpop.f32.mrb[0].mxu0
      %v849 = vadd.f32 %v704, %v848
      %v850 = vpop.f32.mrb[0].mxu0
      %851 = vmatprep.mubr.f32.mxu0 %v396
      %852 = vmatmul.mubr.f32.gmra.mrb[0].mxu0 %v395
      %v853 = vpop.f32.mrb[0].mxu0
      %v854 = vadd.f32 %v709, %v853
      %v855 = vpop.f32.mrb[0].mxu0
      %856 = vmatprep.mubr.f32.mxu0 %v405
      %857 = vmatmul.mubr.f32.gmra.mrb[0].mxu0 %v404
      %v858 = vpop.f32.mrb[0].mxu0
      %v859 = vadd.f32 %v714, %v858
      %v860 = vpop.f32.mrb[0].mxu0
      %861 = vmatprep.mubr.f32.mxu0 %v414
      %862 = vmatmul.mubr.f32.gmra.mrb[0].mxu0 %v413
      %v863 = vpop.f32.mrb[0].mxu0
      %v864 = vadd.f32 %v719, %v863
      %v865 = vpop.f32.mrb[0].mxu0
      %866 = vmatprep.mubr.f32.mxu0 %v423
      %867 = vmatmul.mubr.f32.gmra.mrb[0].mxu0 %v422
      %v868 = vpop.f32.mrb[0].mxu0
      %v869 = vadd.f32 %v724, %v868
      %v870 = vpop.f32.mrb[0].mxu0
      %871 = vmatprep.mubr.f32.mxu0 %v432
      %872 = vmatmul.mubr.f32.gmra.mrb[0].mxu0 %v431
      %v873 = vpop.f32.mrb[0].mxu0
      %v874 = vadd.f32 %v729, %v873
      %v875 = vpop.f32.mrb[0].mxu0
      %876 = vmatprep.mubr.f32.mxu0 %v441
      %877 = vmatmul.mubr.f32.gmra.mrb[0].mxu0 %v440
      %v878 = vpop.f32.mrb[0].mxu0
      %v879 = vadd.f32 %v734, %v878
      %v880 = vpop.f32.mrb[0].mxu0
      %881 = vdwg.mxu0
      %882 = vmatprep.subr.mxu0 0.0
      %883 = vmatpush1.msra.mxu0 %v235
      %884 = vmatprep.subr.mxu0 0.0
      %885 = vmatpush1.msra.mxu0 %v236
      %886 = vmatprep.subr.mxu0 0.0
      %887 = vmatpush1.msra.mxu0 %v237
      %888 = vmatprep.subr.mxu0 0.0
      %889 = vmatpush1.msra.mxu0 %v238
      %890 = vmatprep.subr.mxu0 0.0
      %891 = vmatpush1.msra.mxu0 %v239
      %892 = vmatprep.subr.mxu0 0.0
      %893 = vmatpush1.msra.mxu0 %v240
      %894 = vmatprep.subr.mxu0 0.0
      %895 = vmatpush1.msra.mxu0 %v241
      %896 = vmatprep.subr.mxu0 0.0
      %897 = vmatpush1.msra.mxu0 %v242
      %898 = vmatprep.subr.mxu0 0.0
      %899 = vmatpush1.msra.mxu0 %v243
      %900 = vmatprep.subr.mxu0 0.0
      %901 = vmatpush1.msra.mxu0 %v244
      %902 = vmatprep.subr.mxu0 0.0
      %903 = vmatpush1.msra.mxu0 %v245
      %904 = vmatprep.subr.mxu0 0.0
      %905 = vmatpush1.msra.mxu0 %v246
      %906 = vmatprep.subr.mxu0 0.0
      %907 = vmatpush1.msra.mxu0 %v247
      %908 = vmatprep.subr.mxu0 0.0
      %909 = vmatpush1.msra.mxu0 %v248
      %910 = vmatprep.subr.mxu0 0.0
      %911 = vmatpush1.msra.mxu0 %v249
      %912 = vmatprep.subr.mxu0 0.0
      %913 = vmatpush1.msra.mxu0 %v250
      %914 = vmatprep.subr.mxu0 0.0
      %915 = vmatpush1.msra.mxu0 %v251
      %916 = vmatprep.subr.mxu0 0.0
      %917 = vmatpush1.msra.mxu0 %v252
      %918 = vmatprep.subr.mxu0 0.0
      %919 = vmatpush1.msra.mxu0 %v253
      %920 = vmatprep.subr.mxu0 0.0
      %921 = vmatpush1.msra.mxu0 %v254
      %922 = vmatprep.subr.mxu0 0.0
      %923 = vmatpush1.msra.mxu0 %v255
      %924 = vmatprep.subr.mxu0 0.0
      %925 = vmatpush1.msra.mxu0 %v256
      %926 = vmatprep.subr.mxu0 0.0
      %927 = vmatpush1.msra.mxu0 %v257
      %928 = vmatprep.subr.mxu0 0.0
      %929 = vmatpush1.msra.mxu0 %v258
      %930 = vmatprep.subr.mxu0 0.0
      %931 = vmatpush1.msra.mxu0 %v259
      %932 = vmatprep.subr.mxu0 0.0
      %933 = vmatpush1.msra.mxu0 %v260
      %934 = vmatprep.subr.mxu0 0.0
      %935 = vmatpush1.msra.mxu0 %v261
      %936 = vmatprep.subr.mxu0 0.0
      %937 = vmatpush1.msra.mxu0 %v262
      %938 = vmatprep.subr.mxu0 0.0
      %939 = vmatpush1.msra.mxu0 %v263
      %940 = vmatprep.subr.mxu0 0.0
      %941 = vmatpush1.msra.mxu0 %v264
      %942 = vmatprep.subr.mxu0 0.0
      %943 = vmatpush1.msra.mxu0 %v265
      %944 = vmatprep.subr.mxu0 0.0
      %945 = vmatpush1.msra.mxu0 %v266
      %946 = vmatprep.mubr.f32.mxu0 %v308
      %947 = vmatmul.mubr.f32.gmra.mrb[0].mxu0 %v307
      %v948 = vpop.f32.mrb[0].mxu0
      %v949 = vadd.f32 %v804, %v948
      %v950 = vpop.f32.mrb[0].mxu0
      %951 = vmatprep.mubr.f32.mxu0 %v317
      %952 = vmatmul.mubr.f32.gmra.mrb[0].mxu0 %v316
      %v953 = vpop.f32.mrb[0].mxu0
      %v954 = vadd.f32 %v809, %v953
      %v955 = vpop.f32.mrb[0].mxu0
      %956 = vmatprep.mubr.f32.mxu0 %v326
      %957 = vmatmul.mubr.f32.gmra.mrb[0].mxu0 %v325
      %v958 = vpop.f32.mrb[0].mxu0
      %v959 = vadd.f32 %v814, %v958
      %v960 = vpop.f32.mrb[0].mxu0
      %961 = vmatprep.mubr.f32.mxu0 %v335
      %962 = vmatmul.mubr.f32.gmra.mrb[0].mxu0 %v334
      %v963 = vpop.f32.mrb[0].mxu0
      %v964 = vadd.f32 %v819, %v963
      %v965 = vpop.f32.mrb[0].mxu0
      %966 = vmatprep.mubr.f32.mxu0 %v344
      %967 = vmatmul.mubr.f32.gmra.mrb[0].mxu0 %v343
      %v968 = vpop.f32.mrb[0].mxu0
      %v969 = vadd.f32 %v824, %v968
      %v970 = vpop.f32.mrb[0].mxu0
      %971 = vmatprep.mubr.f32.mxu0 %v353
      %972 = vmatmul.mubr.f32.gmra.mrb[0].mxu0 %v352
      %v973 = vpop.f32.mrb[0].mxu0
      %v974 = vadd.f32 %v829, %v973
      %v975 = vpop.f32.mrb[0].mxu0
      %976 = vmatprep.mubr.f32.mxu0 %v362
      %977 = vmatmul.mubr.f32.gmra.mrb[0].mxu0 %v361
      %v978 = vpop.f32.mrb[0].mxu0
      %v979 = vadd.f32 %v834, %v978
      %v980 = vpop.f32.mrb[0].mxu0
      %981 = vmatprep.mubr.f32.mxu0 %v371
      %982 = vmatmul.mubr.f32.gmra.mrb[0].mxu0 %v370
      %v983 = vpop.f32.mrb[0].mxu0
      %v984 = vadd.f32 %v839, %v983
      %v985 = vpop.f32.mrb[0].mxu0
      %986 = vmatprep.mubr.f32.mxu0 %v380
      %987 = vmatmul.mubr.f32.gmra.mrb[0].mxu0 %v379
      %v988 = vpop.f32.mrb[0].mxu0
      %v989 = vadd.f32 %v844, %v988
      %v990 = vpop.f32.mrb[0].mxu0
      %991 = vmatprep.mubr.f32.mxu0 %v389
      %992 = vmatmul.mubr.f32.gmra.mrb[0].mxu0 %v388
      %v993 = vpop.f32.mrb[0].mxu0
      %v994 = vadd.f32 %v849, %v993
      %v995 = vpop.f32.mrb[0].mxu0
      %996 = vmatprep.mubr.f32.mxu0 %v398
      %997 = vmatmul.mubr.f32.gmra.mrb[0].mxu0 %v397
      %v998 = vpop.f32.mrb[0].mxu0
      %v999 = vadd.f32 %v854, %v998
      %v1000 = vpop.f32.mrb[0].mxu0
      %1001 = vmatprep.mubr.f32.mxu0 %v407
      %1002 = vmatmul.mubr.f32.gmra.mrb[0].mxu0 %v406
      %v1003 = vpop.f32.mrb[0].mxu0
      %v1004 = vadd.f32 %v859, %v1003
      %v1005 = vpop.f32.mrb[0].mxu0
      %1006 = vmatprep.mubr.f32.mxu0 %v416
      %1007 = vmatmul.mubr.f32.gmra.mrb[0].mxu0 %v415
      %v1008 = vpop.f32.mrb[0].mxu0
      %v1009 = vadd.f32 %v864, %v1008
      %v1010 = vpop.f32.mrb[0].mxu0
      %1011 = vmatprep.mubr.f32.mxu0 %v425
      %1012 = vmatmul.mubr.f32.gmra.mrb[0].mxu0 %v424
      %v1013 = vpop.f32.mrb[0].mxu0
      %v1014 = vadd.f32 %v869, %v1013
      %v1015 = vpop.f32.mrb[0].mxu0
      %1016 = vmatprep.mubr.f32.mxu0 %v434
      %1017 = vmatmul.mubr.f32.gmra.mrb[0].mxu0 %v433
      %v1018 = vpop.f32.mrb[0].mxu0
      %v1019 = vadd.f32 %v874, %v1018
      %v1020 = vpop.f32.mrb[0].mxu0
      %1021 = vmatprep.mubr.f32.mxu0 %v443
      %1022 = vmatmul.mubr.f32.gmra.mrb[0].mxu0 %v442
      %v1023 = vpop.f32.mrb[0].mxu0
      %v1024 = vadd.f32 %v879, %v1023
      %v1025 = vpop.f32.mrb[0].mxu0
      %1026 = vdwg.mxu0
      %1027 = vmatprep.subr.mxu0 0.0
      %1028 = vmatpush1.msra.mxu0 %v267
      %1029 = vmatprep.subr.mxu0 0.0
      %1030 = vmatpush1.msra.mxu0 %v268
      %1031 = vmatprep.subr.mxu0 0.0
      %1032 = vmatpush1.msra.mxu0 %v269
      %1033 = vmatprep.subr.mxu0 0.0
      %1034 = vmatpush1.msra.mxu0 %v270
      %1035 = vmatprep.subr.mxu0 0.0
      %1036 = vmatpush1.msra.mxu0 %v271
      %1037 = vmatprep.subr.mxu0 0.0
      %1038 = vmatpush1.msra.mxu0 %v272
      %1039 = vmatprep.subr.mxu0 0.0
      %1040 = vmatpush1.msra.mxu0 %v273
      %1041 = vmatprep.subr.mxu0 0.0
      %1042 = vmatpush1.msra.mxu0 %v274
      %1043 = vmatprep.subr.mxu0 0.0
      %1044 = vmatpush1.msra.mxu0 %v275
      %1045 = vmatprep.subr.mxu0 0.0
      %1046 = vmatpush1.msra.mxu0 %v276
      %1047 = vmatprep.subr.mxu0 0.0
      %1048 = vmatpush1.msra.mxu0 %v277
      %1049 = vmatprep.subr.mxu0 0.0
      %1050 = vmatpush1.msra.mxu0 %v278
      %1051 = vmatprep.subr.mxu0 0.0
      %1052 = vmatpush1.msra.mxu0 %v279
      %1053 = vmatprep.subr.mxu0 0.0
      %1054 = vmatpush1.msra.mxu0 %v280
      %1055 = vmatprep.subr.mxu0 0.0
      %1056 = vmatpush1.msra.mxu0 %v281
      %1057 = vmatprep.subr.mxu0 0.0
      %1058 = vmatpush1.msra.mxu0 %v282
      %1059 = vmatprep.subr.mxu0 0.0
      %1060 = vmatpush1.msra.mxu0 %v283
      %1061 = vmatprep.subr.mxu0 0.0
      %1062 = vmatpush1.msra.mxu0 %v284
      %1063 = vmatprep.subr.mxu0 0.0
      %1064 = vmatpush1.msra.mxu0 %v285
      %1065 = vmatprep.subr.mxu0 0.0
      %1066 = vmatpush1.msra.mxu0 %v286
      %1067 = vmatprep.subr.mxu0 0.0
      %1068 = vmatpush1.msra.mxu0 %v287
      %1069 = vmatprep.subr.mxu0 0.0
      %1070 = vmatpush1.msra.mxu0 %v288
      %1071 = vmatprep.subr.mxu0 0.0
      %1072 = vmatpush1.msra.mxu0 %v289
      %1073 = vmatprep.subr.mxu0 0.0
      %1074 = vmatpush1.msra.mxu0 %v290
      %1075 = vmatprep.subr.mxu0 0.0
      %1076 = vmatpush1.msra.mxu0 %v291
      %1077 = vmatprep.subr.mxu0 0.0
      %1078 = vmatpush1.msra.mxu0 %v292
      %1079 = vmatprep.subr.mxu0 0.0
      %1080 = vmatpush1.msra.mxu0 %v293
      %1081 = vmatprep.subr.mxu0 0.0
      %1082 = vmatpush1.msra.mxu0 %v294
      %1083 = vmatprep.subr.mxu0 0.0
      %1084 = vmatpush1.msra.mxu0 %v295
      %1085 = vmatprep.subr.mxu0 0.0
      %1086 = vmatpush1.msra.mxu0 %v296
      %1087 = vmatprep.subr.mxu0 0.0
      %1088 = vmatpush1.msra.mxu0 %v297
      %1089 = vmatprep.subr.mxu0 0.0
      %1090 = vmatpush1.msra.mxu0 %v298
      %1091 = vmatprep.mubr.f32.mxu0 %v310
      %1092 = vmatmul.mubr.f32.gmra.mrb[0].mxu0 %v309
      %v1093 = vpop.f32.mrb[0].mxu0
      %v1094 = vadd.f32 %v949, %v1093
      %v1095 = vpop.f32.mrb[0].mxu0
      %1096 = vmatprep.mubr.f32.mxu0 %v319
      %1097 = vmatmul.mubr.f32.gmra.mrb[0].mxu0 %v318
      %v1098 = vpop.f32.mrb[0].mxu0
      %v1099 = vadd.f32 %v954, %v1098
      %v1100 = vpop.f32.mrb[0].mxu0
      %1101 = vmatprep.mubr.f32.mxu0 %v328
      %1102 = vmatmul.mubr.f32.gmra.mrb[0].mxu0 %v327
      %v1103 = vpop.f32.mrb[0].mxu0
      %v1104 = vadd.f32 %v959, %v1103
      %v1105 = vpop.f32.mrb[0].mxu0
      %1106 = vmatprep.mubr.f32.mxu0 %v337
      %1107 = vmatmul.mubr.f32.gmra.mrb[0].mxu0 %v336
      %v1108 = vpop.f32.mrb[0].mxu0
      %v1109 = vadd.f32 %v964, %v1108
      %v1110 = vpop.f32.mrb[0].mxu0
      %1111 = vmatprep.mubr.f32.mxu0 %v346
      %1112 = vmatmul.mubr.f32.gmra.mrb[0].mxu0 %v345
      %v1113 = vpop.f32.mrb[0].mxu0
      %v1114 = vadd.f32 %v969, %v1113
      %v1115 = vpop.f32.mrb[0].mxu0
      %1116 = vmatprep.mubr.f32.mxu0 %v355
      %1117 = vmatmul.mubr.f32.gmra.mrb[0].mxu0 %v354
      %v1118 = vpop.f32.mrb[0].mxu0
      %v1119 = vadd.f32 %v974, %v1118
      %v1120 = vpop.f32.mrb[0].mxu0
      %1121 = vmatprep.mubr.f32.mxu0 %v364
      %1122 = vmatmul.mubr.f32.gmra.mrb[0].mxu0 %v363
      %v1123 = vpop.f32.mrb[0].mxu0
      %v1124 = vadd.f32 %v979, %v1123
      %v1125 = vpop.f32.mrb[0].mxu0
      %1126 = vmatprep.mubr.f32.mxu0 %v373
      %1127 = vmatmul.mubr.f32.gmra.mrb[0].mxu0 %v372
      %v1128 = vpop.f32.mrb[0].mxu0
      %v1129 = vadd.f32 %v984, %v1128
      %v1130 = vpop.f32.mrb[0].mxu0
      %1131 = vmatprep.mubr.f32.mxu0 %v382
      %1132 = vmatmul.mubr.f32.gmra.mrb[0].mxu0 %v381
      %v1133 = vpop.f32.mrb[0].mxu0
      %v1134 = vadd.f32 %v989, %v1133
      %v1135 = vpop.f32.mrb[0].mxu0
      %1136 = vmatprep.mubr.f32.mxu0 %v391
      %1137 = vmatmul.mubr.f32.gmra.mrb[0].mxu0 %v390
      %v1138 = vpop.f32.mrb[0].mxu0
      %v1139 = vadd.f32 %v994, %v1138
      %v1140 = vpop.f32.mrb[0].mxu0
      %1141 = vmatprep.mubr.f32.mxu0 %v400
      %1142 = vmatmul.mubr.f32.gmra.mrb[0].mxu0 %v399
      %v1143 = vpop.f32.mrb[0].mxu0
      %v1144 = vadd.f32 %v999, %v1143
      %v1145 = vpop.f32.mrb[0].mxu0
      %1146 = vmatprep.mubr.f32.mxu0 %v409
      %1147 = vmatmul.mubr.f32.gmra.mrb[0].mxu0 %v408
      %v1148 = vpop.f32.mrb[0].mxu0
      %v1149 = vadd.f32 %v1004, %v1148
      %v1150 = vpop.f32.mrb[0].mxu0
      %1151 = vmatprep.mubr.f32.mxu0 %v418
      %1152 = vmatmul.mubr.f32.gmra.mrb[0].mxu0 %v417
      %v1153 = vpop.f32.mrb[0].mxu0
      %v1154 = vadd.f32 %v1009, %v1153
      %v1155 = vpop.f32.mrb[0].mxu0
      %1156 = vmatprep.mubr.f32.mxu0 %v427
      %1157 = vmatmul.mubr.f32.gmra.mrb[0].mxu0 %v426
      %v1158 = vpop.f32.mrb[0].mxu0
      %v1159 = vadd.f32 %v1014, %v1158
      %v1160 = vpop.f32.mrb[0].mxu0
      %1161 = vmatprep.mubr.f32.mxu0 %v436
      %1162 = vmatmul.mubr.f32.gmra.mrb[0].mxu0 %v435
      %v1163 = vpop.f32.mrb[0].mxu0
      %v1164 = vadd.f32 %v1019, %v1163
      %v1165 = vpop.f32.mrb[0].mxu0
      %1166 = vmatprep.mubr.f32.mxu0 %v445
      %1167 = vmatmul.mubr.f32.gmra.mrb[0].mxu0 %v444
      %v1168 = vpop.f32.mrb[0].mxu0
      %v1169 = vadd.f32 %v1024, %v1168
      %v1170 = vpop.f32.mrb[0].mxu0
      %1171 = vdwg.mxu0
      %1172 = vmatprep.subr.mxu0 0.0
      %1173 = vmatpush1.msra.mxu0 %v299
      %1174 = vmatprep.subr.mxu0 0.0
      %1175 = vmatpush1.msra.mxu0 %v300
      %1176 = vmatprep.subr.mxu0 0.0
      %1177 = vmatpush1.msra.mxu0 %v301
      %1178 = vmatprep.subr.mxu0 0.0
      %1179 = vmatpush1.msra.mxu0 %v302
      %1180 = vmatprep.subr.mxu0 0.0
      %1181 = vmatpush1.msra.mxu0 0.0
      %1182 = vmatprep.subr.mxu0 0.0
      %1183 = vmatpush1.msra.mxu0 0.0
      %1184 = vmatprep.subr.mxu0 0.0
      %1185 = vmatpush1.msra.mxu0 0.0
      %1186 = vmatprep.subr.mxu0 0.0
      %1187 = vmatpush1.msra.mxu0 0.0
      %1188 = vmatprep.subr.mxu0 0.0
      %1189 = vmatpush1.msra.mxu0 0.0
      %1190 = vmatprep.subr.mxu0 0.0
      %1191 = vmatpush1.msra.mxu0 0.0
      %1192 = vmatprep.subr.mxu0 0.0
      %1193 = vmatpush1.msra.mxu0 0.0
      %1194 = vmatprep.subr.mxu0 0.0
      %1195 = vmatpush1.msra.mxu0 0.0
      %1196 = vmatprep.subr.mxu0 0.0
      %1197 = vmatpush1.msra.mxu0 0.0
      %1198 = vmatprep.subr.mxu0 0.0
      %1199 = vmatpush1.msra.mxu0 0.0
      %1200 = vmatprep.subr.mxu0 0.0
      %1201 = vmatpush1.msra.mxu0 0.0
      %1202 = vmatprep.subr.mxu0 0.0
      %1203 = vmatpush1.msra.mxu0 0.0
      %1204 = vmatprep.subr.mxu0 0.0
      %1205 = vmatpush1.msra.mxu0 0.0
      %1206 = vmatprep.subr.mxu0 0.0
      %1207 = vmatpush1.msra.mxu0 0.0
      %1208 = vmatprep.subr.mxu0 0.0
      %1209 = vmatpush1.msra.mxu0 0.0
      %1210 = vmatprep.subr.mxu0 0.0
      %1211 = vmatpush1.msra.mxu0 0.0
      %1212 = vmatprep.subr.mxu0 0.0
      %1213 = vmatpush1.msra.mxu0 0.0
      %1214 = vmatprep.subr.mxu0 0.0
      %1215 = vmatpush1.msra.mxu0 0.0
      %1216 = vmatprep.subr.mxu0 0.0
      %1217 = vmatpush1.msra.mxu0 0.0
      %1218 = vmatprep.subr.mxu0 0.0
      %1219 = vmatpush1.msra.mxu0 0.0
      %1220 = vmatprep.subr.mxu0 0.0
      %1221 = vmatpush1.msra.mxu0 0.0
      %1222 = vmatprep.subr.mxu0 0.0
      %1223 = vmatpush1.msra.mxu0 0.0
      %1224 = vmatprep.subr.mxu0 0.0
      %1225 = vmatpush1.msra.mxu0 0.0
      %1226 = vmatprep.subr.mxu0 0.0
      %1227 = vmatpush1.msra.mxu0 0.0
      %1228 = vmatprep.subr.mxu0 0.0
      %1229 = vmatpush1.msra.mxu0 0.0
      %1230 = vmatprep.subr.mxu0 0.0
      %1231 = vmatpush1.msra.mxu0 0.0
      %1232 = vmatprep.subr.mxu0 0.0
      %1233 = vmatpush1.msra.mxu0 0.0
      %1234 = vmatprep.subr.mxu0 0.0
      %1235 = vmatpush1.msra.mxu0 0.0
      %1236 = vmatprep.mubr.f32.mxu0 0.0
      %1237 = vmatmul.mubr.f32.gmra.mrb[0].mxu0 %v545
      %v1238 = vpop.f32.mrb[0].mxu0
      %v1239 = vadd.f32 %v1094, %v1238
      %v1240 = vpop.f32.mrb[0].mxu0
      %1241 = vmatprep.mubr.f32.mxu0 0.0
      %1242 = vmatmul.mubr.f32.gmra.mrb[0].mxu0 %v548
      %v1243 = vpop.f32.mrb[0].mxu0
      %v1244 = vadd.f32 %v1099, %v1243
      %v1245 = vpop.f32.mrb[0].mxu0
      %1246 = vmatprep.mubr.f32.mxu0 0.0
      %1247 = vmatmul.mubr.f32.gmra.mrb[0].mxu0 %v551
      %v1248 = vpop.f32.mrb[0].mxu0
      %v1249 = vadd.f32 %v1104, %v1248
      %v1250 = vpop.f32.mrb[0].mxu0
      %1251 = vmatprep.mubr.f32.mxu0 0.0
      %1252 = vmatmul.mubr.f32.gmra.mrb[0].mxu0 %v554
      %v1253 = vpop.f32.mrb[0].mxu0
      %v1254 = vadd.f32 %v1109, %v1253
      %v1255 = vpop.f32.mrb[0].mxu0
      %1256 = vmatprep.mubr.f32.mxu0 0.0
      %1257 = vmatmul.mubr.f32.gmra.mrb[0].mxu0 %v557
      %v1258 = vpop.f32.mrb[0].mxu0
      %v1259 = vadd.f32 %v1114, %v1258
      %v1260 = vpop.f32.mrb[0].mxu0
      %1261 = vmatprep.mubr.f32.mxu0 0.0
      %1262 = vmatmul.mubr.f32.gmra.mrb[0].mxu0 %v560
      %v1263 = vpop.f32.mrb[0].mxu0
      %v1264 = vadd.f32 %v1119, %v1263
      %v1265 = vpop.f32.mrb[0].mxu0
      %1266 = vmatprep.mubr.f32.mxu0 0.0
      %1267 = vmatmul.mubr.f32.gmra.mrb[0].mxu0 %v563
      %v1268 = vpop.f32.mrb[0].mxu0
      %v1269 = vadd.f32 %v1124, %v1268
      %v1270 = vpop.f32.mrb[0].mxu0
      %1271 = vmatprep.mubr.f32.mxu0 0.0
      %1272 = vmatmul.mubr.f32.gmra.mrb[0].mxu0 %v566
      %v1273 = vpop.f32.mrb[0].mxu0
      %v1274 = vadd.f32 %v1129, %v1273
      %v1275 = vpop.f32.mrb[0].mxu0
      %1276 = vmatprep.mubr.f32.mxu0 0.0
      %1277 = vmatmul.mubr.f32.gmra.mrb[0].mxu0 %v569
      %v1278 = vpop.f32.mrb[0].mxu0
      %v1279 = vadd.f32 %v1134, %v1278
      %v1280 = vpop.f32.mrb[0].mxu0
      %1281 = vmatprep.mubr.f32.mxu0 0.0
      %1282 = vmatmul.mubr.f32.gmra.mrb[0].mxu0 %v572
      %v1283 = vpop.f32.mrb[0].mxu0
      %v1284 = vadd.f32 %v1139, %v1283
      %v1285 = vpop.f32.mrb[0].mxu0
      %1286 = vmatprep.mubr.f32.mxu0 0.0
      %1287 = vmatmul.mubr.f32.gmra.mrb[0].mxu0 %v575
      %v1288 = vpop.f32.mrb[0].mxu0
      %v1289 = vadd.f32 %v1144, %v1288
      %v1290 = vpop.f32.mrb[0].mxu0
      %1291 = vmatprep.mubr.f32.mxu0 0.0
      %1292 = vmatmul.mubr.f32.gmra.mrb[0].mxu0 %v578
      %v1293 = vpop.f32.mrb[0].mxu0
      %v1294 = vadd.f32 %v1149, %v1293
      %v1295 = vpop.f32.mrb[0].mxu0
      %1296 = vmatprep.mubr.f32.mxu0 0.0
      %1297 = vmatmul.mubr.f32.gmra.mrb[0].mxu0 %v581
      %v1298 = vpop.f32.mrb[0].mxu0
      %v1299 = vadd.f32 %v1154, %v1298
      %v1300 = vpop.f32.mrb[0].mxu0
      %1301 = vmatprep.mubr.f32.mxu0 0.0
      %1302 = vmatmul.mubr.f32.gmra.mrb[0].mxu0 %v584
      %v1303 = vpop.f32.mrb[0].mxu0
      %v1304 = vadd.f32 %v1159, %v1303
      %v1305 = vpop.f32.mrb[0].mxu0
      %1306 = vmatprep.mubr.f32.mxu0 0.0
      %1307 = vmatmul.mubr.f32.gmra.mrb[0].mxu0 %v587
      %v1308 = vpop.f32.mrb[0].mxu0
      %v1309 = vadd.f32 %v1164, %v1308
      %v1310 = vpop.f32.mrb[0].mxu0
      %1311 = vmatprep.mubr.f32.mxu0 0.0
      %1312 = vmatmul.mubr.f32.gmra.mrb[0].mxu0 %v590
      %v1313 = vpop.f32.mrb[0].mxu0
      %v1314 = vadd.f32 %v1169, %v1313
      %v1315 = vpop.f32.mrb[0].mxu0
      %1316 = vdwg.mxu0
      %v1317 = vmul.f32 %v1239, 0.5
      %v1318 = vmul.f32 %v1244, 0.5
      %v1319 = vmul.f32 %v1249, 0.5
      %v1320 = vmul.f32 %v1254, 0.5
      %v1321 = vmul.f32 %v1259, 0.5
      %v1322 = vmul.f32 %v1264, 0.5
      %v1323 = vmul.f32 %v1269, 0.5
      %v1324 = vmul.f32 %v1274, 0.5
      %v1325 = vmul.f32 %v1279, 0.5
      %v1326 = vmul.f32 %v1284, 0.5
      %v1327 = vmul.f32 %v1289, 0.5
      %v1328 = vmul.f32 %v1294, 0.5
      %v1329 = vmul.f32 %v1299, 0.5
      %v1330 = vmul.f32 %v1304, 0.5
      %v1331 = vmul.f32 %v1309, 0.5
      %v1332 = vmul.f32 %v1314, 0.5
      %v1333 = vtanh.pop %v1317
      %v1334 = vtanh.pop %v1318
      %v1335 = vtanh.pop %v1319
      %v1336 = vtanh.pop %v1320
      %v1337 = vtanh.pop %v1321
      %v1338 = vtanh.pop %v1322
      %v1339 = vtanh.pop %v1323
      %v1340 = vtanh.pop %v1324
      %v1341 = vtanh.pop %v1325
      %v1342 = vtanh.pop %v1326
      %v1343 = vtanh.pop %v1327
      %v1344 = vtanh.pop %v1328
      %v1345 = vtanh.pop %v1329
      %v1346 = vtanh.pop %v1330
      %v1347 = vtanh.pop %v1331
      %v1348 = vtanh.pop %v1332
      %v1349 = vmul.f32 %v1333, 0.5
      %v1350 = vmul.f32 %v1334, 0.5
      %v1351 = vmul.f32 %v1335, 0.5
      %v1352 = vmul.f32 %v1336, 0.5
      %v1353 = vmul.f32 %v1337, 0.5
      %v1354 = vmul.f32 %v1338, 0.5
      %v1355 = vmul.f32 %v1339, 0.5
      %v1356 = vmul.f32 %v1340, 0.5
      %v1357 = vmul.f32 %v1341, 0.5
      %v1358 = vmul.f32 %v1342, 0.5
      %v1359 = vmul.f32 %v1343, 0.5
      %v1360 = vmul.f32 %v1344, 0.5
      %v1361 = vmul.f32 %v1345, 0.5
      %v1362 = vmul.f32 %v1346, 0.5
      %v1363 = vmul.f32 %v1347, 0.5
      %v1364 = vmul.f32 %v1348, 0.5
      %v1365 = vadd.f32 %v1349, 0.5
      %v1366 = vadd.f32 %v1350, 0.5
      %v1367 = vadd.f32 %v1351, 0.5
      %v1368 = vadd.f32 %v1352, 0.5
      %v1369 = vadd.f32 %v1353, 0.5
      %v1370 = vadd.f32 %v1354, 0.5
      %v1371 = vadd.f32 %v1355, 0.5
      %v1372 = vadd.f32 %v1356, 0.5
      %v1373 = vadd.f32 %v1357, 0.5
      %v1374 = vadd.f32 %v1358, 0.5
      %v1375 = vadd.f32 %v1359, 0.5
      %v1376 = vadd.f32 %v1360, 0.5
      %v1377 = vadd.f32 %v1361, 0.5
      %v1378 = vadd.f32 %v1362, 0.5
      %v1379 = vadd.f32 %v1363, 0.5
      %v1380 = vadd.f32 %v1364, 0.5
      %v1381 = vmul.f32 %v1239, %v1365
      %v1382 = vmul.f32 %v1244, %v1366
      %v1383 = vmul.f32 %v1249, %v1367
      %v1384 = vmul.f32 %v1254, %v1368
      %v1385 = vmul.f32 %v1259, %v1369
      %v1386 = vmul.f32 %v1264, %v1370
      %v1387 = vmul.f32 %v1269, %v1371
      %v1388 = vmul.f32 %v1274, %v1372
      %v1389 = vmul.f32 %v1279, %v1373
      %v1390 = vmul.f32 %v1284, %v1374
      %v1391 = vmul.f32 %v1289, %v1375
      %v1392 = vmul.f32 %v1294, %v1376
      %v1393 = vmul.f32 %v1299, %v1377
      %v1394 = vmul.f32 %v1304, %v1378
      %v1395 = vmul.f32 %v1309, %v1379
      %v1396 = vmul.f32 %v1314, %v1380
      %vm1397 = vcmask 293888
      %v1398 = vsel %vm1397, %v1381, 0.0
      %v1399 = vsel %vm1397, %v1382, 0.0
      %v1400 = vadd.f32 %v1398, %v1399
      %v1401 = vsel %vm1397, %v1383, 0.0
      %v1402 = vadd.f32 %v1400, %v1401
      %v1403 = vsel %vm1397, %v1384, 0.0
      %v1404 = vadd.f32 %v1402, %v1403
      %v1405 = vsel %vm1397, %v1385, 0.0
      %v1406 = vadd.f32 %v1404, %v1405
      %v1407 = vsel %vm1397, %v1386, 0.0
      %v1408 = vadd.f32 %v1406, %v1407
      %v1409 = vsel %vm1397, %v1387, 0.0
      %v1410 = vadd.f32 %v1408, %v1409
      %v1411 = vsel %vm1397, %v1388, 0.0
      %v1412 = vadd.f32 %v1410, %v1411
      %v1413 = vsel %vm1397, %v1389, 0.0
      %v1414 = vadd.f32 %v1412, %v1413
      %v1415 = vsel %vm1397, %v1390, 0.0
      %v1416 = vadd.f32 %v1414, %v1415
      %v1417 = vsel %vm1397, %v1391, 0.0
      %v1418 = vadd.f32 %v1416, %v1417
      %v1419 = vsel %vm1397, %v1392, 0.0
      %v1420 = vadd.f32 %v1418, %v1419
      %v1421 = vsel %vm1397, %v1393, 0.0
      %v1422 = vadd.f32 %v1420, %v1421
      %v1423 = vsel %vm1397, %v1394, 0.0
      %v1424 = vadd.f32 %v1422, %v1423
      %v1425 = vsel %vm1397, %v1395, 0.0
      %v1426 = vadd.f32 %v1424, %v1425
      %v1427 = vsel %vm1397, %v1396, 0.0
      %v1428 = vadd.f32 %v1426, %v1427
      %v1429 = vrot.slane %v1428, 4
      %v1430 = vadd.f32 %v1428, %v1429
      %v1431 = vrot.slane %v1430, 2
      %v1432 = vadd.f32 %v1430, %v1431
      %v1433 = vrot.slane %v1432, 1
      %v1434 = vadd.f32 %v1432, %v1433
      %v1435 = vmul.f32 %v1381, %v1381
      %v1436 = vmul.f32 %v1382, %v1382
      %v1437 = vmul.f32 %v1383, %v1383
      %v1438 = vmul.f32 %v1384, %v1384
      %v1439 = vmul.f32 %v1385, %v1385
      %v1440 = vmul.f32 %v1386, %v1386
      %v1441 = vmul.f32 %v1387, %v1387
      %v1442 = vmul.f32 %v1388, %v1388
      %v1443 = vmul.f32 %v1389, %v1389
      %v1444 = vmul.f32 %v1390, %v1390
      %v1445 = vmul.f32 %v1391, %v1391
      %v1446 = vmul.f32 %v1392, %v1392
      %v1447 = vmul.f32 %v1393, %v1393
      %v1448 = vmul.f32 %v1394, %v1394
      %v1449 = vmul.f32 %v1395, %v1395
      %v1450 = vmul.f32 %v1396, %v1396
      %v1451 = vsel %vm1397, %v1435, 0.0
      %v1452 = vsel %vm1397, %v1436, 0.0
      %v1453 = vadd.f32 %v1451, %v1452
      %v1454 = vsel %vm1397, %v1437, 0.0
      %v1455 = vadd.f32 %v1453, %v1454
      %v1456 = vsel %vm1397, %v1438, 0.0
      %v1457 = vadd.f32 %v1455, %v1456
      %v1458 = vsel %vm1397, %v1439, 0.0
      %v1459 = vadd.f32 %v1457, %v1458
      %v1460 = vsel %vm1397, %v1440, 0.0
      %v1461 = vadd.f32 %v1459, %v1460
      %v1462 = vsel %vm1397, %v1441, 0.0
      %v1463 = vadd.f32 %v1461, %v1462
      %v1464 = vsel %vm1397, %v1442, 0.0
      %v1465 = vadd.f32 %v1463, %v1464
      %v1466 = vsel %vm1397, %v1443, 0.0
      %v1467 = vadd.f32 %v1465, %v1466
      %v1468 = vsel %vm1397, %v1444, 0.0
      %v1469 = vadd.f32 %v1467, %v1468
      %v1470 = vsel %vm1397, %v1445, 0.0
      %v1471 = vadd.f32 %v1469, %v1470
      %v1472 = vsel %vm1397, %v1446, 0.0
      %v1473 = vadd.f32 %v1471, %v1472
      %v1474 = vsel %vm1397, %v1447, 0.0
      %v1475 = vadd.f32 %v1473, %v1474
      %v1476 = vsel %vm1397, %v1448, 0.0
      %v1477 = vadd.f32 %v1475, %v1476
      %v1478 = vsel %vm1397, %v1449, 0.0
      %v1479 = vadd.f32 %v1477, %v1478
      %v1480 = vsel %vm1397, %v1450, 0.0
      %v1481 = vadd.f32 %v1479, %v1480
      %v1482 = vrot.slane %v1481, 4
      %v1483 = vadd.f32 %v1481, %v1482
      %v1484 = vrot.slane %v1483, 2
      %v1485 = vadd.f32 %v1483, %v1484
      %v1486 = vrot.slane %v1485, 1
      %v1487 = vadd.f32 %v1485, %v1486
      %v1488 = vsel %vm1397, %v1434, 0.0
      %1489 = vadd.xlane.f32.xlu0 %v1488
      %v1490 = vpop.xlane.xlu0 %1489
      %v1491 = vsel %vm1397, %v1487, 0.0
      %1492 = vadd.xlane.f32.xlu0 %v1491
      %v1493 = vpop.xlane.xlu0 %1492
      %v1494 = vmul.f32 %v1490, 0.00021701389
      %v1495 = vmul.f32 %v1493, 0.00021701389
      %v1496 = vmul.f32 %v1494, %v1494
      %v1497 = vsub.f32 %v1495, %v1496
      %v1498 = vadd.f32 %v1497, 1e-05
      %v1499 = vrsqrt.pop %v1498
      %v1500 = vsub.f32 %v1381, %v1494
      %v1501 = vsub.f32 %v1382, %v1494
      %v1502 = vsub.f32 %v1383, %v1494
      %v1503 = vsub.f32 %v1384, %v1494
      %v1504 = vsub.f32 %v1385, %v1494
      %v1505 = vsub.f32 %v1386, %v1494
      %v1506 = vsub.f32 %v1387, %v1494
      %v1507 = vsub.f32 %v1388, %v1494
      %v1508 = vsub.f32 %v1389, %v1494
      %v1509 = vsub.f32 %v1390, %v1494
      %v1510 = vsub.f32 %v1391, %v1494
      %v1511 = vsub.f32 %v1392, %v1494
      %v1512 = vsub.f32 %v1393, %v1494
      %v1513 = vsub.f32 %v1394, %v1494
      %v1514 = vsub.f32 %v1395, %v1494
      %v1515 = vsub.f32 %v1396, %v1494
      %v1516 = vmul.f32 %v1500, %v1499
      %v1517 = vmul.f32 %v1501, %v1499
      %v1518 = vmul.f32 %v1502, %v1499
      %v1519 = vmul.f32 %v1503, %v1499
      %v1520 = vmul.f32 %v1504, %v1499
      %v1521 = vmul.f32 %v1505, %v1499
      %v1522 = vmul.f32 %v1506, %v1499
      %v1523 = vmul.f32 %v1507, %v1499
      %v1524 = vmul.f32 %v1508, %v1499
      %v1525 = vmul.f32 %v1509, %v1499
      %v1526 = vmul.f32 %v1510, %v1499
      %v1527 = vmul.f32 %v1511, %v1499
      %v1528 = vmul.f32 %v1512, %v1499
      %v1529 = vmul.f32 %v1513, %v1499
      %v1530 = vmul.f32 %v1514, %v1499
      %v1531 = vmul.f32 %v1515, %v1499
      %1532 = vst.msk [vmem:[%s170] sm:$0xff] %vm1397, %v1516
      %1533 = vst.msk [vmem:[%s170 + $0x8] sm:$0xff] %vm1397, %v1517
      %1534 = vst.msk [vmem:[%s170 + $0x10] sm:$0xff] %vm1397, %v1518
      %1535 = vst.msk [vmem:[%s170 + $0x18] sm:$0xff] %vm1397, %v1519
      %1536 = vst.msk [vmem:[%s170 + $0x20] sm:$0xff] %vm1397, %v1520
      %1537 = vst.msk [vmem:[%s170 + $0x28] sm:$0xff] %vm1397, %v1521
      %1538 = vst.msk [vmem:[%s170 + $0x30] sm:$0xff] %vm1397, %v1522
      %1539 = vst.msk [vmem:[%s170 + $0x38] sm:$0xff] %vm1397, %v1523
      %1540 = vst.msk [vmem:[%s170 + $0x40] sm:$0xff] %vm1397, %v1524
      %1541 = vst.msk [vmem:[%s170 + $0x48] sm:$0xff] %vm1397, %v1525
      %1542 = vst.msk [vmem:[%s170 + $0x50] sm:$0xff] %vm1397, %v1526
      %1543 = vst.msk [vmem:[%s170 + $0x58] sm:$0xff] %vm1397, %v1527
      %1544 = vst.msk [vmem:[%s170 + $0x60] sm:$0xff] %vm1397, %v1528
      %1545 = vst.msk [vmem:[%s170 + $0x68] sm:$0xff] %vm1397, %v1529
      %1546 = vst.msk [vmem:[%s170 + $0x70] sm:$0xff] %vm1397, %v1530
      %1547 = vst.msk [vmem:[%s170 + $0x78] sm:$0xff] %vm1397, %v1531
      %p1548 = scmp.lt.s32.totalorder %s14, 1
      %s1549 = scalar_select %p1548, %s14, 1
      %s1550 = smul.addr %s1549, 16
      %s1551 = smul.addr %s1550, 8
      %s1552 = scalar_lea.vmem %s3, %s1551
      // Predicated region
      $region33: #{wm_encoder_forward.6} parent=31 // pred_check
        %p1553 = pneg %p100
      $region34: #{wm_encoder_forward.6} parent=31 // pred_check_branch
        %1555 = sbr.rel (%p1553) target = $region36
      $region35: #{wm_encoder_forward.6} parent=31 // pred_region
        _
      $region36: #{wm_encoder_forward.6} parent=31 // pred_fallthru
        _
    $region32: #{wm_encoder_forward.6} parent=5 // pred_fallthru
      _
    %p1556 = scmp.le.s32.totalorder 2, %s9
    // Predicated region
    $region37: #{wm_encoder_forward.6} parent=5 // pred_check
      %p1557 = pneg %p1556
    $region38: #{wm_encoder_forward.6} parent=5 // pred_check_branch
      %1559 = sbr.rel (%p1557) target = $region40
    $region39: #{wm_encoder_forward.6} parent=5 // pred_region
      %s1560 = ssub.s32 %s9, 2
      // Predicated region
      $region41: #{wm_encoder_forward.6} parent=39 // pred_check
        %p1561 = pneg %p106
      $region42: #{wm_encoder_forward.6} parent=39 // pred_check_branch
        %1563 = sbr.rel (%p1561) target = $region44
      $region43: #{wm_encoder_forward.6} parent=39 // pred_region
        %p1564 = scmp.lt.s32.totalorder %s15, 1
        %s1565 = scalar_select %p1564, %s15, 1
        %s1566 = smul.addr %s1565, 16
        %s1567 = smul.addr %s1566, 8
        %s1568 = scalar_lea.vmem %s3, %s1567
      $region44: #{wm_encoder_forward.6} parent=39 // pred_fallthru
        _
    $region40: #{wm_encoder_forward.6} parent=5 // pred_fallthru
      _
  $region6: #{wm_encoder_forward.6} parent=0 // loop_footer
    %s13 = sadd.s32 1, %s9
  $region7: #{wm_encoder_forward.6} parent=0 // loop_footer_branch
    %8 = sbr.rel target = $region3
  $region8: #{wm_encoder_forward.6} parent=0 // loop_exit
    _

// kernel: wm_encoder_forward.7
$region0: #{wm_encoder_forward.7}
  #allocation0 [shape = 'u32[]', space=smem, size = 0x4, offset = 0x4, fixed_abs, tag = 'smem constant byte address 0x4 - core index']
  #allocation1 [shape = 'u32[144,128]{1,0:T(1,128)}', space=vmem, size = 0x12000, scoped, tag = 'internal scratch']
  %s0 = inlined_call_operand.vmem [shape: f32[2,2080,4], index: 0, kind: input, shape index: {}]
  %s1 = inlined_call_operand.vmem [shape: f32[256,2080], index: 1, kind: input, shape index: {}]
  %s2 = inlined_call_operand.vmem [shape: f32[256,1], index: 2, kind: input, shape index: {}]
  %s3 = inlined_call_operand.vmem [shape: f32[2,256,4], index: 3, kind: output, shape index: {}]
  %s4 = sld [smem:[#allocation0]]
  $region45: #{wm_encoder_forward.7} parent=0
    _
  %s6 = ssub.s32 1, %s4
  %s7 = scalar_select 0, %s6, %s4
  loop: start=0, step=1, limit=4
  $region2: #{wm_encoder_forward.7} parent=0 // loop_pre_header
    _
  $region3: #{wm_encoder_forward.7} parent=0 // loop_header
    %s9 = sphi 0, %s13
    %p10 = scmp.ge.s32.totalorder %s9, 4
    %s19 = sphi 0, %s21
    %s22 = sphi 0, %s19
    %s23 = sphi 0, %s22
    %s39 = sphi 0, %s23
    %s43 = sphi 0, %s43
    %s45 = sphi 0, %s43
    %s46 = sphi 0, %s45
    %s60 = sphi 0, %s46
    %s64 = sphi 0, %s64
    %s66 = sphi 0, %s64
    %s67 = sphi 0, %s66
    %s81 = sphi 0, %s67
    %s87 = sphi 0, %s89
    %s90 = sphi 0, %s87
    %s91 = sphi 0, %s90
    %s107 = sphi 0, %s91
  $region4: #{wm_encoder_forward.7} parent=0 // loop_header_branch
    %12 = sbr.rel (%p10) target = $region8
  $region5: #{wm_encoder_forward.7} parent=0 // loop_body
    %s14 = ssub.s32 %s9, 1
    %s15 = ssub.s32 %s9, 2
    %s16 = sadd.s32 %s9, 1
    %s17 = ssub.s32 %s9, %s16
    %p18 = scmp.eq.s32.totalorder %s17, 0
    %s20 = sadd.s32 %s19, 1
    %s21 = scalar_select %p18, %s19, %s20
    %p24 = pneg %p18
    %p25 = scmp.eq.s32.totalorder %s9, 1
    %p26 = por %p24, %p25
    %p27 = scmp.ne.s32.totalorder %s19, %s22
    %p28 = scmp.eq.s32.totalorder %s9, 0
    %p29 = por %p27, %p28
    %p30 = scmp.ne.s32.totalorder %s19, %s22
    %p31 = scmp.eq.s32.totalorder %s14, 1
    %p32 = por %p30, %p31
    %p33 = scmp.ne.s32.totalorder %s22, %s23
    %p34 = scmp.eq.s32.totalorder %s14, 0
    %p35 = por %p33, %p34
    %p36 = scmp.ne.s32.totalorder %s22, %s23
    %p37 = scmp.eq.s32.totalorder %s15, 1
    %p38 = por %p36, %p37
    %p40 = scmp.ne.s32.totalorder %s23, %s39
    %p41 = scmp.eq.s32.totalorder %s15, 0
    %p42 = por %p40, %p41
    %s44 = sadd.s32 %s43, 1
    %p47 = scmp.eq.s32.totalorder %s9, 1
    %p48 = scmp.ne.s32.totalorder %s43, %s45
    %p49 = scmp.eq.s32.totalorder %s9, 0
    %p50 = por %p48, %p49
    %p51 = scmp.ne.s32.totalorder %s43, %s45
    %p52 = scmp.eq.s32.totalorder %s14, 1
    %p53 = por %p51, %p52
    %p54 = scmp.ne.s32.totalorder %s45, %s46
    %p55 = scmp.eq.s32.totalorder %s14, 0
    %p56 = por %p54, %p55
    %p57 = scmp.ne.s32.totalorder %s45, %s46
    %p58 = scmp.eq.s32.totalorder %s15, 1
    %p59 = por %p57, %p58
    %p61 = scmp.ne.s32.totalorder %s46, %s60
    %p62 = scmp.eq.s32.totalorder %s15, 0
    %p63 = por %p61, %p62
    %s65 = sadd.s32 %s64, 1
    %p68 = scmp.eq.s32.totalorder %s9, 1
    %p69 = scmp.ne.s32.totalorder %s64, %s66
    %p70 = scmp.eq.s32.totalorder %s9, 0
    %p71 = por %p69, %p70
    %p72 = scmp.ne.s32.totalorder %s64, %s66
    %p73 = scmp.eq.s32.totalorder %s14, 1
    %p74 = por %p72, %p73
    %p75 = scmp.ne.s32.totalorder %s66, %s67
    %p76 = scmp.eq.s32.totalorder %s14, 0
    %p77 = por %p75, %p76
    %p78 = scmp.ne.s32.totalorder %s66, %s67
    %p79 = scmp.eq.s32.totalorder %s15, 1
    %p80 = por %p78, %p79
    %p82 = scmp.ne.s32.totalorder %s67, %s81
    %p83 = scmp.eq.s32.totalorder %s15, 0
    %p84 = por %p82, %p83
    %s85 = ssub.s32 %s9, %s16
    %p86 = scmp.eq.s32.totalorder %s85, 0
    %s88 = sadd.s32 %s87, 1
    %s89 = scalar_select %p86, %s87, %s88
    %p92 = pneg %p86
    %p93 = scmp.eq.s32.totalorder %s9, 1
    %p94 = por %p92, %p93
    %p95 = scmp.ne.s32.totalorder %s87, %s90
    %p96 = scmp.eq.s32.totalorder %s9, 0
    %p97 = por %p95, %p96
    %p98 = scmp.ne.s32.totalorder %s87, %s90
    %p99 = scmp.eq.s32.totalorder %s14, 1
    %p100 = por %p98, %p99
    %p101 = scmp.ne.s32.totalorder %s90, %s91
    %p102 = scmp.eq.s32.totalorder %s14, 0
    %p103 = por %p101, %p102
    %p104 = scmp.ne.s32.totalorder %s90, %s91
    %p105 = scmp.eq.s32.totalorder %s15, 1
    %p106 = por %p104, %p105
    %p108 = scmp.ne.s32.totalorder %s91, %s107
    %p109 = scmp.eq.s32.totalorder %s15, 0
    %p110 = por %p108, %p109
    %p111 = scmp.le.s32.totalorder 1, %s9
    %p112 = scmp.lt.s32.totalorder %s9, 3
    %p113 = pnand %p111, %p112
    %p114 = pneg %p113
    // Predicated region
    $region9: #{wm_encoder_forward.7} parent=5 // pred_check
      _
    $region10: #{wm_encoder_forward.7} parent=5 // pred_check_branch
      %116 = sbr.rel (%p113) target = $region12
    $region11: #{wm_encoder_forward.7} parent=5 // pred_region
      %s117 = ssub.s32 %s9, 1
      // Predicated region
      $region13: #{wm_encoder_forward.7} parent=11 // pred_check
        %p118 = pneg %p56
      $region14: #{wm_encoder_forward.7} parent=11 // pred_check_branch
        %120 = sbr.rel (%p118) target = $region16
      $region15: #{wm_encoder_forward.7} parent=11 // pred_region
        _
      $region16: #{wm_encoder_forward.7} parent=11 // pred_fallthru
        _
      // Predicated region
      $region17: #{wm_encoder_forward.7} parent=11 // pred_check
        %p121 = pneg %p77
      $region18: #{wm_encoder_forward.7} parent=11 // pred_check_branch
        %123 = sbr.rel (%p121) target = $region20
      $region19: #{wm_encoder_forward.7} parent=11 // pred_region
        _
      $region20: #{wm_encoder_forward.7} parent=11 // pred_fallthru
        _
    $region12: #{wm_encoder_forward.7} parent=5 // pred_fallthru
      _
    %p124 = scmp.lt.s32.totalorder %s9, 2
    // Predicated region
    $region21: #{wm_encoder_forward.7} parent=5 // pred_check
      %p125 = pneg %p124
    $region22: #{wm_encoder_forward.7} parent=5 // pred_check_branch
      %127 = sbr.rel (%p125) target = $region24
    $region23: #{wm_encoder_forward.7} parent=5 // pred_region
      // Predicated region
      $region25: #{wm_encoder_forward.7} parent=23 // pred_check
        %p128 = pneg %p29
      $region26: #{wm_encoder_forward.7} parent=23 // pred_check_branch
        %130 = sbr.rel (%p128) target = $region28
      $region27: #{wm_encoder_forward.7} parent=23 // pred_region
        %p131 = scmp.lt.s32.totalorder %s9, 1
        %s132 = scalar_select %p131, %s9, 1
        %s133 = smul.addr %s132, 260
        %s134 = smul.addr %s133, 8
        %s135 = scalar_lea.vmem %s0, %s134
      $region28: #{wm_encoder_forward.7} parent=23 // pred_fallthru
        _
    $region24: #{wm_encoder_forward.7} parent=5 // pred_fallthru
      _
    %p136 = scmp.le.s32.totalorder 1, %s9
    %p137 = scmp.lt.s32.totalorder %s9, 3
    %p138 = pnand %p136, %p137
    %p139 = pneg %p138
    // Predicated region
    $region29: #{wm_encoder_forward.7} parent=5 // pred_check
      _
    $region30: #{wm_encoder_forward.7} parent=5 // pred_check_branch
      %141 = sbr.rel (%p138) target = $region32
    $region31: #{wm_encoder_forward.7} parent=5 // pred_region
      %s142 = ssub.s32 %s9, 1
      %p143 = scmp.lt.s32.totalorder %s14, 1
      %s144 = scalar_select %p143, %s14, 1
      %s145 = smul.addr %s144, 260
      %s146 = smul.addr %s145, 8
      %s147 = scalar_lea.vmem %s0, %s146
      %p148 = pneg %p35
      %p149 = pneg %p32
      %p150 = pneg %p56
      %p151 = pneg %p53
      %p152 = pneg %p77
      %p153 = pneg %p74
      %p154 = pneg %p103
      %p155 = pneg %p100
      %p156 = scmp.lt.s32.totalorder %s14, 1
      %s157 = scalar_select %p156, %s14, 1
      %s158 = smul.addr %s157, 32
      %s159 = smul.addr %s158, 8
      %s160 = scalar_lea.vmem %s3, %s159
      %p161 = scmp.lt.s32.totalorder %s14, 1
      %s162 = scalar_select %p161, %s14, 1
      %s163 = smul.addr %s162, 260
      %s164 = smul.addr %s163, 8
      %s165 = scalar_lea.vmem %s0, %s164
      %p166 = scmp.lt.s32.totalorder %s14, 1
      %s167 = scalar_select %p166, %s14, 1
      %s168 = smul.addr %s167, 32
      %s169 = smul.addr %s168, 8
      %s170 = scalar_lea.vmem %s3, %s169
      %v171 = vld [vmem:[%s165] sm:$0xff]
      %v172 = vld [vmem:[%s165 + $0x8] sm:$0xff]
      %v173 = vld [vmem:[%s165 + $0x10] sm:$0xff]
      %v174 = vld [vmem:[%s165 + $0x18] sm:$0xff]
      %v175 = vld [vmem:[%s165 + $0x20] sm:$0xff]
      %v176 = vld [vmem:[%s165 + $0x28] sm:$0xff]
      %v177 = vld [vmem:[%s165 + $0x30] sm:$0xff]
      %v178 = vld [vmem:[%s165 + $0x38] sm:$0xff]
      %v179 = vld [vmem:[%s165 + $0x40] sm:$0xff]
      %v180 = vld [vmem:[%s165 + $0x48] sm:$0xff]
      %v181 = vld [vmem:[%s165 + $0x50] sm:$0xff]
      %v182 = vld [vmem:[%s165 + $0x58] sm:$0xff]
      %v183 = vld [vmem:[%s165 + $0x60] sm:$0xff]
      %v184 = vld [vmem:[%s165 + $0x68] sm:$0xff]
      %v185 = vld [vmem:[%s165 + $0x70] sm:$0xff]
      %v186 = vld [vmem:[%s165 + $0x78] sm:$0xff]
      %v187 = vld [vmem:[%s165 + $0x80] sm:$0xff]
      %v188 = vld [vmem:[%s165 + $0x88] sm:$0xff]
      %v189 = vld [vmem:[%s165 + $0x90] sm:$0xff]
      %v190 = vld [vmem:[%s165 + $0x98] sm:$0xff]
      %v191 = vld [vmem:[%s165 + $0xa0] sm:$0xff]
      %v192 = vld [vmem:[%s165 + $0xa8] sm:$0xff]
      %v193 = vld [vmem:[%s165 + $0xb0] sm:$0xff]
      %v194 = vld [vmem:[%s165 + $0xb8] sm:$0xff]
      %v195 = vld [vmem:[%s165 + $0xc0] sm:$0xff]
      %v196 = vld [vmem:[%s165 + $0xc8] sm:$0xff]
      %v197 = vld [vmem:[%s165 + $0xd0] sm:$0xff]
      %v198 = vld [vmem:[%s165 + $0xd8] sm:$0xff]
      %v199 = vld [vmem:[%s165 + $0xe0] sm:$0xff]
      %v200 = vld [vmem:[%s165 + $0xe8] sm:$0xff]
      %v201 = vld [vmem:[%s165 + $0xf0] sm:$0xff]
      %v202 = vld [vmem:[%s165 + $0xf8] sm:$0xff]
      %v203 = vld [vmem:[%s165 + $0x100] sm:$0xff]
      %v204 = vld [vmem:[%s165 + $0x108] sm:$0xff]
      %v205 = vld [vmem:[%s165 + $0x110] sm:$0xff]
      %v206 = vld [vmem:[%s165 + $0x118] sm:$0xff]
      %v207 = vld [vmem:[%s165 + $0x120] sm:$0xff]
      %v208 = vld [vmem:[%s165 + $0x128] sm:$0xff]
      %v209 = vld [vmem:[%s165 + $0x130] sm:$0xff]
      %v210 = vld [vmem:[%s165 + $0x138] sm:$0xff]
      %v211 = vld [vmem:[%s165 + $0x140] sm:$0xff]
      %v212 = vld [vmem:[%s165 + $0x148] sm:$0xff]
      %v213 = vld [vmem:[%s165 + $0x150] sm:$0xff]
      %v214 = vld [vmem:[%s165 + $0x158] sm:$0xff]
      %v215 = vld [vmem:[%s165 + $0x160] sm:$0xff]
      %v216 = vld [vmem:[%s165 + $0x168] sm:$0xff]
      %v217 = vld [vmem:[%s165 + $0x170] sm:$0xff]
      %v218 = vld [vmem:[%s165 + $0x178] sm:$0xff]
      %v219 = vld [vmem:[%s165 + $0x180] sm:$0xff]
      %v220 = vld [vmem:[%s165 + $0x188] sm:$0xff]
      %v221 = vld [vmem:[%s165 + $0x190] sm:$0xff]
      %v222 = vld [vmem:[%s165 + $0x198] sm:$0xff]
      %v223 = vld [vmem:[%s165 + $0x1a0] sm:$0xff]
      %v224 = vld [vmem:[%s165 + $0x1a8] sm:$0xff]
      %v225 = vld [vmem:[%s165 + $0x1b0] sm:$0xff]
      %v226 = vld [vmem:[%s165 + $0x1b8] sm:$0xff]
      %v227 = vld [vmem:[%s165 + $0x1c0] sm:$0xff]
      %v228 = vld [vmem:[%s165 + $0x1c8] sm:$0xff]
      %v229 = vld [vmem:[%s165 + $0x1d0] sm:$0xff]
      %v230 = vld [vmem:[%s165 + $0x1d8] sm:$0xff]
      %v231 = vld [vmem:[%s165 + $0x1e0] sm:$0xff]
      %v232 = vld [vmem:[%s165 + $0x1e8] sm:$0xff]
      %v233 = vld [vmem:[%s165 + $0x1f0] sm:$0xff]
      %v234 = vld [vmem:[%s165 + $0x1f8] sm:$0xff]
      %v235 = vld [vmem:[%s165 + $0x200] sm:$0xff]
      %v236 = vld [vmem:[%s165 + $0x208] sm:$0xff]
      %v237 = vld [vmem:[%s165 + $0x210] sm:$0xff]
      %v238 = vld [vmem:[%s165 + $0x218] sm:$0xff]
      %v239 = vld [vmem:[%s165 + $0x220] sm:$0xff]
      %v240 = vld [vmem:[%s165 + $0x228] sm:$0xff]
      %v241 = vld [vmem:[%s165 + $0x230] sm:$0xff]
      %v242 = vld [vmem:[%s165 + $0x238] sm:$0xff]
      %v243 = vld [vmem:[%s165 + $0x240] sm:$0xff]
      %v244 = vld [vmem:[%s165 + $0x248] sm:$0xff]
      %v245 = vld [vmem:[%s165 + $0x250] sm:$0xff]
      %v246 = vld [vmem:[%s165 + $0x258] sm:$0xff]
      %v247 = vld [vmem:[%s165 + $0x260] sm:$0xff]
      %v248 = vld [vmem:[%s165 + $0x268] sm:$0xff]
      %v249 = vld [vmem:[%s165 + $0x270] sm:$0xff]
      %v250 = vld [vmem:[%s165 + $0x278] sm:$0xff]
      %v251 = vld [vmem:[%s165 + $0x280] sm:$0xff]
      %v252 = vld [vmem:[%s165 + $0x288] sm:$0xff]
      %v253 = vld [vmem:[%s165 + $0x290] sm:$0xff]
      %v254 = vld [vmem:[%s165 + $0x298] sm:$0xff]
      %v255 = vld [vmem:[%s165 + $0x2a0] sm:$0xff]
      %v256 = vld [vmem:[%s165 + $0x2a8] sm:$0xff]
      %v257 = vld [vmem:[%s165 + $0x2b0] sm:$0xff]
      %v258 = vld [vmem:[%s165 + $0x2b8] sm:$0xff]
      %v259 = vld [vmem:[%s165 + $0x2c0] sm:$0xff]
      %v260 = vld [vmem:[%s165 + $0x2c8] sm:$0xff]
      %v261 = vld [vmem:[%s165 + $0x2d0] sm:$0xff]
      %v262 = vld [vmem:[%s165 + $0x2d8] sm:$0xff]
      %v263 = vld [vmem:[%s165 + $0x2e0] sm:$0xff]
      %v264 = vld [vmem:[%s165 + $0x2e8] sm:$0xff]
      %v265 = vld [vmem:[%s165 + $0x2f0] sm:$0xff]
      %v266 = vld [vmem:[%s165 + $0x2f8] sm:$0xff]
      %v267 = vld [vmem:[%s165 + $0x300] sm:$0xff]
      %v268 = vld [vmem:[%s165 + $0x308] sm:$0xff]
      %v269 = vld [vmem:[%s165 + $0x310] sm:$0xff]
      %v270 = vld [vmem:[%s165 + $0x318] sm:$0xff]
      %v271 = vld [vmem:[%s165 + $0x320] sm:$0xff]
      %v272 = vld [vmem:[%s165 + $0x328] sm:$0xff]
      %v273 = vld [vmem:[%s165 + $0x330] sm:$0xff]
      %v274 = vld [vmem:[%s165 + $0x338] sm:$0xff]
      %v275 = vld [vmem:[%s165 + $0x340] sm:$0xff]
      %v276 = vld [vmem:[%s165 + $0x348] sm:$0xff]
      %v277 = vld [vmem:[%s165 + $0x350] sm:$0xff]
      %v278 = vld [vmem:[%s165 + $0x358] sm:$0xff]
      %v279 = vld [vmem:[%s165 + $0x360] sm:$0xff]
      %v280 = vld [vmem:[%s165 + $0x368] sm:$0xff]
      %v281 = vld [vmem:[%s165 + $0x370] sm:$0xff]
      %v282 = vld [vmem:[%s165 + $0x378] sm:$0xff]
      %v283 = vld [vmem:[%s165 + $0x380] sm:$0xff]
      %v284 = vld [vmem:[%s165 + $0x388] sm:$0xff]
      %v285 = vld [vmem:[%s165 + $0x390] sm:$0xff]
      %v286 = vld [vmem:[%s165 + $0x398] sm:$0xff]
      %v287 = vld [vmem:[%s165 + $0x3a0] sm:$0xff]
      %v288 = vld [vmem:[%s165 + $0x3a8] sm:$0xff]
      %v289 = vld [vmem:[%s165 + $0x3b0] sm:$0xff]
      %v290 = vld [vmem:[%s165 + $0x3b8] sm:$0xff]
      %v291 = vld [vmem:[%s165 + $0x3c0] sm:$0xff]
      %v292 = vld [vmem:[%s165 + $0x3c8] sm:$0xff]
      %v293 = vld [vmem:[%s165 + $0x3d0] sm:$0xff]
      %v294 = vld [vmem:[%s165 + $0x3d8] sm:$0xff]
      %v295 = vld [vmem:[%s165 + $0x3e0] sm:$0xff]
      %v296 = vld [vmem:[%s165 + $0x3e8] sm:$0xff]
      %v297 = vld [vmem:[%s165 + $0x3f0] sm:$0xff]
      %v298 = vld [vmem:[%s165 + $0x3f8] sm:$0xff]
      %v299 = vld [vmem:[%s165 + $0x400] sm:$0xff]
      %v300 = vld [vmem:[%s165 + $0x408] sm:$0xff]
      %v301 = vld [vmem:[%s165 + $0x410] sm:$0xff]
      %v302 = vld [vmem:[%s165 + $0x418] sm:$0xff]
      %v303 = vld [vmem:[%s165 + $0x420] sm:$0xff]
      %v304 = vld [vmem:[%s165 + $0x428] sm:$0xff]
      %v305 = vld [vmem:[%s165 + $0x430] sm:$0xff]
      %v306 = vld [vmem:[%s165 + $0x438] sm:$0xff]
      %v307 = vld [vmem:[%s165 + $0x440] sm:$0xff]
      %v308 = vld [vmem:[%s165 + $0x448] sm:$0xff]
      %v309 = vld [vmem:[%s165 + $0x450] sm:$0xff]
      %v310 = vld [vmem:[%s165 + $0x458] sm:$0xff]
      %v311 = vld [vmem:[%s165 + $0x460] sm:$0xff]
      %v312 = vld [vmem:[%s165 + $0x468] sm:$0xff]
      %v313 = vld [vmem:[%s165 + $0x470] sm:$0xff]
      %v314 = vld [vmem:[%s165 + $0x478] sm:$0xff]
      %v315 = vld [vmem:[%s165 + $0x480] sm:$0xff]
      %v316 = vld [vmem:[%s165 + $0x488] sm:$0xff]
      %v317 = vld [vmem:[%s165 + $0x490] sm:$0xff]
      %v318 = vld [vmem:[%s165 + $0x498] sm:$0xff]
      %v319 = vld [vmem:[%s165 + $0x4a0] sm:$0xff]
      %v320 = vld [vmem:[%s165 + $0x4a8] sm:$0xff]
      %v321 = vld [vmem:[%s165 + $0x4b0] sm:$0xff]
      %v322 = vld [vmem:[%s165 + $0x4b8] sm:$0xff]
      %v323 = vld [vmem:[%s165 + $0x4c0] sm:$0xff]
      %v324 = vld [vmem:[%s165 + $0x4c8] sm:$0xff]
      %v325 = vld [vmem:[%s165 + $0x4d0] sm:$0xff]
      %v326 = vld [vmem:[%s165 + $0x4d8] sm:$0xff]
      %v327 = vld [vmem:[%s165 + $0x4e0] sm:$0xff]
      %v328 = vld [vmem:[%s165 + $0x4e8] sm:$0xff]
      %v329 = vld [vmem:[%s165 + $0x4f0] sm:$0xff]
      %v330 = vld [vmem:[%s165 + $0x4f8] sm:$0xff]
      %v331 = vld [vmem:[%s165 + $0x500] sm:$0xff]
      %v332 = vld [vmem:[%s165 + $0x508] sm:$0xff]
      %v333 = vld [vmem:[%s165 + $0x510] sm:$0xff]
      %v334 = vld [vmem:[%s165 + $0x518] sm:$0xff]
      %v335 = vld [vmem:[%s165 + $0x520] sm:$0xff]
      %v336 = vld [vmem:[%s165 + $0x528] sm:$0xff]
      %v337 = vld [vmem:[%s165 + $0x530] sm:$0xff]
      %v338 = vld [vmem:[%s165 + $0x538] sm:$0xff]
      %v339 = vld [vmem:[%s165 + $0x540] sm:$0xff]
      %v340 = vld [vmem:[%s165 + $0x548] sm:$0xff]
      %v341 = vld [vmem:[%s165 + $0x550] sm:$0xff]
      %v342 = vld [vmem:[%s165 + $0x558] sm:$0xff]
      %v343 = vld [vmem:[%s165 + $0x560] sm:$0xff]
      %v344 = vld [vmem:[%s165 + $0x568] sm:$0xff]
      %v345 = vld [vmem:[%s165 + $0x570] sm:$0xff]
      %v346 = vld [vmem:[%s165 + $0x578] sm:$0xff]
      %v347 = vld [vmem:[%s165 + $0x580] sm:$0xff]
      %v348 = vld [vmem:[%s165 + $0x588] sm:$0xff]
      %v349 = vld [vmem:[%s165 + $0x590] sm:$0xff]
      %v350 = vld [vmem:[%s165 + $0x598] sm:$0xff]
      %v351 = vld [vmem:[%s165 + $0x5a0] sm:$0xff]
      %v352 = vld [vmem:[%s165 + $0x5a8] sm:$0xff]
      %v353 = vld [vmem:[%s165 + $0x5b0] sm:$0xff]
      %v354 = vld [vmem:[%s165 + $0x5b8] sm:$0xff]
      %v355 = vld [vmem:[%s165 + $0x5c0] sm:$0xff]
      %v356 = vld [vmem:[%s165 + $0x5c8] sm:$0xff]
      %v357 = vld [vmem:[%s165 + $0x5d0] sm:$0xff]
      %v358 = vld [vmem:[%s165 + $0x5d8] sm:$0xff]
      %v359 = vld [vmem:[%s165 + $0x5e0] sm:$0xff]
      %v360 = vld [vmem:[%s165 + $0x5e8] sm:$0xff]
      %v361 = vld [vmem:[%s165 + $0x5f0] sm:$0xff]
      %v362 = vld [vmem:[%s165 + $0x5f8] sm:$0xff]
      %v363 = vld [vmem:[%s165 + $0x600] sm:$0xff]
      %v364 = vld [vmem:[%s165 + $0x608] sm:$0xff]
      %v365 = vld [vmem:[%s165 + $0x610] sm:$0xff]
      %v366 = vld [vmem:[%s165 + $0x618] sm:$0xff]
      %v367 = vld [vmem:[%s165 + $0x620] sm:$0xff]
      %v368 = vld [vmem:[%s165 + $0x628] sm:$0xff]
      %v369 = vld [vmem:[%s165 + $0x630] sm:$0xff]
      %v370 = vld [vmem:[%s165 + $0x638] sm:$0xff]
      %v371 = vld [vmem:[%s165 + $0x640] sm:$0xff]
      %v372 = vld [vmem:[%s165 + $0x648] sm:$0xff]
      %v373 = vld [vmem:[%s165 + $0x650] sm:$0xff]
      %v374 = vld [vmem:[%s165 + $0x658] sm:$0xff]
      %v375 = vld [vmem:[%s165 + $0x660] sm:$0xff]
      %v376 = vld [vmem:[%s165 + $0x668] sm:$0xff]
      %v377 = vld [vmem:[%s165 + $0x670] sm:$0xff]
      %v378 = vld [vmem:[%s165 + $0x678] sm:$0xff]
      %v379 = vld [vmem:[%s165 + $0x680] sm:$0xff]
      %v380 = vld [vmem:[%s165 + $0x688] sm:$0xff]
      %v381 = vld [vmem:[%s165 + $0x690] sm:$0xff]
      %v382 = vld [vmem:[%s165 + $0x698] sm:$0xff]
      %v383 = vld [vmem:[%s165 + $0x6a0] sm:$0xff]
      %v384 = vld [vmem:[%s165 + $0x6a8] sm:$0xff]
      %v385 = vld [vmem:[%s165 + $0x6b0] sm:$0xff]
      %v386 = vld [vmem:[%s165 + $0x6b8] sm:$0xff]
      %v387 = vld [vmem:[%s165 + $0x6c0] sm:$0xff]
      %v388 = vld [vmem:[%s165 + $0x6c8] sm:$0xff]
      %v389 = vld [vmem:[%s165 + $0x6d0] sm:$0xff]
      %v390 = vld [vmem:[%s165 + $0x6d8] sm:$0xff]
      %v391 = vld [vmem:[%s165 + $0x6e0] sm:$0xff]
      %v392 = vld [vmem:[%s165 + $0x6e8] sm:$0xff]
      %v393 = vld [vmem:[%s165 + $0x6f0] sm:$0xff]
      %v394 = vld [vmem:[%s165 + $0x6f8] sm:$0xff]
      %v395 = vld [vmem:[%s165 + $0x700] sm:$0xff]
      %v396 = vld [vmem:[%s165 + $0x708] sm:$0xff]
      %v397 = vld [vmem:[%s165 + $0x710] sm:$0xff]
      %v398 = vld [vmem:[%s165 + $0x718] sm:$0xff]
      %v399 = vld [vmem:[%s165 + $0x720] sm:$0xff]
      %v400 = vld [vmem:[%s165 + $0x728] sm:$0xff]
      %v401 = vld [vmem:[%s165 + $0x730] sm:$0xff]
      %v402 = vld [vmem:[%s165 + $0x738] sm:$0xff]
      %v403 = vld [vmem:[%s165 + $0x740] sm:$0xff]
      %v404 = vld [vmem:[%s165 + $0x748] sm:$0xff]
      %v405 = vld [vmem:[%s165 + $0x750] sm:$0xff]
      %v406 = vld [vmem:[%s165 + $0x758] sm:$0xff]
      %v407 = vld [vmem:[%s165 + $0x760] sm:$0xff]
      %v408 = vld [vmem:[%s165 + $0x768] sm:$0xff]
      %v409 = vld [vmem:[%s165 + $0x770] sm:$0xff]
      %v410 = vld [vmem:[%s165 + $0x778] sm:$0xff]
      %v411 = vld [vmem:[%s165 + $0x780] sm:$0xff]
      %v412 = vld [vmem:[%s165 + $0x788] sm:$0xff]
      %v413 = vld [vmem:[%s165 + $0x790] sm:$0xff]
      %v414 = vld [vmem:[%s165 + $0x798] sm:$0xff]
      %v415 = vld [vmem:[%s165 + $0x7a0] sm:$0xff]
      %v416 = vld [vmem:[%s165 + $0x7a8] sm:$0xff]
      %v417 = vld [vmem:[%s165 + $0x7b0] sm:$0xff]
      %v418 = vld [vmem:[%s165 + $0x7b8] sm:$0xff]
      %v419 = vld [vmem:[%s165 + $0x7c0] sm:$0xff]
      %v420 = vld [vmem:[%s165 + $0x7c8] sm:$0xff]
      %v421 = vld [vmem:[%s165 + $0x7d0] sm:$0xff]
      %v422 = vld [vmem:[%s165 + $0x7d8] sm:$0xff]
      %v423 = vld [vmem:[%s165 + $0x7e0] sm:$0xff]
      %v424 = vld [vmem:[%s165 + $0x7e8] sm:$0xff]
      %v425 = vld [vmem:[%s165 + $0x7f0] sm:$0xff]
      %v426 = vld [vmem:[%s165 + $0x7f8] sm:$0xff]
      %v427 = vld [vmem:[%s165 + $0x800] sm:$0xff]
      %v428 = vld [vmem:[%s165 + $0x808] sm:$0xff]
      %v429 = vld [vmem:[%s165 + $0x810] sm:$0xff]
      %v430 = vld [vmem:[%s165 + $0x818] sm:$0xff]
      %v431 = vld [vmem:[%s1] sm:$0xff]
      %v432 = vld [vmem:[%s1 + $0x8] sm:$0xff]
      %v433 = vld [vmem:[%s1 + $0x10] sm:$0xff]
      %v434 = vld [vmem:[%s1 + $0x18] sm:$0xff]
      %v435 = vld [vmem:[%s1 + $0x20] sm:$0xff]
      %v436 = vld [vmem:[%s1 + $0x28] sm:$0xff]
      %v437 = vld [vmem:[%s1 + $0x30] sm:$0xff]
      %v438 = vld [vmem:[%s1 + $0x38] sm:$0xff]
      %v439 = vld [vmem:[%s1 + $0x40] sm:$0xff]
      %v440 = vld [vmem:[%s1 + $0x48] sm:$0xff]
      %v441 = vld [vmem:[%s1 + $0x50] sm:$0xff]
      %v442 = vld [vmem:[%s1 + $0x58] sm:$0xff]
      %v443 = vld [vmem:[%s1 + $0x60] sm:$0xff]
      %v444 = vld [vmem:[%s1 + $0x68] sm:$0xff]
      %v445 = vld [vmem:[%s1 + $0x70] sm:$0xff]
      %v446 = vld [vmem:[%s1 + $0x78] sm:$0xff]
      %v447 = vld [vmem:[%s1 + $0x80] sm:$0xff]
      %v448 = vld [vmem:[%s1 + $0x88] sm:$0xff]
      %v449 = vld [vmem:[%s1 + $0x90] sm:$0xff]
      %v450 = vld [vmem:[%s1 + $0x98] sm:$0xff]
      %v451 = vld [vmem:[%s1 + $0xa0] sm:$0xff]
      %v452 = vld [vmem:[%s1 + $0xa8] sm:$0xff]
      %v453 = vld [vmem:[%s1 + $0xb0] sm:$0xff]
      %v454 = vld [vmem:[%s1 + $0xb8] sm:$0xff]
      %v455 = vld [vmem:[%s1 + $0xc0] sm:$0xff]
      %v456 = vld [vmem:[%s1 + $0xc8] sm:$0xff]
      %v457 = vld [vmem:[%s1 + $0xd0] sm:$0xff]
      %v458 = vld [vmem:[%s1 + $0xd8] sm:$0xff]
      %v459 = vld [vmem:[%s1 + $0xe0] sm:$0xff]
      %v460 = vld [vmem:[%s1 + $0xe8] sm:$0xff]
      %v461 = vld [vmem:[%s1 + $0xf0] sm:$0xff]
      %v462 = vld [vmem:[%s1 + $0xf8] sm:$0xff]
      %v463 = vld [vmem:[%s1 + $0x100] sm:$0xff]
      %v464 = vld [vmem:[%s1 + $0x108] sm:$0xff]
      %v465 = vld [vmem:[%s1 + $0x110] sm:$0xff]
      %v466 = vld [vmem:[%s1 + $0x118] sm:$0xff]
      %v467 = vld [vmem:[%s1 + $0x120] sm:$0xff]
      %v468 = vld [vmem:[%s1 + $0x128] sm:$0xff]
      %v469 = vld [vmem:[%s1 + $0x130] sm:$0xff]
      %v470 = vld [vmem:[%s1 + $0x138] sm:$0xff]
      %v471 = vld [vmem:[%s1 + $0x140] sm:$0xff]
      %v472 = vld [vmem:[%s1 + $0x148] sm:$0xff]
      %v473 = vld [vmem:[%s1 + $0x150] sm:$0xff]
      %v474 = vld [vmem:[%s1 + $0x158] sm:$0xff]
      %v475 = vld [vmem:[%s1 + $0x160] sm:$0xff]
      %v476 = vld [vmem:[%s1 + $0x168] sm:$0xff]
      %v477 = vld [vmem:[%s1 + $0x170] sm:$0xff]
      %v478 = vld [vmem:[%s1 + $0x178] sm:$0xff]
      %v479 = vld [vmem:[%s1 + $0x180] sm:$0xff]
      %v480 = vld [vmem:[%s1 + $0x188] sm:$0xff]
      %v481 = vld [vmem:[%s1 + $0x190] sm:$0xff]
      %v482 = vld [vmem:[%s1 + $0x198] sm:$0xff]
      %v483 = vld [vmem:[%s1 + $0x1a0] sm:$0xff]
      %v484 = vld [vmem:[%s1 + $0x1a8] sm:$0xff]
      %v485 = vld [vmem:[%s1 + $0x1b0] sm:$0xff]
      %v486 = vld [vmem:[%s1 + $0x1b8] sm:$0xff]
      %v487 = vld [vmem:[%s1 + $0x1c0] sm:$0xff]
      %v488 = vld [vmem:[%s1 + $0x1c8] sm:$0xff]
      %v489 = vld [vmem:[%s1 + $0x1d0] sm:$0xff]
      %v490 = vld [vmem:[%s1 + $0x1d8] sm:$0xff]
      %v491 = vld [vmem:[%s1 + $0x1e0] sm:$0xff]
      %v492 = vld [vmem:[%s1 + $0x1e8] sm:$0xff]
      %v493 = vld [vmem:[%s1 + $0x1f0] sm:$0xff]
      %v494 = vld [vmem:[%s1 + $0x1f8] sm:$0xff]
      %v495 = vld [vmem:[%s1 + $0x200] sm:$0xff]
      %v496 = vld [vmem:[%s1 + $0x208] sm:$0xff]
      %v497 = vld [vmem:[%s1 + $0x210] sm:$0xff]
      %v498 = vld [vmem:[%s1 + $0x218] sm:$0xff]
      %v499 = vld [vmem:[%s1 + $0x220] sm:$0xff]
      %v500 = vld [vmem:[%s1 + $0x228] sm:$0xff]
      %v501 = vld [vmem:[%s1 + $0x230] sm:$0xff]
      %v502 = vld [vmem:[%s1 + $0x238] sm:$0xff]
      %v503 = vld [vmem:[%s1 + $0x240] sm:$0xff]
      %v504 = vld [vmem:[%s1 + $0x248] sm:$0xff]
      %v505 = vld [vmem:[%s1 + $0x250] sm:$0xff]
      %v506 = vld [vmem:[%s1 + $0x258] sm:$0xff]
      %v507 = vld [vmem:[%s1 + $0x260] sm:$0xff]
      %v508 = vld [vmem:[%s1 + $0x268] sm:$0xff]
      %v509 = vld [vmem:[%s1 + $0x270] sm:$0xff]
      %v510 = vld [vmem:[%s1 + $0x278] sm:$0xff]
      %v511 = vld [vmem:[%s1 + $0x280] sm:$0xff]
      %v512 = vld [vmem:[%s1 + $0x288] sm:$0xff]
      %v513 = vld [vmem:[%s1 + $0x290] sm:$0xff]
      %v514 = vld [vmem:[%s1 + $0x298] sm:$0xff]
      %v515 = vld [vmem:[%s1 + $0x2a0] sm:$0xff]
      %v516 = vld [vmem:[%s1 + $0x2a8] sm:$0xff]
      %v517 = vld [vmem:[%s1 + $0x2b0] sm:$0xff]
      %v518 = vld [vmem:[%s1 + $0x2b8] sm:$0xff]
      %v519 = vld [vmem:[%s1 + $0x2c0] sm:$0xff]
      %v520 = vld [vmem:[%s1 + $0x2c8] sm:$0xff]
      %v521 = vld [vmem:[%s1 + $0x2d0] sm:$0xff]
      %v522 = vld [vmem:[%s1 + $0x2d8] sm:$0xff]
      %v523 = vld [vmem:[%s1 + $0x2e0] sm:$0xff]
      %v524 = vld [vmem:[%s1 + $0x2e8] sm:$0xff]
      %v525 = vld [vmem:[%s1 + $0x2f0] sm:$0xff]
      %v526 = vld [vmem:[%s1 + $0x2f8] sm:$0xff]
      %v527 = vld [vmem:[%s1 + $0x300] sm:$0xff]
      %v528 = vld [vmem:[%s1 + $0x308] sm:$0xff]
      %v529 = vld [vmem:[%s1 + $0x310] sm:$0xff]
      %v530 = vld [vmem:[%s1 + $0x318] sm:$0xff]
      %v531 = vld [vmem:[%s1 + $0x320] sm:$0xff]
      %v532 = vld [vmem:[%s1 + $0x328] sm:$0xff]
      %v533 = vld [vmem:[%s1 + $0x330] sm:$0xff]
      %v534 = vld [vmem:[%s1 + $0x338] sm:$0xff]
      %v535 = vld [vmem:[%s1 + $0x340] sm:$0xff]
      %v536 = vld [vmem:[%s1 + $0x348] sm:$0xff]
      %v537 = vld [vmem:[%s1 + $0x350] sm:$0xff]
      %v538 = vld [vmem:[%s1 + $0x358] sm:$0xff]
      %v539 = vld [vmem:[%s1 + $0x360] sm:$0xff]
      %v540 = vld [vmem:[%s1 + $0x368] sm:$0xff]
      %v541 = vld [vmem:[%s1 + $0x370] sm:$0xff]
      %v542 = vld [vmem:[%s1 + $0x378] sm:$0xff]
      %v543 = vld [vmem:[%s1 + $0x380] sm:$0xff]
      %v544 = vld [vmem:[%s1 + $0x388] sm:$0xff]
      %v545 = vld [vmem:[%s1 + $0x390] sm:$0xff]
      %v546 = vld [vmem:[%s1 + $0x398] sm:$0xff]
      %v547 = vld [vmem:[%s1 + $0x3a0] sm:$0xff]
      %v548 = vld [vmem:[%s1 + $0x3a8] sm:$0xff]
      %v549 = vld [vmem:[%s1 + $0x3b0] sm:$0xff]
      %v550 = vld [vmem:[%s1 + $0x3b8] sm:$0xff]
      %v551 = vld [vmem:[%s1 + $0x3c0] sm:$0xff]
      %v552 = vld [vmem:[%s1 + $0x3c8] sm:$0xff]
      %v553 = vld [vmem:[%s1 + $0x3d0] sm:$0xff]
      %v554 = vld [vmem:[%s1 + $0x3d8] sm:$0xff]
      %v555 = vld [vmem:[%s1 + $0x3e0] sm:$0xff]
      %v556 = vld [vmem:[%s1 + $0x3e8] sm:$0xff]
      %v557 = vld [vmem:[%s1 + $0x3f0] sm:$0xff]
      %v558 = vld [vmem:[%s1 + $0x3f8] sm:$0xff]
      %v559 = vld [vmem:[%s1 + $0x400] sm:$0xff]
      %v560 = vld [vmem:[%s1 + $0x408] sm:$0xff]
      %v561 = vld [vmem:[%s1 + $0x410] sm:$0xff]
      %v562 = vld [vmem:[%s1 + $0x418] sm:$0xff]
      %v563 = vld [vmem:[%s1 + $0x420] sm:$0xff]
      %v564 = vld [vmem:[%s1 + $0x428] sm:$0xff]
      %v565 = vld [vmem:[%s1 + $0x430] sm:$0xff]
      %v566 = vld [vmem:[%s1 + $0x438] sm:$0xff]
      %v567 = vld [vmem:[%s1 + $0x440] sm:$0xff]
      %v568 = vld [vmem:[%s1 + $0x448] sm:$0xff]
      %v569 = vld [vmem:[%s1 + $0x450] sm:$0xff]
      %v570 = vld [vmem:[%s1 + $0x458] sm:$0xff]
      %v571 = vld [vmem:[%s1 + $0x460] sm:$0xff]
      %v572 = vld [vmem:[%s1 + $0x468] sm:$0xff]
      %v573 = vld [vmem:[%s1 + $0x470] sm:$0xff]
      %v574 = vld [vmem:[%s1 + $0x478] sm:$0xff]
      %v575 = vld [vmem:[%s1 + $0x480] sm:$0xff]
      %v576 = vld [vmem:[%s1 + $0x488] sm:$0xff]
      %v577 = vld [vmem:[%s1 + $0x490] sm:$0xff]
      %v578 = vld [vmem:[%s1 + $0x498] sm:$0xff]
      %v579 = vld [vmem:[%s1 + $0x4a0] sm:$0xff]
      %v580 = vld [vmem:[%s1 + $0x4a8] sm:$0xff]
      %v581 = vld [vmem:[%s1 + $0x4b0] sm:$0xff]
      %v582 = vld [vmem:[%s1 + $0x4b8] sm:$0xff]
      %v583 = vld [vmem:[%s1 + $0x4c0] sm:$0xff]
      %v584 = vld [vmem:[%s1 + $0x4c8] sm:$0xff]
      %v585 = vld [vmem:[%s1 + $0x4d0] sm:$0xff]
      %v586 = vld [vmem:[%s1 + $0x4d8] sm:$0xff]
      %v587 = vld [vmem:[%s1 + $0x4e0] sm:$0xff]
      %v588 = vld [vmem:[%s1 + $0x4e8] sm:$0xff]
      %v589 = vld [vmem:[%s1 + $0x4f0] sm:$0xff]
      %v590 = vld [vmem:[%s1 + $0x4f8] sm:$0xff]
      %v591 = vld [vmem:[%s1 + $0x500] sm:$0xff]
      %v592 = vld [vmem:[%s1 + $0x508] sm:$0xff]
      %v593 = vld [vmem:[%s1 + $0x510] sm:$0xff]
      %v594 = vld [vmem:[%s1 + $0x518] sm:$0xff]
      %v595 = vld [vmem:[%s1 + $0x520] sm:$0xff]
      %v596 = vld [vmem:[%s1 + $0x528] sm:$0xff]
      %v597 = vld [vmem:[%s1 + $0x530] sm:$0xff]
      %v598 = vld [vmem:[%s1 + $0x538] sm:$0xff]
      %v599 = vld [vmem:[%s1 + $0x540] sm:$0xff]
      %v600 = vld [vmem:[%s1 + $0x548] sm:$0xff]
      %v601 = vld [vmem:[%s1 + $0x550] sm:$0xff]
      %v602 = vld [vmem:[%s1 + $0x558] sm:$0xff]
      %v603 = vld [vmem:[%s1 + $0x560] sm:$0xff]
      %v604 = vld [vmem:[%s1 + $0x568] sm:$0xff]
      %v605 = vld [vmem:[%s1 + $0x570] sm:$0xff]
      %v606 = vld [vmem:[%s1 + $0x578] sm:$0xff]
      %v607 = vld [vmem:[%s1 + $0x580] sm:$0xff]
      %v608 = vld [vmem:[%s1 + $0x588] sm:$0xff]
      %v609 = vld [vmem:[%s1 + $0x590] sm:$0xff]
      %v610 = vld [vmem:[%s1 + $0x598] sm:$0xff]
      %v611 = vld [vmem:[%s1 + $0x5a0] sm:$0xff]
      %v612 = vld [vmem:[%s1 + $0x5a8] sm:$0xff]
      %v613 = vld [vmem:[%s1 + $0x5b0] sm:$0xff]
      %v614 = vld [vmem:[%s1 + $0x5b8] sm:$0xff]
      %v615 = vld [vmem:[%s1 + $0x5c0] sm:$0xff]
      %v616 = vld [vmem:[%s1 + $0x5c8] sm:$0xff]
      %v617 = vld [vmem:[%s1 + $0x5d0] sm:$0xff]
      %v618 = vld [vmem:[%s1 + $0x5d8] sm:$0xff]
      %v619 = vld [vmem:[%s1 + $0x5e0] sm:$0xff]
      %v620 = vld [vmem:[%s1 + $0x5e8] sm:$0xff]
      %v621 = vld [vmem:[%s1 + $0x5f0] sm:$0xff]
      %v622 = vld [vmem:[%s1 + $0x5f8] sm:$0xff]
      %v623 = vld [vmem:[%s1 + $0x600] sm:$0xff]
      %v624 = vld [vmem:[%s1 + $0x608] sm:$0xff]
      %v625 = vld [vmem:[%s1 + $0x610] sm:$0xff]
      %v626 = vld [vmem:[%s1 + $0x618] sm:$0xff]
      %v627 = vld [vmem:[%s1 + $0x620] sm:$0xff]
      %v628 = vld [vmem:[%s1 + $0x628] sm:$0xff]
      %v629 = vld [vmem:[%s1 + $0x630] sm:$0xff]
      %v630 = vld [vmem:[%s1 + $0x638] sm:$0xff]
      %v631 = vld [vmem:[%s1 + $0x640] sm:$0xff]
      %v632 = vld [vmem:[%s1 + $0x648] sm:$0xff]
      %v633 = vld [vmem:[%s1 + $0x650] sm:$0xff]
      %v634 = vld [vmem:[%s1 + $0x658] sm:$0xff]
      %v635 = vld [vmem:[%s1 + $0x660] sm:$0xff]
      %v636 = vld [vmem:[%s1 + $0x668] sm:$0xff]
      %v637 = vld [vmem:[%s1 + $0x670] sm:$0xff]
      %v638 = vld [vmem:[%s1 + $0x678] sm:$0xff]
      %v639 = vld [vmem:[%s1 + $0x680] sm:$0xff]
      %v640 = vld [vmem:[%s1 + $0x688] sm:$0xff]
      %v641 = vld [vmem:[%s1 + $0x690] sm:$0xff]
      %v642 = vld [vmem:[%s1 + $0x698] sm:$0xff]
      %v643 = vld [vmem:[%s1 + $0x6a0] sm:$0xff]
      %v644 = vld [vmem:[%s1 + $0x6a8] sm:$0xff]
      %v645 = vld [vmem:[%s1 + $0x6b0] sm:$0xff]
      %v646 = vld [vmem:[%s1 + $0x6b8] sm:$0xff]
      %v647 = vld [vmem:[%s1 + $0x6c0] sm:$0xff]
      %v648 = vld [vmem:[%s1 + $0x6c8] sm:$0xff]
      %v649 = vld [vmem:[%s1 + $0x6d0] sm:$0xff]
      %v650 = vld [vmem:[%s1 + $0x6d8] sm:$0xff]
      %v651 = vld [vmem:[%s1 + $0x6e0] sm:$0xff]
      %v652 = vld [vmem:[%s1 + $0x6e8] sm:$0xff]
      %v653 = vld [vmem:[%s1 + $0x6f0] sm:$0xff]
      %v654 = vld [vmem:[%s1 + $0x6f8] sm:$0xff]
      %v655 = vld [vmem:[%s1 + $0x700] sm:$0xff]
      %v656 = vld [vmem:[%s1 + $0x708] sm:$0xff]
      %v657 = vld [vmem:[%s1 + $0x710] sm:$0xff]
      %v658 = vld [vmem:[%s1 + $0x718] sm:$0xff]
      %v659 = vld [vmem:[%s1 + $0x720] sm:$0xff]
      %v660 = vld [vmem:[%s1 + $0x728] sm:$0xff]
      %v661 = vld [vmem:[%s1 + $0x730] sm:$0xff]
      %v662 = vld [vmem:[%s1 + $0x738] sm:$0xff]
      %v663 = vld [vmem:[%s1 + $0x740] sm:$0xff]
      %v664 = vld [vmem:[%s1 + $0x748] sm:$0xff]
      %v665 = vld [vmem:[%s1 + $0x750] sm:$0xff]
      %v666 = vld [vmem:[%s1 + $0x758] sm:$0xff]
      %v667 = vld [vmem:[%s1 + $0x760] sm:$0xff]
      %v668 = vld [vmem:[%s1 + $0x768] sm:$0xff]
      %v669 = vld [vmem:[%s1 + $0x770] sm:$0xff]
      %v670 = vld [vmem:[%s1 + $0x778] sm:$0xff]
      %v671 = vld [vmem:[%s1 + $0x780] sm:$0xff]
      %v672 = vld [vmem:[%s1 + $0x788] sm:$0xff]
      %v673 = vld [vmem:[%s1 + $0x790] sm:$0xff]
      %v674 = vld [vmem:[%s1 + $0x798] sm:$0xff]
      %v675 = vld [vmem:[%s1 + $0x7a0] sm:$0xff]
      %v676 = vld [vmem:[%s1 + $0x7a8] sm:$0xff]
      %v677 = vld [vmem:[%s1 + $0x7b0] sm:$0xff]
      %v678 = vld [vmem:[%s1 + $0x7b8] sm:$0xff]
      %v679 = vld [vmem:[%s1 + $0x7c0] sm:$0xff]
      %v680 = vld [vmem:[%s1 + $0x7c8] sm:$0xff]
      %v681 = vld [vmem:[%s1 + $0x7d0] sm:$0xff]
      %v682 = vld [vmem:[%s1 + $0x7d8] sm:$0xff]
      %v683 = vld [vmem:[%s1 + $0x7e0] sm:$0xff]
      %v684 = vld [vmem:[%s1 + $0x7e8] sm:$0xff]
      %v685 = vld [vmem:[%s1 + $0x7f0] sm:$0xff]
      %v686 = vld [vmem:[%s1 + $0x7f8] sm:$0xff]
      %v687 = vld [vmem:[%s1 + $0x800] sm:$0xff]
      %v688 = vld [vmem:[%s1 + $0x808] sm:$0xff]
      %v689 = vld [vmem:[%s1 + $0x810] sm:$0xff]
      %v690 = vld [vmem:[%s1 + $0x818] sm:$0xff]
      %v691 = vld [vmem:[%s1 + $0x820] sm:$0xff]
      %v692 = vld [vmem:[%s1 + $0x828] sm:$0xff]
      %v693 = vld [vmem:[%s1 + $0x830] sm:$0xff]
      %v694 = vld [vmem:[%s1 + $0x838] sm:$0xff]
      %v695 = vld [vmem:[%s1 + $0x840] sm:$0xff]
      %v696 = vld [vmem:[%s1 + $0x848] sm:$0xff]
      %v697 = vld [vmem:[%s1 + $0x850] sm:$0xff]
      %v698 = vld [vmem:[%s1 + $0x858] sm:$0xff]
      %v699 = vld [vmem:[%s1 + $0x860] sm:$0xff]
      %v700 = vld [vmem:[%s1 + $0x868] sm:$0xff]
      %v701 = vld [vmem:[%s1 + $0x870] sm:$0xff]
      %v702 = vld [vmem:[%s1 + $0x878] sm:$0xff]
      %v703 = vld [vmem:[%s1 + $0x880] sm:$0xff]
      %v704 = vld [vmem:[%s1 + $0x888] sm:$0xff]
      %v705 = vld [vmem:[%s1 + $0x890] sm:$0xff]
      %v706 = vld [vmem:[%s1 + $0x898] sm:$0xff]
      %v707 = vld [vmem:[%s1 + $0x8a0] sm:$0xff]
      %v708 = vld [vmem:[%s1 + $0x8a8] sm:$0xff]
      %v709 = vld [vmem:[%s1 + $0x8b0] sm:$0xff]
      %v710 = vld [vmem:[%s1 + $0x8b8] sm:$0xff]
      %v711 = vld [vmem:[%s1 + $0x8c0] sm:$0xff]
      %v712 = vld [vmem:[%s1 + $0x8c8] sm:$0xff]
      %v713 = vld [vmem:[%s1 + $0x8d0] sm:$0xff]
      %v714 = vld [vmem:[%s1 + $0x8d8] sm:$0xff]
      %v715 = vld [vmem:[%s1 + $0x8e0] sm:$0xff]
      %v716 = vld [vmem:[%s1 + $0x8e8] sm:$0xff]
      %v717 = vld [vmem:[%s1 + $0x8f0] sm:$0xff]
      %v718 = vld [vmem:[%s1 + $0x8f8] sm:$0xff]
      %v719 = vld [vmem:[%s1 + $0x900] sm:$0xff]
      %v720 = vld [vmem:[%s1 + $0x908] sm:$0xff]
      %v721 = vld [vmem:[%s1 + $0x910] sm:$0xff]
      %v722 = vld [vmem:[%s1 + $0x918] sm:$0xff]
      %v723 = vld [vmem:[%s1 + $0x920] sm:$0xff]
      %v724 = vld [vmem:[%s1 + $0x928] sm:$0xff]
      %v725 = vld [vmem:[%s1 + $0x930] sm:$0xff]
      %v726 = vld [vmem:[%s1 + $0x938] sm:$0xff]
      %v727 = vld [vmem:[%s1 + $0x940] sm:$0xff]
      %v728 = vld [vmem:[%s1 + $0x948] sm:$0xff]
      %v729 = vld [vmem:[%s1 + $0x950] sm:$0xff]
      %v730 = vld [vmem:[%s1 + $0x958] sm:$0xff]
      %v731 = vld [vmem:[%s1 + $0x960] sm:$0xff]
      %v732 = vld [vmem:[%s1 + $0x968] sm:$0xff]
      %v733 = vld [vmem:[%s1 + $0x970] sm:$0xff]
      %v734 = vld [vmem:[%s1 + $0x978] sm:$0xff]
      %v735 = vld [vmem:[%s1 + $0x980] sm:$0xff]
      %v736 = vld [vmem:[%s1 + $0x988] sm:$0xff]
      %v737 = vld [vmem:[%s1 + $0x990] sm:$0xff]
      %v738 = vld [vmem:[%s1 + $0x998] sm:$0xff]
      %v739 = vld [vmem:[%s1 + $0x9a0] sm:$0xff]
      %v740 = vld [vmem:[%s1 + $0x9a8] sm:$0xff]
      %v741 = vld [vmem:[%s1 + $0x9b0] sm:$0xff]
      %v742 = vld [vmem:[%s1 + $0x9b8] sm:$0xff]
      %v743 = vld [vmem:[%s1 + $0x9c0] sm:$0xff]
      %v744 = vld [vmem:[%s1 + $0x9c8] sm:$0xff]
      %v745 = vld [vmem:[%s1 + $0x9d0] sm:$0xff]
      %v746 = vld [vmem:[%s1 + $0x9d8] sm:$0xff]
      %v747 = vld [vmem:[%s1 + $0x9e0] sm:$0xff]
      %v748 = vld [vmem:[%s1 + $0x9e8] sm:$0xff]
      %v749 = vld [vmem:[%s1 + $0x9f0] sm:$0xff]
      %v750 = vld [vmem:[%s1 + $0x9f8] sm:$0xff]
      %v751 = vld [vmem:[%s1 + $0xa00] sm:$0xff]
      %v752 = vld [vmem:[%s1 + $0xa08] sm:$0xff]
      %v753 = vld [vmem:[%s1 + $0xa10] sm:$0xff]
      %v754 = vld [vmem:[%s1 + $0xa18] sm:$0xff]
      %v755 = vld [vmem:[%s1 + $0xa20] sm:$0xff]
      %v756 = vld [vmem:[%s1 + $0xa28] sm:$0xff]
      %v757 = vld [vmem:[%s1 + $0xa30] sm:$0xff]
      %v758 = vld [vmem:[%s1 + $0xa38] sm:$0xff]
      %v759 = vld [vmem:[%s1 + $0xa40] sm:$0xff]
      %v760 = vld [vmem:[%s1 + $0xa48] sm:$0xff]
      %v761 = vld [vmem:[%s1 + $0xa50] sm:$0xff]
      %v762 = vld [vmem:[%s1 + $0xa58] sm:$0xff]
      %v763 = vld [vmem:[%s1 + $0xa60] sm:$0xff]
      %v764 = vld [vmem:[%s1 + $0xa68] sm:$0xff]
      %v765 = vld [vmem:[%s1 + $0xa70] sm:$0xff]
      %v766 = vld [vmem:[%s1 + $0xa78] sm:$0xff]
      %v767 = vld [vmem:[%s1 + $0xa80] sm:$0xff]
      %v768 = vld [vmem:[%s1 + $0xa88] sm:$0xff]
      %v769 = vld [vmem:[%s1 + $0xa90] sm:$0xff]
      %v770 = vld [vmem:[%s1 + $0xa98] sm:$0xff]
      %v771 = vld [vmem:[%s1 + $0xaa0] sm:$0xff]
      %v772 = vld [vmem:[%s1 + $0xaa8] sm:$0xff]
      %v773 = vld [vmem:[%s1 + $0xab0] sm:$0xff]
      %v774 = vld [vmem:[%s1 + $0xab8] sm:$0xff]
      %v775 = vld [vmem:[%s1 + $0xac0] sm:$0xff]
      %v776 = vld [vmem:[%s1 + $0xac8] sm:$0xff]
      %v777 = vld [vmem:[%s1 + $0xad0] sm:$0xff]
      %v778 = vld [vmem:[%s1 + $0xad8] sm:$0xff]
      %v779 = vld [vmem:[%s1 + $0xae0] sm:$0xff]
      %v780 = vld [vmem:[%s1 + $0xae8] sm:$0xff]
      %v781 = vld [vmem:[%s1 + $0xaf0] sm:$0xff]
      %v782 = vld [vmem:[%s1 + $0xaf8] sm:$0xff]
      %v783 = vld [vmem:[%s1 + $0xb00] sm:$0xff]
      %v784 = vld [vmem:[%s1 + $0xb08] sm:$0xff]
      %v785 = vld [vmem:[%s1 + $0xb10] sm:$0xff]
      %v786 = vld [vmem:[%s1 + $0xb18] sm:$0xff]
      %v787 = vld [vmem:[%s1 + $0xb20] sm:$0xff]
      %v788 = vld [vmem:[%s1 + $0xb28] sm:$0xff]
      %v789 = vld [vmem:[%s1 + $0xb30] sm:$0xff]
      %v790 = vld [vmem:[%s1 + $0xb38] sm:$0xff]
      %v791 = vld [vmem:[%s1 + $0xb40] sm:$0xff]
      %v792 = vld [vmem:[%s1 + $0xb48] sm:$0xff]
      %v793 = vld [vmem:[%s1 + $0xb50] sm:$0xff]
      %v794 = vld [vmem:[%s1 + $0xb58] sm:$0xff]
      %v795 = vld [vmem:[%s1 + $0xb60] sm:$0xff]
      %v796 = vld [vmem:[%s1 + $0xb68] sm:$0xff]
      %v797 = vld [vmem:[%s1 + $0xb70] sm:$0xff]
      %v798 = vld [vmem:[%s1 + $0xb78] sm:$0xff]
      %v799 = vld [vmem:[%s1 + $0xb80] sm:$0xff]
      %v800 = vld [vmem:[%s1 + $0xb88] sm:$0xff]
      %v801 = vld [vmem:[%s1 + $0xb90] sm:$0xff]
      %v802 = vld [vmem:[%s1 + $0xb98] sm:$0xff]
      %v803 = vld [vmem:[%s1 + $0xba0] sm:$0xff]
      %v804 = vld [vmem:[%s1 + $0xba8] sm:$0xff]
      %v805 = vld [vmem:[%s1 + $0xbb0] sm:$0xff]
      %v806 = vld [vmem:[%s1 + $0xbb8] sm:$0xff]
      %v807 = vld [vmem:[%s1 + $0xbc0] sm:$0xff]
      %v808 = vld [vmem:[%s1 + $0xbc8] sm:$0xff]
      %v809 = vld [vmem:[%s1 + $0xbd0] sm:$0xff]
      %v810 = vld [vmem:[%s1 + $0xbd8] sm:$0xff]
      %v811 = vld [vmem:[%s1 + $0xbe0] sm:$0xff]
      %v812 = vld [vmem:[%s1 + $0xbe8] sm:$0xff]
      %v813 = vld [vmem:[%s1 + $0xbf0] sm:$0xff]
      %v814 = vld [vmem:[%s1 + $0xbf8] sm:$0xff]
      %v815 = vld [vmem:[%s1 + $0xc00] sm:$0xff]
      %v816 = vld [vmem:[%s1 + $0xc08] sm:$0xff]
      %v817 = vld [vmem:[%s1 + $0xc10] sm:$0xff]
      %v818 = vld [vmem:[%s1 + $0xc18] sm:$0xff]
      %v819 = vld [vmem:[%s1 + $0xc20] sm:$0xff]
      %v820 = vld [vmem:[%s1 + $0xc28] sm:$0xff]
      %v821 = vld [vmem:[%s1 + $0xc30] sm:$0xff]
      %v822 = vld [vmem:[%s1 + $0xc38] sm:$0xff]
      %v823 = vld [vmem:[%s1 + $0xc40] sm:$0xff]
      %v824 = vld [vmem:[%s1 + $0xc48] sm:$0xff]
      %v825 = vld [vmem:[%s1 + $0xc50] sm:$0xff]
      %v826 = vld [vmem:[%s1 + $0xc58] sm:$0xff]
      %v827 = vld [vmem:[%s1 + $0xc60] sm:$0xff]
      %v828 = vld [vmem:[%s1 + $0xc68] sm:$0xff]
      %v829 = vld [vmem:[%s1 + $0xc70] sm:$0xff]
      %v830 = vld [vmem:[%s1 + $0xc78] sm:$0xff]
      %v831 = vld [vmem:[%s1 + $0xc80] sm:$0xff]
      %v832 = vld [vmem:[%s1 + $0xc88] sm:$0xff]
      %v833 = vld [vmem:[%s1 + $0xc90] sm:$0xff]
      %v834 = vld [vmem:[%s1 + $0xc98] sm:$0xff]
      %v835 = vld [vmem:[%s1 + $0xca0] sm:$0xff]
      %v836 = vld [vmem:[%s1 + $0xca8] sm:$0xff]
      %v837 = vld [vmem:[%s1 + $0xcb0] sm:$0xff]
      %v838 = vld [vmem:[%s1 + $0xcb8] sm:$0xff]
      %v839 = vld [vmem:[%s1 + $0xcc0] sm:$0xff]
      %v840 = vld [vmem:[%s1 + $0xcc8] sm:$0xff]
      %v841 = vld [vmem:[%s1 + $0xcd0] sm:$0xff]
      %v842 = vld [vmem:[%s1 + $0xcd8] sm:$0xff]
      %v843 = vld [vmem:[%s1 + $0xce0] sm:$0xff]
      %v844 = vld [vmem:[%s1 + $0xce8] sm:$0xff]
      %v845 = vld [vmem:[%s1 + $0xcf0] sm:$0xff]
      %v846 = vld [vmem:[%s1 + $0xcf8] sm:$0xff]
      %v847 = vld [vmem:[%s1 + $0xd00] sm:$0xff]
      %v848 = vld [vmem:[%s1 + $0xd08] sm:$0xff]
      %v849 = vld [vmem:[%s1 + $0xd10] sm:$0xff]
      %v850 = vld [vmem:[%s1 + $0xd18] sm:$0xff]
      %v851 = vld [vmem:[%s1 + $0xd20] sm:$0xff]
      %v852 = vld [vmem:[%s1 + $0xd28] sm:$0xff]
      %v853 = vld [vmem:[%s1 + $0xd30] sm:$0xff]
      %v854 = vld [vmem:[%s1 + $0xd38] sm:$0xff]
      %v855 = vld [vmem:[%s1 + $0xd40] sm:$0xff]
      %v856 = vld [vmem:[%s1 + $0xd48] sm:$0xff]
      %v857 = vld [vmem:[%s1 + $0xd50] sm:$0xff]
      %v858 = vld [vmem:[%s1 + $0xd58] sm:$0xff]
      %v859 = vld [vmem:[%s1 + $0xd60] sm:$0xff]
      %v860 = vld [vmem:[%s1 + $0xd68] sm:$0xff]
      %v861 = vld [vmem:[%s1 + $0xd70] sm:$0xff]
      %v862 = vld [vmem:[%s1 + $0xd78] sm:$0xff]
      %v863 = vld [vmem:[%s1 + $0xd80] sm:$0xff]
      %v864 = vld [vmem:[%s1 + $0xd88] sm:$0xff]
      %v865 = vld [vmem:[%s1 + $0xd90] sm:$0xff]
      %v866 = vld [vmem:[%s1 + $0xd98] sm:$0xff]
      %v867 = vld [vmem:[%s1 + $0xda0] sm:$0xff]
      %v868 = vld [vmem:[%s1 + $0xda8] sm:$0xff]
      %v869 = vld [vmem:[%s1 + $0xdb0] sm:$0xff]
      %v870 = vld [vmem:[%s1 + $0xdb8] sm:$0xff]
      %v871 = vld [vmem:[%s1 + $0xdc0] sm:$0xff]
      %v872 = vld [vmem:[%s1 + $0xdc8] sm:$0xff]
      %v873 = vld [vmem:[%s1 + $0xdd0] sm:$0xff]
      %v874 = vld [vmem:[%s1 + $0xdd8] sm:$0xff]
      %v875 = vld [vmem:[%s1 + $0xde0] sm:$0xff]
      %v876 = vld [vmem:[%s1 + $0xde8] sm:$0xff]
      %v877 = vld [vmem:[%s1 + $0xdf0] sm:$0xff]
      %v878 = vld [vmem:[%s1 + $0xdf8] sm:$0xff]
      %v879 = vld [vmem:[%s1 + $0xe00] sm:$0xff]
      %v880 = vld [vmem:[%s1 + $0xe08] sm:$0xff]
      %v881 = vld [vmem:[%s1 + $0xe10] sm:$0xff]
      %v882 = vld [vmem:[%s1 + $0xe18] sm:$0xff]
      %v883 = vld [vmem:[%s1 + $0xe20] sm:$0xff]
      %v884 = vld [vmem:[%s1 + $0xe28] sm:$0xff]
      %v885 = vld [vmem:[%s1 + $0xe30] sm:$0xff]
      %v886 = vld [vmem:[%s1 + $0xe38] sm:$0xff]
      %v887 = vld [vmem:[%s1 + $0xe40] sm:$0xff]
      %v888 = vld [vmem:[%s1 + $0xe48] sm:$0xff]
      %v889 = vld [vmem:[%s1 + $0xe50] sm:$0xff]
      %v890 = vld [vmem:[%s1 + $0xe58] sm:$0xff]
      %v891 = vld [vmem:[%s1 + $0xe60] sm:$0xff]
      %v892 = vld [vmem:[%s1 + $0xe68] sm:$0xff]
      %v893 = vld [vmem:[%s1 + $0xe70] sm:$0xff]
      %v894 = vld [vmem:[%s1 + $0xe78] sm:$0xff]
      %v895 = vld [vmem:[%s1 + $0xe80] sm:$0xff]
      %v896 = vld [vmem:[%s1 + $0xe88] sm:$0xff]
      %v897 = vld [vmem:[%s1 + $0xe90] sm:$0xff]
      %v898 = vld [vmem:[%s1 + $0xe98] sm:$0xff]
      %v899 = vld [vmem:[%s1 + $0xea0] sm:$0xff]
      %v900 = vld [vmem:[%s1 + $0xea8] sm:$0xff]
      %v901 = vld [vmem:[%s1 + $0xeb0] sm:$0xff]
      %v902 = vld [vmem:[%s1 + $0xeb8] sm:$0xff]
      %v903 = vld [vmem:[%s1 + $0xec0] sm:$0xff]
      %v904 = vld [vmem:[%s1 + $0xec8] sm:$0xff]
      %v905 = vld [vmem:[%s1 + $0xed0] sm:$0xff]
      %v906 = vld [vmem:[%s1 + $0xed8] sm:$0xff]
      %v907 = vld [vmem:[%s1 + $0xee0] sm:$0xff]
      %v908 = vld [vmem:[%s1 + $0xee8] sm:$0xff]
      %v909 = vld [vmem:[%s1 + $0xef0] sm:$0xff]
      %v910 = vld [vmem:[%s1 + $0xef8] sm:$0xff]
      %v911 = vld [vmem:[%s1 + $0xf00] sm:$0xff]
      %v912 = vld [vmem:[%s1 + $0xf08] sm:$0xff]
      %v913 = vld [vmem:[%s1 + $0xf10] sm:$0xff]
      %v914 = vld [vmem:[%s1 + $0xf18] sm:$0xff]
      %v915 = vld [vmem:[%s1 + $0xf20] sm:$0xff]
      %v916 = vld [vmem:[%s1 + $0xf28] sm:$0xff]
      %v917 = vld [vmem:[%s1 + $0xf30] sm:$0xff]
      %v918 = vld [vmem:[%s1 + $0xf38] sm:$0xff]
      %v919 = vld [vmem:[%s1 + $0xf40] sm:$0xff]
      %v920 = vld [vmem:[%s1 + $0xf48] sm:$0xff]
      %v921 = vld [vmem:[%s1 + $0xf50] sm:$0xff]
      %v922 = vld [vmem:[%s1 + $0xf58] sm:$0xff]
      %v923 = vld [vmem:[%s1 + $0xf60] sm:$0xff]
      %v924 = vld [vmem:[%s1 + $0xf68] sm:$0xff]
      %v925 = vld [vmem:[%s1 + $0xf70] sm:$0xff]
      %v926 = vld [vmem:[%s1 + $0xf78] sm:$0xff]
      %v927 = vld [vmem:[%s1 + $0xf80] sm:$0xff]
      %v928 = vld [vmem:[%s1 + $0xf88] sm:$0xff]
      %v929 = vld [vmem:[%s1 + $0xf90] sm:$0xff]
      %v930 = vld [vmem:[%s1 + $0xf98] sm:$0xff]
      %v931 = vld [vmem:[%s1 + $0xfa0] sm:$0xff]
      %v932 = vld [vmem:[%s1 + $0xfa8] sm:$0xff]
      %v933 = vld [vmem:[%s1 + $0xfb0] sm:$0xff]
      %v934 = vld [vmem:[%s1 + $0xfb8] sm:$0xff]
      %v935 = vld [vmem:[%s1 + $0xfc0] sm:$0xff]
      %v936 = vld [vmem:[%s1 + $0xfc8] sm:$0xff]
      %v937 = vld [vmem:[%s1 + $0xfd0] sm:$0xff]
      %v938 = vld [vmem:[%s1 + $0xfd8] sm:$0xff]
      %v939 = vld [vmem:[%s1 + $0xfe0] sm:$0xff]
      %v940 = vld [vmem:[%s1 + $0xfe8] sm:$0xff]
      %v941 = vld [vmem:[%s1 + $0xff0] sm:$0xff]
      %v942 = vld [vmem:[%s1 + $0xff8] sm:$0xff]
      %v943 = vld [vmem:[%s1 + $0x1000] sm:$0xff]
      %v944 = vld [vmem:[%s1 + $0x1008] sm:$0xff]
      %v945 = vld [vmem:[%s1 + $0x1010] sm:$0xff]
      %v946 = vld [vmem:[%s1 + $0x1018] sm:$0xff]
      %v947 = vld [vmem:[%s1 + $0x1020] sm:$0xff]
      %v948 = vld [vmem:[%s1 + $0x1028] sm:$0xff]
      %v949 = vld [vmem:[%s1 + $0x1030] sm:$0xff]
      %v950 = vld [vmem:[%s1 + $0x1038] sm:$0xff]
      %v951 = vld [vmem:[%s1 + $0x1040] sm:$0xff]
      %v952 = vld [vmem:[%s1 + $0x1048] sm:$0xff]
      %v953 = vld [vmem:[%s1 + $0x1050] sm:$0xff]
      %v954 = vld [vmem:[%s1 + $0x1058] sm:$0xff]
      %v955 = vld [vmem:[%s1 + $0x1060] sm:$0xff]
      %v956 = vld [vmem:[%s1 + $0x1068] sm:$0xff]
      %v957 = vld [vmem:[%s1 + $0x1070] sm:$0xff]
      %v958 = vld [vmem:[%s1 + $0x1078] sm:$0xff]
      %v959 = vld [vmem:[%s1 + $0x1080] sm:$0xff]
      %v960 = vld [vmem:[%s1 + $0x1088] sm:$0xff]
      %v961 = vld [vmem:[%s1 + $0x1090] sm:$0xff]
      %v962 = vld [vmem:[%s1 + $0x1098] sm:$0xff]
      %v963 = vld [vmem:[%s1 + $0x10a0] sm:$0xff]
      %v964 = vld [vmem:[%s1 + $0x10a8] sm:$0xff]
      %v965 = vld [vmem:[%s1 + $0x10b0] sm:$0xff]
      %v966 = vld [vmem:[%s1 + $0x10b8] sm:$0xff]
      %v967 = vld [vmem:[%s1 + $0x10c0] sm:$0xff]
      %v968 = vld [vmem:[%s1 + $0x10c8] sm:$0xff]
      %v969 = vld [vmem:[%s1 + $0x10d0] sm:$0xff]
      %v970 = vld [vmem:[%s1 + $0x10d8] sm:$0xff]
      %v971 = vld [vmem:[%s1 + $0x10e0] sm:$0xff]
      %v972 = vld [vmem:[%s1 + $0x10e8] sm:$0xff]
      %v973 = vld [vmem:[%s1 + $0x10f0] sm:$0xff]
      %v974 = vld [vmem:[%s1 + $0x10f8] sm:$0xff]
      %v975 = vld [vmem:[%s2] sm:$0xff]
      %v976 = vld [vmem:[%s2 + $0x8] sm:$0xff]
      %v977 = vld [vmem:[%s2 + $0x10] sm:$0xff]
      %v978 = vld [vmem:[%s2 + $0x18] sm:$0xff]
      %v979 = vld [vmem:[%s2 + $0x20] sm:$0xff]
      %v980 = vld [vmem:[%s2 + $0x28] sm:$0xff]
      %v981 = vld [vmem:[%s2 + $0x30] sm:$0xff]
      %v982 = vld [vmem:[%s2 + $0x38] sm:$0xff]
      %v983 = vld [vmem:[%s2 + $0x40] sm:$0xff]
      %v984 = vld [vmem:[%s2 + $0x48] sm:$0xff]
      %v985 = vld [vmem:[%s2 + $0x50] sm:$0xff]
      %v986 = vld [vmem:[%s2 + $0x58] sm:$0xff]
      %v987 = vld [vmem:[%s2 + $0x60] sm:$0xff]
      %v988 = vld [vmem:[%s2 + $0x68] sm:$0xff]
      %v989 = vld [vmem:[%s2 + $0x70] sm:$0xff]
      %v990 = vld [vmem:[%s2 + $0x78] sm:$0xff]
      %v991 = vld [vmem:[%s2 + $0x80] sm:$0xff]
      %v992 = vld [vmem:[%s2 + $0x88] sm:$0xff]
      %v993 = vld [vmem:[%s2 + $0x90] sm:$0xff]
      %v994 = vld [vmem:[%s2 + $0x98] sm:$0xff]
      %v995 = vld [vmem:[%s2 + $0xa0] sm:$0xff]
      %v996 = vld [vmem:[%s2 + $0xa8] sm:$0xff]
      %v997 = vld [vmem:[%s2 + $0xb0] sm:$0xff]
      %v998 = vld [vmem:[%s2 + $0xb8] sm:$0xff]
      %v999 = vld [vmem:[%s2 + $0xc0] sm:$0xff]
      %v1000 = vld [vmem:[%s2 + $0xc8] sm:$0xff]
      %v1001 = vld [vmem:[%s2 + $0xd0] sm:$0xff]
      %v1002 = vld [vmem:[%s2 + $0xd8] sm:$0xff]
      %v1003 = vld [vmem:[%s2 + $0xe0] sm:$0xff]
      %v1004 = vld [vmem:[%s2 + $0xe8] sm:$0xff]
      %v1005 = vld [vmem:[%s2 + $0xf0] sm:$0xff]
      %v1006 = vld [vmem:[%s2 + $0xf8] sm:$0xff]
      %1008 = vset.pattern.permute.xlu0 0
      %1009 = vperm.xlu0 %1008, %v975
      %v1010 = vpop.permute.xlu0 %1009
      %1013 = vset.pattern.permute.xlu0 0
      %1014 = vperm.xlu0 %1013, %v976
      %v1015 = vpop.permute.xlu0 %1014
      %1018 = vset.pattern.permute.xlu0 0
      %1019 = vperm.xlu0 %1018, %v977
      %v1020 = vpop.permute.xlu0 %1019
      %1023 = vset.pattern.permute.xlu0 0
      %1024 = vperm.xlu0 %1023, %v978
      %v1025 = vpop.permute.xlu0 %1024
      %1028 = vset.pattern.permute.xlu0 0
      %1029 = vperm.xlu0 %1028, %v979
      %v1030 = vpop.permute.xlu0 %1029
      %1033 = vset.pattern.permute.xlu0 0
      %1034 = vperm.xlu0 %1033, %v980
      %v1035 = vpop.permute.xlu0 %1034
      %1038 = vset.pattern.permute.xlu0 0
      %1039 = vperm.xlu0 %1038, %v981
      %v1040 = vpop.permute.xlu0 %1039
      %1043 = vset.pattern.permute.xlu0 0
      %1044 = vperm.xlu0 %1043, %v982
      %v1045 = vpop.permute.xlu0 %1044
      %1048 = vset.pattern.permute.xlu0 0
      %1049 = vperm.xlu0 %1048, %v983
      %v1050 = vpop.permute.xlu0 %1049
      %1053 = vset.pattern.permute.xlu0 0
      %1054 = vperm.xlu0 %1053, %v984
      %v1055 = vpop.permute.xlu0 %1054
      %1058 = vset.pattern.permute.xlu0 0
      %1059 = vperm.xlu0 %1058, %v985
      %v1060 = vpop.permute.xlu0 %1059
      %1063 = vset.pattern.permute.xlu0 0
      %1064 = vperm.xlu0 %1063, %v986
      %v1065 = vpop.permute.xlu0 %1064
      %1068 = vset.pattern.permute.xlu0 0
      %1069 = vperm.xlu0 %1068, %v987
      %v1070 = vpop.permute.xlu0 %1069
      %1073 = vset.pattern.permute.xlu0 0
      %1074 = vperm.xlu0 %1073, %v988
      %v1075 = vpop.permute.xlu0 %1074
      %1078 = vset.pattern.permute.xlu0 0
      %1079 = vperm.xlu0 %1078, %v989
      %v1080 = vpop.permute.xlu0 %1079
      %1083 = vset.pattern.permute.xlu0 0
      %1084 = vperm.xlu0 %1083, %v990
      %v1085 = vpop.permute.xlu0 %1084
      %1088 = vset.pattern.permute.xlu0 0
      %1089 = vperm.xlu0 %1088, %v991
      %v1090 = vpop.permute.xlu0 %1089
      %1093 = vset.pattern.permute.xlu0 0
      %1094 = vperm.xlu0 %1093, %v992
      %v1095 = vpop.permute.xlu0 %1094
      %1098 = vset.pattern.permute.xlu0 0
      %1099 = vperm.xlu0 %1098, %v993
      %v1100 = vpop.permute.xlu0 %1099
      %1103 = vset.pattern.permute.xlu0 0
      %1104 = vperm.xlu0 %1103, %v994
      %v1105 = vpop.permute.xlu0 %1104
      %1108 = vset.pattern.permute.xlu0 0
      %1109 = vperm.xlu0 %1108, %v995
      %v1110 = vpop.permute.xlu0 %1109
      %1113 = vset.pattern.permute.xlu0 0
      %1114 = vperm.xlu0 %1113, %v996
      %v1115 = vpop.permute.xlu0 %1114
      %1118 = vset.pattern.permute.xlu0 0
      %1119 = vperm.xlu0 %1118, %v997
      %v1120 = vpop.permute.xlu0 %1119
      %1123 = vset.pattern.permute.xlu0 0
      %1124 = vperm.xlu0 %1123, %v998
      %v1125 = vpop.permute.xlu0 %1124
      %1128 = vset.pattern.permute.xlu0 0
      %1129 = vperm.xlu0 %1128, %v999
      %v1130 = vpop.permute.xlu0 %1129
      %1133 = vset.pattern.permute.xlu0 0
      %1134 = vperm.xlu0 %1133, %v1000
      %v1135 = vpop.permute.xlu0 %1134
      %1138 = vset.pattern.permute.xlu0 0
      %1139 = vperm.xlu0 %1138, %v1001
      %v1140 = vpop.permute.xlu0 %1139
      %1143 = vset.pattern.permute.xlu0 0
      %1144 = vperm.xlu0 %1143, %v1002
      %v1145 = vpop.permute.xlu0 %1144
      %1148 = vset.pattern.permute.xlu0 0
      %1149 = vperm.xlu0 %1148, %v1003
      %v1150 = vpop.permute.xlu0 %1149
      %1153 = vset.pattern.permute.xlu0 0
      %1154 = vperm.xlu0 %1153, %v1004
      %v1155 = vpop.permute.xlu0 %1154
      %1158 = vset.pattern.permute.xlu0 0
      %1159 = vperm.xlu0 %1158, %v1005
      %v1160 = vpop.permute.xlu0 %1159
      %1163 = vset.pattern.permute.xlu0 0
      %1164 = vperm.xlu0 %1163, %v1006
      %v1165 = vpop.permute.xlu0 %1164
      %vm1167 = vcmask 261120
      %v1169 = vsel %vm1167, %v447, 0
      %v1172 = vsel %vm1167, %v464, 0
      %v1175 = vsel %vm1167, %v481, 0
      %v1178 = vsel %vm1167, %v498, 0
      %v1181 = vsel %vm1167, %v515, 0
      %v1184 = vsel %vm1167, %v532, 0
      %v1187 = vsel %vm1167, %v549, 0
      %v1190 = vsel %vm1167, %v566, 0
      %v1193 = vsel %vm1167, %v583, 0
      %v1196 = vsel %vm1167, %v600, 0
      %v1199 = vsel %vm1167, %v617, 0
      %v1202 = vsel %vm1167, %v634, 0
      %v1205 = vsel %vm1167, %v651, 0
      %v1208 = vsel %vm1167, %v668, 0
      %v1211 = vsel %vm1167, %v685, 0
      %v1214 = vsel %vm1167, %v702, 0
      %v1217 = vsel %vm1167, %v719, 0
      %v1220 = vsel %vm1167, %v736, 0
      %v1223 = vsel %vm1167, %v753, 0
      %v1226 = vsel %vm1167, %v770, 0
      %v1229 = vsel %vm1167, %v787, 0
      %v1232 = vsel %vm1167, %v804, 0
      %v1235 = vsel %vm1167, %v821, 0
      %v1238 = vsel %vm1167, %v838, 0
      %v1241 = vsel %vm1167, %v855, 0
      %v1244 = vsel %vm1167, %v872, 0
      %v1247 = vsel %vm1167, %v889, 0
      %v1250 = vsel %vm1167, %v906, 0
      %v1253 = vsel %vm1167, %v923, 0
      %v1256 = vsel %vm1167, %v940, 0
      %v1259 = vsel %vm1167, %v957, 0
      %v1262 = vsel %vm1167, %v974, 0
      %1264 = vmatprep.subr.mxu0 0.0
      %1265 = vmatpush1.msra.mxu0 %v171
      %1266 = vmatprep.subr.mxu0 0.0
      %1267 = vmatpush1.msra.mxu0 %v172
      %1268 = vmatprep.subr.mxu0 0.0
      %1269 = vmatpush1.msra.mxu0 %v173
      %1270 = vmatprep.subr.mxu0 0.0
      %1271 = vmatpush1.msra.mxu0 %v174
      %1272 = vmatprep.subr.mxu0 0.0
      %1273 = vmatpush1.msra.mxu0 %v175
      %1274 = vmatprep.subr.mxu0 0.0
      %1275 = vmatpush1.msra.mxu0 %v176
      %1276 = vmatprep.subr.mxu0 0.0
      %1277 = vmatpush1.msra.mxu0 %v177
      %1278 = vmatprep.subr.mxu0 0.0
      %1279 = vmatpush1.msra.mxu0 %v178
      %1280 = vmatprep.subr.mxu0 0.0
      %1281 = vmatpush1.msra.mxu0 %v179
      %1282 = vmatprep.subr.mxu0 0.0
      %1283 = vmatpush1.msra.mxu0 %v180
      %1284 = vmatprep.subr.mxu0 0.0
      %1285 = vmatpush1.msra.mxu0 %v181
      %1286 = vmatprep.subr.mxu0 0.0
      %1287 = vmatpush1.msra.mxu0 %v182
      %1288 = vmatprep.subr.mxu0 0.0
      %1289 = vmatpush1.msra.mxu0 %v183
      %1290 = vmatprep.subr.mxu0 0.0
      %1291 = vmatpush1.msra.mxu0 %v184
      %1292 = vmatprep.subr.mxu0 0.0
      %1293 = vmatpush1.msra.mxu0 %v185
      %1294 = vmatprep.subr.mxu0 0.0
      %1295 = vmatpush1.msra.mxu0 %v186
      %1296 = vmatprep.subr.mxu0 0.0
      %1297 = vmatpush1.msra.mxu0 %v187
      %1298 = vmatprep.subr.mxu0 0.0
      %1299 = vmatpush1.msra.mxu0 %v188
      %1300 = vmatprep.subr.mxu0 0.0
      %1301 = vmatpush1.msra.mxu0 %v189
      %1302 = vmatprep.subr.mxu0 0.0
      %1303 = vmatpush1.msra.mxu0 %v190
      %1304 = vmatprep.subr.mxu0 0.0
      %1305 = vmatpush1.msra.mxu0 %v191
      %1306 = vmatprep.subr.mxu0 0.0
      %1307 = vmatpush1.msra.mxu0 %v192
      %1308 = vmatprep.subr.mxu0 0.0
      %1309 = vmatpush1.msra.mxu0 %v193
      %1310 = vmatprep.subr.mxu0 0.0
      %1311 = vmatpush1.msra.mxu0 %v194
      %1312 = vmatprep.subr.mxu0 0.0
      %1313 = vmatpush1.msra.mxu0 %v195
      %1314 = vmatprep.subr.mxu0 0.0
      %1315 = vmatpush1.msra.mxu0 %v196
      %1316 = vmatprep.subr.mxu0 0.0
      %1317 = vmatpush1.msra.mxu0 %v197
      %1318 = vmatprep.subr.mxu0 0.0
      %1319 = vmatpush1.msra.mxu0 %v198
      %1320 = vmatprep.subr.mxu0 0.0
      %1321 = vmatpush1.msra.mxu0 %v199
      %1322 = vmatprep.subr.mxu0 0.0
      %1323 = vmatpush1.msra.mxu0 %v200
      %1324 = vmatprep.subr.mxu0 0.0
      %1325 = vmatpush1.msra.mxu0 %v201
      %1326 = vmatprep.subr.mxu0 0.0
      %1327 = vmatpush1.msra.mxu0 %v202
      %1328 = vmatprep.mubr.f32.mxu0 %v432
      %1329 = vmatmul.mubr.f32.gmra.mrb[0].mxu0 %v431
      %v1330 = vpop.f32.mrb[0].mxu0
      %v1331 = vadd.f32 %v1010, %v1330
      %v1332 = vpop.f32.mrb[0].mxu0
      %1333 = vmatprep.mubr.f32.mxu0 %v449
      %1334 = vmatmul.mubr.f32.gmra.mrb[0].mxu0 %v448
      %v1335 = vpop.f32.mrb[0].mxu0
      %v1336 = vadd.f32 %v1015, %v1335
      %v1337 = vpop.f32.mrb[0].mxu0
      %1338 = vmatprep.mubr.f32.mxu0 %v466
      %1339 = vmatmul.mubr.f32.gmra.mrb[0].mxu0 %v465
      %v1340 = vpop.f32.mrb[0].mxu0
      %v1341 = vadd.f32 %v1020, %v1340
      %v1342 = vpop.f32.mrb[0].mxu0
      %1343 = vmatprep.mubr.f32.mxu0 %v483
      %1344 = vmatmul.mubr.f32.gmra.mrb[0].mxu0 %v482
      %v1345 = vpop.f32.mrb[0].mxu0
      %v1346 = vadd.f32 %v1025, %v1345
      %v1347 = vpop.f32.mrb[0].mxu0
      %1348 = vmatprep.mubr.f32.mxu0 %v500
      %1349 = vmatmul.mubr.f32.gmra.mrb[0].mxu0 %v499
      %v1350 = vpop.f32.mrb[0].mxu0
      %v1351 = vadd.f32 %v1030, %v1350
      %v1352 = vpop.f32.mrb[0].mxu0
      %1353 = vmatprep.mubr.f32.mxu0 %v517
      %1354 = vmatmul.mubr.f32.gmra.mrb[0].mxu0 %v516
      %v1355 = vpop.f32.mrb[0].mxu0
      %v1356 = vadd.f32 %v1035, %v1355
      %v1357 = vpop.f32.mrb[0].mxu0
      %1358 = vmatprep.mubr.f32.mxu0 %v534
      %1359 = vmatmul.mubr.f32.gmra.mrb[0].mxu0 %v533
      %v1360 = vpop.f32.mrb[0].mxu0
      %v1361 = vadd.f32 %v1040, %v1360
      %v1362 = vpop.f32.mrb[0].mxu0
      %1363 = vmatprep.mubr.f32.mxu0 %v551
      %1364 = vmatmul.mubr.f32.gmra.mrb[0].mxu0 %v550
      %v1365 = vpop.f32.mrb[0].mxu0
      %v1366 = vadd.f32 %v1045, %v1365
      %v1367 = vpop.f32.mrb[0].mxu0
      %1368 = vmatprep.mubr.f32.mxu0 %v568
      %1369 = vmatmul.mubr.f32.gmra.mrb[0].mxu0 %v567
      %v1370 = vpop.f32.mrb[0].mxu0
      %v1371 = vadd.f32 %v1050, %v1370
      %v1372 = vpop.f32.mrb[0].mxu0
      %1373 = vmatprep.mubr.f32.mxu0 %v585
      %1374 = vmatmul.mubr.f32.gmra.mrb[0].mxu0 %v584
      %v1375 = vpop.f32.mrb[0].mxu0
      %v1376 = vadd.f32 %v1055, %v1375
      %v1377 = vpop.f32.mrb[0].mxu0
      %1378 = vmatprep.mubr.f32.mxu0 %v602
      %1379 = vmatmul.mubr.f32.gmra.mrb[0].mxu0 %v601
      %v1380 = vpop.f32.mrb[0].mxu0
      %v1381 = vadd.f32 %v1060, %v1380
      %v1382 = vpop.f32.mrb[0].mxu0
      %1383 = vmatprep.mubr.f32.mxu0 %v619
      %1384 = vmatmul.mubr.f32.gmra.mrb[0].mxu0 %v618
      %v1385 = vpop.f32.mrb[0].mxu0
      %v1386 = vadd.f32 %v1065, %v1385
      %v1387 = vpop.f32.mrb[0].mxu0
      %1388 = vmatprep.mubr.f32.mxu0 %v636
      %1389 = vmatmul.mubr.f32.gmra.mrb[0].mxu0 %v635
      %v1390 = vpop.f32.mrb[0].mxu0
      %v1391 = vadd.f32 %v1070, %v1390
      %v1392 = vpop.f32.mrb[0].mxu0
      %1393 = vmatprep.mubr.f32.mxu0 %v653
      %1394 = vmatmul.mubr.f32.gmra.mrb[0].mxu0 %v652
      %v1395 = vpop.f32.mrb[0].mxu0
      %v1396 = vadd.f32 %v1075, %v1395
      %v1397 = vpop.f32.mrb[0].mxu0
      %1398 = vmatprep.mubr.f32.mxu0 %v670
      %1399 = vmatmul.mubr.f32.gmra.mrb[0].mxu0 %v669
      %v1400 = vpop.f32.mrb[0].mxu0
      %v1401 = vadd.f32 %v1080, %v1400
      %v1402 = vpop.f32.mrb[0].mxu0
      %1403 = vmatprep.mubr.f32.mxu0 %v687
      %1404 = vmatmul.mubr.f32.gmra.mrb[0].mxu0 %v686
      %v1405 = vpop.f32.mrb[0].mxu0
      %v1406 = vadd.f32 %v1085, %v1405
      %v1407 = vpop.f32.mrb[0].mxu0
      %1408 = vmatprep.mubr.f32.mxu0 %v704
      %1409 = vmatmul.mubr.f32.gmra.mrb[0].mxu0 %v703
      %v1410 = vpop.f32.mrb[0].mxu0
      %v1411 = vadd.f32 %v1090, %v1410
      %v1412 = vpop.f32.mrb[0].mxu0
      %1413 = vmatprep.mubr.f32.mxu0 %v721
      %1414 = vmatmul.mubr.f32.gmra.mrb[0].mxu0 %v720
      %v1415 = vpop.f32.mrb[0].mxu0
      %v1416 = vadd.f32 %v1095, %v1415
      %v1417 = vpop.f32.mrb[0].mxu0
      %1418 = vmatprep.mubr.f32.mxu0 %v738
      %1419 = vmatmul.mubr.f32.gmra.mrb[0].mxu0 %v737
      %v1420 = vpop.f32.mrb[0].mxu0
      %v1421 = vadd.f32 %v1100, %v1420
      %v1422 = vpop.f32.mrb[0].mxu0
      %1423 = vmatprep.mubr.f32.mxu0 %v755
      %1424 = vmatmul.mubr.f32.gmra.mrb[0].mxu0 %v754
      %v1425 = vpop.f32.mrb[0].mxu0
      %v1426 = vadd.f32 %v1105, %v1425
      %v1427 = vpop.f32.mrb[0].mxu0
      %1428 = vmatprep.mubr.f32.mxu0 %v772
      %1429 = vmatmul.mubr.f32.gmra.mrb[0].mxu0 %v771
      %v1430 = vpop.f32.mrb[0].mxu0
      %v1431 = vadd.f32 %v1110, %v1430
      %v1432 = vpop.f32.mrb[0].mxu0
      %1433 = vmatprep.mubr.f32.mxu0 %v789
      %1434 = vmatmul.mubr.f32.gmra.mrb[0].mxu0 %v788
      %v1435 = vpop.f32.mrb[0].mxu0
      %v1436 = vadd.f32 %v1115, %v1435
      %v1437 = vpop.f32.mrb[0].mxu0
      %1438 = vmatprep.mubr.f32.mxu0 %v806
      %1439 = vmatmul.mubr.f32.gmra.mrb[0].mxu0 %v805
      %v1440 = vpop.f32.mrb[0].mxu0
      %v1441 = vadd.f32 %v1120, %v1440
      %v1442 = vpop.f32.mrb[0].mxu0
      %1443 = vmatprep.mubr.f32.mxu0 %v823
      %1444 = vmatmul.mubr.f32.gmra.mrb[0].mxu0 %v822
      %v1445 = vpop.f32.mrb[0].mxu0
      %v1446 = vadd.f32 %v1125, %v1445
      %v1447 = vpop.f32.mrb[0].mxu0
      %1448 = vmatprep.mubr.f32.mxu0 %v840
      %1449 = vmatmul.mubr.f32.gmra.mrb[0].mxu0 %v839
      %v1450 = vpop.f32.mrb[0].mxu0
      %v1451 = vadd.f32 %v1130, %v1450
      %v1452 = vpop.f32.mrb[0].mxu0
      %1453 = vmatprep.mubr.f32.mxu0 %v857
      %1454 = vmatmul.mubr.f32.gmra.mrb[0].mxu0 %v856
      %v1455 = vpop.f32.mrb[0].mxu0
      %v1456 = vadd.f32 %v1135, %v1455
      %v1457 = vpop.f32.mrb[0].mxu0
      %1458 = vmatprep.mubr.f32.mxu0 %v874
      %1459 = vmatmul.mubr.f32.gmra.mrb[0].mxu0 %v873
      %v1460 = vpop.f32.mrb[0].mxu0
      %v1461 = vadd.f32 %v1140, %v1460
      %v1462 = vpop.f32.mrb[0].mxu0
      %1463 = vmatprep.mubr.f32.mxu0 %v891
      %1464 = vmatmul.mubr.f32.gmra.mrb[0].mxu0 %v890
      %v1465 = vpop.f32.mrb[0].mxu0
      %v1466 = vadd.f32 %v1145, %v1465
      %v1467 = vpop.f32.mrb[0].mxu0
      %1468 = vmatprep.mubr.f32.mxu0 %v908
      %1469 = vmatmul.mubr.f32.gmra.mrb[0].mxu0 %v907
      %v1470 = vpop.f32.mrb[0].mxu0
      %v1471 = vadd.f32 %v1150, %v1470
      %v1472 = vpop.f32.mrb[0].mxu0
      %1473 = vmatprep.mubr.f32.mxu0 %v925
      %1474 = vmatmul.mubr.f32.gmra.mrb[0].mxu0 %v924
      %v1475 = vpop.f32.mrb[0].mxu0
      %v1476 = vadd.f32 %v1155, %v1475
      %v1477 = vpop.f32.mrb[0].mxu0
      %1478 = vmatprep.mubr.f32.mxu0 %v942
      %1479 = vmatmul.mubr.f32.gmra.mrb[0].mxu0 %v941
      %v1480 = vpop.f32.mrb[0].mxu0
      %v1481 = vadd.f32 %v1160, %v1480
      %v1482 = vpop.f32.mrb[0].mxu0
      %1483 = vmatprep.mubr.f32.mxu0 %v959
      %1484 = vmatmul.mubr.f32.gmra.mrb[0].mxu0 %v958
      %v1485 = vpop.f32.mrb[0].mxu0
      %v1486 = vadd.f32 %v1165, %v1485
      %v1487 = vpop.f32.mrb[0].mxu0
      %1488 = vdwg.mxu0
      %1489 = vmatprep.subr.mxu0 0.0
      %1490 = vmatpush1.msra.mxu0 %v203
      %1491 = vmatprep.subr.mxu0 0.0
      %1492 = vmatpush1.msra.mxu0 %v204
      %1493 = vmatprep.subr.mxu0 0.0
      %1494 = vmatpush1.msra.mxu0 %v205
      %1495 = vmatprep.subr.mxu0 0.0
      %1496 = vmatpush1.msra.mxu0 %v206
      %1497 = vmatprep.subr.mxu0 0.0
      %1498 = vmatpush1.msra.mxu0 %v207
      %1499 = vmatprep.subr.mxu0 0.0
      %1500 = vmatpush1.msra.mxu0 %v208
      %1501 = vmatprep.subr.mxu0 0.0
      %1502 = vmatpush1.msra.mxu0 %v209
      %1503 = vmatprep.subr.mxu0 0.0
      %1504 = vmatpush1.msra.mxu0 %v210
      %1505 = vmatprep.subr.mxu0 0.0
      %1506 = vmatpush1.msra.mxu0 %v211
      %1507 = vmatprep.subr.mxu0 0.0
      %1508 = vmatpush1.msra.mxu0 %v212
      %1509 = vmatprep.subr.mxu0 0.0
      %1510 = vmatpush1.msra.mxu0 %v213
      %1511 = vmatprep.subr.mxu0 0.0
      %1512 = vmatpush1.msra.mxu0 %v214
      %1513 = vmatprep.subr.mxu0 0.0
      %1514 = vmatpush1.msra.mxu0 %v215
      %1515 = vmatprep.subr.mxu0 0.0
      %1516 = vmatpush1.msra.mxu0 %v216
      %1517 = vmatprep.subr.mxu0 0.0
      %1518 = vmatpush1.msra.mxu0 %v217
      %1519 = vmatprep.subr.mxu0 0.0
      %1520 = vmatpush1.msra.mxu0 %v218
      %1521 = vmatprep.subr.mxu0 0.0
      %1522 = vmatpush1.msra.mxu0 %v219
      %1523 = vmatprep.subr.mxu0 0.0
      %1524 = vmatpush1.msra.mxu0 %v220
      %1525 = vmatprep.subr.mxu0 0.0
      %1526 = vmatpush1.msra.mxu0 %v221
      %1527 = vmatprep.subr.mxu0 0.0
      %1528 = vmatpush1.msra.mxu0 %v222
      %1529 = vmatprep.subr.mxu0 0.0
      %1530 = vmatpush1.msra.mxu0 %v223
      %1531 = vmatprep.subr.mxu0 0.0
      %1532 = vmatpush1.msra.mxu0 %v224
      %1533 = vmatprep.subr.mxu0 0.0
      %1534 = vmatpush1.msra.mxu0 %v225
      %1535 = vmatprep.subr.mxu0 0.0
      %1536 = vmatpush1.msra.mxu0 %v226
      %1537 = vmatprep.subr.mxu0 0.0
      %1538 = vmatpush1.msra.mxu0 %v227
      %1539 = vmatprep.subr.mxu0 0.0
      %1540 = vmatpush1.msra.mxu0 %v228
      %1541 = vmatprep.subr.mxu0 0.0
      %1542 = vmatpush1.msra.mxu0 %v229
      %1543 = vmatprep.subr.mxu0 0.0
      %1544 = vmatpush1.msra.mxu0 %v230
      %1545 = vmatprep.subr.mxu0 0.0
      %1546 = vmatpush1.msra.mxu0 %v231
      %1547 = vmatprep.subr.mxu0 0.0
      %1548 = vmatpush1.msra.mxu0 %v232
      %1549 = vmatprep.subr.mxu0 0.0
      %1550 = vmatpush1.msra.mxu0 %v233
      %1551 = vmatprep.subr.mxu0 0.0
      %1552 = vmatpush1.msra.mxu0 %v234
      %1553 = vmatprep.mubr.f32.mxu0 %v434
      %1554 = vmatmul.mubr.f32.gmra.mrb[0].mxu0 %v433
      %v1555 = vpop.f32.mrb[0].mxu0
      %v1556 = vadd.f32 %v1331, %v1555
      %v1557 = vpop.f32.mrb[0].mxu0
      %1558 = vmatprep.mubr.f32.mxu0 %v451
      %1559 = vmatmul.mubr.f32.gmra.mrb[0].mxu0 %v450
      %v1560 = vpop.f32.mrb[0].mxu0
      %v1561 = vadd.f32 %v1336, %v1560
      %v1562 = vpop.f32.mrb[0].mxu0
      %1563 = vmatprep.mubr.f32.mxu0 %v468
      %1564 = vmatmul.mubr.f32.gmra.mrb[0].mxu0 %v467
      %v1565 = vpop.f32.mrb[0].mxu0
      %v1566 = vadd.f32 %v1341, %v1565
      %v1567 = vpop.f32.mrb[0].mxu0
      %1568 = vmatprep.mubr.f32.mxu0 %v485
      %1569 = vmatmul.mubr.f32.gmra.mrb[0].mxu0 %v484
      %v1570 = vpop.f32.mrb[0].mxu0
      %v1571 = vadd.f32 %v1346, %v1570
      %v1572 = vpop.f32.mrb[0].mxu0
      %1573 = vmatprep.mubr.f32.mxu0 %v502
      %1574 = vmatmul.mubr.f32.gmra.mrb[0].mxu0 %v501
      %v1575 = vpop.f32.mrb[0].mxu0
      %v1576 = vadd.f32 %v1351, %v1575
      %v1577 = vpop.f32.mrb[0].mxu0
      %1578 = vmatprep.mubr.f32.mxu0 %v519
      %1579 = vmatmul.mubr.f32.gmra.mrb[0].mxu0 %v518
      %v1580 = vpop.f32.mrb[0].mxu0
      %v1581 = vadd.f32 %v1356, %v1580
      %v1582 = vpop.f32.mrb[0].mxu0
      %1583 = vmatprep.mubr.f32.mxu0 %v536
      %1584 = vmatmul.mubr.f32.gmra.mrb[0].mxu0 %v535
      %v1585 = vpop.f32.mrb[0].mxu0
      %v1586 = vadd.f32 %v1361, %v1585
      %v1587 = vpop.f32.mrb[0].mxu0
      %1588 = vmatprep.mubr.f32.mxu0 %v553
      %1589 = vmatmul.mubr.f32.gmra.mrb[0].mxu0 %v552
      %v1590 = vpop.f32.mrb[0].mxu0
      %v1591 = vadd.f32 %v1366, %v1590
      %v1592 = vpop.f32.mrb[0].mxu0
      %1593 = vmatprep.mubr.f32.mxu0 %v570
      %1594 = vmatmul.mubr.f32.gmra.mrb[0].mxu0 %v569
      %v1595 = vpop.f32.mrb[0].mxu0
      %v1596 = vadd.f32 %v1371, %v1595
      %v1597 = vpop.f32.mrb[0].mxu0
      %1598 = vmatprep.mubr.f32.mxu0 %v587
      %1599 = vmatmul.mubr.f32.gmra.mrb[0].mxu0 %v586
      %v1600 = vpop.f32.mrb[0].mxu0
      %v1601 = vadd.f32 %v1376, %v1600
      %v1602 = vpop.f32.mrb[0].mxu0
      %1603 = vmatprep.mubr.f32.mxu0 %v604
      %1604 = vmatmul.mubr.f32.gmra.mrb[0].mxu0 %v603
      %v1605 = vpop.f32.mrb[0].mxu0
      %v1606 = vadd.f32 %v1381, %v1605
      %v1607 = vpop.f32.mrb[0].mxu0
      %1608 = vmatprep.mubr.f32.mxu0 %v621
      %1609 = vmatmul.mubr.f32.gmra.mrb[0].mxu0 %v620
      %v1610 = vpop.f32.mrb[0].mxu0
      %v1611 = vadd.f32 %v1386, %v1610
      %v1612 = vpop.f32.mrb[0].mxu0
      %1613 = vmatprep.mubr.f32.mxu0 %v638
      %1614 = vmatmul.mubr.f32.gmra.mrb[0].mxu0 %v637
      %v1615 = vpop.f32.mrb[0].mxu0
      %v1616 = vadd.f32 %v1391, %v1615
      %v1617 = vpop.f32.mrb[0].mxu0
      %1618 = vmatprep.mubr.f32.mxu0 %v655
      %1619 = vmatmul.mubr.f32.gmra.mrb[0].mxu0 %v654
      %v1620 = vpop.f32.mrb[0].mxu0
      %v1621 = vadd.f32 %v1396, %v1620
      %v1622 = vpop.f32.mrb[0].mxu0
      %1623 = vmatprep.mubr.f32.mxu0 %v672
      %1624 = vmatmul.mubr.f32.gmra.mrb[0].mxu0 %v671
      %v1625 = vpop.f32.mrb[0].mxu0
      %v1626 = vadd.f32 %v1401, %v1625
      %v1627 = vpop.f32.mrb[0].mxu0
      %1628 = vmatprep.mubr.f32.mxu0 %v689
      %1629 = vmatmul.mubr.f32.gmra.mrb[0].mxu0 %v688
      %v1630 = vpop.f32.mrb[0].mxu0
      %v1631 = vadd.f32 %v1406, %v1630
      %v1632 = vpop.f32.mrb[0].mxu0
      %1633 = vmatprep.mubr.f32.mxu0 %v706
      %1634 = vmatmul.mubr.f32.gmra.mrb[0].mxu0 %v705
      %v1635 = vpop.f32.mrb[0].mxu0
      %v1636 = vadd.f32 %v1411, %v1635
      %v1637 = vpop.f32.mrb[0].mxu0
      %1638 = vmatprep.mubr.f32.mxu0 %v723
      %1639 = vmatmul.mubr.f32.gmra.mrb[0].mxu0 %v722
      %v1640 = vpop.f32.mrb[0].mxu0
      %v1641 = vadd.f32 %v1416, %v1640
      %v1642 = vpop.f32.mrb[0].mxu0
      %1643 = vmatprep.mubr.f32.mxu0 %v740
      %1644 = vmatmul.mubr.f32.gmra.mrb[0].mxu0 %v739
      %v1645 = vpop.f32.mrb[0].mxu0
      %v1646 = vadd.f32 %v1421, %v1645
      %v1647 = vpop.f32.mrb[0].mxu0
      %1648 = vmatprep.mubr.f32.mxu0 %v757
      %1649 = vmatmul.mubr.f32.gmra.mrb[0].mxu0 %v756
      %v1650 = vpop.f32.mrb[0].mxu0
      %v1651 = vadd.f32 %v1426, %v1650
      %v1652 = vpop.f32.mrb[0].mxu0
      %1653 = vmatprep.mubr.f32.mxu0 %v774
      %1654 = vmatmul.mubr.f32.gmra.mrb[0].mxu0 %v773
      %v1655 = vpop.f32.mrb[0].mxu0
      %v1656 = vadd.f32 %v1431, %v1655
      %v1657 = vpop.f32.mrb[0].mxu0
      %1658 = vmatprep.mubr.f32.mxu0 %v791
      %1659 = vmatmul.mubr.f32.gmra.mrb[0].mxu0 %v790
      %v1660 = vpop.f32.mrb[0].mxu0
      %v1661 = vadd.f32 %v1436, %v1660
      %v1662 = vpop.f32.mrb[0].mxu0
      %1663 = vmatprep.mubr.f32.mxu0 %v808
      %1664 = vmatmul.mubr.f32.gmra.mrb[0].mxu0 %v807
      %v1665 = vpop.f32.mrb[0].mxu0
      %v1666 = vadd.f32 %v1441, %v1665
      %v1667 = vpop.f32.mrb[0].mxu0
      %1668 = vmatprep.mubr.f32.mxu0 %v825
      %1669 = vmatmul.mubr.f32.gmra.mrb[0].mxu0 %v824
      %v1670 = vpop.f32.mrb[0].mxu0
      %v1671 = vadd.f32 %v1446, %v1670
      %v1672 = vpop.f32.mrb[0].mxu0
      %1673 = vmatprep.mubr.f32.mxu0 %v842
      %1674 = vmatmul.mubr.f32.gmra.mrb[0].mxu0 %v841
      %v1675 = vpop.f32.mrb[0].mxu0
      %v1676 = vadd.f32 %v1451, %v1675
      %v1677 = vpop.f32.mrb[0].mxu0
      %1678 = vmatprep.mubr.f32.mxu0 %v859
      %1679 = vmatmul.mubr.f32.gmra.mrb[0].mxu0 %v858
      %v1680 = vpop.f32.mrb[0].mxu0
      %v1681 = vadd.f32 %v1456, %v1680
      %v1682 = vpop.f32.mrb[0].mxu0
      %1683 = vmatprep.mubr.f32.mxu0 %v876
      %1684 = vmatmul.mubr.f32.gmra.mrb[0].mxu0 %v875
      %v1685 = vpop.f32.mrb[0].mxu0
      %v1686 = vadd.f32 %v1461, %v1685
      %v1687 = vpop.f32.mrb[0].mxu0
      %1688 = vmatprep.mubr.f32.mxu0 %v893
      %1689 = vmatmul.mubr.f32.gmra.mrb[0].mxu0 %v892
      %v1690 = vpop.f32.mrb[0].mxu0
      %v1691 = vadd.f32 %v1466, %v1690
      %v1692 = vpop.f32.mrb[0].mxu0
      %1693 = vmatprep.mubr.f32.mxu0 %v910
      %1694 = vmatmul.mubr.f32.gmra.mrb[0].mxu0 %v909
      %v1695 = vpop.f32.mrb[0].mxu0
      %v1696 = vadd.f32 %v1471, %v1695
      %v1697 = vpop.f32.mrb[0].mxu0
      %1698 = vmatprep.mubr.f32.mxu0 %v927
      %1699 = vmatmul.mubr.f32.gmra.mrb[0].mxu0 %v926
      %v1700 = vpop.f32.mrb[0].mxu0
      %v1701 = vadd.f32 %v1476, %v1700
      %v1702 = vpop.f32.mrb[0].mxu0
      %1703 = vmatprep.mubr.f32.mxu0 %v944
      %1704 = vmatmul.mubr.f32.gmra.mrb[0].mxu0 %v943
      %v1705 = vpop.f32.mrb[0].mxu0
      %v1706 = vadd.f32 %v1481, %v1705
      %v1707 = vpop.f32.mrb[0].mxu0
      %1708 = vmatprep.mubr.f32.mxu0 %v961
      %1709 = vmatmul.mubr.f32.gmra.mrb[0].mxu0 %v960
      %v1710 = vpop.f32.mrb[0].mxu0
      %v1711 = vadd.f32 %v1486, %v1710
      %v1712 = vpop.f32.mrb[0].mxu0
      %1713 = vdwg.mxu0
      %1714 = vmatprep.subr.mxu0 0.0
      %1715 = vmatpush1.msra.mxu0 %v235
      %1716 = vmatprep.subr.mxu0 0.0
      %1717 = vmatpush1.msra.mxu0 %v236
      %1718 = vmatprep.subr.mxu0 0.0
      %1719 = vmatpush1.msra.mxu0 %v237
      %1720 = vmatprep.subr.mxu0 0.0
      %1721 = vmatpush1.msra.mxu0 %v238
      %1722 = vmatprep.subr.mxu0 0.0
      %1723 = vmatpush1.msra.mxu0 %v239
      %1724 = vmatprep.subr.mxu0 0.0
      %1725 = vmatpush1.msra.mxu0 %v240
      %1726 = vmatprep.subr.mxu0 0.0
      %1727 = vmatpush1.msra.mxu0 %v241
      %1728 = vmatprep.subr.mxu0 0.0
      %1729 = vmatpush1.msra.mxu0 %v242
      %1730 = vmatprep.subr.mxu0 0.0
      %1731 = vmatpush1.msra.mxu0 %v243
      %1732 = vmatprep.subr.mxu0 0.0
      %1733 = vmatpush1.msra.mxu0 %v244
      %1734 = vmatprep.subr.mxu0 0.0
      %1735 = vmatpush1.msra.mxu0 %v245
      %1736 = vmatprep.subr.mxu0 0.0
      %1737 = vmatpush1.msra.mxu0 %v246
      %1738 = vmatprep.subr.mxu0 0.0
      %1739 = vmatpush1.msra.mxu0 %v247
      %1740 = vmatprep.subr.mxu0 0.0
      %1741 = vmatpush1.msra.mxu0 %v248
      %1742 = vmatprep.subr.mxu0 0.0
      %1743 = vmatpush1.msra.mxu0 %v249
      %1744 = vmatprep.subr.mxu0 0.0
      %1745 = vmatpush1.msra.mxu0 %v250
      %1746 = vmatprep.subr.mxu0 0.0
      %1747 = vmatpush1.msra.mxu0 %v251
      %1748 = vmatprep.subr.mxu0 0.0
      %1749 = vmatpush1.msra.mxu0 %v252
      %1750 = vmatprep.subr.mxu0 0.0
      %1751 = vmatpush1.msra.mxu0 %v253
      %1752 = vmatprep.subr.mxu0 0.0
      %1753 = vmatpush1.msra.mxu0 %v254
      %1754 = vmatprep.subr.mxu0 0.0
      %1755 = vmatpush1.msra.mxu0 %v255
      %1756 = vmatprep.subr.mxu0 0.0
      %1757 = vmatpush1.msra.mxu0 %v256
      %1758 = vmatprep.subr.mxu0 0.0
      %1759 = vmatpush1.msra.mxu0 %v257
      %1760 = vmatprep.subr.mxu0 0.0
      %1761 = vmatpush1.msra.mxu0 %v258
      %1762 = vmatprep.subr.mxu0 0.0
      %1763 = vmatpush1.msra.mxu0 %v259
      %1764 = vmatprep.subr.mxu0 0.0
      %1765 = vmatpush1.msra.mxu0 %v260
      %1766 = vmatprep.subr.mxu0 0.0
      %1767 = vmatpush1.msra.mxu0 %v261
      %1768 = vmatprep.subr.mxu0 0.0
      %1769 = vmatpush1.msra.mxu0 %v262
      %1770 = vmatprep.subr.mxu0 0.0
      %1771 = vmatpush1.msra.mxu0 %v263
      %1772 = vmatprep.subr.mxu0 0.0
      %1773 = vmatpush1.msra.mxu0 %v264
      %1774 = vmatprep.subr.mxu0 0.0
      %1775 = vmatpush1.msra.mxu0 %v265
      %1776 = vmatprep.subr.mxu0 0.0
      %1777 = vmatpush1.msra.mxu0 %v266
      %1778 = vmatprep.mubr.f32.mxu0 %v436
      %1779 = vmatmul.mubr.f32.gmra.mrb[0].mxu0 %v435
      %v1780 = vpop.f32.mrb[0].mxu0
      %v1781 = vadd.f32 %v1556, %v1780
      %v1782 = vpop.f32.mrb[0].mxu0
      %1783 = vmatprep.mubr.f32.mxu0 %v453
      %1784 = vmatmul.mubr.f32.gmra.mrb[0].mxu0 %v452
      %v1785 = vpop.f32.mrb[0].mxu0
      %v1786 = vadd.f32 %v1561, %v1785
      %v1787 = vpop.f32.mrb[0].mxu0
      %1788 = vmatprep.mubr.f32.mxu0 %v470
      %1789 = vmatmul.mubr.f32.gmra.mrb[0].mxu0 %v469
      %v1790 = vpop.f32.mrb[0].mxu0
      %v1791 = vadd.f32 %v1566, %v1790
      %v1792 = vpop.f32.mrb[0].mxu0
      %1793 = vmatprep.mubr.f32.mxu0 %v487
      %1794 = vmatmul.mubr.f32.gmra.mrb[0].mxu0 %v486
      %v1795 = vpop.f32.mrb[0].mxu0
      %v1796 = vadd.f32 %v1571, %v1795
      %v1797 = vpop.f32.mrb[0].mxu0
      %1798 = vmatprep.mubr.f32.mxu0 %v504
      %1799 = vmatmul.mubr.f32.gmra.mrb[0].mxu0 %v503
      %v1800 = vpop.f32.mrb[0].mxu0
      %v1801 = vadd.f32 %v1576, %v1800
      %v1802 = vpop.f32.mrb[0].mxu0
      %1803 = vmatprep.mubr.f32.mxu0 %v521
      %1804 = vmatmul.mubr.f32.gmra.mrb[0].mxu0 %v520
      %v1805 = vpop.f32.mrb[0].mxu0
      %v1806 = vadd.f32 %v1581, %v1805
      %v1807 = vpop.f32.mrb[0].mxu0
      %1808 = vmatprep.mubr.f32.mxu0 %v538
      %1809 = vmatmul.mubr.f32.gmra.mrb[0].mxu0 %v537
      %v1810 = vpop.f32.mrb[0].mxu0
      %v1811 = vadd.f32 %v1586, %v1810
      %v1812 = vpop.f32.mrb[0].mxu0
      %1813 = vmatprep.mubr.f32.mxu0 %v555
      %1814 = vmatmul.mubr.f32.gmra.mrb[0].mxu0 %v554
      %v1815 = vpop.f32.mrb[0].mxu0
      %v1816 = vadd.f32 %v1591, %v1815
      %v1817 = vpop.f32.mrb[0].mxu0
      %1818 = vmatprep.mubr.f32.mxu0 %v572
      %1819 = vmatmul.mubr.f32.gmra.mrb[0].mxu0 %v571
      %v1820 = vpop.f32.mrb[0].mxu0
      %v1821 = vadd.f32 %v1596, %v1820
      %v1822 = vpop.f32.mrb[0].mxu0
      %1823 = vmatprep.mubr.f32.mxu0 %v589
      %1824 = vmatmul.mubr.f32.gmra.mrb[0].mxu0 %v588
      %v1825 = vpop.f32.mrb[0].mxu0
      %v1826 = vadd.f32 %v1601, %v1825
      %v1827 = vpop.f32.mrb[0].mxu0
      %1828 = vmatprep.mubr.f32.mxu0 %v606
      %1829 = vmatmul.mubr.f32.gmra.mrb[0].mxu0 %v605
      %v1830 = vpop.f32.mrb[0].mxu0
      %v1831 = vadd.f32 %v1606, %v1830
      %v1832 = vpop.f32.mrb[0].mxu0
      %1833 = vmatprep.mubr.f32.mxu0 %v623
      %1834 = vmatmul.mubr.f32.gmra.mrb[0].mxu0 %v622
      %v1835 = vpop.f32.mrb[0].mxu0
      %v1836 = vadd.f32 %v1611, %v1835
      %v1837 = vpop.f32.mrb[0].mxu0
      %1838 = vmatprep.mubr.f32.mxu0 %v640
      %1839 = vmatmul.mubr.f32.gmra.mrb[0].mxu0 %v639
      %v1840 = vpop.f32.mrb[0].mxu0
      %v1841 = vadd.f32 %v1616, %v1840
      %v1842 = vpop.f32.mrb[0].mxu0
      %1843 = vmatprep.mubr.f32.mxu0 %v657
      %1844 = vmatmul.mubr.f32.gmra.mrb[0].mxu0 %v656
      %v1845 = vpop.f32.mrb[0].mxu0
      %v1846 = vadd.f32 %v1621, %v1845
      %v1847 = vpop.f32.mrb[0].mxu0
      %1848 = vmatprep.mubr.f32.mxu0 %v674
      %1849 = vmatmul.mubr.f32.gmra.mrb[0].mxu0 %v673
      %v1850 = vpop.f32.mrb[0].mxu0
      %v1851 = vadd.f32 %v1626, %v1850
      %v1852 = vpop.f32.mrb[0].mxu0
      %1853 = vmatprep.mubr.f32.mxu0 %v691
      %1854 = vmatmul.mubr.f32.gmra.mrb[0].mxu0 %v690
      %v1855 = vpop.f32.mrb[0].mxu0
      %v1856 = vadd.f32 %v1631, %v1855
      %v1857 = vpop.f32.mrb[0].mxu0
      %1858 = vmatprep.mubr.f32.mxu0 %v708
      %1859 = vmatmul.mubr.f32.gmra.mrb[0].mxu0 %v707
      %v1860 = vpop.f32.mrb[0].mxu0
      %v1861 = vadd.f32 %v1636, %v1860
      %v1862 = vpop.f32.mrb[0].mxu0
      %1863 = vmatprep.mubr.f32.mxu0 %v725
      %1864 = vmatmul.mubr.f32.gmra.mrb[0].mxu0 %v724
      %v1865 = vpop.f32.mrb[0].mxu0
      %v1866 = vadd.f32 %v1641, %v1865
      %v1867 = vpop.f32.mrb[0].mxu0
      %1868 = vmatprep.mubr.f32.mxu0 %v742
      %1869 = vmatmul.mubr.f32.gmra.mrb[0].mxu0 %v741
      %v1870 = vpop.f32.mrb[0].mxu0
      %v1871 = vadd.f32 %v1646, %v1870
      %v1872 = vpop.f32.mrb[0].mxu0
      %1873 = vmatprep.mubr.f32.mxu0 %v759
      %1874 = vmatmul.mubr.f32.gmra.mrb[0].mxu0 %v758
      %v1875 = vpop.f32.mrb[0].mxu0
      %v1876 = vadd.f32 %v1651, %v1875
      %v1877 = vpop.f32.mrb[0].mxu0
      %1878 = vmatprep.mubr.f32.mxu0 %v776
      %1879 = vmatmul.mubr.f32.gmra.mrb[0].mxu0 %v775
      %v1880 = vpop.f32.mrb[0].mxu0
      %v1881 = vadd.f32 %v1656, %v1880
      %v1882 = vpop.f32.mrb[0].mxu0
      %1883 = vmatprep.mubr.f32.mxu0 %v793
      %1884 = vmatmul.mubr.f32.gmra.mrb[0].mxu0 %v792
      %v1885 = vpop.f32.mrb[0].mxu0
      %v1886 = vadd.f32 %v1661, %v1885
      %v1887 = vpop.f32.mrb[0].mxu0
      %1888 = vmatprep.mubr.f32.mxu0 %v810
      %1889 = vmatmul.mubr.f32.gmra.mrb[0].mxu0 %v809
      %v1890 = vpop.f32.mrb[0].mxu0
      %v1891 = vadd.f32 %v1666, %v1890
      %v1892 = vpop.f32.mrb[0].mxu0
      %1893 = vmatprep.mubr.f32.mxu0 %v827
      %1894 = vmatmul.mubr.f32.gmra.mrb[0].mxu0 %v826
      %v1895 = vpop.f32.mrb[0].mxu0
      %v1896 = vadd.f32 %v1671, %v1895
      %v1897 = vpop.f32.mrb[0].mxu0
      %1898 = vmatprep.mubr.f32.mxu0 %v844
      %1899 = vmatmul.mubr.f32.gmra.mrb[0].mxu0 %v843
      %v1900 = vpop.f32.mrb[0].mxu0
      %v1901 = vadd.f32 %v1676, %v1900
      %v1902 = vpop.f32.mrb[0].mxu0
      %1903 = vmatprep.mubr.f32.mxu0 %v861
      %1904 = vmatmul.mubr.f32.gmra.mrb[0].mxu0 %v860
      %v1905 = vpop.f32.mrb[0].mxu0
      %v1906 = vadd.f32 %v1681, %v1905
      %v1907 = vpop.f32.mrb[0].mxu0
      %1908 = vmatprep.mubr.f32.mxu0 %v878
      %1909 = vmatmul.mubr.f32.gmra.mrb[0].mxu0 %v877
      %v1910 = vpop.f32.mrb[0].mxu0
      %v1911 = vadd.f32 %v1686, %v1910
      %v1912 = vpop.f32.mrb[0].mxu0
      %1913 = vmatprep.mubr.f32.mxu0 %v895
      %1914 = vmatmul.mubr.f32.gmra.mrb[0].mxu0 %v894
      %v1915 = vpop.f32.mrb[0].mxu0
      %v1916 = vadd.f32 %v1691, %v1915
      %v1917 = vpop.f32.mrb[0].mxu0
      %1918 = vmatprep.mubr.f32.mxu0 %v912
      %1919 = vmatmul.mubr.f32.gmra.mrb[0].mxu0 %v911
      %v1920 = vpop.f32.mrb[0].mxu0
      %v1921 = vadd.f32 %v1696, %v1920
      %v1922 = vpop.f32.mrb[0].mxu0
      %1923 = vmatprep.mubr.f32.mxu0 %v929
      %1924 = vmatmul.mubr.f32.gmra.mrb[0].mxu0 %v928
      %v1925 = vpop.f32.mrb[0].mxu0
      %v1926 = vadd.f32 %v1701, %v1925
      %v1927 = vpop.f32.mrb[0].mxu0
      %1928 = vmatprep.mubr.f32.mxu0 %v946
      %1929 = vmatmul.mubr.f32.gmra.mrb[0].mxu0 %v945
      %v1930 = vpop.f32.mrb[0].mxu0
      %v1931 = vadd.f32 %v1706, %v1930
      %v1932 = vpop.f32.mrb[0].mxu0
      %1933 = vmatprep.mubr.f32.mxu0 %v963
      %1934 = vmatmul.mubr.f32.gmra.mrb[0].mxu0 %v962
      %v1935 = vpop.f32.mrb[0].mxu0
      %v1936 = vadd.f32 %v1711, %v1935
      %v1937 = vpop.f32.mrb[0].mxu0
      %1938 = vdwg.mxu0
      %1939 = vmatprep.subr.mxu0 0.0
      %1940 = vmatpush1.msra.mxu0 %v267
      %1941 = vmatprep.subr.mxu0 0.0
      %1942 = vmatpush1.msra.mxu0 %v268
      %1943 = vmatprep.subr.mxu0 0.0
      %1944 = vmatpush1.msra.mxu0 %v269
      %1945 = vmatprep.subr.mxu0 0.0
      %1946 = vmatpush1.msra.mxu0 %v270
      %1947 = vmatprep.subr.mxu0 0.0
      %1948 = vmatpush1.msra.mxu0 %v271
      %1949 = vmatprep.subr.mxu0 0.0
      %1950 = vmatpush1.msra.mxu0 %v272
      %1951 = vmatprep.subr.mxu0 0.0
      %1952 = vmatpush1.msra.mxu0 %v273
      %1953 = vmatprep.subr.mxu0 0.0
      %1954 = vmatpush1.msra.mxu0 %v274
      %1955 = vmatprep.subr.mxu0 0.0
      %1956 = vmatpush1.msra.mxu0 %v275
      %1957 = vmatprep.subr.mxu0 0.0
      %1958 = vmatpush1.msra.mxu0 %v276
      %1959 = vmatprep.subr.mxu0 0.0
      %1960 = vmatpush1.msra.mxu0 %v277
      %1961 = vmatprep.subr.mxu0 0.0
      %1962 = vmatpush1.msra.mxu0 %v278
      %1963 = vmatprep.subr.mxu0 0.0
      %1964 = vmatpush1.msra.mxu0 %v279
      %1965 = vmatprep.subr.mxu0 0.0
      %1966 = vmatpush1.msra.mxu0 %v280
      %1967 = vmatprep.subr.mxu0 0.0
      %1968 = vmatpush1.msra.mxu0 %v281
      %1969 = vmatprep.subr.mxu0 0.0
      %1970 = vmatpush1.msra.mxu0 %v282
      %1971 = vmatprep.subr.mxu0 0.0
      %1972 = vmatpush1.msra.mxu0 %v283
      %1973 = vmatprep.subr.mxu0 0.0
      %1974 = vmatpush1.msra.mxu0 %v284
      %1975 = vmatprep.subr.mxu0 0.0
      %1976 = vmatpush1.msra.mxu0 %v285
      %1977 = vmatprep.subr.mxu0 0.0
      %1978 = vmatpush1.msra.mxu0 %v286
      %1979 = vmatprep.subr.mxu0 0.0
      %1980 = vmatpush1.msra.mxu0 %v287
      %1981 = vmatprep.subr.mxu0 0.0
      %1982 = vmatpush1.msra.mxu0 %v288
      %1983 = vmatprep.subr.mxu0 0.0
      %1984 = vmatpush1.msra.mxu0 %v289
      %1985 = vmatprep.subr.mxu0 0.0
      %1986 = vmatpush1.msra.mxu0 %v290
      %1987 = vmatprep.subr.mxu0 0.0
      %1988 = vmatpush1.msra.mxu0 %v291
      %1989 = vmatprep.subr.mxu0 0.0
      %1990 = vmatpush1.msra.mxu0 %v292
      %1991 = vmatprep.subr.mxu0 0.0
      %1992 = vmatpush1.msra.mxu0 %v293
      %1993 = vmatprep.subr.mxu0 0.0
      %1994 = vmatpush1.msra.mxu0 %v294
      %1995 = vmatprep.subr.mxu0 0.0
      %1996 = vmatpush1.msra.mxu0 %v295
      %1997 = vmatprep.subr.mxu0 0.0
      %1998 = vmatpush1.msra.mxu0 %v296
      %1999 = vmatprep.subr.mxu0 0.0
      %2000 = vmatpush1.msra.mxu0 %v297
      %2001 = vmatprep.subr.mxu0 0.0
      %2002 = vmatpush1.msra.mxu0 %v298
      %2003 = vmatprep.mubr.f32.mxu0 %v438
      %2004 = vmatmul.mubr.f32.gmra.mrb[0].mxu0 %v437
      %v2005 = vpop.f32.mrb[0].mxu0
      %v2006 = vadd.f32 %v1781, %v2005
      %v2007 = vpop.f32.mrb[0].mxu0
      %2008 = vmatprep.mubr.f32.mxu0 %v455
      %2009 = vmatmul.mubr.f32.gmra.mrb[0].mxu0 %v454
      %v2010 = vpop.f32.mrb[0].mxu0
      %v2011 = vadd.f32 %v1786, %v2010
      %v2012 = vpop.f32.mrb[0].mxu0
      %2013 = vmatprep.mubr.f32.mxu0 %v472
      %2014 = vmatmul.mubr.f32.gmra.mrb[0].mxu0 %v471
      %v2015 = vpop.f32.mrb[0].mxu0
      %v2016 = vadd.f32 %v1791, %v2015
      %v2017 = vpop.f32.mrb[0].mxu0
      %2018 = vmatprep.mubr.f32.mxu0 %v489
      %2019 = vmatmul.mubr.f32.gmra.mrb[0].mxu0 %v488
      %v2020 = vpop.f32.mrb[0].mxu0
      %v2021 = vadd.f32 %v1796, %v2020
      %v2022 = vpop.f32.mrb[0].mxu0
      %2023 = vmatprep.mubr.f32.mxu0 %v506
      %2024 = vmatmul.mubr.f32.gmra.mrb[0].mxu0 %v505
      %v2025 = vpop.f32.mrb[0].mxu0
      %v2026 = vadd.f32 %v1801, %v2025
      %v2027 = vpop.f32.mrb[0].mxu0
      %2028 = vmatprep.mubr.f32.mxu0 %v523
      %2029 = vmatmul.mubr.f32.gmra.mrb[0].mxu0 %v522
      %v2030 = vpop.f32.mrb[0].mxu0
      %v2031 = vadd.f32 %v1806, %v2030
      %v2032 = vpop.f32.mrb[0].mxu0
      %2033 = vmatprep.mubr.f32.mxu0 %v540
      %2034 = vmatmul.mubr.f32.gmra.mrb[0].mxu0 %v539
      %v2035 = vpop.f32.mrb[0].mxu0
      %v2036 = vadd.f32 %v1811, %v2035
      %v2037 = vpop.f32.mrb[0].mxu0
      %2038 = vmatprep.mubr.f32.mxu0 %v557
      %2039 = vmatmul.mubr.f32.gmra.mrb[0].mxu0 %v556
      %v2040 = vpop.f32.mrb[0].mxu0
      %v2041 = vadd.f32 %v1816, %v2040
      %v2042 = vpop.f32.mrb[0].mxu0
      %2043 = vmatprep.mubr.f32.mxu0 %v574
      %2044 = vmatmul.mubr.f32.gmra.mrb[0].mxu0 %v573
      %v2045 = vpop.f32.mrb[0].mxu0
      %v2046 = vadd.f32 %v1821, %v2045
      %v2047 = vpop.f32.mrb[0].mxu0
      %2048 = vmatprep.mubr.f32.mxu0 %v591
      %2049 = vmatmul.mubr.f32.gmra.mrb[0].mxu0 %v590
      %v2050 = vpop.f32.mrb[0].mxu0
      %v2051 = vadd.f32 %v1826, %v2050
      %v2052 = vpop.f32.mrb[0].mxu0
      %2053 = vmatprep.mubr.f32.mxu0 %v608
      %2054 = vmatmul.mubr.f32.gmra.mrb[0].mxu0 %v607
      %v2055 = vpop.f32.mrb[0].mxu0
      %v2056 = vadd.f32 %v1831, %v2055
      %v2057 = vpop.f32.mrb[0].mxu0
      %2058 = vmatprep.mubr.f32.mxu0 %v625
      %2059 = vmatmul.mubr.f32.gmra.mrb[0].mxu0 %v624
      %v2060 = vpop.f32.mrb[0].mxu0
      %v2061 = vadd.f32 %v1836, %v2060
      %v2062 = vpop.f32.mrb[0].mxu0
      %2063 = vmatprep.mubr.f32.mxu0 %v642
      %2064 = vmatmul.mubr.f32.gmra.mrb[0].mxu0 %v641
      %v2065 = vpop.f32.mrb[0].mxu0
      %v2066 = vadd.f32 %v1841, %v2065
      %v2067 = vpop.f32.mrb[0].mxu0
      %2068 = vmatprep.mubr.f32.mxu0 %v659
      %2069 = vmatmul.mubr.f32.gmra.mrb[0].mxu0 %v658
      %v2070 = vpop.f32.mrb[0].mxu0
      %v2071 = vadd.f32 %v1846, %v2070
      %v2072 = vpop.f32.mrb[0].mxu0
      %2073 = vmatprep.mubr.f32.mxu0 %v676
      %2074 = vmatmul.mubr.f32.gmra.mrb[0].mxu0 %v675
      %v2075 = vpop.f32.mrb[0].mxu0
      %v2076 = vadd.f32 %v1851, %v2075
      %v2077 = vpop.f32.mrb[0].mxu0
      %2078 = vmatprep.mubr.f32.mxu0 %v693
      %2079 = vmatmul.mubr.f32.gmra.mrb[0].mxu0 %v692
      %v2080 = vpop.f32.mrb[0].mxu0
      %v2081 = vadd.f32 %v1856, %v2080
      %v2082 = vpop.f32.mrb[0].mxu0
      %2083 = vmatprep.mubr.f32.mxu0 %v710
      %2084 = vmatmul.mubr.f32.gmra.mrb[0].mxu0 %v709
      %v2085 = vpop.f32.mrb[0].mxu0
      %v2086 = vadd.f32 %v1861, %v2085
      %v2087 = vpop.f32.mrb[0].mxu0
      %2088 = vmatprep.mubr.f32.mxu0 %v727
      %2089 = vmatmul.mubr.f32.gmra.mrb[0].mxu0 %v726
      %v2090 = vpop.f32.mrb[0].mxu0
      %v2091 = vadd.f32 %v1866, %v2090
      %v2092 = vpop.f32.mrb[0].mxu0
      %2093 = vmatprep.mubr.f32.mxu0 %v744
      %2094 = vmatmul.mubr.f32.gmra.mrb[0].mxu0 %v743
      %v2095 = vpop.f32.mrb[0].mxu0
      %v2096 = vadd.f32 %v1871, %v2095
      %v2097 = vpop.f32.mrb[0].mxu0
      %2098 = vmatprep.mubr.f32.mxu0 %v761
      %2099 = vmatmul.mubr.f32.gmra.mrb[0].mxu0 %v760
      %v2100 = vpop.f32.mrb[0].mxu0
      %v2101 = vadd.f32 %v1876, %v2100
      %v2102 = vpop.f32.mrb[0].mxu0
      %2103 = vmatprep.mubr.f32.mxu0 %v778
      %2104 = vmatmul.mubr.f32.gmra.mrb[0].mxu0 %v777
      %v2105 = vpop.f32.mrb[0].mxu0
      %v2106 = vadd.f32 %v1881, %v2105
      %v2107 = vpop.f32.mrb[0].mxu0
      %2108 = vmatprep.mubr.f32.mxu0 %v795
      %2109 = vmatmul.mubr.f32.gmra.mrb[0].mxu0 %v794
      %v2110 = vpop.f32.mrb[0].mxu0
      %v2111 = vadd.f32 %v1886, %v2110
      %v2112 = vpop.f32.mrb[0].mxu0
      %2113 = vmatprep.mubr.f32.mxu0 %v812
      %2114 = vmatmul.mubr.f32.gmra.mrb[0].mxu0 %v811
      %v2115 = vpop.f32.mrb[0].mxu0
      %v2116 = vadd.f32 %v1891, %v2115
      %v2117 = vpop.f32.mrb[0].mxu0
      %2118 = vmatprep.mubr.f32.mxu0 %v829
      %2119 = vmatmul.mubr.f32.gmra.mrb[0].mxu0 %v828
      %v2120 = vpop.f32.mrb[0].mxu0
      %v2121 = vadd.f32 %v1896, %v2120
      %v2122 = vpop.f32.mrb[0].mxu0
      %2123 = vmatprep.mubr.f32.mxu0 %v846
      %2124 = vmatmul.mubr.f32.gmra.mrb[0].mxu0 %v845
      %v2125 = vpop.f32.mrb[0].mxu0
      %v2126 = vadd.f32 %v1901, %v2125
      %v2127 = vpop.f32.mrb[0].mxu0
      %2128 = vmatprep.mubr.f32.mxu0 %v863
      %2129 = vmatmul.mubr.f32.gmra.mrb[0].mxu0 %v862
      %v2130 = vpop.f32.mrb[0].mxu0
      %v2131 = vadd.f32 %v1906, %v2130
      %v2132 = vpop.f32.mrb[0].mxu0
      %2133 = vmatprep.mubr.f32.mxu0 %v880
      %2134 = vmatmul.mubr.f32.gmra.mrb[0].mxu0 %v879
      %v2135 = vpop.f32.mrb[0].mxu0
      %v2136 = vadd.f32 %v1911, %v2135
      %v2137 = vpop.f32.mrb[0].mxu0
      %2138 = vmatprep.mubr.f32.mxu0 %v897
      %2139 = vmatmul.mubr.f32.gmra.mrb[0].mxu0 %v896
      %v2140 = vpop.f32.mrb[0].mxu0
      %v2141 = vadd.f32 %v1916, %v2140
      %v2142 = vpop.f32.mrb[0].mxu0
      %2143 = vmatprep.mubr.f32.mxu0 %v914
      %2144 = vmatmul.mubr.f32.gmra.mrb[0].mxu0 %v913
      %v2145 = vpop.f32.mrb[0].mxu0
      %v2146 = vadd.f32 %v1921, %v2145
      %v2147 = vpop.f32.mrb[0].mxu0
      %2148 = vmatprep.mubr.f32.mxu0 %v931
      %2149 = vmatmul.mubr.f32.gmra.mrb[0].mxu0 %v930
      %v2150 = vpop.f32.mrb[0].mxu0
      %v2151 = vadd.f32 %v1926, %v2150
      %v2152 = vpop.f32.mrb[0].mxu0
      %2153 = vmatprep.mubr.f32.mxu0 %v948
      %2154 = vmatmul.mubr.f32.gmra.mrb[0].mxu0 %v947
      %v2155 = vpop.f32.mrb[0].mxu0
      %v2156 = vadd.f32 %v1931, %v2155
      %v2157 = vpop.f32.mrb[0].mxu0
      %2158 = vmatprep.mubr.f32.mxu0 %v965
      %2159 = vmatmul.mubr.f32.gmra.mrb[0].mxu0 %v964
      %v2160 = vpop.f32.mrb[0].mxu0
      %v2161 = vadd.f32 %v1936, %v2160
      %v2162 = vpop.f32.mrb[0].mxu0
      %2163 = vdwg.mxu0
      %2164 = vmatprep.subr.mxu0 0.0
      %2165 = vmatpush1.msra.mxu0 %v299
      %2166 = vmatprep.subr.mxu0 0.0
      %2167 = vmatpush1.msra.mxu0 %v300
      %2168 = vmatprep.subr.mxu0 0.0
      %2169 = vmatpush1.msra.mxu0 %v301
      %2170 = vmatprep.subr.mxu0 0.0
      %2171 = vmatpush1.msra.mxu0 %v302
      %2172 = vmatprep.subr.mxu0 0.0
      %2173 = vmatpush1.msra.mxu0 %v303
      %2174 = vmatprep.subr.mxu0 0.0
      %2175 = vmatpush1.msra.mxu0 %v304
      %2176 = vmatprep.subr.mxu0 0.0
      %2177 = vmatpush1.msra.mxu0 %v305
      %2178 = vmatprep.subr.mxu0 0.0
      %2179 = vmatpush1.msra.mxu0 %v306
      %2180 = vmatprep.subr.mxu0 0.0
      %2181 = vmatpush1.msra.mxu0 %v307
      %2182 = vmatprep.subr.mxu0 0.0
      %2183 = vmatpush1.msra.mxu0 %v308
      %2184 = vmatprep.subr.mxu0 0.0
      %2185 = vmatpush1.msra.mxu0 %v309
      %2186 = vmatprep.subr.mxu0 0.0
      %2187 = vmatpush1.msra.mxu0 %v310
      %2188 = vmatprep.subr.mxu0 0.0
      %2189 = vmatpush1.msra.mxu0 %v311
      %2190 = vmatprep.subr.mxu0 0.0
      %2191 = vmatpush1.msra.mxu0 %v312
      %2192 = vmatprep.subr.mxu0 0.0
      %2193 = vmatpush1.msra.mxu0 %v313
      %2194 = vmatprep.subr.mxu0 0.0
      %2195 = vmatpush1.msra.mxu0 %v314
      %2196 = vmatprep.subr.mxu0 0.0
      %2197 = vmatpush1.msra.mxu0 %v315
      %2198 = vmatprep.subr.mxu0 0.0
      %2199 = vmatpush1.msra.mxu0 %v316
      %2200 = vmatprep.subr.mxu0 0.0
      %2201 = vmatpush1.msra.mxu0 %v317
      %2202 = vmatprep.subr.mxu0 0.0
      %2203 = vmatpush1.msra.mxu0 %v318
      %2204 = vmatprep.subr.mxu0 0.0
      %2205 = vmatpush1.msra.mxu0 %v319
      %2206 = vmatprep.subr.mxu0 0.0
      %2207 = vmatpush1.msra.mxu0 %v320
      %2208 = vmatprep.subr.mxu0 0.0
      %2209 = vmatpush1.msra.mxu0 %v321
      %2210 = vmatprep.subr.mxu0 0.0
      %2211 = vmatpush1.msra.mxu0 %v322
      %2212 = vmatprep.subr.mxu0 0.0
      %2213 = vmatpush1.msra.mxu0 %v323
      %2214 = vmatprep.subr.mxu0 0.0
      %2215 = vmatpush1.msra.mxu0 %v324
      %2216 = vmatprep.subr.mxu0 0.0
      %2217 = vmatpush1.msra.mxu0 %v325
      %2218 = vmatprep.subr.mxu0 0.0
      %2219 = vmatpush1.msra.mxu0 %v326
      %2220 = vmatprep.subr.mxu0 0.0
      %2221 = vmatpush1.msra.mxu0 %v327
      %2222 = vmatprep.subr.mxu0 0.0
      %2223 = vmatpush1.msra.mxu0 %v328
      %2224 = vmatprep.subr.mxu0 0.0
      %2225 = vmatpush1.msra.mxu0 %v329
      %2226 = vmatprep.subr.mxu0 0.0
      %2227 = vmatpush1.msra.mxu0 %v330
      %2228 = vmatprep.mubr.f32.mxu0 %v440
      %2229 = vmatmul.mubr.f32.gmra.mrb[0].mxu0 %v439
      %v2230 = vpop.f32.mrb[0].mxu0
      %v2231 = vadd.f32 %v2006, %v2230
      %v2232 = vpop.f32.mrb[0].mxu0
      %2233 = vmatprep.mubr.f32.mxu0 %v457
      %2234 = vmatmul.mubr.f32.gmra.mrb[0].mxu0 %v456
      %v2235 = vpop.f32.mrb[0].mxu0
      %v2236 = vadd.f32 %v2011, %v2235
      %v2237 = vpop.f32.mrb[0].mxu0
      %2238 = vmatprep.mubr.f32.mxu0 %v474
      %2239 = vmatmul.mubr.f32.gmra.mrb[0].mxu0 %v473
      %v2240 = vpop.f32.mrb[0].mxu0
      %v2241 = vadd.f32 %v2016, %v2240
      %v2242 = vpop.f32.mrb[0].mxu0
      %2243 = vmatprep.mubr.f32.mxu0 %v491
      %2244 = vmatmul.mubr.f32.gmra.mrb[0].mxu0 %v490
      %v2245 = vpop.f32.mrb[0].mxu0
      %v2246 = vadd.f32 %v2021, %v2245
      %v2247 = vpop.f32.mrb[0].mxu0
      %2248 = vmatprep.mubr.f32.mxu0 %v508
      %2249 = vmatmul.mubr.f32.gmra.mrb[0].mxu0 %v507
      %v2250 = vpop.f32.mrb[0].mxu0
      %v2251 = vadd.f32 %v2026, %v2250
      %v2252 = vpop.f32.mrb[0].mxu0
      %2253 = vmatprep.mubr.f32.mxu0 %v525
      %2254 = vmatmul.mubr.f32.gmra.mrb[0].mxu0 %v524
      %v2255 = vpop.f32.mrb[0].mxu0
      %v2256 = vadd.f32 %v2031, %v2255
      %v2257 = vpop.f32.mrb[0].mxu0
      %2258 = vmatprep.mubr.f32.mxu0 %v542
      %2259 = vmatmul.mubr.f32.gmra.mrb[0].mxu0 %v541
      %v2260 = vpop.f32.mrb[0].mxu0
      %v2261 = vadd.f32 %v2036, %v2260
      %v2262 = vpop.f32.mrb[0].mxu0
      %2263 = vmatprep.mubr.f32.mxu0 %v559
      %2264 = vmatmul.mubr.f32.gmra.mrb[0].mxu0 %v558
      %v2265 = vpop.f32.mrb[0].mxu0
      %v2266 = vadd.f32 %v2041, %v2265
      %v2267 = vpop.f32.mrb[0].mxu0
      %2268 = vmatprep.mubr.f32.mxu0 %v576
      %2269 = vmatmul.mubr.f32.gmra.mrb[0].mxu0 %v575
      %v2270 = vpop.f32.mrb[0].mxu0
      %v2271 = vadd.f32 %v2046, %v2270
      %v2272 = vpop.f32.mrb[0].mxu0
      %2273 = vmatprep.mubr.f32.mxu0 %v593
      %2274 = vmatmul.mubr.f32.gmra.mrb[0].mxu0 %v592
      %v2275 = vpop.f32.mrb[0].mxu0
      %v2276 = vadd.f32 %v2051, %v2275
      %v2277 = vpop.f32.mrb[0].mxu0
      %2278 = vmatprep.mubr.f32.mxu0 %v610
      %2279 = vmatmul.mubr.f32.gmra.mrb[0].mxu0 %v609
      %v2280 = vpop.f32.mrb[0].mxu0
      %v2281 = vadd.f32 %v2056, %v2280
      %v2282 = vpop.f32.mrb[0].mxu0
      %2283 = vmatprep.mubr.f32.mxu0 %v627
      %2284 = vmatmul.mubr.f32.gmra.mrb[0].mxu0 %v626
      %v2285 = vpop.f32.mrb[0].mxu0
      %v2286 = vadd.f32 %v2061, %v2285
      %v2287 = vpop.f32.mrb[0].mxu0
      %2288 = vmatprep.mubr.f32.mxu0 %v644
      %2289 = vmatmul.mubr.f32.gmra.mrb[0].mxu0 %v643
      %v2290 = vpop.f32.mrb[0].mxu0
      %v2291 = vadd.f32 %v2066, %v2290
      %v2292 = vpop.f32.mrb[0].mxu0
      %2293 = vmatprep.mubr.f32.mxu0 %v661
      %2294 = vmatmul.mubr.f32.gmra.mrb[0].mxu0 %v660
      %v2295 = vpop.f32.mrb[0].mxu0
      %v2296 = vadd.f32 %v2071, %v2295
      %v2297 = vpop.f32.mrb[0].mxu0
      %2298 = vmatprep.mubr.f32.mxu0 %v678
      %2299 = vmatmul.mubr.f32.gmra.mrb[0].mxu0 %v677
      %v2300 = vpop.f32.mrb[0].mxu0
      %v2301 = vadd.f32 %v2076, %v2300
      %v2302 = vpop.f32.mrb[0].mxu0
      %2303 = vmatprep.mubr.f32.mxu0 %v695
      %2304 = vmatmul.mubr.f32.gmra.mrb[0].mxu0 %v694
      %v2305 = vpop.f32.mrb[0].mxu0
      %v2306 = vadd.f32 %v2081, %v2305
      %v2307 = vpop.f32.mrb[0].mxu0
      %2308 = vmatprep.mubr.f32.mxu0 %v712
      %2309 = vmatmul.mubr.f32.gmra.mrb[0].mxu0 %v711
      %v2310 = vpop.f32.mrb[0].mxu0
      %v2311 = vadd.f32 %v2086, %v2310
      %v2312 = vpop.f32.mrb[0].mxu0
      %2313 = vmatprep.mubr.f32.mxu0 %v729
      %2314 = vmatmul.mubr.f32.gmra.mrb[0].mxu0 %v728
      %v2315 = vpop.f32.mrb[0].mxu0
      %v2316 = vadd.f32 %v2091, %v2315
      %v2317 = vpop.f32.mrb[0].mxu0
      %2318 = vmatprep.mubr.f32.mxu0 %v746
      %2319 = vmatmul.mubr.f32.gmra.mrb[0].mxu0 %v745
      %v2320 = vpop.f32.mrb[0].mxu0
      %v2321 = vadd.f32 %v2096, %v2320
      %v2322 = vpop.f32.mrb[0].mxu0
      %2323 = vmatprep.mubr.f32.mxu0 %v763
      %2324 = vmatmul.mubr.f32.gmra.mrb[0].mxu0 %v762
      %v2325 = vpop.f32.mrb[0].mxu0
      %v2326 = vadd.f32 %v2101, %v2325
      %v2327 = vpop.f32.mrb[0].mxu0
      %2328 = vmatprep.mubr.f32.mxu0 %v780
      %2329 = vmatmul.mubr.f32.gmra.mrb[0].mxu0 %v779
      %v2330 = vpop.f32.mrb[0].mxu0
      %v2331 = vadd.f32 %v2106, %v2330
      %v2332 = vpop.f32.mrb[0].mxu0
      %2333 = vmatprep.mubr.f32.mxu0 %v797
      %2334 = vmatmul.mubr.f32.gmra.mrb[0].mxu0 %v796
      %v2335 = vpop.f32.mrb[0].mxu0
      %v2336 = vadd.f32 %v2111, %v2335
      %v2337 = vpop.f32.mrb[0].mxu0
      %2338 = vmatprep.mubr.f32.mxu0 %v814
      %2339 = vmatmul.mubr.f32.gmra.mrb[0].mxu0 %v813
      %v2340 = vpop.f32.mrb[0].mxu0
      %v2341 = vadd.f32 %v2116, %v2340
      %v2342 = vpop.f32.mrb[0].mxu0
      %2343 = vmatprep.mubr.f32.mxu0 %v831
      %2344 = vmatmul.mubr.f32.gmra.mrb[0].mxu0 %v830
      %v2345 = vpop.f32.mrb[0].mxu0
      %v2346 = vadd.f32 %v2121, %v2345
      %v2347 = vpop.f32.mrb[0].mxu0
      %2348 = vmatprep.mubr.f32.mxu0 %v848
      %2349 = vmatmul.mubr.f32.gmra.mrb[0].mxu0 %v847
      %v2350 = vpop.f32.mrb[0].mxu0
      %v2351 = vadd.f32 %v2126, %v2350
      %v2352 = vpop.f32.mrb[0].mxu0
      %2353 = vmatprep.mubr.f32.mxu0 %v865
      %2354 = vmatmul.mubr.f32.gmra.mrb[0].mxu0 %v864
      %v2355 = vpop.f32.mrb[0].mxu0
      %v2356 = vadd.f32 %v2131, %v2355
      %v2357 = vpop.f32.mrb[0].mxu0
      %2358 = vmatprep.mubr.f32.mxu0 %v882
      %2359 = vmatmul.mubr.f32.gmra.mrb[0].mxu0 %v881
      %v2360 = vpop.f32.mrb[0].mxu0
      %v2361 = vadd.f32 %v2136, %v2360
      %v2362 = vpop.f32.mrb[0].mxu0
      %2363 = vmatprep.mubr.f32.mxu0 %v899
      %2364 = vmatmul.mubr.f32.gmra.mrb[0].mxu0 %v898
      %v2365 = vpop.f32.mrb[0].mxu0
      %v2366 = vadd.f32 %v2141, %v2365
      %v2367 = vpop.f32.mrb[0].mxu0
      %2368 = vmatprep.mubr.f32.mxu0 %v916
      %2369 = vmatmul.mubr.f32.gmra.mrb[0].mxu0 %v915
      %v2370 = vpop.f32.mrb[0].mxu0
      %v2371 = vadd.f32 %v2146, %v2370
      %v2372 = vpop.f32.mrb[0].mxu0
      %2373 = vmatprep.mubr.f32.mxu0 %v933
      %2374 = vmatmul.mubr.f32.gmra.mrb[0].mxu0 %v932
      %v2375 = vpop.f32.mrb[0].mxu0
      %v2376 = vadd.f32 %v2151, %v2375
      %v2377 = vpop.f32.mrb[0].mxu0
      %2378 = vmatprep.mubr.f32.mxu0 %v950
      %2379 = vmatmul.mubr.f32.gmra.mrb[0].mxu0 %v949
      %v2380 = vpop.f32.mrb[0].mxu0
      %v2381 = vadd.f32 %v2156, %v2380
      %v2382 = vpop.f32.mrb[0].mxu0
      %2383 = vmatprep.mubr.f32.mxu0 %v967
      %2384 = vmatmul.mubr.f32.gmra.mrb[0].mxu0 %v966
      %v2385 = vpop.f32.mrb[0].mxu0
      %v2386 = vadd.f32 %v2161, %v2385
      %v2387 = vpop.f32.mrb[0].mxu0
      %2388 = vdwg.mxu0
      %2389 = vmatprep.subr.mxu0 0.0
      %2390 = vmatpush1.msra.mxu0 %v331
      %2391 = vmatprep.subr.mxu0 0.0
      %2392 = vmatpush1.msra.mxu0 %v332
      %2393 = vmatprep.subr.mxu0 0.0
      %2394 = vmatpush1.msra.mxu0 %v333
      %2395 = vmatprep.subr.mxu0 0.0
      %2396 = vmatpush1.msra.mxu0 %v334
      %2397 = vmatprep.subr.mxu0 0.0
      %2398 = vmatpush1.msra.mxu0 %v335
      %2399 = vmatprep.subr.mxu0 0.0
      %2400 = vmatpush1.msra.mxu0 %v336
      %2401 = vmatprep.subr.mxu0 0.0
      %2402 = vmatpush1.msra.mxu0 %v337
      %2403 = vmatprep.subr.mxu0 0.0
      %2404 = vmatpush1.msra.mxu0 %v338
      %2405 = vmatprep.subr.mxu0 0.0
      %2406 = vmatpush1.msra.mxu0 %v339
      %2407 = vmatprep.subr.mxu0 0.0
      %2408 = vmatpush1.msra.mxu0 %v340
      %2409 = vmatprep.subr.mxu0 0.0
      %2410 = vmatpush1.msra.mxu0 %v341
      %2411 = vmatprep.subr.mxu0 0.0
      %2412 = vmatpush1.msra.mxu0 %v342
      %2413 = vmatprep.subr.mxu0 0.0
      %2414 = vmatpush1.msra.mxu0 %v343
      %2415 = vmatprep.subr.mxu0 0.0
      %2416 = vmatpush1.msra.mxu0 %v344
      %2417 = vmatprep.subr.mxu0 0.0
      %2418 = vmatpush1.msra.mxu0 %v345
      %2419 = vmatprep.subr.mxu0 0.0
      %2420 = vmatpush1.msra.mxu0 %v346
      %2421 = vmatprep.subr.mxu0 0.0
      %2422 = vmatpush1.msra.mxu0 %v347
      %2423 = vmatprep.subr.mxu0 0.0
      %2424 = vmatpush1.msra.mxu0 %v348
      %2425 = vmatprep.subr.mxu0 0.0
      %2426 = vmatpush1.msra.mxu0 %v349
      %2427 = vmatprep.subr.mxu0 0.0
      %2428 = vmatpush1.msra.mxu0 %v350
      %2429 = vmatprep.subr.mxu0 0.0
      %2430 = vmatpush1.msra.mxu0 %v351
      %2431 = vmatprep.subr.mxu0 0.0
      %2432 = vmatpush1.msra.mxu0 %v352
      %2433 = vmatprep.subr.mxu0 0.0
      %2434 = vmatpush1.msra.mxu0 %v353
      %2435 = vmatprep.subr.mxu0 0.0
      %2436 = vmatpush1.msra.mxu0 %v354
      %2437 = vmatprep.subr.mxu0 0.0
      %2438 = vmatpush1.msra.mxu0 %v355
      %2439 = vmatprep.subr.mxu0 0.0
      %2440 = vmatpush1.msra.mxu0 %v356
      %2441 = vmatprep.subr.mxu0 0.0
      %2442 = vmatpush1.msra.mxu0 %v357
      %2443 = vmatprep.subr.mxu0 0.0
      %2444 = vmatpush1.msra.mxu0 %v358
      %2445 = vmatprep.subr.mxu0 0.0
      %2446 = vmatpush1.msra.mxu0 %v359
      %2447 = vmatprep.subr.mxu0 0.0
      %2448 = vmatpush1.msra.mxu0 %v360
      %2449 = vmatprep.subr.mxu0 0.0
      %2450 = vmatpush1.msra.mxu0 %v361
      %2451 = vmatprep.subr.mxu0 0.0
      %2452 = vmatpush1.msra.mxu0 %v362
      %2453 = vmatprep.mubr.f32.mxu0 %v442
      %2454 = vmatmul.mubr.f32.gmra.mrb[0].mxu0 %v441
      %v2455 = vpop.f32.mrb[0].mxu0
      %v2456 = vadd.f32 %v2231, %v2455
      %v2457 = vpop.f32.mrb[0].mxu0
      %2458 = vmatprep.mubr.f32.mxu0 %v459
      %2459 = vmatmul.mubr.f32.gmra.mrb[0].mxu0 %v458
      %v2460 = vpop.f32.mrb[0].mxu0
      %v2461 = vadd.f32 %v2236, %v2460
      %v2462 = vpop.f32.mrb[0].mxu0
      %2463 = vmatprep.mubr.f32.mxu0 %v476
      %2464 = vmatmul.mubr.f32.gmra.mrb[0].mxu0 %v475
      %v2465 = vpop.f32.mrb[0].mxu0
      %v2466 = vadd.f32 %v2241, %v2465
      %v2467 = vpop.f32.mrb[0].mxu0
      %2468 = vmatprep.mubr.f32.mxu0 %v493
      %2469 = vmatmul.mubr.f32.gmra.mrb[0].mxu0 %v492
      %v2470 = vpop.f32.mrb[0].mxu0
      %v2471 = vadd.f32 %v2246, %v2470
      %v2472 = vpop.f32.mrb[0].mxu0
      %2473 = vmatprep.mubr.f32.mxu0 %v510
      %2474 = vmatmul.mubr.f32.gmra.mrb[0].mxu0 %v509
      %v2475 = vpop.f32.mrb[0].mxu0
      %v2476 = vadd.f32 %v2251, %v2475
      %v2477 = vpop.f32.mrb[0].mxu0
      %2478 = vmatprep.mubr.f32.mxu0 %v527
      %2479 = vmatmul.mubr.f32.gmra.mrb[0].mxu0 %v526
      %v2480 = vpop.f32.mrb[0].mxu0
      %v2481 = vadd.f32 %v2256, %v2480
      %v2482 = vpop.f32.mrb[0].mxu0
      %2483 = vmatprep.mubr.f32.mxu0 %v544
      %2484 = vmatmul.mubr.f32.gmra.mrb[0].mxu0 %v543
      %v2485 = vpop.f32.mrb[0].mxu0
      %v2486 = vadd.f32 %v2261, %v2485
      %v2487 = vpop.f32.mrb[0].mxu0
      %2488 = vmatprep.mubr.f32.mxu0 %v561
      %2489 = vmatmul.mubr.f32.gmra.mrb[0].mxu0 %v560
      %v2490 = vpop.f32.mrb[0].mxu0
      %v2491 = vadd.f32 %v2266, %v2490
      %v2492 = vpop.f32.mrb[0].mxu0
      %2493 = vmatprep.mubr.f32.mxu0 %v578
      %2494 = vmatmul.mubr.f32.gmra.mrb[0].mxu0 %v577
      %v2495 = vpop.f32.mrb[0].mxu0
      %v2496 = vadd.f32 %v2271, %v2495
      %v2497 = vpop.f32.mrb[0].mxu0
      %2498 = vmatprep.mubr.f32.mxu0 %v595
      %2499 = vmatmul.mubr.f32.gmra.mrb[0].mxu0 %v594
      %v2500 = vpop.f32.mrb[0].mxu0
      %v2501 = vadd.f32 %v2276, %v2500
      %v2502 = vpop.f32.mrb[0].mxu0
      %2503 = vmatprep.mubr.f32.mxu0 %v612
      %2504 = vmatmul.mubr.f32.gmra.mrb[0].mxu0 %v611
      %v2505 = vpop.f32.mrb[0].mxu0
      %v2506 = vadd.f32 %v2281, %v2505
      %v2507 = vpop.f32.mrb[0].mxu0
      %2508 = vmatprep.mubr.f32.mxu0 %v629
      %2509 = vmatmul.mubr.f32.gmra.mrb[0].mxu0 %v628
      %v2510 = vpop.f32.mrb[0].mxu0
      %v2511 = vadd.f32 %v2286, %v2510
      %v2512 = vpop.f32.mrb[0].mxu0
      %2513 = vmatprep.mubr.f32.mxu0 %v646
      %2514 = vmatmul.mubr.f32.gmra.mrb[0].mxu0 %v645
      %v2515 = vpop.f32.mrb[0].mxu0
      %v2516 = vadd.f32 %v2291, %v2515
      %v2517 = vpop.f32.mrb[0].mxu0
      %2518 = vmatprep.mubr.f32.mxu0 %v663
      %2519 = vmatmul.mubr.f32.gmra.mrb[0].mxu0 %v662
      %v2520 = vpop.f32.mrb[0].mxu0
      %v2521 = vadd.f32 %v2296, %v2520
      %v2522 = vpop.f32.mrb[0].mxu0
      %2523 = vmatprep.mubr.f32.mxu0 %v680
      %2524 = vmatmul.mubr.f32.gmra.mrb[0].mxu0 %v679
      %v2525 = vpop.f32.mrb[0].mxu0
      %v2526 = vadd.f32 %v2301, %v2525
      %v2527 = vpop.f32.mrb[0].mxu0
      %2528 = vmatprep.mubr.f32.mxu0 %v697
      %2529 = vmatmul.mubr.f32.gmra.mrb[0].mxu0 %v696
      %v2530 = vpop.f32.mrb[0].mxu0
      %v2531 = vadd.f32 %v2306, %v2530
      %v2532 = vpop.f32.mrb[0].mxu0
      %2533 = vmatprep.mubr.f32.mxu0 %v714
      %2534 = vmatmul.mubr.f32.gmra.mrb[0].mxu0 %v713
      %v2535 = vpop.f32.mrb[0].mxu0
      %v2536 = vadd.f32 %v2311, %v2535
      %v2537 = vpop.f32.mrb[0].mxu0
      %2538 = vmatprep.mubr.f32.mxu0 %v731
      %2539 = vmatmul.mubr.f32.gmra.mrb[0].mxu0 %v730
      %v2540 = vpop.f32.mrb[0].mxu0
      %v2541 = vadd.f32 %v2316, %v2540
      %v2542 = vpop.f32.mrb[0].mxu0
      %2543 = vmatprep.mubr.f32.mxu0 %v748
      %2544 = vmatmul.mubr.f32.gmra.mrb[0].mxu0 %v747
      %v2545 = vpop.f32.mrb[0].mxu0
      %v2546 = vadd.f32 %v2321, %v2545
      %v2547 = vpop.f32.mrb[0].mxu0
      %2548 = vmatprep.mubr.f32.mxu0 %v765
      %2549 = vmatmul.mubr.f32.gmra.mrb[0].mxu0 %v764
      %v2550 = vpop.f32.mrb[0].mxu0
      %v2551 = vadd.f32 %v2326, %v2550
      %v2552 = vpop.f32.mrb[0].mxu0
      %2553 = vmatprep.mubr.f32.mxu0 %v782
      %2554 = vmatmul.mubr.f32.gmra.mrb[0].mxu0 %v781
      %v2555 = vpop.f32.mrb[0].mxu0
      %v2556 = vadd.f32 %v2331, %v2555
      %v2557 = vpop.f32.mrb[0].mxu0
      %2558 = vmatprep.mubr.f32.mxu0 %v799
      %2559 = vmatmul.mubr.f32.gmra.mrb[0].mxu0 %v798
      %v2560 = vpop.f32.mrb[0].mxu0
      %v2561 = vadd.f32 %v2336, %v2560
      %v2562 = vpop.f32.mrb[0].mxu0
      %2563 = vmatprep.mubr.f32.mxu0 %v816
      %2564 = vmatmul.mubr.f32.gmra.mrb[0].mxu0 %v815
      %v2565 = vpop.f32.mrb[0].mxu0
      %v2566 = vadd.f32 %v2341, %v2565
      %v2567 = vpop.f32.mrb[0].mxu0
      %2568 = vmatprep.mubr.f32.mxu0 %v833
      %2569 = vmatmul.mubr.f32.gmra.mrb[0].mxu0 %v832
      %v2570 = vpop.f32.mrb[0].mxu0
      %v2571 = vadd.f32 %v2346, %v2570
      %v2572 = vpop.f32.mrb[0].mxu0
      %2573 = vmatprep.mubr.f32.mxu0 %v850
      %2574 = vmatmul.mubr.f32.gmra.mrb[0].mxu0 %v849
      %v2575 = vpop.f32.mrb[0].mxu0
      %v2576 = vadd.f32 %v2351, %v2575
      %v2577 = vpop.f32.mrb[0].mxu0
      %2578 = vmatprep.mubr.f32.mxu0 %v867
      %2579 = vmatmul.mubr.f32.gmra.mrb[0].mxu0 %v866
      %v2580 = vpop.f32.mrb[0].mxu0
      %v2581 = vadd.f32 %v2356, %v2580
      %v2582 = vpop.f32.mrb[0].mxu0
      %2583 = vmatprep.mubr.f32.mxu0 %v884
      %2584 = vmatmul.mubr.f32.gmra.mrb[0].mxu0 %v883
      %v2585 = vpop.f32.mrb[0].mxu0
      %v2586 = vadd.f32 %v2361, %v2585
      %v2587 = vpop.f32.mrb[0].mxu0
      %2588 = vmatprep.mubr.f32.mxu0 %v901
      %2589 = vmatmul.mubr.f32.gmra.mrb[0].mxu0 %v900
      %v2590 = vpop.f32.mrb[0].mxu0
      %v2591 = vadd.f32 %v2366, %v2590
      %v2592 = vpop.f32.mrb[0].mxu0
      %2593 = vmatprep.mubr.f32.mxu0 %v918
      %2594 = vmatmul.mubr.f32.gmra.mrb[0].mxu0 %v917
      %v2595 = vpop.f32.mrb[0].mxu0
      %v2596 = vadd.f32 %v2371, %v2595
      %v2597 = vpop.f32.mrb[0].mxu0
      %2598 = vmatprep.mubr.f32.mxu0 %v935
      %2599 = vmatmul.mubr.f32.gmra.mrb[0].mxu0 %v934
      %v2600 = vpop.f32.mrb[0].mxu0
      %v2601 = vadd.f32 %v2376, %v2600
      %v2602 = vpop.f32.mrb[0].mxu0
      %2603 = vmatprep.mubr.f32.mxu0 %v952
      %2604 = vmatmul.mubr.f32.gmra.mrb[0].mxu0 %v951
      %v2605 = vpop.f32.mrb[0].mxu0
      %v2606 = vadd.f32 %v2381, %v2605
      %v2607 = vpop.f32.mrb[0].mxu0
      %2608 = vmatprep.mubr.f32.mxu0 %v969
      %2609 = vmatmul.mubr.f32.gmra.mrb[0].mxu0 %v968
      %v2610 = vpop.f32.mrb[0].mxu0
      %v2611 = vadd.f32 %v2386, %v2610
      %v2612 = vpop.f32.mrb[0].mxu0
      %2613 = vdwg.mxu0
      %2614 = vmatprep.subr.mxu0 0.0
      %2615 = vmatpush1.msra.mxu0 %v363
      %2616 = vmatprep.subr.mxu0 0.0
      %2617 = vmatpush1.msra.mxu0 %v364
      %2618 = vmatprep.subr.mxu0 0.0
      %2619 = vmatpush1.msra.mxu0 %v365
      %2620 = vmatprep.subr.mxu0 0.0
      %2621 = vmatpush1.msra.mxu0 %v366
      %2622 = vmatprep.subr.mxu0 0.0
      %2623 = vmatpush1.msra.mxu0 %v367
      %2624 = vmatprep.subr.mxu0 0.0
      %2625 = vmatpush1.msra.mxu0 %v368
      %2626 = vmatprep.subr.mxu0 0.0
      %2627 = vmatpush1.msra.mxu0 %v369
      %2628 = vmatprep.subr.mxu0 0.0
      %2629 = vmatpush1.msra.mxu0 %v370
      %2630 = vmatprep.subr.mxu0 0.0
      %2631 = vmatpush1.msra.mxu0 %v371
      %2632 = vmatprep.subr.mxu0 0.0
      %2633 = vmatpush1.msra.mxu0 %v372
      %2634 = vmatprep.subr.mxu0 0.0
      %2635 = vmatpush1.msra.mxu0 %v373
      %2636 = vmatprep.subr.mxu0 0.0
      %2637 = vmatpush1.msra.mxu0 %v374
      %2638 = vmatprep.subr.mxu0 0.0
      %2639 = vmatpush1.msra.mxu0 %v375
      %2640 = vmatprep.subr.mxu0 0.0
      %2641 = vmatpush1.msra.mxu0 %v376
      %2642 = vmatprep.subr.mxu0 0.0
      %2643 = vmatpush1.msra.mxu0 %v377
      %2644 = vmatprep.subr.mxu0 0.0
      %2645 = vmatpush1.msra.mxu0 %v378
      %2646 = vmatprep.subr.mxu0 0.0
      %2647 = vmatpush1.msra.mxu0 %v379
      %2648 = vmatprep.subr.mxu0 0.0
      %2649 = vmatpush1.msra.mxu0 %v380
      %2650 = vmatprep.subr.mxu0 0.0
      %2651 = vmatpush1.msra.mxu0 %v381
      %2652 = vmatprep.subr.mxu0 0.0
      %2653 = vmatpush1.msra.mxu0 %v382
      %2654 = vmatprep.subr.mxu0 0.0
      %2655 = vmatpush1.msra.mxu0 %v383
      %2656 = vmatprep.subr.mxu0 0.0
      %2657 = vmatpush1.msra.mxu0 %v384
      %2658 = vmatprep.subr.mxu0 0.0
      %2659 = vmatpush1.msra.mxu0 %v385
      %2660 = vmatprep.subr.mxu0 0.0
      %2661 = vmatpush1.msra.mxu0 %v386
      %2662 = vmatprep.subr.mxu0 0.0
      %2663 = vmatpush1.msra.mxu0 %v387
      %2664 = vmatprep.subr.mxu0 0.0
      %2665 = vmatpush1.msra.mxu0 %v388
      %2666 = vmatprep.subr.mxu0 0.0
      %2667 = vmatpush1.msra.mxu0 %v389
      %2668 = vmatprep.subr.mxu0 0.0
      %2669 = vmatpush1.msra.mxu0 %v390
      %2670 = vmatprep.subr.mxu0 0.0
      %2671 = vmatpush1.msra.mxu0 %v391
      %2672 = vmatprep.subr.mxu0 0.0
      %2673 = vmatpush1.msra.mxu0 %v392
      %2674 = vmatprep.subr.mxu0 0.0
      %2675 = vmatpush1.msra.mxu0 %v393
      %2676 = vmatprep.subr.mxu0 0.0
      %2677 = vmatpush1.msra.mxu0 %v394
      %2678 = vmatprep.mubr.f32.mxu0 %v444
      %2679 = vmatmul.mubr.f32.gmra.mrb[0].mxu0 %v443
      %v2680 = vpop.f32.mrb[0].mxu0
      %v2681 = vadd.f32 %v2456, %v2680
      %v2682 = vpop.f32.mrb[0].mxu0
      %2683 = vmatprep.mubr.f32.mxu0 %v461
      %2684 = vmatmul.mubr.f32.gmra.mrb[0].mxu0 %v460
      %v2685 = vpop.f32.mrb[0].mxu0
      %v2686 = vadd.f32 %v2461, %v2685
      %v2687 = vpop.f32.mrb[0].mxu0
      %2688 = vmatprep.mubr.f32.mxu0 %v478
      %2689 = vmatmul.mubr.f32.gmra.mrb[0].mxu0 %v477
      %v2690 = vpop.f32.mrb[0].mxu0
      %v2691 = vadd.f32 %v2466, %v2690
      %v2692 = vpop.f32.mrb[0].mxu0
      %2693 = vmatprep.mubr.f32.mxu0 %v495
      %2694 = vmatmul.mubr.f32.gmra.mrb[0].mxu0 %v494
      %v2695 = vpop.f32.mrb[0].mxu0
      %v2696 = vadd.f32 %v2471, %v2695
      %v2697 = vpop.f32.mrb[0].mxu0
      %2698 = vmatprep.mubr.f32.mxu0 %v512
      %2699 = vmatmul.mubr.f32.gmra.mrb[0].mxu0 %v511
      %v2700 = vpop.f32.mrb[0].mxu0
      %v2701 = vadd.f32 %v2476, %v2700
      %v2702 = vpop.f32.mrb[0].mxu0
      %2703 = vmatprep.mubr.f32.mxu0 %v529
      %2704 = vmatmul.mubr.f32.gmra.mrb[0].mxu0 %v528
      %v2705 = vpop.f32.mrb[0].mxu0
      %v2706 = vadd.f32 %v2481, %v2705
      %v2707 = vpop.f32.mrb[0].mxu0
      %2708 = vmatprep.mubr.f32.mxu0 %v546
      %2709 = vmatmul.mubr.f32.gmra.mrb[0].mxu0 %v545
      %v2710 = vpop.f32.mrb[0].mxu0
      %v2711 = vadd.f32 %v2486, %v2710
      %v2712 = vpop.f32.mrb[0].mxu0
      %2713 = vmatprep.mubr.f32.mxu0 %v563
      %2714 = vmatmul.mubr.f32.gmra.mrb[0].mxu0 %v562
      %v2715 = vpop.f32.mrb[0].mxu0
      %v2716 = vadd.f32 %v2491, %v2715
      %v2717 = vpop.f32.mrb[0].mxu0
      %2718 = vmatprep.mubr.f32.mxu0 %v580
      %2719 = vmatmul.mubr.f32.gmra.mrb[0].mxu0 %v579
      %v2720 = vpop.f32.mrb[0].mxu0
      %v2721 = vadd.f32 %v2496, %v2720
      %v2722 = vpop.f32.mrb[0].mxu0
      %2723 = vmatprep.mubr.f32.mxu0 %v597
      %2724 = vmatmul.mubr.f32.gmra.mrb[0].mxu0 %v596
      %v2725 = vpop.f32.mrb[0].mxu0
      %v2726 = vadd.f32 %v2501, %v2725
      %v2727 = vpop.f32.mrb[0].mxu0
      %2728 = vmatprep.mubr.f32.mxu0 %v614
      %2729 = vmatmul.mubr.f32.gmra.mrb[0].mxu0 %v613
      %v2730 = vpop.f32.mrb[0].mxu0
      %v2731 = vadd.f32 %v2506, %v2730
      %v2732 = vpop.f32.mrb[0].mxu0
      %2733 = vmatprep.mubr.f32.mxu0 %v631
      %2734 = vmatmul.mubr.f32.gmra.mrb[0].mxu0 %v630
      %v2735 = vpop.f32.mrb[0].mxu0
      %v2736 = vadd.f32 %v2511, %v2735
      %v2737 = vpop.f32.mrb[0].mxu0
      %2738 = vmatprep.mubr.f32.mxu0 %v648
      %2739 = vmatmul.mubr.f32.gmra.mrb[0].mxu0 %v647
      %v2740 = vpop.f32.mrb[0].mxu0
      %v2741 = vadd.f32 %v2516, %v2740
      %v2742 = vpop.f32.mrb[0].mxu0
      %2743 = vmatprep.mubr.f32.mxu0 %v665
      %2744 = vmatmul.mubr.f32.gmra.mrb[0].mxu0 %v664
      %v2745 = vpop.f32.mrb[0].mxu0
      %v2746 = vadd.f32 %v2521, %v2745
      %v2747 = vpop.f32.mrb[0].mxu0
      %2748 = vmatprep.mubr.f32.mxu0 %v682
      %2749 = vmatmul.mubr.f32.gmra.mrb[0].mxu0 %v681
      %v2750 = vpop.f32.mrb[0].mxu0
      %v2751 = vadd.f32 %v2526, %v2750
      %v2752 = vpop.f32.mrb[0].mxu0
      %2753 = vmatprep.mubr.f32.mxu0 %v699
      %2754 = vmatmul.mubr.f32.gmra.mrb[0].mxu0 %v698
      %v2755 = vpop.f32.mrb[0].mxu0
      %v2756 = vadd.f32 %v2531, %v2755
      %v2757 = vpop.f32.mrb[0].mxu0
      %2758 = vmatprep.mubr.f32.mxu0 %v716
      %2759 = vmatmul.mubr.f32.gmra.mrb[0].mxu0 %v715
      %v2760 = vpop.f32.mrb[0].mxu0
      %v2761 = vadd.f32 %v2536, %v2760
      %v2762 = vpop.f32.mrb[0].mxu0
      %2763 = vmatprep.mubr.f32.mxu0 %v733
      %2764 = vmatmul.mubr.f32.gmra.mrb[0].mxu0 %v732
      %v2765 = vpop.f32.mrb[0].mxu0
      %v2766 = vadd.f32 %v2541, %v2765
      %v2767 = vpop.f32.mrb[0].mxu0
      %2768 = vmatprep.mubr.f32.mxu0 %v750
      %2769 = vmatmul.mubr.f32.gmra.mrb[0].mxu0 %v749
      %v2770 = vpop.f32.mrb[0].mxu0
      %v2771 = vadd.f32 %v2546, %v2770
      %v2772 = vpop.f32.mrb[0].mxu0
      %2773 = vmatprep.mubr.f32.mxu0 %v767
      %2774 = vmatmul.mubr.f32.gmra.mrb[0].mxu0 %v766
      %v2775 = vpop.f32.mrb[0].mxu0
      %v2776 = vadd.f32 %v2551, %v2775
      %v2777 = vpop.f32.mrb[0].mxu0
      %2778 = vmatprep.mubr.f32.mxu0 %v784
      %2779 = vmatmul.mubr.f32.gmra.mrb[0].mxu0 %v783
      %v2780 = vpop.f32.mrb[0].mxu0
      %v2781 = vadd.f32 %v2556, %v2780
      %v2782 = vpop.f32.mrb[0].mxu0
      %2783 = vmatprep.mubr.f32.mxu0 %v801
      %2784 = vmatmul.mubr.f32.gmra.mrb[0].mxu0 %v800
      %v2785 = vpop.f32.mrb[0].mxu0
      %v2786 = vadd.f32 %v2561, %v2785
      %v2787 = vpop.f32.mrb[0].mxu0
      %2788 = vmatprep.mubr.f32.mxu0 %v818
      %2789 = vmatmul.mubr.f32.gmra.mrb[0].mxu0 %v817
      %v2790 = vpop.f32.mrb[0].mxu0
      %v2791 = vadd.f32 %v2566, %v2790
      %v2792 = vpop.f32.mrb[0].mxu0
      %2793 = vmatprep.mubr.f32.mxu0 %v835
      %2794 = vmatmul.mubr.f32.gmra.mrb[0].mxu0 %v834
      %v2795 = vpop.f32.mrb[0].mxu0
      %v2796 = vadd.f32 %v2571, %v2795
      %v2797 = vpop.f32.mrb[0].mxu0
      %2798 = vmatprep.mubr.f32.mxu0 %v852
      %2799 = vmatmul.mubr.f32.gmra.mrb[0].mxu0 %v851
      %v2800 = vpop.f32.mrb[0].mxu0
      %v2801 = vadd.f32 %v2576, %v2800
      %v2802 = vpop.f32.mrb[0].mxu0
      %2803 = vmatprep.mubr.f32.mxu0 %v869
      %2804 = vmatmul.mubr.f32.gmra.mrb[0].mxu0 %v868
      %v2805 = vpop.f32.mrb[0].mxu0
      %v2806 = vadd.f32 %v2581, %v2805
      %v2807 = vpop.f32.mrb[0].mxu0
      %2808 = vmatprep.mubr.f32.mxu0 %v886
      %2809 = vmatmul.mubr.f32.gmra.mrb[0].mxu0 %v885
      %v2810 = vpop.f32.mrb[0].mxu0
      %v2811 = vadd.f32 %v2586, %v2810
      %v2812 = vpop.f32.mrb[0].mxu0
      %2813 = vmatprep.mubr.f32.mxu0 %v903
      %2814 = vmatmul.mubr.f32.gmra.mrb[0].mxu0 %v902
      %v2815 = vpop.f32.mrb[0].mxu0
      %v2816 = vadd.f32 %v2591, %v2815
      %v2817 = vpop.f32.mrb[0].mxu0
      %2818 = vmatprep.mubr.f32.mxu0 %v920
      %2819 = vmatmul.mubr.f32.gmra.mrb[0].mxu0 %v919
      %v2820 = vpop.f32.mrb[0].mxu0
      %v2821 = vadd.f32 %v2596, %v2820
      %v2822 = vpop.f32.mrb[0].mxu0
      %2823 = vmatprep.mubr.f32.mxu0 %v937
      %2824 = vmatmul.mubr.f32.gmra.mrb[0].mxu0 %v936
      %v2825 = vpop.f32.mrb[0].mxu0
      %v2826 = vadd.f32 %v2601, %v2825
      %v2827 = vpop.f32.mrb[0].mxu0
      %2828 = vmatprep.mubr.f32.mxu0 %v954
      %2829 = vmatmul.mubr.f32.gmra.mrb[0].mxu0 %v953
      %v2830 = vpop.f32.mrb[0].mxu0
      %v2831 = vadd.f32 %v2606, %v2830
      %v2832 = vpop.f32.mrb[0].mxu0
      %2833 = vmatprep.mubr.f32.mxu0 %v971
      %2834 = vmatmul.mubr.f32.gmra.mrb[0].mxu0 %v970
      %v2835 = vpop.f32.mrb[0].mxu0
      %v2836 = vadd.f32 %v2611, %v2835
      %v2837 = vpop.f32.mrb[0].mxu0
      %2838 = vdwg.mxu0
      %2839 = vmatprep.subr.mxu0 0.0
      %2840 = vmatpush1.msra.mxu0 %v395
      %2841 = vmatprep.subr.mxu0 0.0
      %2842 = vmatpush1.msra.mxu0 %v396
      %2843 = vmatprep.subr.mxu0 0.0
      %2844 = vmatpush1.msra.mxu0 %v397
      %2845 = vmatprep.subr.mxu0 0.0
      %2846 = vmatpush1.msra.mxu0 %v398
      %2847 = vmatprep.subr.mxu0 0.0
      %2848 = vmatpush1.msra.mxu0 %v399
      %2849 = vmatprep.subr.mxu0 0.0
      %2850 = vmatpush1.msra.mxu0 %v400
      %2851 = vmatprep.subr.mxu0 0.0
      %2852 = vmatpush1.msra.mxu0 %v401
      %2853 = vmatprep.subr.mxu0 0.0
      %2854 = vmatpush1.msra.mxu0 %v402
      %2855 = vmatprep.subr.mxu0 0.0
      %2856 = vmatpush1.msra.mxu0 %v403
      %2857 = vmatprep.subr.mxu0 0.0
      %2858 = vmatpush1.msra.mxu0 %v404
      %2859 = vmatprep.subr.mxu0 0.0
      %2860 = vmatpush1.msra.mxu0 %v405
      %2861 = vmatprep.subr.mxu0 0.0
      %2862 = vmatpush1.msra.mxu0 %v406
      %2863 = vmatprep.subr.mxu0 0.0
      %2864 = vmatpush1.msra.mxu0 %v407
      %2865 = vmatprep.subr.mxu0 0.0
      %2866 = vmatpush1.msra.mxu0 %v408
      %2867 = vmatprep.subr.mxu0 0.0
      %2868 = vmatpush1.msra.mxu0 %v409
      %2869 = vmatprep.subr.mxu0 0.0
      %2870 = vmatpush1.msra.mxu0 %v410
      %2871 = vmatprep.subr.mxu0 0.0
      %2872 = vmatpush1.msra.mxu0 %v411
      %2873 = vmatprep.subr.mxu0 0.0
      %2874 = vmatpush1.msra.mxu0 %v412
      %2875 = vmatprep.subr.mxu0 0.0
      %2876 = vmatpush1.msra.mxu0 %v413
      %2877 = vmatprep.subr.mxu0 0.0
      %2878 = vmatpush1.msra.mxu0 %v414
      %2879 = vmatprep.subr.mxu0 0.0
      %2880 = vmatpush1.msra.mxu0 %v415
      %2881 = vmatprep.subr.mxu0 0.0
      %2882 = vmatpush1.msra.mxu0 %v416
      %2883 = vmatprep.subr.mxu0 0.0
      %2884 = vmatpush1.msra.mxu0 %v417
      %2885 = vmatprep.subr.mxu0 0.0
      %2886 = vmatpush1.msra.mxu0 %v418
      %2887 = vmatprep.subr.mxu0 0.0
      %2888 = vmatpush1.msra.mxu0 %v419
      %2889 = vmatprep.subr.mxu0 0.0
      %2890 = vmatpush1.msra.mxu0 %v420
      %2891 = vmatprep.subr.mxu0 0.0
      %2892 = vmatpush1.msra.mxu0 %v421
      %2893 = vmatprep.subr.mxu0 0.0
      %2894 = vmatpush1.msra.mxu0 %v422
      %2895 = vmatprep.subr.mxu0 0.0
      %2896 = vmatpush1.msra.mxu0 %v423
      %2897 = vmatprep.subr.mxu0 0.0
      %2898 = vmatpush1.msra.mxu0 %v424
      %2899 = vmatprep.subr.mxu0 0.0
      %2900 = vmatpush1.msra.mxu0 %v425
      %2901 = vmatprep.subr.mxu0 0.0
      %2902 = vmatpush1.msra.mxu0 %v426
      %2903 = vmatprep.mubr.f32.mxu0 %v446
      %2904 = vmatmul.mubr.f32.gmra.mrb[0].mxu0 %v445
      %v2905 = vpop.f32.mrb[0].mxu0
      %v2906 = vadd.f32 %v2681, %v2905
      %v2907 = vpop.f32.mrb[0].mxu0
      %2908 = vmatprep.mubr.f32.mxu0 %v463
      %2909 = vmatmul.mubr.f32.gmra.mrb[0].mxu0 %v462
      %v2910 = vpop.f32.mrb[0].mxu0
      %v2911 = vadd.f32 %v2686, %v2910
      %v2912 = vpop.f32.mrb[0].mxu0
      %2913 = vmatprep.mubr.f32.mxu0 %v480
      %2914 = vmatmul.mubr.f32.gmra.mrb[0].mxu0 %v479
      %v2915 = vpop.f32.mrb[0].mxu0
      %v2916 = vadd.f32 %v2691, %v2915
      %v2917 = vpop.f32.mrb[0].mxu0
      %2918 = vmatprep.mubr.f32.mxu0 %v497
      %2919 = vmatmul.mubr.f32.gmra.mrb[0].mxu0 %v496
      %v2920 = vpop.f32.mrb[0].mxu0
      %v2921 = vadd.f32 %v2696, %v2920
      %v2922 = vpop.f32.mrb[0].mxu0
      %2923 = vmatprep.mubr.f32.mxu0 %v514
      %2924 = vmatmul.mubr.f32.gmra.mrb[0].mxu0 %v513
      %v2925 = vpop.f32.mrb[0].mxu0
      %v2926 = vadd.f32 %v2701, %v2925
      %v2927 = vpop.f32.mrb[0].mxu0
      %2928 = vmatprep.mubr.f32.mxu0 %v531
      %2929 = vmatmul.mubr.f32.gmra.mrb[0].mxu0 %v530
      %v2930 = vpop.f32.mrb[0].mxu0
      %v2931 = vadd.f32 %v2706, %v2930
      %v2932 = vpop.f32.mrb[0].mxu0
      %2933 = vmatprep.mubr.f32.mxu0 %v548
      %2934 = vmatmul.mubr.f32.gmra.mrb[0].mxu0 %v547
      %v2935 = vpop.f32.mrb[0].mxu0
      %v2936 = vadd.f32 %v2711, %v2935
      %v2937 = vpop.f32.mrb[0].mxu0
      %2938 = vmatprep.mubr.f32.mxu0 %v565
      %2939 = vmatmul.mubr.f32.gmra.mrb[0].mxu0 %v564
      %v2940 = vpop.f32.mrb[0].mxu0
      %v2941 = vadd.f32 %v2716, %v2940
      %v2942 = vpop.f32.mrb[0].mxu0
      %2943 = vmatprep.mubr.f32.mxu0 %v582
      %2944 = vmatmul.mubr.f32.gmra.mrb[0].mxu0 %v581
      %v2945 = vpop.f32.mrb[0].mxu0
      %v2946 = vadd.f32 %v2721, %v2945
      %v2947 = vpop.f32.mrb[0].mxu0
      %2948 = vmatprep.mubr.f32.mxu0 %v599
      %2949 = vmatmul.mubr.f32.gmra.mrb[0].mxu0 %v598
      %v2950 = vpop.f32.mrb[0].mxu0
      %v2951 = vadd.f32 %v2726, %v2950
      %v2952 = vpop.f32.mrb[0].mxu0
      %2953 = vmatprep.mubr.f32.mxu0 %v616
      %2954 = vmatmul.mubr.f32.gmra.mrb[0].mxu0 %v615
      %v2955 = vpop.f32.mrb[0].mxu0
      %v2956 = vadd.f32 %v2731, %v2955
      %v2957 = vpop.f32.mrb[0].mxu0
      %2958 = vmatprep.mubr.f32.mxu0 %v633
      %2959 = vmatmul.mubr.f32.gmra.mrb[0].mxu0 %v632
      %v2960 = vpop.f32.mrb[0].mxu0
      %v2961 = vadd.f32 %v2736, %v2960
      %v2962 = vpop.f32.mrb[0].mxu0
      %2963 = vmatprep.mubr.f32.mxu0 %v650
      %2964 = vmatmul.mubr.f32.gmra.mrb[0].mxu0 %v649
      %v2965 = vpop.f32.mrb[0].mxu0
      %v2966 = vadd.f32 %v2741, %v2965
      %v2967 = vpop.f32.mrb[0].mxu0
      %2968 = vmatprep.mubr.f32.mxu0 %v667
      %2969 = vmatmul.mubr.f32.gmra.mrb[0].mxu0 %v666
      %v2970 = vpop.f32.mrb[0].mxu0
      %v2971 = vadd.f32 %v2746, %v2970
      %v2972 = vpop.f32.mrb[0].mxu0
      %2973 = vmatprep.mubr.f32.mxu0 %v684
      %2974 = vmatmul.mubr.f32.gmra.mrb[0].mxu0 %v683
      %v2975 = vpop.f32.mrb[0].mxu0
      %v2976 = vadd.f32 %v2751, %v2975
      %v2977 = vpop.f32.mrb[0].mxu0
      %2978 = vmatprep.mubr.f32.mxu0 %v701
      %2979 = vmatmul.mubr.f32.gmra.mrb[0].mxu0 %v700
      %v2980 = vpop.f32.mrb[0].mxu0
      %v2981 = vadd.f32 %v2756, %v2980
      %v2982 = vpop.f32.mrb[0].mxu0
      %2983 = vmatprep.mubr.f32.mxu0 %v718
      %2984 = vmatmul.mubr.f32.gmra.mrb[0].mxu0 %v717
      %v2985 = vpop.f32.mrb[0].mxu0
      %v2986 = vadd.f32 %v2761, %v2985
      %v2987 = vpop.f32.mrb[0].mxu0
      %2988 = vmatprep.mubr.f32.mxu0 %v735
      %2989 = vmatmul.mubr.f32.gmra.mrb[0].mxu0 %v734
      %v2990 = vpop.f32.mrb[0].mxu0
      %v2991 = vadd.f32 %v2766, %v2990
      %v2992 = vpop.f32.mrb[0].mxu0
      %2993 = vmatprep.mubr.f32.mxu0 %v752
      %2994 = vmatmul.mubr.f32.gmra.mrb[0].mxu0 %v751
      %v2995 = vpop.f32.mrb[0].mxu0
      %v2996 = vadd.f32 %v2771, %v2995
      %v2997 = vpop.f32.mrb[0].mxu0
      %2998 = vmatprep.mubr.f32.mxu0 %v769
      %2999 = vmatmul.mubr.f32.gmra.mrb[0].mxu0 %v768
      %v3000 = vpop.f32.mrb[0].mxu0
      %v3001 = vadd.f32 %v2776, %v3000
      %v3002 = vpop.f32.mrb[0].mxu0
      %3003 = vmatprep.mubr.f32.mxu0 %v786
      %3004 = vmatmul.mubr.f32.gmra.mrb[0].mxu0 %v785
      %v3005 = vpop.f32.mrb[0].mxu0
      %v3006 = vadd.f32 %v2781, %v3005
      %v3007 = vpop.f32.mrb[0].mxu0
      %3008 = vmatprep.mubr.f32.mxu0 %v803
      %3009 = vmatmul.mubr.f32.gmra.mrb[0].mxu0 %v802
      %v3010 = vpop.f32.mrb[0].mxu0
      %v3011 = vadd.f32 %v2786, %v3010
      %v3012 = vpop.f32.mrb[0].mxu0
      %3013 = vmatprep.mubr.f32.mxu0 %v820
      %3014 = vmatmul.mubr.f32.gmra.mrb[0].mxu0 %v819
      %v3015 = vpop.f32.mrb[0].mxu0
      %v3016 = vadd.f32 %v2791, %v3015
      %v3017 = vpop.f32.mrb[0].mxu0
      %3018 = vmatprep.mubr.f32.mxu0 %v837
      %3019 = vmatmul.mubr.f32.gmra.mrb[0].mxu0 %v836
      %v3020 = vpop.f32.mrb[0].mxu0
      %v3021 = vadd.f32 %v2796, %v3020
      %v3022 = vpop.f32.mrb[0].mxu0
      %3023 = vmatprep.mubr.f32.mxu0 %v854
      %3024 = vmatmul.mubr.f32.gmra.mrb[0].mxu0 %v853
      %v3025 = vpop.f32.mrb[0].mxu0
      %v3026 = vadd.f32 %v2801, %v3025
      %v3027 = vpop.f32.mrb[0].mxu0
      %3028 = vmatprep.mubr.f32.mxu0 %v871
      %3029 = vmatmul.mubr.f32.gmra.mrb[0].mxu0 %v870
      %v3030 = vpop.f32.mrb[0].mxu0
      %v3031 = vadd.f32 %v2806, %v3030
      %v3032 = vpop.f32.mrb[0].mxu0
      %3033 = vmatprep.mubr.f32.mxu0 %v888
      %3034 = vmatmul.mubr.f32.gmra.mrb[0].mxu0 %v887
      %v3035 = vpop.f32.mrb[0].mxu0
      %v3036 = vadd.f32 %v2811, %v3035
      %v3037 = vpop.f32.mrb[0].mxu0
      %3038 = vmatprep.mubr.f32.mxu0 %v905
      %3039 = vmatmul.mubr.f32.gmra.mrb[0].mxu0 %v904
      %v3040 = vpop.f32.mrb[0].mxu0
      %v3041 = vadd.f32 %v2816, %v3040
      %v3042 = vpop.f32.mrb[0].mxu0
      %3043 = vmatprep.mubr.f32.mxu0 %v922
      %3044 = vmatmul.mubr.f32.gmra.mrb[0].mxu0 %v921
      %v3045 = vpop.f32.mrb[0].mxu0
      %v3046 = vadd.f32 %v2821, %v3045
      %v3047 = vpop.f32.mrb[0].mxu0
      %3048 = vmatprep.mubr.f32.mxu0 %v939
      %3049 = vmatmul.mubr.f32.gmra.mrb[0].mxu0 %v938
      %v3050 = vpop.f32.mrb[0].mxu0
      %v3051 = vadd.f32 %v2826, %v3050
      %v3052 = vpop.f32.mrb[0].mxu0
      %3053 = vmatprep.mubr.f32.mxu0 %v956
      %3054 = vmatmul.mubr.f32.gmra.mrb[0].mxu0 %v955
      %v3055 = vpop.f32.mrb[0].mxu0
      %v3056 = vadd.f32 %v2831, %v3055
      %v3057 = vpop.f32.mrb[0].mxu0
      %3058 = vmatprep.mubr.f32.mxu0 %v973
      %3059 = vmatmul.mubr.f32.gmra.mrb[0].mxu0 %v972
      %v3060 = vpop.f32.mrb[0].mxu0
      %v3061 = vadd.f32 %v2836, %v3060
      %v3062 = vpop.f32.mrb[0].mxu0
      %3063 = vdwg.mxu0
      %3064 = vmatprep.subr.mxu0 0.0
      %3065 = vmatpush1.msra.mxu0 %v427
      %3066 = vmatprep.subr.mxu0 0.0
      %3067 = vmatpush1.msra.mxu0 %v428
      %3068 = vmatprep.subr.mxu0 0.0
      %3069 = vmatpush1.msra.mxu0 %v429
      %3070 = vmatprep.subr.mxu0 0.0
      %3071 = vmatpush1.msra.mxu0 %v430
      %3072 = vmatprep.subr.mxu0 0.0
      %3073 = vmatpush1.msra.mxu0 0.0
      %3074 = vmatprep.subr.mxu0 0.0
      %3075 = vmatpush1.msra.mxu0 0.0
      %3076 = vmatprep.subr.mxu0 0.0
      %3077 = vmatpush1.msra.mxu0 0.0
      %3078 = vmatprep.subr.mxu0 0.0
      %3079 = vmatpush1.msra.mxu0 0.0
      %3080 = vmatprep.subr.mxu0 0.0
      %3081 = vmatpush1.msra.mxu0 0.0
      %3082 = vmatprep.subr.mxu0 0.0
      %3083 = vmatpush1.msra.mxu0 0.0
      %3084 = vmatprep.subr.mxu0 0.0
      %3085 = vmatpush1.msra.mxu0 0.0
      %3086 = vmatprep.subr.mxu0 0.0
      %3087 = vmatpush1.msra.mxu0 0.0
      %3088 = vmatprep.subr.mxu0 0.0
      %3089 = vmatpush1.msra.mxu0 0.0
      %3090 = vmatprep.subr.mxu0 0.0
      %3091 = vmatpush1.msra.mxu0 0.0
      %3092 = vmatprep.subr.mxu0 0.0
      %3093 = vmatpush1.msra.mxu0 0.0
      %3094 = vmatprep.subr.mxu0 0.0
      %3095 = vmatpush1.msra.mxu0 0.0
      %3096 = vmatprep.subr.mxu0 0.0
      %3097 = vmatpush1.msra.mxu0 0.0
      %3098 = vmatprep.subr.mxu0 0.0
      %3099 = vmatpush1.msra.mxu0 0.0
      %3100 = vmatprep.subr.mxu0 0.0
      %3101 = vmatpush1.msra.mxu0 0.0
      %3102 = vmatprep.subr.mxu0 0.0
      %3103 = vmatpush1.msra.mxu0 0.0
      %3104 = vmatprep.subr.mxu0 0.0
      %3105 = vmatpush1.msra.mxu0 0.0
      %3106 = vmatprep.subr.mxu0 0.0
      %3107 = vmatpush1.msra.mxu0 0.0
      %3108 = vmatprep.subr.mxu0 0.0
      %3109 = vmatpush1.msra.mxu0 0.0
      %3110 = vmatprep.subr.mxu0 0.0
      %3111 = vmatpush1.msra.mxu0 0.0
      %3112 = vmatprep.subr.mxu0 0.0
      %3113 = vmatpush1.msra.mxu0 0.0
      %3114 = vmatprep.subr.mxu0 0.0
      %3115 = vmatpush1.msra.mxu0 0.0
      %3116 = vmatprep.subr.mxu0 0.0
      %3117 = vmatpush1.msra.mxu0 0.0
      %3118 = vmatprep.subr.mxu0 0.0
      %3119 = vmatpush1.msra.mxu0 0.0
      %3120 = vmatprep.subr.mxu0 0.0
      %3121 = vmatpush1.msra.mxu0 0.0
      %3122 = vmatprep.subr.mxu0 0.0
      %3123 = vmatpush1.msra.mxu0 0.0
      %3124 = vmatprep.subr.mxu0 0.0
      %3125 = vmatpush1.msra.mxu0 0.0
      %3126 = vmatprep.subr.mxu0 0.0
      %3127 = vmatpush1.msra.mxu0 0.0
      %3128 = vmatprep.mubr.f32.mxu0 0.0
      %3129 = vmatmul.mubr.f32.gmra.mrb[0].mxu0 %v1169
      %v3130 = vpop.f32.mrb[0].mxu0
      %v3131 = vadd.f32 %v2906, %v3130
      %v3132 = vpop.f32.mrb[0].mxu0
      %3133 = vmatprep.mubr.f32.mxu0 0.0
      %3134 = vmatmul.mubr.f32.gmra.mrb[0].mxu0 %v1172
      %v3135 = vpop.f32.mrb[0].mxu0
      %v3136 = vadd.f32 %v2911, %v3135
      %v3137 = vpop.f32.mrb[0].mxu0
      %3138 = vmatprep.mubr.f32.mxu0 0.0
      %3139 = vmatmul.mubr.f32.gmra.mrb[0].mxu0 %v1175
      %v3140 = vpop.f32.mrb[0].mxu0
      %v3141 = vadd.f32 %v2916, %v3140
      %v3142 = vpop.f32.mrb[0].mxu0
      %3143 = vmatprep.mubr.f32.mxu0 0.0
      %3144 = vmatmul.mubr.f32.gmra.mrb[0].mxu0 %v1178
      %v3145 = vpop.f32.mrb[0].mxu0
      %v3146 = vadd.f32 %v2921, %v3145
      %v3147 = vpop.f32.mrb[0].mxu0
      %3148 = vmatprep.mubr.f32.mxu0 0.0
      %3149 = vmatmul.mubr.f32.gmra.mrb[0].mxu0 %v1181
      %v3150 = vpop.f32.mrb[0].mxu0
      %v3151 = vadd.f32 %v2926, %v3150
      %v3152 = vpop.f32.mrb[0].mxu0
      %3153 = vmatprep.mubr.f32.mxu0 0.0
      %3154 = vmatmul.mubr.f32.gmra.mrb[0].mxu0 %v1184
      %v3155 = vpop.f32.mrb[0].mxu0
      %v3156 = vadd.f32 %v2931, %v3155
      %v3157 = vpop.f32.mrb[0].mxu0
      %3158 = vmatprep.mubr.f32.mxu0 0.0
      %3159 = vmatmul.mubr.f32.gmra.mrb[0].mxu0 %v1187
      %v3160 = vpop.f32.mrb[0].mxu0
      %v3161 = vadd.f32 %v2936, %v3160
      %v3162 = vpop.f32.mrb[0].mxu0
      %3163 = vmatprep.mubr.f32.mxu0 0.0
      %3164 = vmatmul.mubr.f32.gmra.mrb[0].mxu0 %v1190
      %v3165 = vpop.f32.mrb[0].mxu0
      %v3166 = vadd.f32 %v2941, %v3165
      %v3167 = vpop.f32.mrb[0].mxu0
      %3168 = vmatprep.mubr.f32.mxu0 0.0
      %3169 = vmatmul.mubr.f32.gmra.mrb[0].mxu0 %v1193
      %v3170 = vpop.f32.mrb[0].mxu0
      %v3171 = vadd.f32 %v2946, %v3170
      %v3172 = vpop.f32.mrb[0].mxu0
      %3173 = vmatprep.mubr.f32.mxu0 0.0
      %3174 = vmatmul.mubr.f32.gmra.mrb[0].mxu0 %v1196
      %v3175 = vpop.f32.mrb[0].mxu0
      %v3176 = vadd.f32 %v2951, %v3175
      %v3177 = vpop.f32.mrb[0].mxu0
      %3178 = vmatprep.mubr.f32.mxu0 0.0
      %3179 = vmatmul.mubr.f32.gmra.mrb[0].mxu0 %v1199
      %v3180 = vpop.f32.mrb[0].mxu0
      %v3181 = vadd.f32 %v2956, %v3180
      %v3182 = vpop.f32.mrb[0].mxu0
      %3183 = vmatprep.mubr.f32.mxu0 0.0
      %3184 = vmatmul.mubr.f32.gmra.mrb[0].mxu0 %v1202
      %v3185 = vpop.f32.mrb[0].mxu0
      %v3186 = vadd.f32 %v2961, %v3185
      %v3187 = vpop.f32.mrb[0].mxu0
      %3188 = vmatprep.mubr.f32.mxu0 0.0
      %3189 = vmatmul.mubr.f32.gmra.mrb[0].mxu0 %v1205
      %v3190 = vpop.f32.mrb[0].mxu0
      %v3191 = vadd.f32 %v2966, %v3190
      %v3192 = vpop.f32.mrb[0].mxu0
      %3193 = vmatprep.mubr.f32.mxu0 0.0
      %3194 = vmatmul.mubr.f32.gmra.mrb[0].mxu0 %v1208
      %v3195 = vpop.f32.mrb[0].mxu0
      %v3196 = vadd.f32 %v2971, %v3195
      %v3197 = vpop.f32.mrb[0].mxu0
      %3198 = vmatprep.mubr.f32.mxu0 0.0
      %3199 = vmatmul.mubr.f32.gmra.mrb[0].mxu0 %v1211
      %v3200 = vpop.f32.mrb[0].mxu0
      %v3201 = vadd.f32 %v2976, %v3200
      %v3202 = vpop.f32.mrb[0].mxu0
      %3203 = vmatprep.mubr.f32.mxu0 0.0
      %3204 = vmatmul.mubr.f32.gmra.mrb[0].mxu0 %v1214
      %v3205 = vpop.f32.mrb[0].mxu0
      %v3206 = vadd.f32 %v2981, %v3205
      %v3207 = vpop.f32.mrb[0].mxu0
      %3208 = vmatprep.mubr.f32.mxu0 0.0
      %3209 = vmatmul.mubr.f32.gmra.mrb[0].mxu0 %v1217
      %v3210 = vpop.f32.mrb[0].mxu0
      %v3211 = vadd.f32 %v2986, %v3210
      %v3212 = vpop.f32.mrb[0].mxu0
      %3213 = vmatprep.mubr.f32.mxu0 0.0
      %3214 = vmatmul.mubr.f32.gmra.mrb[0].mxu0 %v1220
      %v3215 = vpop.f32.mrb[0].mxu0
      %v3216 = vadd.f32 %v2991, %v3215
      %v3217 = vpop.f32.mrb[0].mxu0
      %3218 = vmatprep.mubr.f32.mxu0 0.0
      %3219 = vmatmul.mubr.f32.gmra.mrb[0].mxu0 %v1223
      %v3220 = vpop.f32.mrb[0].mxu0
      %v3221 = vadd.f32 %v2996, %v3220
      %v3222 = vpop.f32.mrb[0].mxu0
      %3223 = vmatprep.mubr.f32.mxu0 0.0
      %3224 = vmatmul.mubr.f32.gmra.mrb[0].mxu0 %v1226
      %v3225 = vpop.f32.mrb[0].mxu0
      %v3226 = vadd.f32 %v3001, %v3225
      %v3227 = vpop.f32.mrb[0].mxu0
      %3228 = vmatprep.mubr.f32.mxu0 0.0
      %3229 = vmatmul.mubr.f32.gmra.mrb[0].mxu0 %v1229
      %v3230 = vpop.f32.mrb[0].mxu0
      %v3231 = vadd.f32 %v3006, %v3230
      %v3232 = vpop.f32.mrb[0].mxu0
      %3233 = vmatprep.mubr.f32.mxu0 0.0
      %3234 = vmatmul.mubr.f32.gmra.mrb[0].mxu0 %v1232
      %v3235 = vpop.f32.mrb[0].mxu0
      %v3236 = vadd.f32 %v3011, %v3235
      %v3237 = vpop.f32.mrb[0].mxu0
      %3238 = vmatprep.mubr.f32.mxu0 0.0
      %3239 = vmatmul.mubr.f32.gmra.mrb[0].mxu0 %v1235
      %v3240 = vpop.f32.mrb[0].mxu0
      %v3241 = vadd.f32 %v3016, %v3240
      %v3242 = vpop.f32.mrb[0].mxu0
      %3243 = vmatprep.mubr.f32.mxu0 0.0
      %3244 = vmatmul.mubr.f32.gmra.mrb[0].mxu0 %v1238
      %v3245 = vpop.f32.mrb[0].mxu0
      %v3246 = vadd.f32 %v3021, %v3245
      %v3247 = vpop.f32.mrb[0].mxu0
      %3248 = vmatprep.mubr.f32.mxu0 0.0
      %3249 = vmatmul.mubr.f32.gmra.mrb[0].mxu0 %v1241
      %v3250 = vpop.f32.mrb[0].mxu0
      %v3251 = vadd.f32 %v3026, %v3250
      %v3252 = vpop.f32.mrb[0].mxu0
      %3253 = vmatprep.mubr.f32.mxu0 0.0
      %3254 = vmatmul.mubr.f32.gmra.mrb[0].mxu0 %v1244
      %v3255 = vpop.f32.mrb[0].mxu0
      %v3256 = vadd.f32 %v3031, %v3255
      %v3257 = vpop.f32.mrb[0].mxu0
      %3258 = vmatprep.mubr.f32.mxu0 0.0
      %3259 = vmatmul.mubr.f32.gmra.mrb[0].mxu0 %v1247
      %v3260 = vpop.f32.mrb[0].mxu0
      %v3261 = vadd.f32 %v3036, %v3260
      %v3262 = vpop.f32.mrb[0].mxu0
      %3263 = vmatprep.mubr.f32.mxu0 0.0
      %3264 = vmatmul.mubr.f32.gmra.mrb[0].mxu0 %v1250
      %v3265 = vpop.f32.mrb[0].mxu0
      %v3266 = vadd.f32 %v3041, %v3265
      %v3267 = vpop.f32.mrb[0].mxu0
      %3268 = vmatprep.mubr.f32.mxu0 0.0
      %3269 = vmatmul.mubr.f32.gmra.mrb[0].mxu0 %v1253
      %v3270 = vpop.f32.mrb[0].mxu0
      %v3271 = vadd.f32 %v3046, %v3270
      %v3272 = vpop.f32.mrb[0].mxu0
      %3273 = vmatprep.mubr.f32.mxu0 0.0
      %3274 = vmatmul.mubr.f32.gmra.mrb[0].mxu0 %v1256
      %v3275 = vpop.f32.mrb[0].mxu0
      %v3276 = vadd.f32 %v3051, %v3275
      %v3277 = vpop.f32.mrb[0].mxu0
      %3278 = vmatprep.mubr.f32.mxu0 0.0
      %3279 = vmatmul.mubr.f32.gmra.mrb[0].mxu0 %v1259
      %v3280 = vpop.f32.mrb[0].mxu0
      %v3281 = vadd.f32 %v3056, %v3280
      %v3282 = vpop.f32.mrb[0].mxu0
      %3283 = vmatprep.mubr.f32.mxu0 0.0
      %3284 = vmatmul.mubr.f32.gmra.mrb[0].mxu0 %v1262
      %v3285 = vpop.f32.mrb[0].mxu0
      %v3286 = vadd.f32 %v3061, %v3285
      %v3287 = vpop.f32.mrb[0].mxu0
      %3288 = vdwg.mxu0
      %v3289 = vmul.f32 %v3131, 0.5
      %v3290 = vmul.f32 %v3136, 0.5
      %v3291 = vmul.f32 %v3141, 0.5
      %v3292 = vmul.f32 %v3146, 0.5
      %v3293 = vmul.f32 %v3151, 0.5
      %v3294 = vmul.f32 %v3156, 0.5
      %v3295 = vmul.f32 %v3161, 0.5
      %v3296 = vmul.f32 %v3166, 0.5
      %v3297 = vmul.f32 %v3171, 0.5
      %v3298 = vmul.f32 %v3176, 0.5
      %v3299 = vmul.f32 %v3181, 0.5
      %v3300 = vmul.f32 %v3186, 0.5
      %v3301 = vmul.f32 %v3191, 0.5
      %v3302 = vmul.f32 %v3196, 0.5
      %v3303 = vmul.f32 %v3201, 0.5
      %v3304 = vmul.f32 %v3206, 0.5
      %v3305 = vmul.f32 %v3211, 0.5
      %v3306 = vmul.f32 %v3216, 0.5
      %v3307 = vmul.f32 %v3221, 0.5
      %v3308 = vmul.f32 %v3226, 0.5
      %v3309 = vmul.f32 %v3231, 0.5
      %v3310 = vmul.f32 %v3236, 0.5
      %v3311 = vmul.f32 %v3241, 0.5
      %v3312 = vmul.f32 %v3246, 0.5
      %v3313 = vmul.f32 %v3251, 0.5
      %v3314 = vmul.f32 %v3256, 0.5
      %v3315 = vmul.f32 %v3261, 0.5
      %v3316 = vmul.f32 %v3266, 0.5
      %v3317 = vmul.f32 %v3271, 0.5
      %v3318 = vmul.f32 %v3276, 0.5
      %v3319 = vmul.f32 %v3281, 0.5
      %v3320 = vmul.f32 %v3286, 0.5
      %v3321 = vtanh.pop %v3289
      %v3322 = vtanh.pop %v3290
      %v3323 = vtanh.pop %v3291
      %v3324 = vtanh.pop %v3292
      %v3325 = vtanh.pop %v3293
      %v3326 = vtanh.pop %v3294
      %v3327 = vtanh.pop %v3295
      %v3328 = vtanh.pop %v3296
      %v3329 = vtanh.pop %v3297
      %v3330 = vtanh.pop %v3298
      %v3331 = vtanh.pop %v3299
      %v3332 = vtanh.pop %v3300
      %v3333 = vtanh.pop %v3301
      %v3334 = vtanh.pop %v3302
      %v3335 = vtanh.pop %v3303
      %v3336 = vtanh.pop %v3304
      %v3337 = vtanh.pop %v3305
      %v3338 = vtanh.pop %v3306
      %v3339 = vtanh.pop %v3307
      %v3340 = vtanh.pop %v3308
      %v3341 = vtanh.pop %v3309
      %v3342 = vtanh.pop %v3310
      %v3343 = vtanh.pop %v3311
      %v3344 = vtanh.pop %v3312
      %v3345 = vtanh.pop %v3313
      %v3346 = vtanh.pop %v3314
      %v3347 = vtanh.pop %v3315
      %v3348 = vtanh.pop %v3316
      %v3349 = vtanh.pop %v3317
      %v3350 = vtanh.pop %v3318
      %v3351 = vtanh.pop %v3319
      %v3352 = vtanh.pop %v3320
      %v3353 = vmul.f32 %v3321, 0.5
      %v3354 = vmul.f32 %v3322, 0.5
      %v3355 = vmul.f32 %v3323, 0.5
      %v3356 = vmul.f32 %v3324, 0.5
      %v3357 = vmul.f32 %v3325, 0.5
      %v3358 = vmul.f32 %v3326, 0.5
      %v3359 = vmul.f32 %v3327, 0.5
      %v3360 = vmul.f32 %v3328, 0.5
      %v3361 = vmul.f32 %v3329, 0.5
      %v3362 = vmul.f32 %v3330, 0.5
      %v3363 = vmul.f32 %v3331, 0.5
      %v3364 = vmul.f32 %v3332, 0.5
      %v3365 = vmul.f32 %v3333, 0.5
      %v3366 = vmul.f32 %v3334, 0.5
      %v3367 = vmul.f32 %v3335, 0.5
      %v3368 = vmul.f32 %v3336, 0.5
      %v3369 = vmul.f32 %v3337, 0.5
      %v3370 = vmul.f32 %v3338, 0.5
      %v3371 = vmul.f32 %v3339, 0.5
      %v3372 = vmul.f32 %v3340, 0.5
      %v3373 = vmul.f32 %v3341, 0.5
      %v3374 = vmul.f32 %v3342, 0.5
      %v3375 = vmul.f32 %v3343, 0.5
      %v3376 = vmul.f32 %v3344, 0.5
      %v3377 = vmul.f32 %v3345, 0.5
      %v3378 = vmul.f32 %v3346, 0.5
      %v3379 = vmul.f32 %v3347, 0.5
      %v3380 = vmul.f32 %v3348, 0.5
      %v3381 = vmul.f32 %v3349, 0.5
      %v3382 = vmul.f32 %v3350, 0.5
      %v3383 = vmul.f32 %v3351, 0.5
      %v3384 = vmul.f32 %v3352, 0.5
      %v3385 = vadd.f32 %v3353, 0.5
      %v3386 = vadd.f32 %v3354, 0.5
      %v3387 = vadd.f32 %v3355, 0.5
      %v3388 = vadd.f32 %v3356, 0.5
      %v3389 = vadd.f32 %v3357, 0.5
      %v3390 = vadd.f32 %v3358, 0.5
      %v3391 = vadd.f32 %v3359, 0.5
      %v3392 = vadd.f32 %v3360, 0.5
      %v3393 = vadd.f32 %v3361, 0.5
      %v3394 = vadd.f32 %v3362, 0.5
      %v3395 = vadd.f32 %v3363, 0.5
      %v3396 = vadd.f32 %v3364, 0.5
      %v3397 = vadd.f32 %v3365, 0.5
      %v3398 = vadd.f32 %v3366, 0.5
      %v3399 = vadd.f32 %v3367, 0.5
      %v3400 = vadd.f32 %v3368, 0.5
      %v3401 = vadd.f32 %v3369, 0.5
      %v3402 = vadd.f32 %v3370, 0.5
      %v3403 = vadd.f32 %v3371, 0.5
      %v3404 = vadd.f32 %v3372, 0.5
      %v3405 = vadd.f32 %v3373, 0.5
      %v3406 = vadd.f32 %v3374, 0.5
      %v3407 = vadd.f32 %v3375, 0.5
      %v3408 = vadd.f32 %v3376, 0.5
      %v3409 = vadd.f32 %v3377, 0.5
      %v3410 = vadd.f32 %v3378, 0.5
      %v3411 = vadd.f32 %v3379, 0.5
      %v3412 = vadd.f32 %v3380, 0.5
      %v3413 = vadd.f32 %v3381, 0.5
      %v3414 = vadd.f32 %v3382, 0.5
      %v3415 = vadd.f32 %v3383, 0.5
      %v3416 = vadd.f32 %v3384, 0.5
      %v3417 = vmul.f32 %v3131, %v3385
      %v3418 = vmul.f32 %v3136, %v3386
      %v3419 = vmul.f32 %v3141, %v3387
      %v3420 = vmul.f32 %v3146, %v3388
      %v3421 = vmul.f32 %v3151, %v3389
      %v3422 = vmul.f32 %v3156, %v3390
      %v3423 = vmul.f32 %v3161, %v3391
      %v3424 = vmul.f32 %v3166, %v3392
      %v3425 = vmul.f32 %v3171, %v3393
      %v3426 = vmul.f32 %v3176, %v3394
      %v3427 = vmul.f32 %v3181, %v3395
      %v3428 = vmul.f32 %v3186, %v3396
      %v3429 = vmul.f32 %v3191, %v3397
      %v3430 = vmul.f32 %v3196, %v3398
      %v3431 = vmul.f32 %v3201, %v3399
      %v3432 = vmul.f32 %v3206, %v3400
      %v3433 = vmul.f32 %v3211, %v3401
      %v3434 = vmul.f32 %v3216, %v3402
      %v3435 = vmul.f32 %v3221, %v3403
      %v3436 = vmul.f32 %v3226, %v3404
      %v3437 = vmul.f32 %v3231, %v3405
      %v3438 = vmul.f32 %v3236, %v3406
      %v3439 = vmul.f32 %v3241, %v3407
      %v3440 = vmul.f32 %v3246, %v3408
      %v3441 = vmul.f32 %v3251, %v3409
      %v3442 = vmul.f32 %v3256, %v3410
      %v3443 = vmul.f32 %v3261, %v3411
      %v3444 = vmul.f32 %v3266, %v3412
      %v3445 = vmul.f32 %v3271, %v3413
      %v3446 = vmul.f32 %v3276, %v3414
      %v3447 = vmul.f32 %v3281, %v3415
      %v3448 = vmul.f32 %v3286, %v3416
      %vm3449 = vcmask 31744
      %v3450 = vsel %vm3449, %v3417, 0.0
      %v3451 = vsel %vm3449, %v3418, 0.0
      %v3452 = vadd.f32 %v3450, %v3451
      %v3453 = vsel %vm3449, %v3419, 0.0
      %v3454 = vadd.f32 %v3452, %v3453
      %v3455 = vsel %vm3449, %v3420, 0.0
      %v3456 = vadd.f32 %v3454, %v3455
      %v3457 = vsel %vm3449, %v3421, 0.0
      %v3458 = vadd.f32 %v3456, %v3457
      %v3459 = vsel %vm3449, %v3422, 0.0
      %v3460 = vadd.f32 %v3458, %v3459
      %v3461 = vsel %vm3449, %v3423, 0.0
      %v3462 = vadd.f32 %v3460, %v3461
      %v3463 = vsel %vm3449, %v3424, 0.0
      %v3464 = vadd.f32 %v3462, %v3463
      %v3465 = vsel %vm3449, %v3425, 0.0
      %v3466 = vadd.f32 %v3464, %v3465
      %v3467 = vsel %vm3449, %v3426, 0.0
      %v3468 = vadd.f32 %v3466, %v3467
      %v3469 = vsel %vm3449, %v3427, 0.0
      %v3470 = vadd.f32 %v3468, %v3469
      %v3471 = vsel %vm3449, %v3428, 0.0
      %v3472 = vadd.f32 %v3470, %v3471
      %v3473 = vsel %vm3449, %v3429, 0.0
      %v3474 = vadd.f32 %v3472, %v3473
      %v3475 = vsel %vm3449, %v3430, 0.0
      %v3476 = vadd.f32 %v3474, %v3475
      %v3477 = vsel %vm3449, %v3431, 0.0
      %v3478 = vadd.f32 %v3476, %v3477
      %v3479 = vsel %vm3449, %v3432, 0.0
      %v3480 = vadd.f32 %v3478, %v3479
      %v3481 = vsel %vm3449, %v3433, 0.0
      %v3482 = vadd.f32 %v3480, %v3481
      %v3483 = vsel %vm3449, %v3434, 0.0
      %v3484 = vadd.f32 %v3482, %v3483
      %v3485 = vsel %vm3449, %v3435, 0.0
      %v3486 = vadd.f32 %v3484, %v3485
      %v3487 = vsel %vm3449, %v3436, 0.0
      %v3488 = vadd.f32 %v3486, %v3487
      %v3489 = vsel %vm3449, %v3437, 0.0
      %v3490 = vadd.f32 %v3488, %v3489
      %v3491 = vsel %vm3449, %v3438, 0.0
      %v3492 = vadd.f32 %v3490, %v3491
      %v3493 = vsel %vm3449, %v3439, 0.0
      %v3494 = vadd.f32 %v3492, %v3493
      %v3495 = vsel %vm3449, %v3440, 0.0
      %v3496 = vadd.f32 %v3494, %v3495
      %v3497 = vsel %vm3449, %v3441, 0.0
      %v3498 = vadd.f32 %v3496, %v3497
      %v3499 = vsel %vm3449, %v3442, 0.0
      %v3500 = vadd.f32 %v3498, %v3499
      %v3501 = vsel %vm3449, %v3443, 0.0
      %v3502 = vadd.f32 %v3500, %v3501
      %v3503 = vsel %vm3449, %v3444, 0.0
      %v3504 = vadd.f32 %v3502, %v3503
      %v3505 = vsel %vm3449, %v3445, 0.0
      %v3506 = vadd.f32 %v3504, %v3505
      %v3507 = vsel %vm3449, %v3446, 0.0
      %v3508 = vadd.f32 %v3506, %v3507
      %v3509 = vsel %vm3449, %v3447, 0.0
      %v3510 = vadd.f32 %v3508, %v3509
      %v3511 = vsel %vm3449, %v3448, 0.0
      %v3512 = vadd.f32 %v3510, %v3511
      %v3513 = vrot.slane %v3512, 4
      %v3514 = vadd.f32 %v3512, %v3513
      %v3515 = vrot.slane %v3514, 2
      %v3516 = vadd.f32 %v3514, %v3515
      %v3517 = vrot.slane %v3516, 1
      %v3518 = vadd.f32 %v3516, %v3517
      %v3519 = vmul.f32 %v3417, %v3417
      %v3520 = vmul.f32 %v3418, %v3418
      %v3521 = vmul.f32 %v3419, %v3419
      %v3522 = vmul.f32 %v3420, %v3420
      %v3523 = vmul.f32 %v3421, %v3421
      %v3524 = vmul.f32 %v3422, %v3422
      %v3525 = vmul.f32 %v3423, %v3423
      %v3526 = vmul.f32 %v3424, %v3424
      %v3527 = vmul.f32 %v3425, %v3425
      %v3528 = vmul.f32 %v3426, %v3426
      %v3529 = vmul.f32 %v3427, %v3427
      %v3530 = vmul.f32 %v3428, %v3428
      %v3531 = vmul.f32 %v3429, %v3429
      %v3532 = vmul.f32 %v3430, %v3430
      %v3533 = vmul.f32 %v3431, %v3431
      %v3534 = vmul.f32 %v3432, %v3432
      %v3535 = vmul.f32 %v3433, %v3433
      %v3536 = vmul.f32 %v3434, %v3434
      %v3537 = vmul.f32 %v3435, %v3435
      %v3538 = vmul.f32 %v3436, %v3436
      %v3539 = vmul.f32 %v3437, %v3437
      %v3540 = vmul.f32 %v3438, %v3438
      %v3541 = vmul.f32 %v3439, %v3439
      %v3542 = vmul.f32 %v3440, %v3440
      %v3543 = vmul.f32 %v3441, %v3441
      %v3544 = vmul.f32 %v3442, %v3442
      %v3545 = vmul.f32 %v3443, %v3443
      %v3546 = vmul.f32 %v3444, %v3444
      %v3547 = vmul.f32 %v3445, %v3445
      %v3548 = vmul.f32 %v3446, %v3446
      %v3549 = vmul.f32 %v3447, %v3447
      %v3550 = vmul.f32 %v3448, %v3448
      %v3551 = vsel %vm3449, %v3519, 0.0
      %v3552 = vsel %vm3449, %v3520, 0.0
      %v3553 = vadd.f32 %v3551, %v3552
      %v3554 = vsel %vm3449, %v3521, 0.0
      %v3555 = vadd.f32 %v3553, %v3554
      %v3556 = vsel %vm3449, %v3522, 0.0
      %v3557 = vadd.f32 %v3555, %v3556
      %v3558 = vsel %vm3449, %v3523, 0.0
      %v3559 = vadd.f32 %v3557, %v3558
      %v3560 = vsel %vm3449, %v3524, 0.0
      %v3561 = vadd.f32 %v3559, %v3560
      %v3562 = vsel %vm3449, %v3525, 0.0
      %v3563 = vadd.f32 %v3561, %v3562
      %v3564 = vsel %vm3449, %v3526, 0.0
      %v3565 = vadd.f32 %v3563, %v3564
      %v3566 = vsel %vm3449, %v3527, 0.0
      %v3567 = vadd.f32 %v3565, %v3566
      %v3568 = vsel %vm3449, %v3528, 0.0
      %v3569 = vadd.f32 %v3567, %v3568
      %v3570 = vsel %vm3449, %v3529, 0.0
      %v3571 = vadd.f32 %v3569, %v3570
      %v3572 = vsel %vm3449, %v3530, 0.0
      %v3573 = vadd.f32 %v3571, %v3572
      %v3574 = vsel %vm3449, %v3531, 0.0
      %v3575 = vadd.f32 %v3573, %v3574
      %v3576 = vsel %vm3449, %v3532, 0.0
      %v3577 = vadd.f32 %v3575, %v3576
      %v3578 = vsel %vm3449, %v3533, 0.0
      %v3579 = vadd.f32 %v3577, %v3578
      %v3580 = vsel %vm3449, %v3534, 0.0
      %v3581 = vadd.f32 %v3579, %v3580
      %v3582 = vsel %vm3449, %v3535, 0.0
      %v3583 = vadd.f32 %v3581, %v3582
      %v3584 = vsel %vm3449, %v3536, 0.0
      %v3585 = vadd.f32 %v3583, %v3584
      %v3586 = vsel %vm3449, %v3537, 0.0
      %v3587 = vadd.f32 %v3585, %v3586
      %v3588 = vsel %vm3449, %v3538, 0.0
      %v3589 = vadd.f32 %v3587, %v3588
      %v3590 = vsel %vm3449, %v3539, 0.0
      %v3591 = vadd.f32 %v3589, %v3590
      %v3592 = vsel %vm3449, %v3540, 0.0
      %v3593 = vadd.f32 %v3591, %v3592
      %v3594 = vsel %vm3449, %v3541, 0.0
      %v3595 = vadd.f32 %v3593, %v3594
      %v3596 = vsel %vm3449, %v3542, 0.0
      %v3597 = vadd.f32 %v3595, %v3596
      %v3598 = vsel %vm3449, %v3543, 0.0
      %v3599 = vadd.f32 %v3597, %v3598
      %v3600 = vsel %vm3449, %v3544, 0.0
      %v3601 = vadd.f32 %v3599, %v3600
      %v3602 = vsel %vm3449, %v3545, 0.0
      %v3603 = vadd.f32 %v3601, %v3602
      %v3604 = vsel %vm3449, %v3546, 0.0
      %v3605 = vadd.f32 %v3603, %v3604
      %v3606 = vsel %vm3449, %v3547, 0.0
      %v3607 = vadd.f32 %v3605, %v3606
      %v3608 = vsel %vm3449, %v3548, 0.0
      %v3609 = vadd.f32 %v3607, %v3608
      %v3610 = vsel %vm3449, %v3549, 0.0
      %v3611 = vadd.f32 %v3609, %v3610
      %v3612 = vsel %vm3449, %v3550, 0.0
      %v3613 = vadd.f32 %v3611, %v3612
      %v3614 = vrot.slane %v3613, 4
      %v3615 = vadd.f32 %v3613, %v3614
      %v3616 = vrot.slane %v3615, 2
      %v3617 = vadd.f32 %v3615, %v3616
      %v3618 = vrot.slane %v3617, 1
      %v3619 = vadd.f32 %v3617, %v3618
      %v3620 = vsel %vm3449, %v3518, 0.0
      %3621 = vadd.xlane.f32.xlu0 %v3620
      %v3622 = vpop.xlane.xlu0 %3621
      %v3623 = vsel %vm3449, %v3619, 0.0
      %3624 = vadd.xlane.f32.xlu0 %v3623
      %v3625 = vpop.xlane.xlu0 %3624
      %v3626 = vmul.f32 %v3622, 0.0009765625
      %v3627 = vmul.f32 %v3625, 0.0009765625
      %v3628 = vmul.f32 %v3626, %v3626
      %v3629 = vsub.f32 %v3627, %v3628
      %v3630 = vadd.f32 %v3629, 1e-05
      %v3631 = vrsqrt.pop %v3630
      %v3632 = vsub.f32 %v3417, %v3626
      %v3633 = vsub.f32 %v3418, %v3626
      %v3634 = vsub.f32 %v3419, %v3626
      %v3635 = vsub.f32 %v3420, %v3626
      %v3636 = vsub.f32 %v3421, %v3626
      %v3637 = vsub.f32 %v3422, %v3626
      %v3638 = vsub.f32 %v3423, %v3626
      %v3639 = vsub.f32 %v3424, %v3626
      %v3640 = vsub.f32 %v3425, %v3626
      %v3641 = vsub.f32 %v3426, %v3626
      %v3642 = vsub.f32 %v3427, %v3626
      %v3643 = vsub.f32 %v3428, %v3626
      %v3644 = vsub.f32 %v3429, %v3626
      %v3645 = vsub.f32 %v3430, %v3626
      %v3646 = vsub.f32 %v3431, %v3626
      %v3647 = vsub.f32 %v3432, %v3626
      %v3648 = vsub.f32 %v3433, %v3626
      %v3649 = vsub.f32 %v3434, %v3626
      %v3650 = vsub.f32 %v3435, %v3626
      %v3651 = vsub.f32 %v3436, %v3626
      %v3652 = vsub.f32 %v3437, %v3626
      %v3653 = vsub.f32 %v3438, %v3626
      %v3654 = vsub.f32 %v3439, %v3626
      %v3655 = vsub.f32 %v3440, %v3626
      %v3656 = vsub.f32 %v3441, %v3626
      %v3657 = vsub.f32 %v3442, %v3626
      %v3658 = vsub.f32 %v3443, %v3626
      %v3659 = vsub.f32 %v3444, %v3626
      %v3660 = vsub.f32 %v3445, %v3626
      %v3661 = vsub.f32 %v3446, %v3626
      %v3662 = vsub.f32 %v3447, %v3626
      %v3663 = vsub.f32 %v3448, %v3626
      %v3664 = vmul.f32 %v3632, %v3631
      %v3665 = vmul.f32 %v3633, %v3631
      %v3666 = vmul.f32 %v3634, %v3631
      %v3667 = vmul.f32 %v3635, %v3631
      %v3668 = vmul.f32 %v3636, %v3631
      %v3669 = vmul.f32 %v3637, %v3631
      %v3670 = vmul.f32 %v3638, %v3631
      %v3671 = vmul.f32 %v3639, %v3631
      %v3672 = vmul.f32 %v3640, %v3631
      %v3673 = vmul.f32 %v3641, %v3631
      %v3674 = vmul.f32 %v3642, %v3631
      %v3675 = vmul.f32 %v3643, %v3631
      %v3676 = vmul.f32 %v3644, %v3631
      %v3677 = vmul.f32 %v3645, %v3631
      %v3678 = vmul.f32 %v3646, %v3631
      %v3679 = vmul.f32 %v3647, %v3631
      %v3680 = vmul.f32 %v3648, %v3631
      %v3681 = vmul.f32 %v3649, %v3631
      %v3682 = vmul.f32 %v3650, %v3631
      %v3683 = vmul.f32 %v3651, %v3631
      %v3684 = vmul.f32 %v3652, %v3631
      %v3685 = vmul.f32 %v3653, %v3631
      %v3686 = vmul.f32 %v3654, %v3631
      %v3687 = vmul.f32 %v3655, %v3631
      %v3688 = vmul.f32 %v3656, %v3631
      %v3689 = vmul.f32 %v3657, %v3631
      %v3690 = vmul.f32 %v3658, %v3631
      %v3691 = vmul.f32 %v3659, %v3631
      %v3692 = vmul.f32 %v3660, %v3631
      %v3693 = vmul.f32 %v3661, %v3631
      %v3694 = vmul.f32 %v3662, %v3631
      %v3695 = vmul.f32 %v3663, %v3631
      %3696 = vst.msk [vmem:[%s170] sm:$0xff] %vm3449, %v3664
      %3697 = vst.msk [vmem:[%s170 + $0x8] sm:$0xff] %vm3449, %v3665
      %3698 = vst.msk [vmem:[%s170 + $0x10] sm:$0xff] %vm3449, %v3666
      %3699 = vst.msk [vmem:[%s170 + $0x18] sm:$0xff] %vm3449, %v3667
      %3700 = vst.msk [vmem:[%s170 + $0x20] sm:$0xff] %vm3449, %v3668
      %3701 = vst.msk [vmem:[%s170 + $0x28] sm:$0xff] %vm3449, %v3669
      %3702 = vst.msk [vmem:[%s170 + $0x30] sm:$0xff] %vm3449, %v3670
      %3703 = vst.msk [vmem:[%s170 + $0x38] sm:$0xff] %vm3449, %v3671
      %3704 = vst.msk [vmem:[%s170 + $0x40] sm:$0xff] %vm3449, %v3672
      %3705 = vst.msk [vmem:[%s170 + $0x48] sm:$0xff] %vm3449, %v3673
      %3706 = vst.msk [vmem:[%s170 + $0x50] sm:$0xff] %vm3449, %v3674
      %3707 = vst.msk [vmem:[%s170 + $0x58] sm:$0xff] %vm3449, %v3675
      %3708 = vst.msk [vmem:[%s170 + $0x60] sm:$0xff] %vm3449, %v3676
      %3709 = vst.msk [vmem:[%s170 + $0x68] sm:$0xff] %vm3449, %v3677
      %3710 = vst.msk [vmem:[%s170 + $0x70] sm:$0xff] %vm3449, %v3678
      %3711 = vst.msk [vmem:[%s170 + $0x78] sm:$0xff] %vm3449, %v3679
      %3712 = vst.msk [vmem:[%s170 + $0x80] sm:$0xff] %vm3449, %v3680
      %3713 = vst.msk [vmem:[%s170 + $0x88] sm:$0xff] %vm3449, %v3681
      %3714 = vst.msk [vmem:[%s170 + $0x90] sm:$0xff] %vm3449, %v3682
      %3715 = vst.msk [vmem:[%s170 + $0x98] sm:$0xff] %vm3449, %v3683
      %3716 = vst.msk [vmem:[%s170 + $0xa0] sm:$0xff] %vm3449, %v3684
      %3717 = vst.msk [vmem:[%s170 + $0xa8] sm:$0xff] %vm3449, %v3685
      %3718 = vst.msk [vmem:[%s170 + $0xb0] sm:$0xff] %vm3449, %v3686
      %3719 = vst.msk [vmem:[%s170 + $0xb8] sm:$0xff] %vm3449, %v3687
      %3720 = vst.msk [vmem:[%s170 + $0xc0] sm:$0xff] %vm3449, %v3688
      %3721 = vst.msk [vmem:[%s170 + $0xc8] sm:$0xff] %vm3449, %v3689
      %3722 = vst.msk [vmem:[%s170 + $0xd0] sm:$0xff] %vm3449, %v3690
      %3723 = vst.msk [vmem:[%s170 + $0xd8] sm:$0xff] %vm3449, %v3691
      %3724 = vst.msk [vmem:[%s170 + $0xe0] sm:$0xff] %vm3449, %v3692
      %3725 = vst.msk [vmem:[%s170 + $0xe8] sm:$0xff] %vm3449, %v3693
      %3726 = vst.msk [vmem:[%s170 + $0xf0] sm:$0xff] %vm3449, %v3694
      %3727 = vst.msk [vmem:[%s170 + $0xf8] sm:$0xff] %vm3449, %v3695
      %p3728 = scmp.lt.s32.totalorder %s14, 1
      %s3729 = scalar_select %p3728, %s14, 1
      %s3730 = smul.addr %s3729, 32
      %s3731 = smul.addr %s3730, 8
      %s3732 = scalar_lea.vmem %s3, %s3731
      // Predicated region
      $region33: #{wm_encoder_forward.7} parent=31 // pred_check
        %p3733 = pneg %p100
      $region34: #{wm_encoder_forward.7} parent=31 // pred_check_branch
        %3735 = sbr.rel (%p3733) target = $region36
      $region35: #{wm_encoder_forward.7} parent=31 // pred_region
        _
      $region36: #{wm_encoder_forward.7} parent=31 // pred_fallthru
        _
    $region32: #{wm_encoder_forward.7} parent=5 // pred_fallthru
      _
    %p3736 = scmp.le.s32.totalorder 2, %s9
    // Predicated region
    $region37: #{wm_encoder_forward.7} parent=5 // pred_check
      %p3737 = pneg %p3736
    $region38: #{wm_encoder_forward.7} parent=5 // pred_check_branch
      %3739 = sbr.rel (%p3737) target = $region40
    $region39: #{wm_encoder_forward.7} parent=5 // pred_region
      %s3740 = ssub.s32 %s9, 2
      // Predicated region
      $region41: #{wm_encoder_forward.7} parent=39 // pred_check
        %p3741 = pneg %p106
      $region42: #{wm_encoder_forward.7} parent=39 // pred_check_branch
        %3743 = sbr.rel (%p3741) target = $region44
      $region43: #{wm_encoder_forward.7} parent=39 // pred_region
        %p3744 = scmp.lt.s32.totalorder %s15, 1
        %s3745 = scalar_select %p3744, %s15, 1
        %s3746 = smul.addr %s3745, 32
        %s3747 = smul.addr %s3746, 8
        %s3748 = scalar_lea.vmem %s3, %s3747
      $region44: #{wm_encoder_forward.7} parent=39 // pred_fallthru
        _
    $region40: #{wm_encoder_forward.7} parent=5 // pred_fallthru
      _
  $region6: #{wm_encoder_forward.7} parent=0 // loop_footer
    %s13 = sadd.s32 1, %s9
  $region7: #{wm_encoder_forward.7} parent=0 // loop_footer_branch
    %8 = sbr.rel target = $region3
  $region8: #{wm_encoder_forward.7} parent=0 // loop_exit
    _

</llo_original>
